<compile_context>
chip_gen: v5e
topology: v5e:2x2
jax: 0.10.0
libtpu: 0.0.40
codegen_flags: <defaults>
</compile_context>

<pallas_src>
import numpy as np
import jax
import jax.numpy as jnp
from jax.experimental import pallas as pl
from jax.experimental.pallas import tpu as pltpu

_IMG = 28  # MnistNet always decodes to a 28x28 image.


# ------------------------------ Pallas kernel -------------------------------

def _elu(x):
    # ELU(alpha=1): x if x > 0 else exp(x) - 1  (f32 VPU/EUP epilogue).
    # (expm1 would be marginally more accurate for tiny negatives; exp-1 is
    #  well within the validation tolerance and lowers cleanly.)
    return jnp.where(x > 0.0, x, jnp.exp(jnp.minimum(x, 0.0)) - 1.0)


def _mnist_kernel(x_ref, w0_ref, b0_ref,
                  g1_ref, c1_ref, g2_ref, c2_ref, g3_ref, c3_ref,
                  o_ref):
    # Linear(in_dim, 32) + tanh: a single small MXU matmul, f32 throughout.
    h = jnp.tanh(
        jnp.dot(x_ref[...], w0_ref[...], preferred_element_type=jnp.float32)
        + b0_ref[...])                                         # (bb, 32)

    def convt_elu(act, g_ref, c_ref):
        # ConvTranspose2d + bias + ELU == one dense matmul on the flattened
        # (H*W*C) axis.  Activations are cast to bf16 exactly once per layer;
        # accumulation stays f32 on the MXU (uninterrupted single-dot chain).
        acc = jnp.dot(act.astype(jnp.bfloat16), g_ref[...],
                      preferred_element_type=jnp.float32) + c_ref[...]
        return _elu(acc)

    a1 = convt_elu(h,  g1_ref, c1_ref)    # (bb, 512)   5*5*16  -> 128-padded
    a2 = convt_elu(a1, g2_ref, c2_ref)    # (bb, 1920)  15*15*8 -> 128-padded
    a3 = convt_elu(a2, g3_ref, c3_ref)    # (bb, 896)   28*28*1 -> 128-padded

    # One dense, lane-aligned store of the whole block (no per-batch slices).
    o_ref[...] = a3


def mnist_net_forward(x, packed):
    """x: (B, in_dim) float32 -> (B, 28, 28) float32, one fused Pallas kernel."""
    batch, in_dim = x.shape
    assert in_dim == packed["w0t"].shape[0], "in_dimension mismatch with packed params"
    p_out = packed["g3"].shape[1]                       # 896 (= 28*28 padded to 128)

    # Batch block: prefer sublane-aligned multiples of 8; packed weights are
    # batch independent, so any batch works with the same params.
    block_b = batch
    for cand in (256, 128, 64, 32, 16, 8):
        if batch % cand == 0:
            block_b = cand
            break

    args = (x, packed["w0t"], packed["b0"],
            packed["g1"], packed["c1"], packed["g2"], packed["c2"],
            packed["g3"], packed["c3"])

    in_specs = [pl.BlockSpec((block_b, in_dim), lambda i: (i, 0))]
    # Constant index maps: weights are DMA'd once and stay VMEM resident.
    in_specs += [pl.BlockSpec(a.shape, lambda i: (0, 0)) for a in args[1:]]

    arg_bytes = sum(int(np.prod(a.shape)) * a.dtype.itemsize for a in args)
    out_bytes = batch * p_out * 4
    vmem_limit = int(2 * (arg_bytes + out_bytes)) + (8 << 20)  # dbl-buffer + slack

    out = pl.pallas_call(
        _mnist_kernel,
        out_shape=jax.ShapeDtypeStruct((batch, p_out), jnp.float32),
        grid=(batch // block_b,),
        in_specs=in_specs,
        out_specs=pl.BlockSpec((block_b, p_out), lambda i: (i, 0)),
        compiler_params=pltpu.CompilerParams(
            dimension_semantics=("parallel",),   # batch shards over v7x's 2 TCs
            vmem_limit_bytes=vmem_limit),
    )(*args)
    # Drop the lane padding and reshape to images in the wrapper (pure XLA).
    return out[:, :_IMG * _IMG].reshape(batch, _IMG, _IMG)


# ----------------------- one-time parameter repacking -----------------------

def _round_up(n, m):
    return ((n + m - 1) // m) * m


def _pad2(a, rows, cols):
    out = np.zeros((rows, cols), np.float32)
    out[:a.shape[0], :a.shape[1]] = a
    return out


def _dense_convt_matrix(w, stride, pad, h_in, w_in, in_order):
    """Unroll ConvTranspose2d(w:(Cin,Cout,K,K)) into a dense matrix G with
    G[row(ci,i,j), (oy*Wo+ox)*Cout+co] += w[ci,co,ky,kx], oy=i*s+ky-p, ox=j*s+kx-p.
    Input-row order: 'cyx' (PyTorch .view(B,C,H,W) flattening) or 'yxc'."""
    cin, cout, k, _ = w.shape
    h_out = (h_in - 1) * stride - 2 * pad + k
    w_out = (w_in - 1) * stride - 2 * pad + k
    g = np.zeros((h_in * w_in * cin, h_out * w_out * cout), np.float32)
    for ci in range(cin):
        for i in range(h_in):
            for j in range(w_in):
                if in_order == "yxc":
                    r = (i * w_in + j) * cin + ci
                else:                                  # 'cyx'
                    r = ci * (h_in * w_in) + i * w_in + j
                for ky in range(k):
                    oy = i * stride + ky - pad
                    if not 0 <= oy < h_out:
                        continue
                    for kx in range(k):
                        ox = j * stride + kx - pad
                        if not 0 <= ox < w_out:
                            continue
                        c0 = (oy * w_out + ox) * cout
                        g[r, c0:c0 + cout] += w[ci, :, ky, kx]
    return g, h_out, w_out


def prepare_params(params):
    """Host-side, one-time, batch-INDEPENDENT repacking of PyTorch parameters."""
    w0, b0, w1, b1, w2, b2, w3, b3 = [np.asarray(p, np.float32) for p in params]

    # Layer-1 input rows follow the Linear / .view(B, 8, 2, 2) order (c, y, x);
    # every later activation uses channel-last (y, x, c) order.
    g1, h1, w1s = _dense_convt_matrix(w1, stride=2, pad=0, h_in=2, w_in=2, in_order="cyx")
    g2, h2, w2s = _dense_convt_matrix(w2, stride=3, pad=1, h_in=h1, w_in=w1s, in_order="yxc")
    g3, h3, w3s = _dense_convt_matrix(w3, stride=2, pad=1, h_in=h2, w_in=w2s, in_order="yxc")
    assert w3.shape[1] == 1 and (h3, w3s) == (_IMG, _IMG)

    p1 = _round_up(g1.shape[1], 128)      # 400  -> 512
    p2 = _round_up(g2.shape[1], 128)      # 1800 -> 1920
    p3 = _round_up(g3.shape[1], 128)      # 784  -> 896

    c1 = np.tile(b1, h1 * w1s)[None, :]
    c2 = np.tile(b2, h2 * w2s)[None, :]
    c3 = np.tile(b3, h3 * w3s)[None, :]

    bf = jnp.bfloat16
    return {
        "w0t": jnp.asarray(w0.T),                            # (in_dim, 32) f32
        "b0":  jnp.asarray(b0[None, :]),                     # (1, 32)      f32
        "g1":  jnp.asarray(_pad2(g1, g1.shape[0], p1), bf),  # (32, 512)    bf16
        "c1":  jnp.asarray(_pad2(c1, 1, p1)),                # (1, 512)     f32
        "g2":  jnp.asarray(_pad2(g2, p1, p2), bf),           # (512, 1920)  bf16
        "c2":  jnp.asarray(_pad2(c2, 1, p2)),                # (1, 1920)    f32
        "g3":  jnp.asarray(_pad2(g3, p2, p3), bf),           # (1920, 896)  bf16
        "c3":  jnp.asarray(_pad2(c3, 1, p3)),                # (1, 896)     f32
    }


# ------------------------------ parameter init ------------------------------

def init_params(key):
    ks = jax.random.split(key, 8)

    def u(k, shape, scale):
        return jax.random.uniform(k, shape, jnp.float32, -1.0, 1.0) * scale

    w0 = u(ks[0], (32, 2), 0.5)         # nn.Linear(2, 32): weight (out, in)
    b0 = u(ks[1], (32,), 0.5)
    w1 = u(ks[2], (8, 16, 3, 3), 0.2)   # ConvTranspose2d(8, 16, 3, s=2)
    b1 = u(ks[3], (16,), 0.2)
    w2 = u(ks[4], (16, 8, 5, 5), 0.1)   # ConvTranspose2d(16, 8, 5, s=3, p=1)
    b2 = u(ks[5], (8,), 0.1)
    w3 = u(ks[6], (8, 1, 2, 2), 0.3)    # ConvTranspose2d(8, 1, 2, s=2, p=1)
    b3 = u(ks[7], (1,), 0.3)
    return (w0, b0, w1, b1, w2, b2, w3, b3)


# ------------------------------ NumPy reference -----------------------------

def _elu_np(x):
    return np.where(x > 0, x, np.expm1(np.minimum(x, 0.0)))


def _convt_np(x, w, b, stride, pad):
    B, Cin, H, W = x.shape
    _, Cout, K, _ = w.shape
    Ho = (H - 1) * stride - 2 * pad + K
    Wo = (W - 1) * stride - 2 * pad + K
    out = np.broadcast_to(b.reshape(1, Cout, 1, 1),
                          (B, Cout, Ho, Wo)).astype(np.float64).copy()
    for i in range(H):
        for j in range(W):
            for ky in range(K):
                for kx in range(K):
                    oy = i * stride + ky - pad
                    ox = j * stride + kx - pad
                    if 0 <= oy < Ho and 0 <= ox < Wo:
                        out[:, :, oy, ox] += x[:, :, i, j] @ w[:, :, ky, kx]
    return out


def mnist_net_forward_ref(x, params):
    w0, b0, w1, b1, w2, b2, w3, b3 = [np.asarray(p, np.float64) for p in params]
    x = np.asarray(x, np.float64)
    h = x @ w0.T + b0
    h = h.reshape(len(x), 8, 2, 2)
    h = np.tanh(h)
    h = _elu_np(_convt_np(h, w1, b1, 2, 0))
    h = _elu_np(_convt_np(h, w2, b2, 3, 1))
    h = _elu_np(_convt_np(h, w3, b3, 2, 1))
    return h[:, 0]


# ----------------------------------- main ------------------------------------

if __name__ == "__main__":
    key = jax.random.PRNGKey(0)
    kx, kp = jax.random.split(key)

    B, in_dim = 2, 2
    x = jax.random.normal(kx, (B, in_dim), jnp.float32)
    params = init_params(kp)

    packed = prepare_params(params)       # host-side, one-time, batch-independent
    forward = jax.jit(mnist_net_forward)
    out = jax.block_until_ready(forward(x, packed))

    assert out.shape == (B, 28, 28), out.shape
    ref = mnist_net_forward_ref(np.asarray(x), params)
    np.testing.assert_allclose(np.asarray(out), ref, rtol=1e-2, atol=1e-2)

    print("KERNEL_OK")
</pallas_src>

<mosaic_0001>
module attributes {stable_mosaic.version = 11 : i64} {
  func.func @_mnist_kernel(%arg0: i32, %arg1: memref<2x2xf32, #tpu.memory_space<vmem>>, %arg2: memref<2x32xf32, #tpu.memory_space<vmem>>, %arg3: memref<1x32xf32, #tpu.memory_space<vmem>>, %arg4: memref<32x512xbf16, #tpu.memory_space<vmem>>, %arg5: memref<1x512xf32, #tpu.memory_space<vmem>>, %arg6: memref<512x1920xbf16, #tpu.memory_space<vmem>>, %arg7: memref<1x1920xf32, #tpu.memory_space<vmem>>, %arg8: memref<1920x896xbf16, #tpu.memory_space<vmem>>, %arg9: memref<1x896xf32, #tpu.memory_space<vmem>>, %arg10: memref<2x896xf32, #tpu.memory_space<vmem>>) attributes {dimension_semantics = [#tpu.dimension_semantics<parallel>], iteration_bounds = array<i64: 1>, scalar_prefetch = 0 : i64, scratch_operands = 0 : i64, tpu.core_type = #tpu.core_type<tc>, window_params = [{transform_indices = @transform_0, window_bounds = array<i64: 2, 2>}, {pipeline_mode = #tpu.pipeline_mode<synchronous>, transform_indices = @transform_1, window_bounds = array<i64: 2, 32>}, {pipeline_mode = #tpu.pipeline_mode<synchronous>, transform_indices = @transform_2, window_bounds = array<i64: 1, 32>}, {pipeline_mode = #tpu.pipeline_mode<synchronous>, transform_indices = @transform_3, window_bounds = array<i64: 32, 512>}, {pipeline_mode = #tpu.pipeline_mode<synchronous>, transform_indices = @transform_4, window_bounds = array<i64: 1, 512>}, {pipeline_mode = #tpu.pipeline_mode<synchronous>, transform_indices = @transform_5, window_bounds = array<i64: 512, 1920>}, {pipeline_mode = #tpu.pipeline_mode<synchronous>, transform_indices = @transform_6, window_bounds = array<i64: 1, 1920>}, {pipeline_mode = #tpu.pipeline_mode<synchronous>, transform_indices = @transform_7, window_bounds = array<i64: 1920, 896>}, {pipeline_mode = #tpu.pipeline_mode<synchronous>, transform_indices = @transform_8, window_bounds = array<i64: 1, 896>}, {transform_indices = @transform_9, window_bounds = array<i64: 2, 896>}]} {
    %c0 = arith.constant 0 : index
    %c0_0 = arith.constant 0 : index
    %0 = vector.load %arg1[%c0, %c0_0] : memref<2x2xf32, #tpu.memory_space<vmem>>, vector<2x2xf32>
    %c0_1 = arith.constant 0 : index
    %c0_2 = arith.constant 0 : index
    %1 = vector.load %arg2[%c0_1, %c0_2] : memref<2x32xf32, #tpu.memory_space<vmem>>, vector<2x32xf32>
    %cst = arith.constant dense<0.000000e+00> : vector<2x32xf32>
    %2 = tpu.matmul %0, %1, %cst {dimension_numbers = #tpu.dot_dimension_numbers<[1], [0], [0], [1], [0, 0, 1, 1], [], []>} : vector<2x2xf32>, vector<2x32xf32>, vector<2x32xf32> -> vector<2x32xf32>
    %c0_3 = arith.constant 0 : index
    %c0_4 = arith.constant 0 : index
    %3 = vector.load %arg3[%c0_3, %c0_4] : memref<1x32xf32, #tpu.memory_space<vmem>>, vector<1x32xf32>
    %4 = vector.broadcast %3 : vector<1x32xf32> to vector<2x32xf32>
    %5 = arith.addf %2, %4 : vector<2x32xf32>
    %6 = math.tanh %5 : vector<2x32xf32>
    %7 = arith.truncf %6 : vector<2x32xf32> to vector<2x32xbf16>
    %c0_5 = arith.constant 0 : index
    %c0_6 = arith.constant 0 : index
    %8 = vector.load %arg4[%c0_5, %c0_6] : memref<32x512xbf16, #tpu.memory_space<vmem>>, vector<32x512xbf16>
    %cst_7 = arith.constant dense<0.000000e+00> : vector<2x512xf32>
    %9 = tpu.matmul %7, %8, %cst_7 {dimension_numbers = #tpu.dot_dimension_numbers<[1], [0], [0], [1], [0, 0, 1, 1], [], []>} : vector<2x32xbf16>, vector<32x512xbf16>, vector<2x512xf32> -> vector<2x512xf32>
    %c0_8 = arith.constant 0 : index
    %c0_9 = arith.constant 0 : index
    %10 = vector.load %arg5[%c0_8, %c0_9] : memref<1x512xf32, #tpu.memory_space<vmem>>, vector<1x512xf32>
    %11 = vector.broadcast %10 : vector<1x512xf32> to vector<2x512xf32>
    %12 = arith.addf %9, %11 : vector<2x512xf32>
    %cst_10 = arith.constant 0.000000e+00 : f32
    %13 = vector.broadcast %cst_10 : f32 to vector<2x512xf32>
    %14 = arith.cmpf ogt, %12, %13 : vector<2x512xf32>
    %cst_11 = arith.constant 0.000000e+00 : f32
    %15 = vector.broadcast %cst_11 : f32 to vector<2x512xf32>
    %16 = arith.minimumf %12, %15 : vector<2x512xf32>
    %17 = math.exp %16 : vector<2x512xf32>
    %cst_12 = arith.constant 1.000000e+00 : f32
    %18 = vector.broadcast %cst_12 : f32 to vector<2x512xf32>
    %19 = arith.subf %17, %18 : vector<2x512xf32>
    %20 = arith.select %14, %12, %19 : vector<2x512xi1>, vector<2x512xf32>
    %21 = arith.truncf %20 : vector<2x512xf32> to vector<2x512xbf16>
    %c0_13 = arith.constant 0 : index
    %c0_14 = arith.constant 0 : index
    %22 = vector.load %arg6[%c0_13, %c0_14] : memref<512x1920xbf16, #tpu.memory_space<vmem>>, vector<512x1920xbf16>
    %cst_15 = arith.constant dense<0.000000e+00> : vector<2x1920xf32>
    %23 = tpu.matmul %21, %22, %cst_15 {dimension_numbers = #tpu.dot_dimension_numbers<[1], [0], [0], [1], [0, 0, 1, 1], [], []>} : vector<2x512xbf16>, vector<512x1920xbf16>, vector<2x1920xf32> -> vector<2x1920xf32>
    %c0_16 = arith.constant 0 : index
    %c0_17 = arith.constant 0 : index
    %24 = vector.load %arg7[%c0_16, %c0_17] : memref<1x1920xf32, #tpu.memory_space<vmem>>, vector<1x1920xf32>
    %25 = vector.broadcast %24 : vector<1x1920xf32> to vector<2x1920xf32>
    %26 = arith.addf %23, %25 : vector<2x1920xf32>
    %cst_18 = arith.constant 0.000000e+00 : f32
    %27 = vector.broadcast %cst_18 : f32 to vector<2x1920xf32>
    %28 = arith.cmpf ogt, %26, %27 : vector<2x1920xf32>
    %cst_19 = arith.constant 0.000000e+00 : f32
    %29 = vector.broadcast %cst_19 : f32 to vector<2x1920xf32>
    %30 = arith.minimumf %26, %29 : vector<2x1920xf32>
    %31 = math.exp %30 : vector<2x1920xf32>
    %cst_20 = arith.constant 1.000000e+00 : f32
    %32 = vector.broadcast %cst_20 : f32 to vector<2x1920xf32>
    %33 = arith.subf %31, %32 : vector<2x1920xf32>
    %34 = arith.select %28, %26, %33 : vector<2x1920xi1>, vector<2x1920xf32>
    %35 = arith.truncf %34 : vector<2x1920xf32> to vector<2x1920xbf16>
    %c0_21 = arith.constant 0 : index
    %c0_22 = arith.constant 0 : index
    %36 = vector.load %arg8[%c0_21, %c0_22] : memref<1920x896xbf16, #tpu.memory_space<vmem>>, vector<1920x896xbf16>
    %cst_23 = arith.constant dense<0.000000e+00> : vector<2x896xf32>
    %37 = tpu.matmul %35, %36, %cst_23 {dimension_numbers = #tpu.dot_dimension_numbers<[1], [0], [0], [1], [0, 0, 1, 1], [], []>} : vector<2x1920xbf16>, vector<1920x896xbf16>, vector<2x896xf32> -> vector<2x896xf32>
    %c0_24 = arith.constant 0 : index
    %c0_25 = arith.constant 0 : index
    %38 = vector.load %arg9[%c0_24, %c0_25] : memref<1x896xf32, #tpu.memory_space<vmem>>, vector<1x896xf32>
    %39 = vector.broadcast %38 : vector<1x896xf32> to vector<2x896xf32>
    %40 = arith.addf %37, %39 : vector<2x896xf32>
    %cst_26 = arith.constant 0.000000e+00 : f32
    %41 = vector.broadcast %cst_26 : f32 to vector<2x896xf32>
    %42 = arith.cmpf ogt, %40, %41 : vector<2x896xf32>
    %cst_27 = arith.constant 0.000000e+00 : f32
    %43 = vector.broadcast %cst_27 : f32 to vector<2x896xf32>
    %44 = arith.minimumf %40, %43 : vector<2x896xf32>
    %45 = math.exp %44 : vector<2x896xf32>
    %cst_28 = arith.constant 1.000000e+00 : f32
    %46 = vector.broadcast %cst_28 : f32 to vector<2x896xf32>
    %47 = arith.subf %45, %46 : vector<2x896xf32>
    %48 = arith.select %42, %40, %47 : vector<2x896xi1>, vector<2x896xf32>
    %c0_29 = arith.constant 0 : index
    %c0_30 = arith.constant 0 : index
    %49 = vector.load %arg10[%c0_29, %c0_30] : memref<2x896xf32, #tpu.memory_space<vmem>>, vector<2x896xf32>
    tpu.vector_store %arg10[%c0_29, %c0_30], %48 {strides = array<i32>} : memref<2x896xf32, #tpu.memory_space<vmem>>, vector<2x896xf32>,
    return
  }
  func.func @transform_0(%arg0: i32) -> (i32, i32) {
    %c0_i32 = arith.constant 0 : i32
    %c0_i32_0 = arith.constant 0 : i32
    return %arg0, %c0_i32 : i32, i32
  }
  func.func @transform_1(%arg0: i32) -> (i32, i32) {
    %c0_i32 = arith.constant 0 : i32
    %c0_i32_0 = arith.constant 0 : i32
    %c0_i32_1 = arith.constant 0 : i32
    return %c0_i32, %c0_i32_0 : i32, i32
  }
  func.func @transform_2(%arg0: i32) -> (i32, i32) {
    %c0_i32 = arith.constant 0 : i32
    %c0_i32_0 = arith.constant 0 : i32
    %c0_i32_1 = arith.constant 0 : i32
    return %c0_i32, %c0_i32_0 : i32, i32
  }
  func.func @transform_3(%arg0: i32) -> (i32, i32) {
    %c0_i32 = arith.constant 0 : i32
    %c0_i32_0 = arith.constant 0 : i32
    %c0_i32_1 = arith.constant 0 : i32
    return %c0_i32, %c0_i32_0 : i32, i32
  }
  func.func @transform_4(%arg0: i32) -> (i32, i32) {
    %c0_i32 = arith.constant 0 : i32
    %c0_i32_0 = arith.constant 0 : i32
    %c0_i32_1 = arith.constant 0 : i32
    return %c0_i32, %c0_i32_0 : i32, i32
  }
  func.func @transform_5(%arg0: i32) -> (i32, i32) {
    %c0_i32 = arith.constant 0 : i32
    %c0_i32_0 = arith.constant 0 : i32
    %c0_i32_1 = arith.constant 0 : i32
    return %c0_i32, %c0_i32_0 : i32, i32
  }
  func.func @transform_6(%arg0: i32) -> (i32, i32) {
    %c0_i32 = arith.constant 0 : i32
    %c0_i32_0 = arith.constant 0 : i32
    %c0_i32_1 = arith.constant 0 : i32
    return %c0_i32, %c0_i32_0 : i32, i32
  }
  func.func @transform_7(%arg0: i32) -> (i32, i32) {
    %c0_i32 = arith.constant 0 : i32
    %c0_i32_0 = arith.constant 0 : i32
    %c0_i32_1 = arith.constant 0 : i32
    return %c0_i32, %c0_i32_0 : i32, i32
  }
  func.func @transform_8(%arg0: i32) -> (i32, i32) {
    %c0_i32 = arith.constant 0 : i32
    %c0_i32_0 = arith.constant 0 : i32
    %c0_i32_1 = arith.constant 0 : i32
    return %c0_i32, %c0_i32_0 : i32, i32
  }
  func.func @transform_9(%arg0: i32) -> (i32, i32) {
    %c0_i32 = arith.constant 0 : i32
    %c0_i32_0 = arith.constant 0 : i32
    return %arg0, %c0_i32 : i32, i32
  }
}

</mosaic_0001>

<llo_original>
// kernel: mnist_net_forward.1
$region0: #{mnist_net_forward.1}
  #allocation0 [shape = 'u32[]', space=smem, size = 0x4, offset = 0x4, fixed_abs, tag = 'smem constant byte address 0x4 - core index']
  #allocation1 [shape = 'u32[72,128]{1,0:T(1,128)}', space=vmem, size = 0x9000, scoped, tag = 'internal scratch']
  %s0 = inlined_call_operand.hbm [shape: f32[2,2], index: 0, kind: input, shape index: {}]
  %s1 = inlined_call_operand.hbm [shape: f32[2,32], index: 1, kind: input, shape index: {}]
  %s2 = inlined_call_operand.hbm [shape: f32[1,32], index: 2, kind: input, shape index: {}]
  %s3 = inlined_call_operand.hbm [shape: bf16[32,512], index: 3, kind: input, shape index: {}]
  %s4 = inlined_call_operand.hbm [shape: f32[1,512], index: 4, kind: input, shape index: {}]
  %s5 = inlined_call_operand.hbm [shape: bf16[512,1920], index: 5, kind: input, shape index: {}]
  %s6 = inlined_call_operand.hbm [shape: f32[1,1920], index: 6, kind: input, shape index: {}]
  %s7 = inlined_call_operand.hbm [shape: bf16[1920,896], index: 7, kind: input, shape index: {}]
  %s8 = inlined_call_operand.hbm [shape: f32[1,896], index: 8, kind: input, shape index: {}]
  %s9 = inlined_call_operand.vmem [shape: f32[2,896], index: 9, kind: output, shape index: {}]
  %s10 = sld [smem:[#allocation0]]
  $region82: #{mnist_net_forward.1} parent=0
    _
  %s12 = ssub.s32 1, %s10
  %s13 = scalar_select 0, %s12, %s10
  $region1: #{mnist_net_forward.1} parent=0
    #allocation2 [shape = 'u8[1024]{0}', space=vmem, size = 0x400, scoped, tag = 'input window, operand 0, single buffered']
    #allocation3 [shape = 's32[1]{0}', space=sflag, size = 0x4, scoped, tag = 'scoped memory for mnist_net_forward.1']
    #allocation4 [shape = 'u8[1024]{0}', space=vmem, size = 0x400, scoped, tag = 'input window, operand 1, single buffered']
    #allocation5 [shape = 's32[1]{0}', space=sflag, size = 0x4, scoped, tag = 'scoped memory for mnist_net_forward.1']
    #allocation6 [shape = 'u8[512]{0}', space=vmem, size = 0x400, scoped, tag = 'input window, operand 2, single buffered']
    #allocation7 [shape = 'u8[32768]{0}', space=vmem, size = 0x8000, scoped, tag = 'input window, operand 3, single buffered']
    #allocation8 [shape = 's32[1]{0}', space=sflag, size = 0x4, scoped, tag = 'scoped memory for mnist_net_forward.1']
    #allocation9 [shape = 'u8[2048]{0}', space=vmem, size = 0x800, scoped, tag = 'input window, operand 4, single buffered']
    #allocation10 [shape = 'u8[1966080]{0}', space=vmem, size = 0x1e0000, scoped, tag = 'input window, operand 5, single buffered']
    #allocation11 [shape = 's32[1]{0}', space=sflag, size = 0x4, scoped, tag = 'scoped memory for mnist_net_forward.1']
    #allocation12 [shape = 'u8[7680]{0}', space=vmem, size = 0x2000, scoped, tag = 'input window, operand 6, single buffered']
    #allocation13 [shape = 'u8[3440640]{0}', space=vmem, size = 0x348000, scoped, tag = 'input window, operand 7, single buffered']
    #allocation14 [shape = 's32[1]{0}', space=sflag, size = 0x4, scoped, tag = 'scoped memory for mnist_net_forward.1']
    #allocation15 [shape = 'u8[3584]{0}', space=vmem, size = 0x1000, scoped, tag = 'input window, operand 8, single buffered']
    %14 = vsyncpa [#allocation3], 0
    %15 = vsyncpa [#allocation5], 0
    %16 = vsyncpa [#allocation8], 0
    %17 = vsyncpa [#allocation11], 0
    %18 = vsyncpa [#allocation14], 0
    // Predicated region
    $region2: #{mnist_net_forward.1} parent=1 // pred_check
      _
    $region3: #{mnist_net_forward.1} parent=1 // pred_check_branch
      %20 = sbr.rel (0) target = $region5
    $region4: #{mnist_net_forward.1} parent=1 // pred_region
      %22 = vsyncadd [#allocation3], 0
      %s24 = sshll.u32 %s0, 4
      %s25 = int_to_ptr.hbm [resolvable:$true] %s24
      %s26 = sshll.u32 [#allocation2], 4
      %s27 = int_to_ptr.vmem [resolvable:$true] %s26
      %29 = dma.hbm_to_vmem [thread:$0]  %s25, 32, %s27, [#allocation3]
    $region5: #{mnist_net_forward.1} parent=1 // pred_fallthru
      _
    // Predicated region
    $region6: #{mnist_net_forward.1} parent=1 // pred_check
      _
    $region7: #{mnist_net_forward.1} parent=1 // pred_check_branch
      %31 = sbr.rel (0) target = $region9
    $region8: #{mnist_net_forward.1} parent=1 // pred_region
      %33 = vsyncadd [#allocation5], 0
      %s35 = sshll.u32 %s1, 4
      %s36 = int_to_ptr.hbm [resolvable:$true] %s35
      %s37 = sshll.u32 [#allocation4], 4
      %s38 = int_to_ptr.vmem [resolvable:$true] %s37
      %40 = dma.hbm_to_vmem [thread:$0]  %s36, 32, %s38, [#allocation5]
    $region9: #{mnist_net_forward.1} parent=1 // pred_fallthru
      _
    // Predicated region
    $region10: #{mnist_net_forward.1} parent=1 // pred_check
      _
    $region11: #{mnist_net_forward.1} parent=1 // pred_check_branch
      %42 = sbr.rel (0) target = $region13
    $region12: #{mnist_net_forward.1} parent=1 // pred_region
      %44 = vsyncadd [#allocation5], 0
      %s46 = sshll.u32 %s2, 4
      %s47 = int_to_ptr.hbm [resolvable:$true] %s46
      %s48 = sshll.u32 [#allocation6], 4
      %s49 = int_to_ptr.vmem [resolvable:$true] %s48
      %51 = dma.hbm_to_vmem [thread:$0]  %s47, 16, %s49, [#allocation5]
    $region13: #{mnist_net_forward.1} parent=1 // pred_fallthru
      _
    // Predicated region
    $region14: #{mnist_net_forward.1} parent=1 // pred_check
      _
    $region15: #{mnist_net_forward.1} parent=1 // pred_check_branch
      %53 = sbr.rel (0) target = $region17
    $region16: #{mnist_net_forward.1} parent=1 // pred_region
      %55 = vsyncadd [#allocation8], 0
      %s56 = sshll.u32 %s3, 4
      %s57 = int_to_ptr.hbm [resolvable:$true] %s56
      %s58 = sshll.u32 [#allocation7], 4
      %s59 = int_to_ptr.vmem [resolvable:$true] %s58
      %64 = dma.hbm_to_vmem [thread:$0]  %s57, 1024, %s59, [#allocation8], 256, 256, 16
    $region17: #{mnist_net_forward.1} parent=1 // pred_fallthru
      _
    // Predicated region
    $region18: #{mnist_net_forward.1} parent=1 // pred_check
      _
    $region19: #{mnist_net_forward.1} parent=1 // pred_check_branch
      %66 = sbr.rel (0) target = $region21
    $region20: #{mnist_net_forward.1} parent=1 // pred_region
      %68 = vsyncadd [#allocation8], 0
      %s70 = sshll.u32 %s4, 4
      %s71 = int_to_ptr.hbm [resolvable:$true] %s70
      %s72 = sshll.u32 [#allocation9], 4
      %s73 = int_to_ptr.vmem [resolvable:$true] %s72
      %75 = dma.hbm_to_vmem [thread:$0]  %s71, 64, %s73, [#allocation8]
    $region21: #{mnist_net_forward.1} parent=1 // pred_fallthru
      _
    // Predicated region
    $region22: #{mnist_net_forward.1} parent=1 // pred_check
      _
    $region23: #{mnist_net_forward.1} parent=1 // pred_check_branch
      %77 = sbr.rel (0) target = $region25
    $region24: #{mnist_net_forward.1} parent=1 // pred_region
      %79 = vsyncadd [#allocation11], 0
      %s80 = sshll.u32 %s5, 4
      %s81 = int_to_ptr.hbm [resolvable:$true] %s80
      %s82 = sshll.u32 [#allocation10], 4
      %s83 = int_to_ptr.vmem [resolvable:$true] %s82
      %88 = dma.hbm_to_vmem [thread:$0]  %s81, 61440, %s83, [#allocation11], 960, 960, 60
    $region25: #{mnist_net_forward.1} parent=1 // pred_fallthru
      _
    // Predicated region
    $region26: #{mnist_net_forward.1} parent=1 // pred_check
      _
    $region27: #{mnist_net_forward.1} parent=1 // pred_check_branch
      %90 = sbr.rel (0) target = $region29
    $region28: #{mnist_net_forward.1} parent=1 // pred_region
      %92 = vsyncadd [#allocation11], 0
      %s94 = sshll.u32 %s6, 4
      %s95 = int_to_ptr.hbm [resolvable:$true] %s94
      %s96 = sshll.u32 [#allocation12], 4
      %s97 = int_to_ptr.vmem [resolvable:$true] %s96
      %99 = dma.hbm_to_vmem [thread:$0]  %s95, 240, %s97, [#allocation11]
    $region29: #{mnist_net_forward.1} parent=1 // pred_fallthru
      _
    // Predicated region
    $region30: #{mnist_net_forward.1} parent=1 // pred_check
      _
    $region31: #{mnist_net_forward.1} parent=1 // pred_check_branch
      %101 = sbr.rel (0) target = $region33
    $region32: #{mnist_net_forward.1} parent=1 // pred_region
      %103 = vsyncadd [#allocation14], 0
      %s104 = sshll.u32 %s7, 4
      %s105 = int_to_ptr.hbm [resolvable:$true] %s104
      %s106 = sshll.u32 [#allocation13], 4
      %s107 = int_to_ptr.vmem [resolvable:$true] %s106
      %112 = dma.hbm_to_vmem [thread:$0]  %s105, 107520, %s107, [#allocation14], 448, 448, 28
    $region33: #{mnist_net_forward.1} parent=1 // pred_fallthru
      _
    // Predicated region
    $region34: #{mnist_net_forward.1} parent=1 // pred_check
      _
    $region35: #{mnist_net_forward.1} parent=1 // pred_check_branch
      %114 = sbr.rel (0) target = $region37
    $region36: #{mnist_net_forward.1} parent=1 // pred_region
      %116 = vsyncadd [#allocation14], 0
      %s118 = sshll.u32 %s8, 4
      %s119 = int_to_ptr.hbm [resolvable:$true] %s118
      %s120 = sshll.u32 [#allocation15], 4
      %s121 = int_to_ptr.vmem [resolvable:$true] %s120
      %123 = dma.hbm_to_vmem [thread:$0]  %s119, 112, %s121, [#allocation14]
    $region37: #{mnist_net_forward.1} parent=1 // pred_fallthru
      _
    // Predicated region
    $region38: #{mnist_net_forward.1} parent=1 // pred_check
      _
    $region39: #{mnist_net_forward.1} parent=1 // pred_check_branch
      %125 = sbr.rel (0) target = $region41
    $region40: #{mnist_net_forward.1} parent=1 // pred_region
      %127 = dma.done [#allocation3], 32
    $region41: #{mnist_net_forward.1} parent=1 // pred_fallthru
      _
    // Predicated region
    $region42: #{mnist_net_forward.1} parent=1 // pred_check
      _
    $region43: #{mnist_net_forward.1} parent=1 // pred_check_branch
      %129 = sbr.rel (0) target = $region45
    $region44: #{mnist_net_forward.1} parent=1 // pred_region
      %131 = dma.done [#allocation5], 32
    $region45: #{mnist_net_forward.1} parent=1 // pred_fallthru
      _
    // Predicated region
    $region46: #{mnist_net_forward.1} parent=1 // pred_check
      _
    $region47: #{mnist_net_forward.1} parent=1 // pred_check_branch
      %133 = sbr.rel (0) target = $region49
    $region48: #{mnist_net_forward.1} parent=1 // pred_region
      %135 = dma.done [#allocation5], 16
    $region49: #{mnist_net_forward.1} parent=1 // pred_fallthru
      _
    // Predicated region
    $region50: #{mnist_net_forward.1} parent=1 // pred_check
      _
    $region51: #{mnist_net_forward.1} parent=1 // pred_check_branch
      %137 = sbr.rel (0) target = $region53
    $region52: #{mnist_net_forward.1} parent=1 // pred_region
      %139 = dma.done [#allocation8], 1024
    $region53: #{mnist_net_forward.1} parent=1 // pred_fallthru
      _
    // Predicated region
    $region54: #{mnist_net_forward.1} parent=1 // pred_check
      _
    $region55: #{mnist_net_forward.1} parent=1 // pred_check_branch
      %141 = sbr.rel (0) target = $region57
    $region56: #{mnist_net_forward.1} parent=1 // pred_region
      %143 = dma.done [#allocation8], 64
    $region57: #{mnist_net_forward.1} parent=1 // pred_fallthru
      _
    // Predicated region
    $region58: #{mnist_net_forward.1} parent=1 // pred_check
      _
    $region59: #{mnist_net_forward.1} parent=1 // pred_check_branch
      %145 = sbr.rel (0) target = $region61
    $region60: #{mnist_net_forward.1} parent=1 // pred_region
      %147 = dma.done [#allocation11], 61440
    $region61: #{mnist_net_forward.1} parent=1 // pred_fallthru
      _
    // Predicated region
    $region62: #{mnist_net_forward.1} parent=1 // pred_check
      _
    $region63: #{mnist_net_forward.1} parent=1 // pred_check_branch
      %149 = sbr.rel (0) target = $region65
    $region64: #{mnist_net_forward.1} parent=1 // pred_region
      %151 = dma.done [#allocation11], 240
    $region65: #{mnist_net_forward.1} parent=1 // pred_fallthru
      _
    // Predicated region
    $region66: #{mnist_net_forward.1} parent=1 // pred_check
      _
    $region67: #{mnist_net_forward.1} parent=1 // pred_check_branch
      %153 = sbr.rel (0) target = $region69
    $region68: #{mnist_net_forward.1} parent=1 // pred_region
      %155 = dma.done [#allocation14], 107520
    $region69: #{mnist_net_forward.1} parent=1 // pred_fallthru
      _
    // Predicated region
    $region70: #{mnist_net_forward.1} parent=1 // pred_check
      _
    $region71: #{mnist_net_forward.1} parent=1 // pred_check_branch
      %157 = sbr.rel (0) target = $region73
    $region72: #{mnist_net_forward.1} parent=1 // pred_region
      %159 = dma.done [#allocation14], 112
    $region73: #{mnist_net_forward.1} parent=1 // pred_fallthru
      _
    %v161 = vld [vmem:[#allocation2] sm:$0x3]
    %v162 = vld [vmem:[#allocation4] sm:$0x3]
    %v163 = vld [vmem:[#allocation6] sm:$0x1]
    %v165 = vperm.slane %v163, 0
    %vm167 = vcmask 15360
    %v169 = vsel %vm167, %v161, 0
    %vm171 = vcmask 1041408
    %v173 = vsel %vm171, %v162, 0
    %175 = vmatpush.msra.mxu0 0.0
    %176 = vmatpush.msra.mxu0 0.0
    %177 = vmatpush.msra.mxu0 0.0
    %178 = vmatpush.msra.mxu0 0.0
    %179 = vmatpush.msra.mxu0 0.0
    %180 = vmatpush.msra.mxu0 0.0
    %181 = vmatpush.msra.mxu0 0.0
    %182 = vmatpush.msra.mxu0 0.0
    %183 = vmatpush.msra.mxu0 0.0
    %184 = vmatpush.msra.mxu0 0.0
    %185 = vmatpush.msra.mxu0 0.0
    %186 = vmatpush.msra.mxu0 0.0
    %187 = vmatpush.msra.mxu0 0.0
    %188 = vmatpush.msra.mxu0 0.0
    %189 = vmatpush.msra.mxu0 0.0
    %190 = vmatpush.msra.mxu0 %v173
    %191 = vmatmul.f32.gmra.mxu0 %v169
    %v192 = vpop.f32.mrf.mxu0
    %v193 = vadd.f32 %v165, %v192
    %194 = vdwg.mxu0
    %v195 = vtanh.pop %v193
    %v196 = vpack.c.bf16 %v195, %v195
    %v197 = vld [vmem:[#allocation7] sm:$0xff]
    %v198 = vld [vmem:[#allocation7 + $0x8] sm:$0xff]
    %v199 = vld [vmem:[#allocation7 + $0x10] sm:$0xff]
    %v200 = vld [vmem:[#allocation7 + $0x18] sm:$0xff]
    %v201 = vld [vmem:[#allocation7 + $0x20] sm:$0xff]
    %v202 = vld [vmem:[#allocation7 + $0x28] sm:$0xff]
    %v203 = vld [vmem:[#allocation7 + $0x30] sm:$0xff]
    %v204 = vld [vmem:[#allocation7 + $0x38] sm:$0xff]
    %v205 = vld [vmem:[#allocation9] sm:$0xf]
    %v207 = vperm.slane %v205, 0
    %v208 = vperm.slane %v205, 1
    %v209 = vperm.slane %v205, 2
    %v210 = vperm.slane %v205, 3
    %v223 = vunpack.c.l.b16 %v197
    %v224 = vunpack.c.h.b16 %v197
    %v225 = vunpack.c.l.b16 %v198
    %v226 = vunpack.c.h.b16 %v198
    %v227 = vunpack.c.l.b16 %v199
    %v228 = vunpack.c.h.b16 %v199
    %v229 = vunpack.c.l.b16 %v200
    %v230 = vunpack.c.h.b16 %v200
    %v231 = vunpack.c.l.b16 %v201
    %v232 = vunpack.c.h.b16 %v201
    %v233 = vunpack.c.l.b16 %v202
    %v234 = vunpack.c.h.b16 %v202
    %v235 = vunpack.c.l.b16 %v203
    %v236 = vunpack.c.h.b16 %v203
    %v237 = vunpack.c.l.b16 %v204
    %v238 = vunpack.c.h.b16 %v204
    %v239 = vpack.c.b16 %v227, %v223
    %v240 = vpack.c.b16 %v228, %v224
    %v241 = vpack.c.b16 %v229, %v225
    %v242 = vpack.c.b16 %v230, %v226
    %v243 = vpack.c.b16 %v235, %v231
    %v244 = vpack.c.b16 %v236, %v232
    %v245 = vpack.c.b16 %v237, %v233
    %v246 = vpack.c.b16 %v238, %v234
    %vm255 = vcmask 261120
    %v257 = vsel %vm255, %v196, 0
    %259 = vmatpush.bf16.msra.mxu0 0
    %260 = vmatpush.bf16.msra.mxu0 0
    %261 = vmatpush.bf16.msra.mxu0 0
    %262 = vmatpush.bf16.msra.mxu0 0
    %263 = vmatpush.bf16.msra.mxu0 0
    %264 = vmatpush.bf16.msra.mxu0 0
    %265 = vmatpush.bf16.msra.mxu0 %v243
    %266 = vmatpush.bf16.msra.mxu0 %v239
    %267 = vmatmul.bf16.gmra.mxu0 %v257
    %v268 = vpop.f32.mrf.mxu0
    %v269 = vadd.f32 %v207, %v268
    %v270 = vpop.f32.mrf.mxu0
    %271 = vdwg.mxu0
    %272 = vmatpush.bf16.msra.mxu0 0
    %273 = vmatpush.bf16.msra.mxu0 0
    %274 = vmatpush.bf16.msra.mxu0 0
    %275 = vmatpush.bf16.msra.mxu0 0
    %276 = vmatpush.bf16.msra.mxu0 0
    %277 = vmatpush.bf16.msra.mxu0 0
    %278 = vmatpush.bf16.msra.mxu0 %v244
    %279 = vmatpush.bf16.msra.mxu0 %v240
    %280 = vmatmul.bf16.gmra.mxu0 %v257
    %v281 = vpop.f32.mrf.mxu0
    %v282 = vadd.f32 %v208, %v281
    %v283 = vpop.f32.mrf.mxu0
    %284 = vdwg.mxu0
    %285 = vmatpush.bf16.msra.mxu0 0
    %286 = vmatpush.bf16.msra.mxu0 0
    %287 = vmatpush.bf16.msra.mxu0 0
    %288 = vmatpush.bf16.msra.mxu0 0
    %289 = vmatpush.bf16.msra.mxu0 0
    %290 = vmatpush.bf16.msra.mxu0 0
    %291 = vmatpush.bf16.msra.mxu0 %v245
    %292 = vmatpush.bf16.msra.mxu0 %v241
    %293 = vmatmul.bf16.gmra.mxu0 %v257
    %v294 = vpop.f32.mrf.mxu0
    %v295 = vadd.f32 %v209, %v294
    %v296 = vpop.f32.mrf.mxu0
    %297 = vdwg.mxu0
    %298 = vmatpush.bf16.msra.mxu0 0
    %299 = vmatpush.bf16.msra.mxu0 0
    %300 = vmatpush.bf16.msra.mxu0 0
    %301 = vmatpush.bf16.msra.mxu0 0
    %302 = vmatpush.bf16.msra.mxu0 0
    %303 = vmatpush.bf16.msra.mxu0 0
    %304 = vmatpush.bf16.msra.mxu0 %v246
    %305 = vmatpush.bf16.msra.mxu0 %v242
    %306 = vmatmul.bf16.gmra.mxu0 %v257
    %v307 = vpop.f32.mrf.mxu0
    %v308 = vadd.f32 %v210, %v307
    %v309 = vpop.f32.mrf.mxu0
    %310 = vdwg.mxu0
    %vm311 = vcmp.gt.f32.partialorder %v269, 0.0
    %vm312 = vcmp.gt.f32.partialorder %v282, 0.0
    %vm313 = vcmp.gt.f32.partialorder %v295, 0.0
    %vm314 = vcmp.gt.f32.partialorder %v308, 0.0
    %v315 = vmin.f32 %v269, 0.0
    %v316 = vmin.f32 %v282, 0.0
    %v317 = vmin.f32 %v295, 0.0
    %v318 = vmin.f32 %v308, 0.0
    %v319 = vmul.f32 %v315, 1.442695
    %v320 = vpow.pop %v319
    %v321 = vmul.f32 %v316, 1.442695
    %v322 = vpow.pop %v321
    %v323 = vmul.f32 %v317, 1.442695
    %v324 = vpow.pop %v323
    %v325 = vmul.f32 %v318, 1.442695
    %v326 = vpow.pop %v325
    %v327 = vsub.f32 %v320, 1.0
    %v328 = vsub.f32 %v322, 1.0
    %v329 = vsub.f32 %v324, 1.0
    %v330 = vsub.f32 %v326, 1.0
    %v331 = vsel %vm311, %v269, %v327
    %v332 = vsel %vm312, %v282, %v328
    %v333 = vsel %vm313, %v295, %v329
    %v334 = vsel %vm314, %v308, %v330
    %v335 = vpack.c.bf16 %v331, %v331
    %v336 = vpack.c.bf16 %v332, %v332
    %v337 = vpack.c.bf16 %v333, %v333
    %v338 = vpack.c.bf16 %v334, %v334
    %v339 = vld [vmem:[#allocation10] sm:$0xff]
    %v340 = vld [vmem:[#allocation10 + $0x8] sm:$0xff]
    %v341 = vld [vmem:[#allocation10 + $0x10] sm:$0xff]
    %v342 = vld [vmem:[#allocation10 + $0x18] sm:$0xff]
    %v343 = vld [vmem:[#allocation10 + $0x20] sm:$0xff]
    %v344 = vld [vmem:[#allocation10 + $0x28] sm:$0xff]
    %v345 = vld [vmem:[#allocation10 + $0x30] sm:$0xff]
    %v346 = vld [vmem:[#allocation10 + $0x38] sm:$0xf]
    %v347 = vld [vmem:[#allocation10 + $0x3c] sm:$0xff]
    %v348 = vld [vmem:[#allocation10 + $0x44] sm:$0xff]
    %v349 = vld [vmem:[#allocation10 + $0x4c] sm:$0xff]
    %v350 = vld [vmem:[#allocation10 + $0x54] sm:$0xff]
    %v351 = vld [vmem:[#allocation10 + $0x5c] sm:$0xff]
    %v352 = vld [vmem:[#allocation10 + $0x64] sm:$0xff]
    %v353 = vld [vmem:[#allocation10 + $0x6c] sm:$0xff]
    %v354 = vld [vmem:[#allocation10 + $0x74] sm:$0xf]
    %v355 = vld [vmem:[#allocation10 + $0x78] sm:$0xff]
    %v356 = vld [vmem:[#allocation10 + $0x80] sm:$0xff]
    %v357 = vld [vmem:[#allocation10 + $0x88] sm:$0xff]
    %v358 = vld [vmem:[#allocation10 + $0x90] sm:$0xff]
    %v359 = vld [vmem:[#allocation10 + $0x98] sm:$0xff]
    %v360 = vld [vmem:[#allocation10 + $0xa0] sm:$0xff]
    %v361 = vld [vmem:[#allocation10 + $0xa8] sm:$0xff]
    %v362 = vld [vmem:[#allocation10 + $0xb0] sm:$0xf]
    %v363 = vld [vmem:[#allocation10 + $0xb4] sm:$0xff]
    %v364 = vld [vmem:[#allocation10 + $0xbc] sm:$0xff]
    %v365 = vld [vmem:[#allocation10 + $0xc4] sm:$0xff]
    %v366 = vld [vmem:[#allocation10 + $0xcc] sm:$0xff]
    %v367 = vld [vmem:[#allocation10 + $0xd4] sm:$0xff]
    %v368 = vld [vmem:[#allocation10 + $0xdc] sm:$0xff]
    %v369 = vld [vmem:[#allocation10 + $0xe4] sm:$0xff]
    %v370 = vld [vmem:[#allocation10 + $0xec] sm:$0xf]
    %v371 = vld [vmem:[#allocation10 + $0xf0] sm:$0xff]
    %v372 = vld [vmem:[#allocation10 + $0xf8] sm:$0xff]
    %v373 = vld [vmem:[#allocation10 + $0x100] sm:$0xff]
    %v374 = vld [vmem:[#allocation10 + $0x108] sm:$0xff]
    %v375 = vld [vmem:[#allocation10 + $0x110] sm:$0xff]
    %v376 = vld [vmem:[#allocation10 + $0x118] sm:$0xff]
    %v377 = vld [vmem:[#allocation10 + $0x120] sm:$0xff]
    %v378 = vld [vmem:[#allocation10 + $0x128] sm:$0xf]
    %v379 = vld [vmem:[#allocation10 + $0x12c] sm:$0xff]
    %v380 = vld [vmem:[#allocation10 + $0x134] sm:$0xff]
    %v381 = vld [vmem:[#allocation10 + $0x13c] sm:$0xff]
    %v382 = vld [vmem:[#allocation10 + $0x144] sm:$0xff]
    %v383 = vld [vmem:[#allocation10 + $0x14c] sm:$0xff]
    %v384 = vld [vmem:[#allocation10 + $0x154] sm:$0xff]
    %v385 = vld [vmem:[#allocation10 + $0x15c] sm:$0xff]
    %v386 = vld [vmem:[#allocation10 + $0x164] sm:$0xf]
    %v387 = vld [vmem:[#allocation10 + $0x168] sm:$0xff]
    %v388 = vld [vmem:[#allocation10 + $0x170] sm:$0xff]
    %v389 = vld [vmem:[#allocation10 + $0x178] sm:$0xff]
    %v390 = vld [vmem:[#allocation10 + $0x180] sm:$0xff]
    %v391 = vld [vmem:[#allocation10 + $0x188] sm:$0xff]
    %v392 = vld [vmem:[#allocation10 + $0x190] sm:$0xff]
    %v393 = vld [vmem:[#allocation10 + $0x198] sm:$0xff]
    %v394 = vld [vmem:[#allocation10 + $0x1a0] sm:$0xf]
    %v395 = vld [vmem:[#allocation10 + $0x1a4] sm:$0xff]
    %v396 = vld [vmem:[#allocation10 + $0x1ac] sm:$0xff]
    %v397 = vld [vmem:[#allocation10 + $0x1b4] sm:$0xff]
    %v398 = vld [vmem:[#allocation10 + $0x1bc] sm:$0xff]
    %v399 = vld [vmem:[#allocation10 + $0x1c4] sm:$0xff]
    %v400 = vld [vmem:[#allocation10 + $0x1cc] sm:$0xff]
    %v401 = vld [vmem:[#allocation10 + $0x1d4] sm:$0xff]
    %v402 = vld [vmem:[#allocation10 + $0x1dc] sm:$0xf]
    %v403 = vld [vmem:[#allocation10 + $0x1e0] sm:$0xff]
    %v404 = vld [vmem:[#allocation10 + $0x1e8] sm:$0xff]
    %v405 = vld [vmem:[#allocation10 + $0x1f0] sm:$0xff]
    %v406 = vld [vmem:[#allocation10 + $0x1f8] sm:$0xff]
    %v407 = vld [vmem:[#allocation10 + $0x200] sm:$0xff]
    %v408 = vld [vmem:[#allocation10 + $0x208] sm:$0xff]
    %v409 = vld [vmem:[#allocation10 + $0x210] sm:$0xff]
    %v410 = vld [vmem:[#allocation10 + $0x218] sm:$0xf]
    %v411 = vld [vmem:[#allocation10 + $0x21c] sm:$0xff]
    %v412 = vld [vmem:[#allocation10 + $0x224] sm:$0xff]
    %v413 = vld [vmem:[#allocation10 + $0x22c] sm:$0xff]
    %v414 = vld [vmem:[#allocation10 + $0x234] sm:$0xff]
    %v415 = vld [vmem:[#allocation10 + $0x23c] sm:$0xff]
    %v416 = vld [vmem:[#allocation10 + $0x244] sm:$0xff]
    %v417 = vld [vmem:[#allocation10 + $0x24c] sm:$0xff]
    %v418 = vld [vmem:[#allocation10 + $0x254] sm:$0xf]
    %v419 = vld [vmem:[#allocation10 + $0x258] sm:$0xff]
    %v420 = vld [vmem:[#allocation10 + $0x260] sm:$0xff]
    %v421 = vld [vmem:[#allocation10 + $0x268] sm:$0xff]
    %v422 = vld [vmem:[#allocation10 + $0x270] sm:$0xff]
    %v423 = vld [vmem:[#allocation10 + $0x278] sm:$0xff]
    %v424 = vld [vmem:[#allocation10 + $0x280] sm:$0xff]
    %v425 = vld [vmem:[#allocation10 + $0x288] sm:$0xff]
    %v426 = vld [vmem:[#allocation10 + $0x290] sm:$0xf]
    %v427 = vld [vmem:[#allocation10 + $0x294] sm:$0xff]
    %v428 = vld [vmem:[#allocation10 + $0x29c] sm:$0xff]
    %v429 = vld [vmem:[#allocation10 + $0x2a4] sm:$0xff]
    %v430 = vld [vmem:[#allocation10 + $0x2ac] sm:$0xff]
    %v431 = vld [vmem:[#allocation10 + $0x2b4] sm:$0xff]
    %v432 = vld [vmem:[#allocation10 + $0x2bc] sm:$0xff]
    %v433 = vld [vmem:[#allocation10 + $0x2c4] sm:$0xff]
    %v434 = vld [vmem:[#allocation10 + $0x2cc] sm:$0xf]
    %v435 = vld [vmem:[#allocation10 + $0x2d0] sm:$0xff]
    %v436 = vld [vmem:[#allocation10 + $0x2d8] sm:$0xff]
    %v437 = vld [vmem:[#allocation10 + $0x2e0] sm:$0xff]
    %v438 = vld [vmem:[#allocation10 + $0x2e8] sm:$0xff]
    %v439 = vld [vmem:[#allocation10 + $0x2f0] sm:$0xff]
    %v440 = vld [vmem:[#allocation10 + $0x2f8] sm:$0xff]
    %v441 = vld [vmem:[#allocation10 + $0x300] sm:$0xff]
    %v442 = vld [vmem:[#allocation10 + $0x308] sm:$0xf]
    %v443 = vld [vmem:[#allocation10 + $0x30c] sm:$0xff]
    %v444 = vld [vmem:[#allocation10 + $0x314] sm:$0xff]
    %v445 = vld [vmem:[#allocation10 + $0x31c] sm:$0xff]
    %v446 = vld [vmem:[#allocation10 + $0x324] sm:$0xff]
    %v447 = vld [vmem:[#allocation10 + $0x32c] sm:$0xff]
    %v448 = vld [vmem:[#allocation10 + $0x334] sm:$0xff]
    %v449 = vld [vmem:[#allocation10 + $0x33c] sm:$0xff]
    %v450 = vld [vmem:[#allocation10 + $0x344] sm:$0xf]
    %v451 = vld [vmem:[#allocation10 + $0x348] sm:$0xff]
    %v452 = vld [vmem:[#allocation10 + $0x350] sm:$0xff]
    %v453 = vld [vmem:[#allocation10 + $0x358] sm:$0xff]
    %v454 = vld [vmem:[#allocation10 + $0x360] sm:$0xff]
    %v455 = vld [vmem:[#allocation10 + $0x368] sm:$0xff]
    %v456 = vld [vmem:[#allocation10 + $0x370] sm:$0xff]
    %v457 = vld [vmem:[#allocation10 + $0x378] sm:$0xff]
    %v458 = vld [vmem:[#allocation10 + $0x380] sm:$0xf]
    %v459 = vld [vmem:[#allocation10 + $0x384] sm:$0xff]
    %v460 = vld [vmem:[#allocation10 + $0x38c] sm:$0xff]
    %v461 = vld [vmem:[#allocation10 + $0x394] sm:$0xff]
    %v462 = vld [vmem:[#allocation10 + $0x39c] sm:$0xff]
    %v463 = vld [vmem:[#allocation10 + $0x3a4] sm:$0xff]
    %v464 = vld [vmem:[#allocation10 + $0x3ac] sm:$0xff]
    %v465 = vld [vmem:[#allocation10 + $0x3b4] sm:$0xff]
    %v466 = vld [vmem:[#allocation10 + $0x3bc] sm:$0xf]
    %v467 = vld [vmem:[#allocation10 + $0x3c0] sm:$0xff]
    %v468 = vld [vmem:[#allocation10 + $0x3c8] sm:$0xff]
    %v469 = vld [vmem:[#allocation10 + $0x3d0] sm:$0xff]
    %v470 = vld [vmem:[#allocation10 + $0x3d8] sm:$0xff]
    %v471 = vld [vmem:[#allocation10 + $0x3e0] sm:$0xff]
    %v472 = vld [vmem:[#allocation10 + $0x3e8] sm:$0xff]
    %v473 = vld [vmem:[#allocation10 + $0x3f0] sm:$0xff]
    %v474 = vld [vmem:[#allocation10 + $0x3f8] sm:$0xf]
    %v475 = vld [vmem:[#allocation10 + $0x3fc] sm:$0xff]
    %v476 = vld [vmem:[#allocation10 + $0x404] sm:$0xff]
    %v477 = vld [vmem:[#allocation10 + $0x40c] sm:$0xff]
    %v478 = vld [vmem:[#allocation10 + $0x414] sm:$0xff]
    %v479 = vld [vmem:[#allocation10 + $0x41c] sm:$0xff]
    %v480 = vld [vmem:[#allocation10 + $0x424] sm:$0xff]
    %v481 = vld [vmem:[#allocation10 + $0x42c] sm:$0xff]
    %v482 = vld [vmem:[#allocation10 + $0x434] sm:$0xf]
    %v483 = vld [vmem:[#allocation10 + $0x438] sm:$0xff]
    %v484 = vld [vmem:[#allocation10 + $0x440] sm:$0xff]
    %v485 = vld [vmem:[#allocation10 + $0x448] sm:$0xff]
    %v486 = vld [vmem:[#allocation10 + $0x450] sm:$0xff]
    %v487 = vld [vmem:[#allocation10 + $0x458] sm:$0xff]
    %v488 = vld [vmem:[#allocation10 + $0x460] sm:$0xff]
    %v489 = vld [vmem:[#allocation10 + $0x468] sm:$0xff]
    %v490 = vld [vmem:[#allocation10 + $0x470] sm:$0xf]
    %v491 = vld [vmem:[#allocation10 + $0x474] sm:$0xff]
    %v492 = vld [vmem:[#allocation10 + $0x47c] sm:$0xff]
    %v493 = vld [vmem:[#allocation10 + $0x484] sm:$0xff]
    %v494 = vld [vmem:[#allocation10 + $0x48c] sm:$0xff]
    %v495 = vld [vmem:[#allocation10 + $0x494] sm:$0xff]
    %v496 = vld [vmem:[#allocation10 + $0x49c] sm:$0xff]
    %v497 = vld [vmem:[#allocation10 + $0x4a4] sm:$0xff]
    %v498 = vld [vmem:[#allocation10 + $0x4ac] sm:$0xf]
    %v499 = vld [vmem:[#allocation10 + $0x4b0] sm:$0xff]
    %v500 = vld [vmem:[#allocation10 + $0x4b8] sm:$0xff]
    %v501 = vld [vmem:[#allocation10 + $0x4c0] sm:$0xff]
    %v502 = vld [vmem:[#allocation10 + $0x4c8] sm:$0xff]
    %v503 = vld [vmem:[#allocation10 + $0x4d0] sm:$0xff]
    %v504 = vld [vmem:[#allocation10 + $0x4d8] sm:$0xff]
    %v505 = vld [vmem:[#allocation10 + $0x4e0] sm:$0xff]
    %v506 = vld [vmem:[#allocation10 + $0x4e8] sm:$0xf]
    %v507 = vld [vmem:[#allocation10 + $0x4ec] sm:$0xff]
    %v508 = vld [vmem:[#allocation10 + $0x4f4] sm:$0xff]
    %v509 = vld [vmem:[#allocation10 + $0x4fc] sm:$0xff]
    %v510 = vld [vmem:[#allocation10 + $0x504] sm:$0xff]
    %v511 = vld [vmem:[#allocation10 + $0x50c] sm:$0xff]
    %v512 = vld [vmem:[#allocation10 + $0x514] sm:$0xff]
    %v513 = vld [vmem:[#allocation10 + $0x51c] sm:$0xff]
    %v514 = vld [vmem:[#allocation10 + $0x524] sm:$0xf]
    %v515 = vld [vmem:[#allocation10 + $0x528] sm:$0xff]
    %v516 = vld [vmem:[#allocation10 + $0x530] sm:$0xff]
    %v517 = vld [vmem:[#allocation10 + $0x538] sm:$0xff]
    %v518 = vld [vmem:[#allocation10 + $0x540] sm:$0xff]
    %v519 = vld [vmem:[#allocation10 + $0x548] sm:$0xff]
    %v520 = vld [vmem:[#allocation10 + $0x550] sm:$0xff]
    %v521 = vld [vmem:[#allocation10 + $0x558] sm:$0xff]
    %v522 = vld [vmem:[#allocation10 + $0x560] sm:$0xf]
    %v523 = vld [vmem:[#allocation10 + $0x564] sm:$0xff]
    %v524 = vld [vmem:[#allocation10 + $0x56c] sm:$0xff]
    %v525 = vld [vmem:[#allocation10 + $0x574] sm:$0xff]
    %v526 = vld [vmem:[#allocation10 + $0x57c] sm:$0xff]
    %v527 = vld [vmem:[#allocation10 + $0x584] sm:$0xff]
    %v528 = vld [vmem:[#allocation10 + $0x58c] sm:$0xff]
    %v529 = vld [vmem:[#allocation10 + $0x594] sm:$0xff]
    %v530 = vld [vmem:[#allocation10 + $0x59c] sm:$0xf]
    %v531 = vld [vmem:[#allocation10 + $0x5a0] sm:$0xff]
    %v532 = vld [vmem:[#allocation10 + $0x5a8] sm:$0xff]
    %v533 = vld [vmem:[#allocation10 + $0x5b0] sm:$0xff]
    %v534 = vld [vmem:[#allocation10 + $0x5b8] sm:$0xff]
    %v535 = vld [vmem:[#allocation10 + $0x5c0] sm:$0xff]
    %v536 = vld [vmem:[#allocation10 + $0x5c8] sm:$0xff]
    %v537 = vld [vmem:[#allocation10 + $0x5d0] sm:$0xff]
    %v538 = vld [vmem:[#allocation10 + $0x5d8] sm:$0xf]
    %v539 = vld [vmem:[#allocation10 + $0x5dc] sm:$0xff]
    %v540 = vld [vmem:[#allocation10 + $0x5e4] sm:$0xff]
    %v541 = vld [vmem:[#allocation10 + $0x5ec] sm:$0xff]
    %v542 = vld [vmem:[#allocation10 + $0x5f4] sm:$0xff]
    %v543 = vld [vmem:[#allocation10 + $0x5fc] sm:$0xff]
    %v544 = vld [vmem:[#allocation10 + $0x604] sm:$0xff]
    %v545 = vld [vmem:[#allocation10 + $0x60c] sm:$0xff]
    %v546 = vld [vmem:[#allocation10 + $0x614] sm:$0xf]
    %v547 = vld [vmem:[#allocation10 + $0x618] sm:$0xff]
    %v548 = vld [vmem:[#allocation10 + $0x620] sm:$0xff]
    %v549 = vld [vmem:[#allocation10 + $0x628] sm:$0xff]
    %v550 = vld [vmem:[#allocation10 + $0x630] sm:$0xff]
    %v551 = vld [vmem:[#allocation10 + $0x638] sm:$0xff]
    %v552 = vld [vmem:[#allocation10 + $0x640] sm:$0xff]
    %v553 = vld [vmem:[#allocation10 + $0x648] sm:$0xff]
    %v554 = vld [vmem:[#allocation10 + $0x650] sm:$0xf]
    %v555 = vld [vmem:[#allocation10 + $0x654] sm:$0xff]
    %v556 = vld [vmem:[#allocation10 + $0x65c] sm:$0xff]
    %v557 = vld [vmem:[#allocation10 + $0x664] sm:$0xff]
    %v558 = vld [vmem:[#allocation10 + $0x66c] sm:$0xff]
    %v559 = vld [vmem:[#allocation10 + $0x674] sm:$0xff]
    %v560 = vld [vmem:[#allocation10 + $0x67c] sm:$0xff]
    %v561 = vld [vmem:[#allocation10 + $0x684] sm:$0xff]
    %v562 = vld [vmem:[#allocation10 + $0x68c] sm:$0xf]
    %v563 = vld [vmem:[#allocation10 + $0x690] sm:$0xff]
    %v564 = vld [vmem:[#allocation10 + $0x698] sm:$0xff]
    %v565 = vld [vmem:[#allocation10 + $0x6a0] sm:$0xff]
    %v566 = vld [vmem:[#allocation10 + $0x6a8] sm:$0xff]
    %v567 = vld [vmem:[#allocation10 + $0x6b0] sm:$0xff]
    %v568 = vld [vmem:[#allocation10 + $0x6b8] sm:$0xff]
    %v569 = vld [vmem:[#allocation10 + $0x6c0] sm:$0xff]
    %v570 = vld [vmem:[#allocation10 + $0x6c8] sm:$0xf]
    %v571 = vld [vmem:[#allocation10 + $0x6cc] sm:$0xff]
    %v572 = vld [vmem:[#allocation10 + $0x6d4] sm:$0xff]
    %v573 = vld [vmem:[#allocation10 + $0x6dc] sm:$0xff]
    %v574 = vld [vmem:[#allocation10 + $0x6e4] sm:$0xff]
    %v575 = vld [vmem:[#allocation10 + $0x6ec] sm:$0xff]
    %v576 = vld [vmem:[#allocation10 + $0x6f4] sm:$0xff]
    %v577 = vld [vmem:[#allocation10 + $0x6fc] sm:$0xff]
    %v578 = vld [vmem:[#allocation10 + $0x704] sm:$0xf]
    %v579 = vld [vmem:[#allocation10 + $0x708] sm:$0xff]
    %v580 = vld [vmem:[#allocation10 + $0x710] sm:$0xff]
    %v581 = vld [vmem:[#allocation10 + $0x718] sm:$0xff]
    %v582 = vld [vmem:[#allocation10 + $0x720] sm:$0xff]
    %v583 = vld [vmem:[#allocation10 + $0x728] sm:$0xff]
    %v584 = vld [vmem:[#allocation10 + $0x730] sm:$0xff]
    %v585 = vld [vmem:[#allocation10 + $0x738] sm:$0xff]
    %v586 = vld [vmem:[#allocation10 + $0x740] sm:$0xf]
    %v587 = vld [vmem:[#allocation10 + $0x744] sm:$0xff]
    %v588 = vld [vmem:[#allocation10 + $0x74c] sm:$0xff]
    %v589 = vld [vmem:[#allocation10 + $0x754] sm:$0xff]
    %v590 = vld [vmem:[#allocation10 + $0x75c] sm:$0xff]
    %v591 = vld [vmem:[#allocation10 + $0x764] sm:$0xff]
    %v592 = vld [vmem:[#allocation10 + $0x76c] sm:$0xff]
    %v593 = vld [vmem:[#allocation10 + $0x774] sm:$0xff]
    %v594 = vld [vmem:[#allocation10 + $0x77c] sm:$0xf]
    %v595 = vld [vmem:[#allocation10 + $0x780] sm:$0xff]
    %v596 = vld [vmem:[#allocation10 + $0x788] sm:$0xff]
    %v597 = vld [vmem:[#allocation10 + $0x790] sm:$0xff]
    %v598 = vld [vmem:[#allocation10 + $0x798] sm:$0xff]
    %v599 = vld [vmem:[#allocation10 + $0x7a0] sm:$0xff]
    %v600 = vld [vmem:[#allocation10 + $0x7a8] sm:$0xff]
    %v601 = vld [vmem:[#allocation10 + $0x7b0] sm:$0xff]
    %v602 = vld [vmem:[#allocation10 + $0x7b8] sm:$0xf]
    %v603 = vld [vmem:[#allocation10 + $0x7bc] sm:$0xff]
    %v604 = vld [vmem:[#allocation10 + $0x7c4] sm:$0xff]
    %v605 = vld [vmem:[#allocation10 + $0x7cc] sm:$0xff]
    %v606 = vld [vmem:[#allocation10 + $0x7d4] sm:$0xff]
    %v607 = vld [vmem:[#allocation10 + $0x7dc] sm:$0xff]
    %v608 = vld [vmem:[#allocation10 + $0x7e4] sm:$0xff]
    %v609 = vld [vmem:[#allocation10 + $0x7ec] sm:$0xff]
    %v610 = vld [vmem:[#allocation10 + $0x7f4] sm:$0xf]
    %v611 = vld [vmem:[#allocation10 + $0x7f8] sm:$0xff]
    %v612 = vld [vmem:[#allocation10 + $0x800] sm:$0xff]
    %v613 = vld [vmem:[#allocation10 + $0x808] sm:$0xff]
    %v614 = vld [vmem:[#allocation10 + $0x810] sm:$0xff]
    %v615 = vld [vmem:[#allocation10 + $0x818] sm:$0xff]
    %v616 = vld [vmem:[#allocation10 + $0x820] sm:$0xff]
    %v617 = vld [vmem:[#allocation10 + $0x828] sm:$0xff]
    %v618 = vld [vmem:[#allocation10 + $0x830] sm:$0xf]
    %v619 = vld [vmem:[#allocation10 + $0x834] sm:$0xff]
    %v620 = vld [vmem:[#allocation10 + $0x83c] sm:$0xff]
    %v621 = vld [vmem:[#allocation10 + $0x844] sm:$0xff]
    %v622 = vld [vmem:[#allocation10 + $0x84c] sm:$0xff]
    %v623 = vld [vmem:[#allocation10 + $0x854] sm:$0xff]
    %v624 = vld [vmem:[#allocation10 + $0x85c] sm:$0xff]
    %v625 = vld [vmem:[#allocation10 + $0x864] sm:$0xff]
    %v626 = vld [vmem:[#allocation10 + $0x86c] sm:$0xf]
    %v627 = vld [vmem:[#allocation10 + $0x870] sm:$0xff]
    %v628 = vld [vmem:[#allocation10 + $0x878] sm:$0xff]
    %v629 = vld [vmem:[#allocation10 + $0x880] sm:$0xff]
    %v630 = vld [vmem:[#allocation10 + $0x888] sm:$0xff]
    %v631 = vld [vmem:[#allocation10 + $0x890] sm:$0xff]
    %v632 = vld [vmem:[#allocation10 + $0x898] sm:$0xff]
    %v633 = vld [vmem:[#allocation10 + $0x8a0] sm:$0xff]
    %v634 = vld [vmem:[#allocation10 + $0x8a8] sm:$0xf]
    %v635 = vld [vmem:[#allocation10 + $0x8ac] sm:$0xff]
    %v636 = vld [vmem:[#allocation10 + $0x8b4] sm:$0xff]
    %v637 = vld [vmem:[#allocation10 + $0x8bc] sm:$0xff]
    %v638 = vld [vmem:[#allocation10 + $0x8c4] sm:$0xff]
    %v639 = vld [vmem:[#allocation10 + $0x8cc] sm:$0xff]
    %v640 = vld [vmem:[#allocation10 + $0x8d4] sm:$0xff]
    %v641 = vld [vmem:[#allocation10 + $0x8dc] sm:$0xff]
    %v642 = vld [vmem:[#allocation10 + $0x8e4] sm:$0xf]
    %v643 = vld [vmem:[#allocation10 + $0x8e8] sm:$0xff]
    %v644 = vld [vmem:[#allocation10 + $0x8f0] sm:$0xff]
    %v645 = vld [vmem:[#allocation10 + $0x8f8] sm:$0xff]
    %v646 = vld [vmem:[#allocation10 + $0x900] sm:$0xff]
    %v647 = vld [vmem:[#allocation10 + $0x908] sm:$0xff]
    %v648 = vld [vmem:[#allocation10 + $0x910] sm:$0xff]
    %v649 = vld [vmem:[#allocation10 + $0x918] sm:$0xff]
    %v650 = vld [vmem:[#allocation10 + $0x920] sm:$0xf]
    %v651 = vld [vmem:[#allocation10 + $0x924] sm:$0xff]
    %v652 = vld [vmem:[#allocation10 + $0x92c] sm:$0xff]
    %v653 = vld [vmem:[#allocation10 + $0x934] sm:$0xff]
    %v654 = vld [vmem:[#allocation10 + $0x93c] sm:$0xff]
    %v655 = vld [vmem:[#allocation10 + $0x944] sm:$0xff]
    %v656 = vld [vmem:[#allocation10 + $0x94c] sm:$0xff]
    %v657 = vld [vmem:[#allocation10 + $0x954] sm:$0xff]
    %v658 = vld [vmem:[#allocation10 + $0x95c] sm:$0xf]
    %v659 = vld [vmem:[#allocation10 + $0x960] sm:$0xff]
    %v660 = vld [vmem:[#allocation10 + $0x968] sm:$0xff]
    %v661 = vld [vmem:[#allocation10 + $0x970] sm:$0xff]
    %v662 = vld [vmem:[#allocation10 + $0x978] sm:$0xff]
    %v663 = vld [vmem:[#allocation10 + $0x980] sm:$0xff]
    %v664 = vld [vmem:[#allocation10 + $0x988] sm:$0xff]
    %v665 = vld [vmem:[#allocation10 + $0x990] sm:$0xff]
    %v666 = vld [vmem:[#allocation10 + $0x998] sm:$0xf]
    %v667 = vld [vmem:[#allocation10 + $0x99c] sm:$0xff]
    %v668 = vld [vmem:[#allocation10 + $0x9a4] sm:$0xff]
    %v669 = vld [vmem:[#allocation10 + $0x9ac] sm:$0xff]
    %v670 = vld [vmem:[#allocation10 + $0x9b4] sm:$0xff]
    %v671 = vld [vmem:[#allocation10 + $0x9bc] sm:$0xff]
    %v672 = vld [vmem:[#allocation10 + $0x9c4] sm:$0xff]
    %v673 = vld [vmem:[#allocation10 + $0x9cc] sm:$0xff]
    %v674 = vld [vmem:[#allocation10 + $0x9d4] sm:$0xf]
    %v675 = vld [vmem:[#allocation10 + $0x9d8] sm:$0xff]
    %v676 = vld [vmem:[#allocation10 + $0x9e0] sm:$0xff]
    %v677 = vld [vmem:[#allocation10 + $0x9e8] sm:$0xff]
    %v678 = vld [vmem:[#allocation10 + $0x9f0] sm:$0xff]
    %v679 = vld [vmem:[#allocation10 + $0x9f8] sm:$0xff]
    %v680 = vld [vmem:[#allocation10 + $0xa00] sm:$0xff]
    %v681 = vld [vmem:[#allocation10 + $0xa08] sm:$0xff]
    %v682 = vld [vmem:[#allocation10 + $0xa10] sm:$0xf]
    %v683 = vld [vmem:[#allocation10 + $0xa14] sm:$0xff]
    %v684 = vld [vmem:[#allocation10 + $0xa1c] sm:$0xff]
    %v685 = vld [vmem:[#allocation10 + $0xa24] sm:$0xff]
    %v686 = vld [vmem:[#allocation10 + $0xa2c] sm:$0xff]
    %v687 = vld [vmem:[#allocation10 + $0xa34] sm:$0xff]
    %v688 = vld [vmem:[#allocation10 + $0xa3c] sm:$0xff]
    %v689 = vld [vmem:[#allocation10 + $0xa44] sm:$0xff]
    %v690 = vld [vmem:[#allocation10 + $0xa4c] sm:$0xf]
    %v691 = vld [vmem:[#allocation10 + $0xa50] sm:$0xff]
    %v692 = vld [vmem:[#allocation10 + $0xa58] sm:$0xff]
    %v693 = vld [vmem:[#allocation10 + $0xa60] sm:$0xff]
    %v694 = vld [vmem:[#allocation10 + $0xa68] sm:$0xff]
    %v695 = vld [vmem:[#allocation10 + $0xa70] sm:$0xff]
    %v696 = vld [vmem:[#allocation10 + $0xa78] sm:$0xff]
    %v697 = vld [vmem:[#allocation10 + $0xa80] sm:$0xff]
    %v698 = vld [vmem:[#allocation10 + $0xa88] sm:$0xf]
    %v699 = vld [vmem:[#allocation10 + $0xa8c] sm:$0xff]
    %v700 = vld [vmem:[#allocation10 + $0xa94] sm:$0xff]
    %v701 = vld [vmem:[#allocation10 + $0xa9c] sm:$0xff]
    %v702 = vld [vmem:[#allocation10 + $0xaa4] sm:$0xff]
    %v703 = vld [vmem:[#allocation10 + $0xaac] sm:$0xff]
    %v704 = vld [vmem:[#allocation10 + $0xab4] sm:$0xff]
    %v705 = vld [vmem:[#allocation10 + $0xabc] sm:$0xff]
    %v706 = vld [vmem:[#allocation10 + $0xac4] sm:$0xf]
    %v707 = vld [vmem:[#allocation10 + $0xac8] sm:$0xff]
    %v708 = vld [vmem:[#allocation10 + $0xad0] sm:$0xff]
    %v709 = vld [vmem:[#allocation10 + $0xad8] sm:$0xff]
    %v710 = vld [vmem:[#allocation10 + $0xae0] sm:$0xff]
    %v711 = vld [vmem:[#allocation10 + $0xae8] sm:$0xff]
    %v712 = vld [vmem:[#allocation10 + $0xaf0] sm:$0xff]
    %v713 = vld [vmem:[#allocation10 + $0xaf8] sm:$0xff]
    %v714 = vld [vmem:[#allocation10 + $0xb00] sm:$0xf]
    %v715 = vld [vmem:[#allocation10 + $0xb04] sm:$0xff]
    %v716 = vld [vmem:[#allocation10 + $0xb0c] sm:$0xff]
    %v717 = vld [vmem:[#allocation10 + $0xb14] sm:$0xff]
    %v718 = vld [vmem:[#allocation10 + $0xb1c] sm:$0xff]
    %v719 = vld [vmem:[#allocation10 + $0xb24] sm:$0xff]
    %v720 = vld [vmem:[#allocation10 + $0xb2c] sm:$0xff]
    %v721 = vld [vmem:[#allocation10 + $0xb34] sm:$0xff]
    %v722 = vld [vmem:[#allocation10 + $0xb3c] sm:$0xf]
    %v723 = vld [vmem:[#allocation10 + $0xb40] sm:$0xff]
    %v724 = vld [vmem:[#allocation10 + $0xb48] sm:$0xff]
    %v725 = vld [vmem:[#allocation10 + $0xb50] sm:$0xff]
    %v726 = vld [vmem:[#allocation10 + $0xb58] sm:$0xff]
    %v727 = vld [vmem:[#allocation10 + $0xb60] sm:$0xff]
    %v728 = vld [vmem:[#allocation10 + $0xb68] sm:$0xff]
    %v729 = vld [vmem:[#allocation10 + $0xb70] sm:$0xff]
    %v730 = vld [vmem:[#allocation10 + $0xb78] sm:$0xf]
    %v731 = vld [vmem:[#allocation10 + $0xb7c] sm:$0xff]
    %v732 = vld [vmem:[#allocation10 + $0xb84] sm:$0xff]
    %v733 = vld [vmem:[#allocation10 + $0xb8c] sm:$0xff]
    %v734 = vld [vmem:[#allocation10 + $0xb94] sm:$0xff]
    %v735 = vld [vmem:[#allocation10 + $0xb9c] sm:$0xff]
    %v736 = vld [vmem:[#allocation10 + $0xba4] sm:$0xff]
    %v737 = vld [vmem:[#allocation10 + $0xbac] sm:$0xff]
    %v738 = vld [vmem:[#allocation10 + $0xbb4] sm:$0xf]
    %v739 = vld [vmem:[#allocation10 + $0xbb8] sm:$0xff]
    %v740 = vld [vmem:[#allocation10 + $0xbc0] sm:$0xff]
    %v741 = vld [vmem:[#allocation10 + $0xbc8] sm:$0xff]
    %v742 = vld [vmem:[#allocation10 + $0xbd0] sm:$0xff]
    %v743 = vld [vmem:[#allocation10 + $0xbd8] sm:$0xff]
    %v744 = vld [vmem:[#allocation10 + $0xbe0] sm:$0xff]
    %v745 = vld [vmem:[#allocation10 + $0xbe8] sm:$0xff]
    %v746 = vld [vmem:[#allocation10 + $0xbf0] sm:$0xf]
    %v747 = vld [vmem:[#allocation10 + $0xbf4] sm:$0xff]
    %v748 = vld [vmem:[#allocation10 + $0xbfc] sm:$0xff]
    %v749 = vld [vmem:[#allocation10 + $0xc04] sm:$0xff]
    %v750 = vld [vmem:[#allocation10 + $0xc0c] sm:$0xff]
    %v751 = vld [vmem:[#allocation10 + $0xc14] sm:$0xff]
    %v752 = vld [vmem:[#allocation10 + $0xc1c] sm:$0xff]
    %v753 = vld [vmem:[#allocation10 + $0xc24] sm:$0xff]
    %v754 = vld [vmem:[#allocation10 + $0xc2c] sm:$0xf]
    %v755 = vld [vmem:[#allocation10 + $0xc30] sm:$0xff]
    %v756 = vld [vmem:[#allocation10 + $0xc38] sm:$0xff]
    %v757 = vld [vmem:[#allocation10 + $0xc40] sm:$0xff]
    %v758 = vld [vmem:[#allocation10 + $0xc48] sm:$0xff]
    %v759 = vld [vmem:[#allocation10 + $0xc50] sm:$0xff]
    %v760 = vld [vmem:[#allocation10 + $0xc58] sm:$0xff]
    %v761 = vld [vmem:[#allocation10 + $0xc60] sm:$0xff]
    %v762 = vld [vmem:[#allocation10 + $0xc68] sm:$0xf]
    %v763 = vld [vmem:[#allocation10 + $0xc6c] sm:$0xff]
    %v764 = vld [vmem:[#allocation10 + $0xc74] sm:$0xff]
    %v765 = vld [vmem:[#allocation10 + $0xc7c] sm:$0xff]
    %v766 = vld [vmem:[#allocation10 + $0xc84] sm:$0xff]
    %v767 = vld [vmem:[#allocation10 + $0xc8c] sm:$0xff]
    %v768 = vld [vmem:[#allocation10 + $0xc94] sm:$0xff]
    %v769 = vld [vmem:[#allocation10 + $0xc9c] sm:$0xff]
    %v770 = vld [vmem:[#allocation10 + $0xca4] sm:$0xf]
    %v771 = vld [vmem:[#allocation10 + $0xca8] sm:$0xff]
    %v772 = vld [vmem:[#allocation10 + $0xcb0] sm:$0xff]
    %v773 = vld [vmem:[#allocation10 + $0xcb8] sm:$0xff]
    %v774 = vld [vmem:[#allocation10 + $0xcc0] sm:$0xff]
    %v775 = vld [vmem:[#allocation10 + $0xcc8] sm:$0xff]
    %v776 = vld [vmem:[#allocation10 + $0xcd0] sm:$0xff]
    %v777 = vld [vmem:[#allocation10 + $0xcd8] sm:$0xff]
    %v778 = vld [vmem:[#allocation10 + $0xce0] sm:$0xf]
    %v779 = vld [vmem:[#allocation10 + $0xce4] sm:$0xff]
    %v780 = vld [vmem:[#allocation10 + $0xcec] sm:$0xff]
    %v781 = vld [vmem:[#allocation10 + $0xcf4] sm:$0xff]
    %v782 = vld [vmem:[#allocation10 + $0xcfc] sm:$0xff]
    %v783 = vld [vmem:[#allocation10 + $0xd04] sm:$0xff]
    %v784 = vld [vmem:[#allocation10 + $0xd0c] sm:$0xff]
    %v785 = vld [vmem:[#allocation10 + $0xd14] sm:$0xff]
    %v786 = vld [vmem:[#allocation10 + $0xd1c] sm:$0xf]
    %v787 = vld [vmem:[#allocation10 + $0xd20] sm:$0xff]
    %v788 = vld [vmem:[#allocation10 + $0xd28] sm:$0xff]
    %v789 = vld [vmem:[#allocation10 + $0xd30] sm:$0xff]
    %v790 = vld [vmem:[#allocation10 + $0xd38] sm:$0xff]
    %v791 = vld [vmem:[#allocation10 + $0xd40] sm:$0xff]
    %v792 = vld [vmem:[#allocation10 + $0xd48] sm:$0xff]
    %v793 = vld [vmem:[#allocation10 + $0xd50] sm:$0xff]
    %v794 = vld [vmem:[#allocation10 + $0xd58] sm:$0xf]
    %v795 = vld [vmem:[#allocation10 + $0xd5c] sm:$0xff]
    %v796 = vld [vmem:[#allocation10 + $0xd64] sm:$0xff]
    %v797 = vld [vmem:[#allocation10 + $0xd6c] sm:$0xff]
    %v798 = vld [vmem:[#allocation10 + $0xd74] sm:$0xff]
    %v799 = vld [vmem:[#allocation10 + $0xd7c] sm:$0xff]
    %v800 = vld [vmem:[#allocation10 + $0xd84] sm:$0xff]
    %v801 = vld [vmem:[#allocation10 + $0xd8c] sm:$0xff]
    %v802 = vld [vmem:[#allocation10 + $0xd94] sm:$0xf]
    %v803 = vld [vmem:[#allocation10 + $0xd98] sm:$0xff]
    %v804 = vld [vmem:[#allocation10 + $0xda0] sm:$0xff]
    %v805 = vld [vmem:[#allocation10 + $0xda8] sm:$0xff]
    %v806 = vld [vmem:[#allocation10 + $0xdb0] sm:$0xff]
    %v807 = vld [vmem:[#allocation10 + $0xdb8] sm:$0xff]
    %v808 = vld [vmem:[#allocation10 + $0xdc0] sm:$0xff]
    %v809 = vld [vmem:[#allocation10 + $0xdc8] sm:$0xff]
    %v810 = vld [vmem:[#allocation10 + $0xdd0] sm:$0xf]
    %v811 = vld [vmem:[#allocation10 + $0xdd4] sm:$0xff]
    %v812 = vld [vmem:[#allocation10 + $0xddc] sm:$0xff]
    %v813 = vld [vmem:[#allocation10 + $0xde4] sm:$0xff]
    %v814 = vld [vmem:[#allocation10 + $0xdec] sm:$0xff]
    %v815 = vld [vmem:[#allocation10 + $0xdf4] sm:$0xff]
    %v816 = vld [vmem:[#allocation10 + $0xdfc] sm:$0xff]
    %v817 = vld [vmem:[#allocation10 + $0xe04] sm:$0xff]
    %v818 = vld [vmem:[#allocation10 + $0xe0c] sm:$0xf]
    %v819 = vld [vmem:[#allocation10 + $0xe10] sm:$0xff]
    %v820 = vld [vmem:[#allocation10 + $0xe18] sm:$0xff]
    %v821 = vld [vmem:[#allocation10 + $0xe20] sm:$0xff]
    %v822 = vld [vmem:[#allocation10 + $0xe28] sm:$0xff]
    %v823 = vld [vmem:[#allocation10 + $0xe30] sm:$0xff]
    %v824 = vld [vmem:[#allocation10 + $0xe38] sm:$0xff]
    %v825 = vld [vmem:[#allocation10 + $0xe40] sm:$0xff]
    %v826 = vld [vmem:[#allocation10 + $0xe48] sm:$0xf]
    %v827 = vld [vmem:[#allocation10 + $0xe4c] sm:$0xff]
    %v828 = vld [vmem:[#allocation10 + $0xe54] sm:$0xff]
    %v829 = vld [vmem:[#allocation10 + $0xe5c] sm:$0xff]
    %v830 = vld [vmem:[#allocation10 + $0xe64] sm:$0xff]
    %v831 = vld [vmem:[#allocation10 + $0xe6c] sm:$0xff]
    %v832 = vld [vmem:[#allocation10 + $0xe74] sm:$0xff]
    %v833 = vld [vmem:[#allocation10 + $0xe7c] sm:$0xff]
    %v834 = vld [vmem:[#allocation10 + $0xe84] sm:$0xf]
    %v835 = vld [vmem:[#allocation10 + $0xe88] sm:$0xff]
    %v836 = vld [vmem:[#allocation10 + $0xe90] sm:$0xff]
    %v837 = vld [vmem:[#allocation10 + $0xe98] sm:$0xff]
    %v838 = vld [vmem:[#allocation10 + $0xea0] sm:$0xff]
    %v839 = vld [vmem:[#allocation10 + $0xea8] sm:$0xff]
    %v840 = vld [vmem:[#allocation10 + $0xeb0] sm:$0xff]
    %v841 = vld [vmem:[#allocation10 + $0xeb8] sm:$0xff]
    %v842 = vld [vmem:[#allocation10 + $0xec0] sm:$0xf]
    %v843 = vld [vmem:[#allocation10 + $0xec4] sm:$0xff]
    %v844 = vld [vmem:[#allocation10 + $0xecc] sm:$0xff]
    %v845 = vld [vmem:[#allocation10 + $0xed4] sm:$0xff]
    %v846 = vld [vmem:[#allocation10 + $0xedc] sm:$0xff]
    %v847 = vld [vmem:[#allocation10 + $0xee4] sm:$0xff]
    %v848 = vld [vmem:[#allocation10 + $0xeec] sm:$0xff]
    %v849 = vld [vmem:[#allocation10 + $0xef4] sm:$0xff]
    %v850 = vld [vmem:[#allocation10 + $0xefc] sm:$0xf]
    %v851 = vld [vmem:[#allocation12] sm:$0xff]
    %v852 = vld [vmem:[#allocation12 + $0x8] sm:$0xff]
    %v855 = vperm.slane %v851, 0
    %v856 = vperm.slane %v851, 1
    %v857 = vperm.slane %v851, 2
    %v858 = vperm.slane %v851, 3
    %v859 = vperm.slane %v851, 4
    %v860 = vperm.slane %v851, 5
    %v861 = vperm.slane %v851, 6
    %v862 = vperm.slane %v851, 7
    %v863 = vperm.slane %v852, 0
    %v864 = vperm.slane %v852, 1
    %v865 = vperm.slane %v852, 2
    %v866 = vperm.slane %v852, 3
    %v867 = vperm.slane %v852, 4
    %v868 = vperm.slane %v852, 5
    %v869 = vperm.slane %v852, 6
    %v1397 = vunpack.c.l.b16 %v339
    %v1398 = vunpack.c.h.b16 %v339
    %v1399 = vunpack.c.l.b16 %v340
    %v1400 = vunpack.c.h.b16 %v340
    %v1401 = vunpack.c.l.b16 %v341
    %v1402 = vunpack.c.h.b16 %v341
    %v1403 = vunpack.c.l.b16 %v342
    %v1404 = vunpack.c.h.b16 %v342
    %v1405 = vunpack.c.l.b16 %v343
    %v1406 = vunpack.c.h.b16 %v343
    %v1407 = vunpack.c.l.b16 %v344
    %v1408 = vunpack.c.h.b16 %v344
    %v1409 = vunpack.c.l.b16 %v345
    %v1410 = vunpack.c.h.b16 %v345
    %v1411 = vunpack.c.l.b16 %v346
    %v1412 = vunpack.c.l.b16 %v347
    %v1413 = vunpack.c.h.b16 %v347
    %v1414 = vunpack.c.l.b16 %v348
    %v1415 = vunpack.c.h.b16 %v348
    %v1416 = vunpack.c.l.b16 %v349
    %v1417 = vunpack.c.h.b16 %v349
    %v1418 = vunpack.c.l.b16 %v350
    %v1419 = vunpack.c.h.b16 %v350
    %v1420 = vunpack.c.l.b16 %v351
    %v1421 = vunpack.c.h.b16 %v351
    %v1422 = vunpack.c.l.b16 %v352
    %v1423 = vunpack.c.h.b16 %v352
    %v1424 = vunpack.c.l.b16 %v353
    %v1425 = vunpack.c.h.b16 %v353
    %v1426 = vunpack.c.l.b16 %v354
    %v1427 = vunpack.c.l.b16 %v355
    %v1428 = vunpack.c.h.b16 %v355
    %v1429 = vunpack.c.l.b16 %v356
    %v1430 = vunpack.c.h.b16 %v356
    %v1431 = vunpack.c.l.b16 %v357
    %v1432 = vunpack.c.h.b16 %v357
    %v1433 = vunpack.c.l.b16 %v358
    %v1434 = vunpack.c.h.b16 %v358
    %v1435 = vunpack.c.l.b16 %v359
    %v1436 = vunpack.c.h.b16 %v359
    %v1437 = vunpack.c.l.b16 %v360
    %v1438 = vunpack.c.h.b16 %v360
    %v1439 = vunpack.c.l.b16 %v361
    %v1440 = vunpack.c.h.b16 %v361
    %v1441 = vunpack.c.l.b16 %v362
    %v1442 = vunpack.c.l.b16 %v363
    %v1443 = vunpack.c.h.b16 %v363
    %v1444 = vunpack.c.l.b16 %v364
    %v1445 = vunpack.c.h.b16 %v364
    %v1446 = vunpack.c.l.b16 %v365
    %v1447 = vunpack.c.h.b16 %v365
    %v1448 = vunpack.c.l.b16 %v366
    %v1449 = vunpack.c.h.b16 %v366
    %v1450 = vunpack.c.l.b16 %v367
    %v1451 = vunpack.c.h.b16 %v367
    %v1452 = vunpack.c.l.b16 %v368
    %v1453 = vunpack.c.h.b16 %v368
    %v1454 = vunpack.c.l.b16 %v369
    %v1455 = vunpack.c.h.b16 %v369
    %v1456 = vunpack.c.l.b16 %v370
    %v1457 = vunpack.c.l.b16 %v371
    %v1458 = vunpack.c.h.b16 %v371
    %v1459 = vunpack.c.l.b16 %v372
    %v1460 = vunpack.c.h.b16 %v372
    %v1461 = vunpack.c.l.b16 %v373
    %v1462 = vunpack.c.h.b16 %v373
    %v1463 = vunpack.c.l.b16 %v374
    %v1464 = vunpack.c.h.b16 %v374
    %v1465 = vunpack.c.l.b16 %v375
    %v1466 = vunpack.c.h.b16 %v375
    %v1467 = vunpack.c.l.b16 %v376
    %v1468 = vunpack.c.h.b16 %v376
    %v1469 = vunpack.c.l.b16 %v377
    %v1470 = vunpack.c.h.b16 %v377
    %v1471 = vunpack.c.l.b16 %v378
    %v1472 = vunpack.c.l.b16 %v379
    %v1473 = vunpack.c.h.b16 %v379
    %v1474 = vunpack.c.l.b16 %v380
    %v1475 = vunpack.c.h.b16 %v380
    %v1476 = vunpack.c.l.b16 %v381
    %v1477 = vunpack.c.h.b16 %v381
    %v1478 = vunpack.c.l.b16 %v382
    %v1479 = vunpack.c.h.b16 %v382
    %v1480 = vunpack.c.l.b16 %v383
    %v1481 = vunpack.c.h.b16 %v383
    %v1482 = vunpack.c.l.b16 %v384
    %v1483 = vunpack.c.h.b16 %v384
    %v1484 = vunpack.c.l.b16 %v385
    %v1485 = vunpack.c.h.b16 %v385
    %v1486 = vunpack.c.l.b16 %v386
    %v1487 = vunpack.c.l.b16 %v387
    %v1488 = vunpack.c.h.b16 %v387
    %v1489 = vunpack.c.l.b16 %v388
    %v1490 = vunpack.c.h.b16 %v388
    %v1491 = vunpack.c.l.b16 %v389
    %v1492 = vunpack.c.h.b16 %v389
    %v1493 = vunpack.c.l.b16 %v390
    %v1494 = vunpack.c.h.b16 %v390
    %v1495 = vunpack.c.l.b16 %v391
    %v1496 = vunpack.c.h.b16 %v391
    %v1497 = vunpack.c.l.b16 %v392
    %v1498 = vunpack.c.h.b16 %v392
    %v1499 = vunpack.c.l.b16 %v393
    %v1500 = vunpack.c.h.b16 %v393
    %v1501 = vunpack.c.l.b16 %v394
    %v1502 = vunpack.c.l.b16 %v395
    %v1503 = vunpack.c.h.b16 %v395
    %v1504 = vunpack.c.l.b16 %v396
    %v1505 = vunpack.c.h.b16 %v396
    %v1506 = vunpack.c.l.b16 %v397
    %v1507 = vunpack.c.h.b16 %v397
    %v1508 = vunpack.c.l.b16 %v398
    %v1509 = vunpack.c.h.b16 %v398
    %v1510 = vunpack.c.l.b16 %v399
    %v1511 = vunpack.c.h.b16 %v399
    %v1512 = vunpack.c.l.b16 %v400
    %v1513 = vunpack.c.h.b16 %v400
    %v1514 = vunpack.c.l.b16 %v401
    %v1515 = vunpack.c.h.b16 %v401
    %v1516 = vunpack.c.l.b16 %v402
    %v1517 = vunpack.c.l.b16 %v403
    %v1518 = vunpack.c.h.b16 %v403
    %v1519 = vunpack.c.l.b16 %v404
    %v1520 = vunpack.c.h.b16 %v404
    %v1521 = vunpack.c.l.b16 %v405
    %v1522 = vunpack.c.h.b16 %v405
    %v1523 = vunpack.c.l.b16 %v406
    %v1524 = vunpack.c.h.b16 %v406
    %v1525 = vunpack.c.l.b16 %v407
    %v1526 = vunpack.c.h.b16 %v407
    %v1527 = vunpack.c.l.b16 %v408
    %v1528 = vunpack.c.h.b16 %v408
    %v1529 = vunpack.c.l.b16 %v409
    %v1530 = vunpack.c.h.b16 %v409
    %v1531 = vunpack.c.l.b16 %v410
    %v1532 = vunpack.c.l.b16 %v411
    %v1533 = vunpack.c.h.b16 %v411
    %v1534 = vunpack.c.l.b16 %v412
    %v1535 = vunpack.c.h.b16 %v412
    %v1536 = vunpack.c.l.b16 %v413
    %v1537 = vunpack.c.h.b16 %v413
    %v1538 = vunpack.c.l.b16 %v414
    %v1539 = vunpack.c.h.b16 %v414
    %v1540 = vunpack.c.l.b16 %v415
    %v1541 = vunpack.c.h.b16 %v415
    %v1542 = vunpack.c.l.b16 %v416
    %v1543 = vunpack.c.h.b16 %v416
    %v1544 = vunpack.c.l.b16 %v417
    %v1545 = vunpack.c.h.b16 %v417
    %v1546 = vunpack.c.l.b16 %v418
    %v1547 = vunpack.c.l.b16 %v419
    %v1548 = vunpack.c.h.b16 %v419
    %v1549 = vunpack.c.l.b16 %v420
    %v1550 = vunpack.c.h.b16 %v420
    %v1551 = vunpack.c.l.b16 %v421
    %v1552 = vunpack.c.h.b16 %v421
    %v1553 = vunpack.c.l.b16 %v422
    %v1554 = vunpack.c.h.b16 %v422
    %v1555 = vunpack.c.l.b16 %v423
    %v1556 = vunpack.c.h.b16 %v423
    %v1557 = vunpack.c.l.b16 %v424
    %v1558 = vunpack.c.h.b16 %v424
    %v1559 = vunpack.c.l.b16 %v425
    %v1560 = vunpack.c.h.b16 %v425
    %v1561 = vunpack.c.l.b16 %v426
    %v1562 = vunpack.c.l.b16 %v427
    %v1563 = vunpack.c.h.b16 %v427
    %v1564 = vunpack.c.l.b16 %v428
    %v1565 = vunpack.c.h.b16 %v428
    %v1566 = vunpack.c.l.b16 %v429
    %v1567 = vunpack.c.h.b16 %v429
    %v1568 = vunpack.c.l.b16 %v430
    %v1569 = vunpack.c.h.b16 %v430
    %v1570 = vunpack.c.l.b16 %v431
    %v1571 = vunpack.c.h.b16 %v431
    %v1572 = vunpack.c.l.b16 %v432
    %v1573 = vunpack.c.h.b16 %v432
    %v1574 = vunpack.c.l.b16 %v433
    %v1575 = vunpack.c.h.b16 %v433
    %v1576 = vunpack.c.l.b16 %v434
    %v1577 = vunpack.c.l.b16 %v435
    %v1578 = vunpack.c.h.b16 %v435
    %v1579 = vunpack.c.l.b16 %v436
    %v1580 = vunpack.c.h.b16 %v436
    %v1581 = vunpack.c.l.b16 %v437
    %v1582 = vunpack.c.h.b16 %v437
    %v1583 = vunpack.c.l.b16 %v438
    %v1584 = vunpack.c.h.b16 %v438
    %v1585 = vunpack.c.l.b16 %v439
    %v1586 = vunpack.c.h.b16 %v439
    %v1587 = vunpack.c.l.b16 %v440
    %v1588 = vunpack.c.h.b16 %v440
    %v1589 = vunpack.c.l.b16 %v441
    %v1590 = vunpack.c.h.b16 %v441
    %v1591 = vunpack.c.l.b16 %v442
    %v1592 = vunpack.c.l.b16 %v443
    %v1593 = vunpack.c.h.b16 %v443
    %v1594 = vunpack.c.l.b16 %v444
    %v1595 = vunpack.c.h.b16 %v444
    %v1596 = vunpack.c.l.b16 %v445
    %v1597 = vunpack.c.h.b16 %v445
    %v1598 = vunpack.c.l.b16 %v446
    %v1599 = vunpack.c.h.b16 %v446
    %v1600 = vunpack.c.l.b16 %v447
    %v1601 = vunpack.c.h.b16 %v447
    %v1602 = vunpack.c.l.b16 %v448
    %v1603 = vunpack.c.h.b16 %v448
    %v1604 = vunpack.c.l.b16 %v449
    %v1605 = vunpack.c.h.b16 %v449
    %v1606 = vunpack.c.l.b16 %v450
    %v1607 = vunpack.c.l.b16 %v451
    %v1608 = vunpack.c.h.b16 %v451
    %v1609 = vunpack.c.l.b16 %v452
    %v1610 = vunpack.c.h.b16 %v452
    %v1611 = vunpack.c.l.b16 %v453
    %v1612 = vunpack.c.h.b16 %v453
    %v1613 = vunpack.c.l.b16 %v454
    %v1614 = vunpack.c.h.b16 %v454
    %v1615 = vunpack.c.l.b16 %v455
    %v1616 = vunpack.c.h.b16 %v455
    %v1617 = vunpack.c.l.b16 %v456
    %v1618 = vunpack.c.h.b16 %v456
    %v1619 = vunpack.c.l.b16 %v457
    %v1620 = vunpack.c.h.b16 %v457
    %v1621 = vunpack.c.l.b16 %v458
    %v1622 = vunpack.c.l.b16 %v459
    %v1623 = vunpack.c.h.b16 %v459
    %v1624 = vunpack.c.l.b16 %v460
    %v1625 = vunpack.c.h.b16 %v460
    %v1626 = vunpack.c.l.b16 %v461
    %v1627 = vunpack.c.h.b16 %v461
    %v1628 = vunpack.c.l.b16 %v462
    %v1629 = vunpack.c.h.b16 %v462
    %v1630 = vunpack.c.l.b16 %v463
    %v1631 = vunpack.c.h.b16 %v463
    %v1632 = vunpack.c.l.b16 %v464
    %v1633 = vunpack.c.h.b16 %v464
    %v1634 = vunpack.c.l.b16 %v465
    %v1635 = vunpack.c.h.b16 %v465
    %v1636 = vunpack.c.l.b16 %v466
    %v1637 = vunpack.c.l.b16 %v467
    %v1638 = vunpack.c.h.b16 %v467
    %v1639 = vunpack.c.l.b16 %v468
    %v1640 = vunpack.c.h.b16 %v468
    %v1641 = vunpack.c.l.b16 %v469
    %v1642 = vunpack.c.h.b16 %v469
    %v1643 = vunpack.c.l.b16 %v470
    %v1644 = vunpack.c.h.b16 %v470
    %v1645 = vunpack.c.l.b16 %v471
    %v1646 = vunpack.c.h.b16 %v471
    %v1647 = vunpack.c.l.b16 %v472
    %v1648 = vunpack.c.h.b16 %v472
    %v1649 = vunpack.c.l.b16 %v473
    %v1650 = vunpack.c.h.b16 %v473
    %v1651 = vunpack.c.l.b16 %v474
    %v1652 = vunpack.c.l.b16 %v475
    %v1653 = vunpack.c.h.b16 %v475
    %v1654 = vunpack.c.l.b16 %v476
    %v1655 = vunpack.c.h.b16 %v476
    %v1656 = vunpack.c.l.b16 %v477
    %v1657 = vunpack.c.h.b16 %v477
    %v1658 = vunpack.c.l.b16 %v478
    %v1659 = vunpack.c.h.b16 %v478
    %v1660 = vunpack.c.l.b16 %v479
    %v1661 = vunpack.c.h.b16 %v479
    %v1662 = vunpack.c.l.b16 %v480
    %v1663 = vunpack.c.h.b16 %v480
    %v1664 = vunpack.c.l.b16 %v481
    %v1665 = vunpack.c.h.b16 %v481
    %v1666 = vunpack.c.l.b16 %v482
    %v1667 = vunpack.c.l.b16 %v483
    %v1668 = vunpack.c.h.b16 %v483
    %v1669 = vunpack.c.l.b16 %v484
    %v1670 = vunpack.c.h.b16 %v484
    %v1671 = vunpack.c.l.b16 %v485
    %v1672 = vunpack.c.h.b16 %v485
    %v1673 = vunpack.c.l.b16 %v486
    %v1674 = vunpack.c.h.b16 %v486
    %v1675 = vunpack.c.l.b16 %v487
    %v1676 = vunpack.c.h.b16 %v487
    %v1677 = vunpack.c.l.b16 %v488
    %v1678 = vunpack.c.h.b16 %v488
    %v1679 = vunpack.c.l.b16 %v489
    %v1680 = vunpack.c.h.b16 %v489
    %v1681 = vunpack.c.l.b16 %v490
    %v1682 = vunpack.c.l.b16 %v491
    %v1683 = vunpack.c.h.b16 %v491
    %v1684 = vunpack.c.l.b16 %v492
    %v1685 = vunpack.c.h.b16 %v492
    %v1686 = vunpack.c.l.b16 %v493
    %v1687 = vunpack.c.h.b16 %v493
    %v1688 = vunpack.c.l.b16 %v494
    %v1689 = vunpack.c.h.b16 %v494
    %v1690 = vunpack.c.l.b16 %v495
    %v1691 = vunpack.c.h.b16 %v495
    %v1692 = vunpack.c.l.b16 %v496
    %v1693 = vunpack.c.h.b16 %v496
    %v1694 = vunpack.c.l.b16 %v497
    %v1695 = vunpack.c.h.b16 %v497
    %v1696 = vunpack.c.l.b16 %v498
    %v1697 = vunpack.c.l.b16 %v499
    %v1698 = vunpack.c.h.b16 %v499
    %v1699 = vunpack.c.l.b16 %v500
    %v1700 = vunpack.c.h.b16 %v500
    %v1701 = vunpack.c.l.b16 %v501
    %v1702 = vunpack.c.h.b16 %v501
    %v1703 = vunpack.c.l.b16 %v502
    %v1704 = vunpack.c.h.b16 %v502
    %v1705 = vunpack.c.l.b16 %v503
    %v1706 = vunpack.c.h.b16 %v503
    %v1707 = vunpack.c.l.b16 %v504
    %v1708 = vunpack.c.h.b16 %v504
    %v1709 = vunpack.c.l.b16 %v505
    %v1710 = vunpack.c.h.b16 %v505
    %v1711 = vunpack.c.l.b16 %v506
    %v1712 = vunpack.c.l.b16 %v507
    %v1713 = vunpack.c.h.b16 %v507
    %v1714 = vunpack.c.l.b16 %v508
    %v1715 = vunpack.c.h.b16 %v508
    %v1716 = vunpack.c.l.b16 %v509
    %v1717 = vunpack.c.h.b16 %v509
    %v1718 = vunpack.c.l.b16 %v510
    %v1719 = vunpack.c.h.b16 %v510
    %v1720 = vunpack.c.l.b16 %v511
    %v1721 = vunpack.c.h.b16 %v511
    %v1722 = vunpack.c.l.b16 %v512
    %v1723 = vunpack.c.h.b16 %v512
    %v1724 = vunpack.c.l.b16 %v513
    %v1725 = vunpack.c.h.b16 %v513
    %v1726 = vunpack.c.l.b16 %v514
    %v1727 = vunpack.c.l.b16 %v515
    %v1728 = vunpack.c.h.b16 %v515
    %v1729 = vunpack.c.l.b16 %v516
    %v1730 = vunpack.c.h.b16 %v516
    %v1731 = vunpack.c.l.b16 %v517
    %v1732 = vunpack.c.h.b16 %v517
    %v1733 = vunpack.c.l.b16 %v518
    %v1734 = vunpack.c.h.b16 %v518
    %v1735 = vunpack.c.l.b16 %v519
    %v1736 = vunpack.c.h.b16 %v519
    %v1737 = vunpack.c.l.b16 %v520
    %v1738 = vunpack.c.h.b16 %v520
    %v1739 = vunpack.c.l.b16 %v521
    %v1740 = vunpack.c.h.b16 %v521
    %v1741 = vunpack.c.l.b16 %v522
    %v1742 = vunpack.c.l.b16 %v523
    %v1743 = vunpack.c.h.b16 %v523
    %v1744 = vunpack.c.l.b16 %v524
    %v1745 = vunpack.c.h.b16 %v524
    %v1746 = vunpack.c.l.b16 %v525
    %v1747 = vunpack.c.h.b16 %v525
    %v1748 = vunpack.c.l.b16 %v526
    %v1749 = vunpack.c.h.b16 %v526
    %v1750 = vunpack.c.l.b16 %v527
    %v1751 = vunpack.c.h.b16 %v527
    %v1752 = vunpack.c.l.b16 %v528
    %v1753 = vunpack.c.h.b16 %v528
    %v1754 = vunpack.c.l.b16 %v529
    %v1755 = vunpack.c.h.b16 %v529
    %v1756 = vunpack.c.l.b16 %v530
    %v1757 = vunpack.c.l.b16 %v531
    %v1758 = vunpack.c.h.b16 %v531
    %v1759 = vunpack.c.l.b16 %v532
    %v1760 = vunpack.c.h.b16 %v532
    %v1761 = vunpack.c.l.b16 %v533
    %v1762 = vunpack.c.h.b16 %v533
    %v1763 = vunpack.c.l.b16 %v534
    %v1764 = vunpack.c.h.b16 %v534
    %v1765 = vunpack.c.l.b16 %v535
    %v1766 = vunpack.c.h.b16 %v535
    %v1767 = vunpack.c.l.b16 %v536
    %v1768 = vunpack.c.h.b16 %v536
    %v1769 = vunpack.c.l.b16 %v537
    %v1770 = vunpack.c.h.b16 %v537
    %v1771 = vunpack.c.l.b16 %v538
    %v1772 = vunpack.c.l.b16 %v539
    %v1773 = vunpack.c.h.b16 %v539
    %v1774 = vunpack.c.l.b16 %v540
    %v1775 = vunpack.c.h.b16 %v540
    %v1776 = vunpack.c.l.b16 %v541
    %v1777 = vunpack.c.h.b16 %v541
    %v1778 = vunpack.c.l.b16 %v542
    %v1779 = vunpack.c.h.b16 %v542
    %v1780 = vunpack.c.l.b16 %v543
    %v1781 = vunpack.c.h.b16 %v543
    %v1782 = vunpack.c.l.b16 %v544
    %v1783 = vunpack.c.h.b16 %v544
    %v1784 = vunpack.c.l.b16 %v545
    %v1785 = vunpack.c.h.b16 %v545
    %v1786 = vunpack.c.l.b16 %v546
    %v1787 = vunpack.c.l.b16 %v547
    %v1788 = vunpack.c.h.b16 %v547
    %v1789 = vunpack.c.l.b16 %v548
    %v1790 = vunpack.c.h.b16 %v548
    %v1791 = vunpack.c.l.b16 %v549
    %v1792 = vunpack.c.h.b16 %v549
    %v1793 = vunpack.c.l.b16 %v550
    %v1794 = vunpack.c.h.b16 %v550
    %v1795 = vunpack.c.l.b16 %v551
    %v1796 = vunpack.c.h.b16 %v551
    %v1797 = vunpack.c.l.b16 %v552
    %v1798 = vunpack.c.h.b16 %v552
    %v1799 = vunpack.c.l.b16 %v553
    %v1800 = vunpack.c.h.b16 %v553
    %v1801 = vunpack.c.l.b16 %v554
    %v1802 = vunpack.c.l.b16 %v555
    %v1803 = vunpack.c.h.b16 %v555
    %v1804 = vunpack.c.l.b16 %v556
    %v1805 = vunpack.c.h.b16 %v556
    %v1806 = vunpack.c.l.b16 %v557
    %v1807 = vunpack.c.h.b16 %v557
    %v1808 = vunpack.c.l.b16 %v558
    %v1809 = vunpack.c.h.b16 %v558
    %v1810 = vunpack.c.l.b16 %v559
    %v1811 = vunpack.c.h.b16 %v559
    %v1812 = vunpack.c.l.b16 %v560
    %v1813 = vunpack.c.h.b16 %v560
    %v1814 = vunpack.c.l.b16 %v561
    %v1815 = vunpack.c.h.b16 %v561
    %v1816 = vunpack.c.l.b16 %v562
    %v1817 = vunpack.c.l.b16 %v563
    %v1818 = vunpack.c.h.b16 %v563
    %v1819 = vunpack.c.l.b16 %v564
    %v1820 = vunpack.c.h.b16 %v564
    %v1821 = vunpack.c.l.b16 %v565
    %v1822 = vunpack.c.h.b16 %v565
    %v1823 = vunpack.c.l.b16 %v566
    %v1824 = vunpack.c.h.b16 %v566
    %v1825 = vunpack.c.l.b16 %v567
    %v1826 = vunpack.c.h.b16 %v567
    %v1827 = vunpack.c.l.b16 %v568
    %v1828 = vunpack.c.h.b16 %v568
    %v1829 = vunpack.c.l.b16 %v569
    %v1830 = vunpack.c.h.b16 %v569
    %v1831 = vunpack.c.l.b16 %v570
    %v1832 = vunpack.c.l.b16 %v571
    %v1833 = vunpack.c.h.b16 %v571
    %v1834 = vunpack.c.l.b16 %v572
    %v1835 = vunpack.c.h.b16 %v572
    %v1836 = vunpack.c.l.b16 %v573
    %v1837 = vunpack.c.h.b16 %v573
    %v1838 = vunpack.c.l.b16 %v574
    %v1839 = vunpack.c.h.b16 %v574
    %v1840 = vunpack.c.l.b16 %v575
    %v1841 = vunpack.c.h.b16 %v575
    %v1842 = vunpack.c.l.b16 %v576
    %v1843 = vunpack.c.h.b16 %v576
    %v1844 = vunpack.c.l.b16 %v577
    %v1845 = vunpack.c.h.b16 %v577
    %v1846 = vunpack.c.l.b16 %v578
    %v1847 = vunpack.c.l.b16 %v579
    %v1848 = vunpack.c.h.b16 %v579
    %v1849 = vunpack.c.l.b16 %v580
    %v1850 = vunpack.c.h.b16 %v580
    %v1851 = vunpack.c.l.b16 %v581
    %v1852 = vunpack.c.h.b16 %v581
    %v1853 = vunpack.c.l.b16 %v582
    %v1854 = vunpack.c.h.b16 %v582
    %v1855 = vunpack.c.l.b16 %v583
    %v1856 = vunpack.c.h.b16 %v583
    %v1857 = vunpack.c.l.b16 %v584
    %v1858 = vunpack.c.h.b16 %v584
    %v1859 = vunpack.c.l.b16 %v585
    %v1860 = vunpack.c.h.b16 %v585
    %v1861 = vunpack.c.l.b16 %v586
    %v1862 = vunpack.c.l.b16 %v587
    %v1863 = vunpack.c.h.b16 %v587
    %v1864 = vunpack.c.l.b16 %v588
    %v1865 = vunpack.c.h.b16 %v588
    %v1866 = vunpack.c.l.b16 %v589
    %v1867 = vunpack.c.h.b16 %v589
    %v1868 = vunpack.c.l.b16 %v590
    %v1869 = vunpack.c.h.b16 %v590
    %v1870 = vunpack.c.l.b16 %v591
    %v1871 = vunpack.c.h.b16 %v591
    %v1872 = vunpack.c.l.b16 %v592
    %v1873 = vunpack.c.h.b16 %v592
    %v1874 = vunpack.c.l.b16 %v593
    %v1875 = vunpack.c.h.b16 %v593
    %v1876 = vunpack.c.l.b16 %v594
    %v1877 = vunpack.c.l.b16 %v595
    %v1878 = vunpack.c.h.b16 %v595
    %v1879 = vunpack.c.l.b16 %v596
    %v1880 = vunpack.c.h.b16 %v596
    %v1881 = vunpack.c.l.b16 %v597
    %v1882 = vunpack.c.h.b16 %v597
    %v1883 = vunpack.c.l.b16 %v598
    %v1884 = vunpack.c.h.b16 %v598
    %v1885 = vunpack.c.l.b16 %v599
    %v1886 = vunpack.c.h.b16 %v599
    %v1887 = vunpack.c.l.b16 %v600
    %v1888 = vunpack.c.h.b16 %v600
    %v1889 = vunpack.c.l.b16 %v601
    %v1890 = vunpack.c.h.b16 %v601
    %v1891 = vunpack.c.l.b16 %v602
    %v1892 = vunpack.c.l.b16 %v603
    %v1893 = vunpack.c.h.b16 %v603
    %v1894 = vunpack.c.l.b16 %v604
    %v1895 = vunpack.c.h.b16 %v604
    %v1896 = vunpack.c.l.b16 %v605
    %v1897 = vunpack.c.h.b16 %v605
    %v1898 = vunpack.c.l.b16 %v606
    %v1899 = vunpack.c.h.b16 %v606
    %v1900 = vunpack.c.l.b16 %v607
    %v1901 = vunpack.c.h.b16 %v607
    %v1902 = vunpack.c.l.b16 %v608
    %v1903 = vunpack.c.h.b16 %v608
    %v1904 = vunpack.c.l.b16 %v609
    %v1905 = vunpack.c.h.b16 %v609
    %v1906 = vunpack.c.l.b16 %v610
    %v1907 = vunpack.c.l.b16 %v611
    %v1908 = vunpack.c.h.b16 %v611
    %v1909 = vunpack.c.l.b16 %v612
    %v1910 = vunpack.c.h.b16 %v612
    %v1911 = vunpack.c.l.b16 %v613
    %v1912 = vunpack.c.h.b16 %v613
    %v1913 = vunpack.c.l.b16 %v614
    %v1914 = vunpack.c.h.b16 %v614
    %v1915 = vunpack.c.l.b16 %v615
    %v1916 = vunpack.c.h.b16 %v615
    %v1917 = vunpack.c.l.b16 %v616
    %v1918 = vunpack.c.h.b16 %v616
    %v1919 = vunpack.c.l.b16 %v617
    %v1920 = vunpack.c.h.b16 %v617
    %v1921 = vunpack.c.l.b16 %v618
    %v1922 = vunpack.c.l.b16 %v619
    %v1923 = vunpack.c.h.b16 %v619
    %v1924 = vunpack.c.l.b16 %v620
    %v1925 = vunpack.c.h.b16 %v620
    %v1926 = vunpack.c.l.b16 %v621
    %v1927 = vunpack.c.h.b16 %v621
    %v1928 = vunpack.c.l.b16 %v622
    %v1929 = vunpack.c.h.b16 %v622
    %v1930 = vunpack.c.l.b16 %v623
    %v1931 = vunpack.c.h.b16 %v623
    %v1932 = vunpack.c.l.b16 %v624
    %v1933 = vunpack.c.h.b16 %v624
    %v1934 = vunpack.c.l.b16 %v625
    %v1935 = vunpack.c.h.b16 %v625
    %v1936 = vunpack.c.l.b16 %v626
    %v1937 = vunpack.c.l.b16 %v627
    %v1938 = vunpack.c.h.b16 %v627
    %v1939 = vunpack.c.l.b16 %v628
    %v1940 = vunpack.c.h.b16 %v628
    %v1941 = vunpack.c.l.b16 %v629
    %v1942 = vunpack.c.h.b16 %v629
    %v1943 = vunpack.c.l.b16 %v630
    %v1944 = vunpack.c.h.b16 %v630
    %v1945 = vunpack.c.l.b16 %v631
    %v1946 = vunpack.c.h.b16 %v631
    %v1947 = vunpack.c.l.b16 %v632
    %v1948 = vunpack.c.h.b16 %v632
    %v1949 = vunpack.c.l.b16 %v633
    %v1950 = vunpack.c.h.b16 %v633
    %v1951 = vunpack.c.l.b16 %v634
    %v1952 = vunpack.c.l.b16 %v635
    %v1953 = vunpack.c.h.b16 %v635
    %v1954 = vunpack.c.l.b16 %v636
    %v1955 = vunpack.c.h.b16 %v636
    %v1956 = vunpack.c.l.b16 %v637
    %v1957 = vunpack.c.h.b16 %v637
    %v1958 = vunpack.c.l.b16 %v638
    %v1959 = vunpack.c.h.b16 %v638
    %v1960 = vunpack.c.l.b16 %v639
    %v1961 = vunpack.c.h.b16 %v639
    %v1962 = vunpack.c.l.b16 %v640
    %v1963 = vunpack.c.h.b16 %v640
    %v1964 = vunpack.c.l.b16 %v641
    %v1965 = vunpack.c.h.b16 %v641
    %v1966 = vunpack.c.l.b16 %v642
    %v1967 = vunpack.c.l.b16 %v643
    %v1968 = vunpack.c.h.b16 %v643
    %v1969 = vunpack.c.l.b16 %v644
    %v1970 = vunpack.c.h.b16 %v644
    %v1971 = vunpack.c.l.b16 %v645
    %v1972 = vunpack.c.h.b16 %v645
    %v1973 = vunpack.c.l.b16 %v646
    %v1974 = vunpack.c.h.b16 %v646
    %v1975 = vunpack.c.l.b16 %v647
    %v1976 = vunpack.c.h.b16 %v647
    %v1977 = vunpack.c.l.b16 %v648
    %v1978 = vunpack.c.h.b16 %v648
    %v1979 = vunpack.c.l.b16 %v649
    %v1980 = vunpack.c.h.b16 %v649
    %v1981 = vunpack.c.l.b16 %v650
    %v1982 = vunpack.c.l.b16 %v651
    %v1983 = vunpack.c.h.b16 %v651
    %v1984 = vunpack.c.l.b16 %v652
    %v1985 = vunpack.c.h.b16 %v652
    %v1986 = vunpack.c.l.b16 %v653
    %v1987 = vunpack.c.h.b16 %v653
    %v1988 = vunpack.c.l.b16 %v654
    %v1989 = vunpack.c.h.b16 %v654
    %v1990 = vunpack.c.l.b16 %v655
    %v1991 = vunpack.c.h.b16 %v655
    %v1992 = vunpack.c.l.b16 %v656
    %v1993 = vunpack.c.h.b16 %v656
    %v1994 = vunpack.c.l.b16 %v657
    %v1995 = vunpack.c.h.b16 %v657
    %v1996 = vunpack.c.l.b16 %v658
    %v1997 = vunpack.c.l.b16 %v659
    %v1998 = vunpack.c.h.b16 %v659
    %v1999 = vunpack.c.l.b16 %v660
    %v2000 = vunpack.c.h.b16 %v660
    %v2001 = vunpack.c.l.b16 %v661
    %v2002 = vunpack.c.h.b16 %v661
    %v2003 = vunpack.c.l.b16 %v662
    %v2004 = vunpack.c.h.b16 %v662
    %v2005 = vunpack.c.l.b16 %v663
    %v2006 = vunpack.c.h.b16 %v663
    %v2007 = vunpack.c.l.b16 %v664
    %v2008 = vunpack.c.h.b16 %v664
    %v2009 = vunpack.c.l.b16 %v665
    %v2010 = vunpack.c.h.b16 %v665
    %v2011 = vunpack.c.l.b16 %v666
    %v2012 = vunpack.c.l.b16 %v667
    %v2013 = vunpack.c.h.b16 %v667
    %v2014 = vunpack.c.l.b16 %v668
    %v2015 = vunpack.c.h.b16 %v668
    %v2016 = vunpack.c.l.b16 %v669
    %v2017 = vunpack.c.h.b16 %v669
    %v2018 = vunpack.c.l.b16 %v670
    %v2019 = vunpack.c.h.b16 %v670
    %v2020 = vunpack.c.l.b16 %v671
    %v2021 = vunpack.c.h.b16 %v671
    %v2022 = vunpack.c.l.b16 %v672
    %v2023 = vunpack.c.h.b16 %v672
    %v2024 = vunpack.c.l.b16 %v673
    %v2025 = vunpack.c.h.b16 %v673
    %v2026 = vunpack.c.l.b16 %v674
    %v2027 = vunpack.c.l.b16 %v675
    %v2028 = vunpack.c.h.b16 %v675
    %v2029 = vunpack.c.l.b16 %v676
    %v2030 = vunpack.c.h.b16 %v676
    %v2031 = vunpack.c.l.b16 %v677
    %v2032 = vunpack.c.h.b16 %v677
    %v2033 = vunpack.c.l.b16 %v678
    %v2034 = vunpack.c.h.b16 %v678
    %v2035 = vunpack.c.l.b16 %v679
    %v2036 = vunpack.c.h.b16 %v679
    %v2037 = vunpack.c.l.b16 %v680
    %v2038 = vunpack.c.h.b16 %v680
    %v2039 = vunpack.c.l.b16 %v681
    %v2040 = vunpack.c.h.b16 %v681
    %v2041 = vunpack.c.l.b16 %v682
    %v2042 = vunpack.c.l.b16 %v683
    %v2043 = vunpack.c.h.b16 %v683
    %v2044 = vunpack.c.l.b16 %v684
    %v2045 = vunpack.c.h.b16 %v684
    %v2046 = vunpack.c.l.b16 %v685
    %v2047 = vunpack.c.h.b16 %v685
    %v2048 = vunpack.c.l.b16 %v686
    %v2049 = vunpack.c.h.b16 %v686
    %v2050 = vunpack.c.l.b16 %v687
    %v2051 = vunpack.c.h.b16 %v687
    %v2052 = vunpack.c.l.b16 %v688
    %v2053 = vunpack.c.h.b16 %v688
    %v2054 = vunpack.c.l.b16 %v689
    %v2055 = vunpack.c.h.b16 %v689
    %v2056 = vunpack.c.l.b16 %v690
    %v2057 = vunpack.c.l.b16 %v691
    %v2058 = vunpack.c.h.b16 %v691
    %v2059 = vunpack.c.l.b16 %v692
    %v2060 = vunpack.c.h.b16 %v692
    %v2061 = vunpack.c.l.b16 %v693
    %v2062 = vunpack.c.h.b16 %v693
    %v2063 = vunpack.c.l.b16 %v694
    %v2064 = vunpack.c.h.b16 %v694
    %v2065 = vunpack.c.l.b16 %v695
    %v2066 = vunpack.c.h.b16 %v695
    %v2067 = vunpack.c.l.b16 %v696
    %v2068 = vunpack.c.h.b16 %v696
    %v2069 = vunpack.c.l.b16 %v697
    %v2070 = vunpack.c.h.b16 %v697
    %v2071 = vunpack.c.l.b16 %v698
    %v2072 = vunpack.c.l.b16 %v699
    %v2073 = vunpack.c.h.b16 %v699
    %v2074 = vunpack.c.l.b16 %v700
    %v2075 = vunpack.c.h.b16 %v700
    %v2076 = vunpack.c.l.b16 %v701
    %v2077 = vunpack.c.h.b16 %v701
    %v2078 = vunpack.c.l.b16 %v702
    %v2079 = vunpack.c.h.b16 %v702
    %v2080 = vunpack.c.l.b16 %v703
    %v2081 = vunpack.c.h.b16 %v703
    %v2082 = vunpack.c.l.b16 %v704
    %v2083 = vunpack.c.h.b16 %v704
    %v2084 = vunpack.c.l.b16 %v705
    %v2085 = vunpack.c.h.b16 %v705
    %v2086 = vunpack.c.l.b16 %v706
    %v2087 = vunpack.c.l.b16 %v707
    %v2088 = vunpack.c.h.b16 %v707
    %v2089 = vunpack.c.l.b16 %v708
    %v2090 = vunpack.c.h.b16 %v708
    %v2091 = vunpack.c.l.b16 %v709
    %v2092 = vunpack.c.h.b16 %v709
    %v2093 = vunpack.c.l.b16 %v710
    %v2094 = vunpack.c.h.b16 %v710
    %v2095 = vunpack.c.l.b16 %v711
    %v2096 = vunpack.c.h.b16 %v711
    %v2097 = vunpack.c.l.b16 %v712
    %v2098 = vunpack.c.h.b16 %v712
    %v2099 = vunpack.c.l.b16 %v713
    %v2100 = vunpack.c.h.b16 %v713
    %v2101 = vunpack.c.l.b16 %v714
    %v2102 = vunpack.c.l.b16 %v715
    %v2103 = vunpack.c.h.b16 %v715
    %v2104 = vunpack.c.l.b16 %v716
    %v2105 = vunpack.c.h.b16 %v716
    %v2106 = vunpack.c.l.b16 %v717
    %v2107 = vunpack.c.h.b16 %v717
    %v2108 = vunpack.c.l.b16 %v718
    %v2109 = vunpack.c.h.b16 %v718
    %v2110 = vunpack.c.l.b16 %v719
    %v2111 = vunpack.c.h.b16 %v719
    %v2112 = vunpack.c.l.b16 %v720
    %v2113 = vunpack.c.h.b16 %v720
    %v2114 = vunpack.c.l.b16 %v721
    %v2115 = vunpack.c.h.b16 %v721
    %v2116 = vunpack.c.l.b16 %v722
    %v2117 = vunpack.c.l.b16 %v723
    %v2118 = vunpack.c.h.b16 %v723
    %v2119 = vunpack.c.l.b16 %v724
    %v2120 = vunpack.c.h.b16 %v724
    %v2121 = vunpack.c.l.b16 %v725
    %v2122 = vunpack.c.h.b16 %v725
    %v2123 = vunpack.c.l.b16 %v726
    %v2124 = vunpack.c.h.b16 %v726
    %v2125 = vunpack.c.l.b16 %v727
    %v2126 = vunpack.c.h.b16 %v727
    %v2127 = vunpack.c.l.b16 %v728
    %v2128 = vunpack.c.h.b16 %v728
    %v2129 = vunpack.c.l.b16 %v729
    %v2130 = vunpack.c.h.b16 %v729
    %v2131 = vunpack.c.l.b16 %v730
    %v2132 = vunpack.c.l.b16 %v731
    %v2133 = vunpack.c.h.b16 %v731
    %v2134 = vunpack.c.l.b16 %v732
    %v2135 = vunpack.c.h.b16 %v732
    %v2136 = vunpack.c.l.b16 %v733
    %v2137 = vunpack.c.h.b16 %v733
    %v2138 = vunpack.c.l.b16 %v734
    %v2139 = vunpack.c.h.b16 %v734
    %v2140 = vunpack.c.l.b16 %v735
    %v2141 = vunpack.c.h.b16 %v735
    %v2142 = vunpack.c.l.b16 %v736
    %v2143 = vunpack.c.h.b16 %v736
    %v2144 = vunpack.c.l.b16 %v737
    %v2145 = vunpack.c.h.b16 %v737
    %v2146 = vunpack.c.l.b16 %v738
    %v2147 = vunpack.c.l.b16 %v739
    %v2148 = vunpack.c.h.b16 %v739
    %v2149 = vunpack.c.l.b16 %v740
    %v2150 = vunpack.c.h.b16 %v740
    %v2151 = vunpack.c.l.b16 %v741
    %v2152 = vunpack.c.h.b16 %v741
    %v2153 = vunpack.c.l.b16 %v742
    %v2154 = vunpack.c.h.b16 %v742
    %v2155 = vunpack.c.l.b16 %v743
    %v2156 = vunpack.c.h.b16 %v743
    %v2157 = vunpack.c.l.b16 %v744
    %v2158 = vunpack.c.h.b16 %v744
    %v2159 = vunpack.c.l.b16 %v745
    %v2160 = vunpack.c.h.b16 %v745
    %v2161 = vunpack.c.l.b16 %v746
    %v2162 = vunpack.c.l.b16 %v747
    %v2163 = vunpack.c.h.b16 %v747
    %v2164 = vunpack.c.l.b16 %v748
    %v2165 = vunpack.c.h.b16 %v748
    %v2166 = vunpack.c.l.b16 %v749
    %v2167 = vunpack.c.h.b16 %v749
    %v2168 = vunpack.c.l.b16 %v750
    %v2169 = vunpack.c.h.b16 %v750
    %v2170 = vunpack.c.l.b16 %v751
    %v2171 = vunpack.c.h.b16 %v751
    %v2172 = vunpack.c.l.b16 %v752
    %v2173 = vunpack.c.h.b16 %v752
    %v2174 = vunpack.c.l.b16 %v753
    %v2175 = vunpack.c.h.b16 %v753
    %v2176 = vunpack.c.l.b16 %v754
    %v2177 = vunpack.c.l.b16 %v755
    %v2178 = vunpack.c.h.b16 %v755
    %v2179 = vunpack.c.l.b16 %v756
    %v2180 = vunpack.c.h.b16 %v756
    %v2181 = vunpack.c.l.b16 %v757
    %v2182 = vunpack.c.h.b16 %v757
    %v2183 = vunpack.c.l.b16 %v758
    %v2184 = vunpack.c.h.b16 %v758
    %v2185 = vunpack.c.l.b16 %v759
    %v2186 = vunpack.c.h.b16 %v759
    %v2187 = vunpack.c.l.b16 %v760
    %v2188 = vunpack.c.h.b16 %v760
    %v2189 = vunpack.c.l.b16 %v761
    %v2190 = vunpack.c.h.b16 %v761
    %v2191 = vunpack.c.l.b16 %v762
    %v2192 = vunpack.c.l.b16 %v763
    %v2193 = vunpack.c.h.b16 %v763
    %v2194 = vunpack.c.l.b16 %v764
    %v2195 = vunpack.c.h.b16 %v764
    %v2196 = vunpack.c.l.b16 %v765
    %v2197 = vunpack.c.h.b16 %v765
    %v2198 = vunpack.c.l.b16 %v766
    %v2199 = vunpack.c.h.b16 %v766
    %v2200 = vunpack.c.l.b16 %v767
    %v2201 = vunpack.c.h.b16 %v767
    %v2202 = vunpack.c.l.b16 %v768
    %v2203 = vunpack.c.h.b16 %v768
    %v2204 = vunpack.c.l.b16 %v769
    %v2205 = vunpack.c.h.b16 %v769
    %v2206 = vunpack.c.l.b16 %v770
    %v2207 = vunpack.c.l.b16 %v771
    %v2208 = vunpack.c.h.b16 %v771
    %v2209 = vunpack.c.l.b16 %v772
    %v2210 = vunpack.c.h.b16 %v772
    %v2211 = vunpack.c.l.b16 %v773
    %v2212 = vunpack.c.h.b16 %v773
    %v2213 = vunpack.c.l.b16 %v774
    %v2214 = vunpack.c.h.b16 %v774
    %v2215 = vunpack.c.l.b16 %v775
    %v2216 = vunpack.c.h.b16 %v775
    %v2217 = vunpack.c.l.b16 %v776
    %v2218 = vunpack.c.h.b16 %v776
    %v2219 = vunpack.c.l.b16 %v777
    %v2220 = vunpack.c.h.b16 %v777
    %v2221 = vunpack.c.l.b16 %v778
    %v2222 = vunpack.c.l.b16 %v779
    %v2223 = vunpack.c.h.b16 %v779
    %v2224 = vunpack.c.l.b16 %v780
    %v2225 = vunpack.c.h.b16 %v780
    %v2226 = vunpack.c.l.b16 %v781
    %v2227 = vunpack.c.h.b16 %v781
    %v2228 = vunpack.c.l.b16 %v782
    %v2229 = vunpack.c.h.b16 %v782
    %v2230 = vunpack.c.l.b16 %v783
    %v2231 = vunpack.c.h.b16 %v783
    %v2232 = vunpack.c.l.b16 %v784
    %v2233 = vunpack.c.h.b16 %v784
    %v2234 = vunpack.c.l.b16 %v785
    %v2235 = vunpack.c.h.b16 %v785
    %v2236 = vunpack.c.l.b16 %v786
    %v2237 = vunpack.c.l.b16 %v787
    %v2238 = vunpack.c.h.b16 %v787
    %v2239 = vunpack.c.l.b16 %v788
    %v2240 = vunpack.c.h.b16 %v788
    %v2241 = vunpack.c.l.b16 %v789
    %v2242 = vunpack.c.h.b16 %v789
    %v2243 = vunpack.c.l.b16 %v790
    %v2244 = vunpack.c.h.b16 %v790
    %v2245 = vunpack.c.l.b16 %v791
    %v2246 = vunpack.c.h.b16 %v791
    %v2247 = vunpack.c.l.b16 %v792
    %v2248 = vunpack.c.h.b16 %v792
    %v2249 = vunpack.c.l.b16 %v793
    %v2250 = vunpack.c.h.b16 %v793
    %v2251 = vunpack.c.l.b16 %v794
    %v2252 = vunpack.c.l.b16 %v795
    %v2253 = vunpack.c.h.b16 %v795
    %v2254 = vunpack.c.l.b16 %v796
    %v2255 = vunpack.c.h.b16 %v796
    %v2256 = vunpack.c.l.b16 %v797
    %v2257 = vunpack.c.h.b16 %v797
    %v2258 = vunpack.c.l.b16 %v798
    %v2259 = vunpack.c.h.b16 %v798
    %v2260 = vunpack.c.l.b16 %v799
    %v2261 = vunpack.c.h.b16 %v799
    %v2262 = vunpack.c.l.b16 %v800
    %v2263 = vunpack.c.h.b16 %v800
    %v2264 = vunpack.c.l.b16 %v801
    %v2265 = vunpack.c.h.b16 %v801
    %v2266 = vunpack.c.l.b16 %v802
    %v2267 = vunpack.c.l.b16 %v803
    %v2268 = vunpack.c.h.b16 %v803
    %v2269 = vunpack.c.l.b16 %v804
    %v2270 = vunpack.c.h.b16 %v804
    %v2271 = vunpack.c.l.b16 %v805
    %v2272 = vunpack.c.h.b16 %v805
    %v2273 = vunpack.c.l.b16 %v806
    %v2274 = vunpack.c.h.b16 %v806
    %v2275 = vunpack.c.l.b16 %v807
    %v2276 = vunpack.c.h.b16 %v807
    %v2277 = vunpack.c.l.b16 %v808
    %v2278 = vunpack.c.h.b16 %v808
    %v2279 = vunpack.c.l.b16 %v809
    %v2280 = vunpack.c.h.b16 %v809
    %v2281 = vunpack.c.l.b16 %v810
    %v2282 = vunpack.c.l.b16 %v811
    %v2283 = vunpack.c.h.b16 %v811
    %v2284 = vunpack.c.l.b16 %v812
    %v2285 = vunpack.c.h.b16 %v812
    %v2286 = vunpack.c.l.b16 %v813
    %v2287 = vunpack.c.h.b16 %v813
    %v2288 = vunpack.c.l.b16 %v814
    %v2289 = vunpack.c.h.b16 %v814
    %v2290 = vunpack.c.l.b16 %v815
    %v2291 = vunpack.c.h.b16 %v815
    %v2292 = vunpack.c.l.b16 %v816
    %v2293 = vunpack.c.h.b16 %v816
    %v2294 = vunpack.c.l.b16 %v817
    %v2295 = vunpack.c.h.b16 %v817
    %v2296 = vunpack.c.l.b16 %v818
    %v2297 = vunpack.c.l.b16 %v819
    %v2298 = vunpack.c.h.b16 %v819
    %v2299 = vunpack.c.l.b16 %v820
    %v2300 = vunpack.c.h.b16 %v820
    %v2301 = vunpack.c.l.b16 %v821
    %v2302 = vunpack.c.h.b16 %v821
    %v2303 = vunpack.c.l.b16 %v822
    %v2304 = vunpack.c.h.b16 %v822
    %v2305 = vunpack.c.l.b16 %v823
    %v2306 = vunpack.c.h.b16 %v823
    %v2307 = vunpack.c.l.b16 %v824
    %v2308 = vunpack.c.h.b16 %v824
    %v2309 = vunpack.c.l.b16 %v825
    %v2310 = vunpack.c.h.b16 %v825
    %v2311 = vunpack.c.l.b16 %v826
    %v2312 = vunpack.c.l.b16 %v827
    %v2313 = vunpack.c.h.b16 %v827
    %v2314 = vunpack.c.l.b16 %v828
    %v2315 = vunpack.c.h.b16 %v828
    %v2316 = vunpack.c.l.b16 %v829
    %v2317 = vunpack.c.h.b16 %v829
    %v2318 = vunpack.c.l.b16 %v830
    %v2319 = vunpack.c.h.b16 %v830
    %v2320 = vunpack.c.l.b16 %v831
    %v2321 = vunpack.c.h.b16 %v831
    %v2322 = vunpack.c.l.b16 %v832
    %v2323 = vunpack.c.h.b16 %v832
    %v2324 = vunpack.c.l.b16 %v833
    %v2325 = vunpack.c.h.b16 %v833
    %v2326 = vunpack.c.l.b16 %v834
    %v2327 = vunpack.c.l.b16 %v835
    %v2328 = vunpack.c.h.b16 %v835
    %v2329 = vunpack.c.l.b16 %v836
    %v2330 = vunpack.c.h.b16 %v836
    %v2331 = vunpack.c.l.b16 %v837
    %v2332 = vunpack.c.h.b16 %v837
    %v2333 = vunpack.c.l.b16 %v838
    %v2334 = vunpack.c.h.b16 %v838
    %v2335 = vunpack.c.l.b16 %v839
    %v2336 = vunpack.c.h.b16 %v839
    %v2337 = vunpack.c.l.b16 %v840
    %v2338 = vunpack.c.h.b16 %v840
    %v2339 = vunpack.c.l.b16 %v841
    %v2340 = vunpack.c.h.b16 %v841
    %v2341 = vunpack.c.l.b16 %v842
    %v2342 = vunpack.c.l.b16 %v843
    %v2343 = vunpack.c.h.b16 %v843
    %v2344 = vunpack.c.l.b16 %v844
    %v2345 = vunpack.c.h.b16 %v844
    %v2346 = vunpack.c.l.b16 %v845
    %v2347 = vunpack.c.h.b16 %v845
    %v2348 = vunpack.c.l.b16 %v846
    %v2349 = vunpack.c.h.b16 %v846
    %v2350 = vunpack.c.l.b16 %v847
    %v2351 = vunpack.c.h.b16 %v847
    %v2352 = vunpack.c.l.b16 %v848
    %v2353 = vunpack.c.h.b16 %v848
    %v2354 = vunpack.c.l.b16 %v849
    %v2355 = vunpack.c.h.b16 %v849
    %v2356 = vunpack.c.l.b16 %v850
    %v2357 = vpack.c.b16 %v1412, %v1397
    %v2358 = vpack.c.b16 %v1413, %v1398
    %v2359 = vpack.c.b16 %v1414, %v1399
    %v2360 = vpack.c.b16 %v1415, %v1400
    %v2361 = vpack.c.b16 %v1416, %v1401
    %v2362 = vpack.c.b16 %v1417, %v1402
    %v2363 = vpack.c.b16 %v1418, %v1403
    %v2364 = vpack.c.b16 %v1419, %v1404
    %v2365 = vpack.c.b16 %v1420, %v1405
    %v2366 = vpack.c.b16 %v1421, %v1406
    %v2367 = vpack.c.b16 %v1422, %v1407
    %v2368 = vpack.c.b16 %v1423, %v1408
    %v2369 = vpack.c.b16 %v1424, %v1409
    %v2370 = vpack.c.b16 %v1425, %v1410
    %v2371 = vpack.c.b16 %v1426, %v1411
    %v2372 = vpack.c.b16 %v1442, %v1427
    %v2373 = vpack.c.b16 %v1443, %v1428
    %v2374 = vpack.c.b16 %v1444, %v1429
    %v2375 = vpack.c.b16 %v1445, %v1430
    %v2376 = vpack.c.b16 %v1446, %v1431
    %v2377 = vpack.c.b16 %v1447, %v1432
    %v2378 = vpack.c.b16 %v1448, %v1433
    %v2379 = vpack.c.b16 %v1449, %v1434
    %v2380 = vpack.c.b16 %v1450, %v1435
    %v2381 = vpack.c.b16 %v1451, %v1436
    %v2382 = vpack.c.b16 %v1452, %v1437
    %v2383 = vpack.c.b16 %v1453, %v1438
    %v2384 = vpack.c.b16 %v1454, %v1439
    %v2385 = vpack.c.b16 %v1455, %v1440
    %v2386 = vpack.c.b16 %v1456, %v1441
    %v2387 = vpack.c.b16 %v1472, %v1457
    %v2388 = vpack.c.b16 %v1473, %v1458
    %v2389 = vpack.c.b16 %v1474, %v1459
    %v2390 = vpack.c.b16 %v1475, %v1460
    %v2391 = vpack.c.b16 %v1476, %v1461
    %v2392 = vpack.c.b16 %v1477, %v1462
    %v2393 = vpack.c.b16 %v1478, %v1463
    %v2394 = vpack.c.b16 %v1479, %v1464
    %v2395 = vpack.c.b16 %v1480, %v1465
    %v2396 = vpack.c.b16 %v1481, %v1466
    %v2397 = vpack.c.b16 %v1482, %v1467
    %v2398 = vpack.c.b16 %v1483, %v1468
    %v2399 = vpack.c.b16 %v1484, %v1469
    %v2400 = vpack.c.b16 %v1485, %v1470
    %v2401 = vpack.c.b16 %v1486, %v1471
    %v2402 = vpack.c.b16 %v1502, %v1487
    %v2403 = vpack.c.b16 %v1503, %v1488
    %v2404 = vpack.c.b16 %v1504, %v1489
    %v2405 = vpack.c.b16 %v1505, %v1490
    %v2406 = vpack.c.b16 %v1506, %v1491
    %v2407 = vpack.c.b16 %v1507, %v1492
    %v2408 = vpack.c.b16 %v1508, %v1493
    %v2409 = vpack.c.b16 %v1509, %v1494
    %v2410 = vpack.c.b16 %v1510, %v1495
    %v2411 = vpack.c.b16 %v1511, %v1496
    %v2412 = vpack.c.b16 %v1512, %v1497
    %v2413 = vpack.c.b16 %v1513, %v1498
    %v2414 = vpack.c.b16 %v1514, %v1499
    %v2415 = vpack.c.b16 %v1515, %v1500
    %v2416 = vpack.c.b16 %v1516, %v1501
    %v2417 = vpack.c.b16 %v1532, %v1517
    %v2418 = vpack.c.b16 %v1533, %v1518
    %v2419 = vpack.c.b16 %v1534, %v1519
    %v2420 = vpack.c.b16 %v1535, %v1520
    %v2421 = vpack.c.b16 %v1536, %v1521
    %v2422 = vpack.c.b16 %v1537, %v1522
    %v2423 = vpack.c.b16 %v1538, %v1523
    %v2424 = vpack.c.b16 %v1539, %v1524
    %v2425 = vpack.c.b16 %v1540, %v1525
    %v2426 = vpack.c.b16 %v1541, %v1526
    %v2427 = vpack.c.b16 %v1542, %v1527
    %v2428 = vpack.c.b16 %v1543, %v1528
    %v2429 = vpack.c.b16 %v1544, %v1529
    %v2430 = vpack.c.b16 %v1545, %v1530
    %v2431 = vpack.c.b16 %v1546, %v1531
    %v2432 = vpack.c.b16 %v1562, %v1547
    %v2433 = vpack.c.b16 %v1563, %v1548
    %v2434 = vpack.c.b16 %v1564, %v1549
    %v2435 = vpack.c.b16 %v1565, %v1550
    %v2436 = vpack.c.b16 %v1566, %v1551
    %v2437 = vpack.c.b16 %v1567, %v1552
    %v2438 = vpack.c.b16 %v1568, %v1553
    %v2439 = vpack.c.b16 %v1569, %v1554
    %v2440 = vpack.c.b16 %v1570, %v1555
    %v2441 = vpack.c.b16 %v1571, %v1556
    %v2442 = vpack.c.b16 %v1572, %v1557
    %v2443 = vpack.c.b16 %v1573, %v1558
    %v2444 = vpack.c.b16 %v1574, %v1559
    %v2445 = vpack.c.b16 %v1575, %v1560
    %v2446 = vpack.c.b16 %v1576, %v1561
    %v2447 = vpack.c.b16 %v1592, %v1577
    %v2448 = vpack.c.b16 %v1593, %v1578
    %v2449 = vpack.c.b16 %v1594, %v1579
    %v2450 = vpack.c.b16 %v1595, %v1580
    %v2451 = vpack.c.b16 %v1596, %v1581
    %v2452 = vpack.c.b16 %v1597, %v1582
    %v2453 = vpack.c.b16 %v1598, %v1583
    %v2454 = vpack.c.b16 %v1599, %v1584
    %v2455 = vpack.c.b16 %v1600, %v1585
    %v2456 = vpack.c.b16 %v1601, %v1586
    %v2457 = vpack.c.b16 %v1602, %v1587
    %v2458 = vpack.c.b16 %v1603, %v1588
    %v2459 = vpack.c.b16 %v1604, %v1589
    %v2460 = vpack.c.b16 %v1605, %v1590
    %v2461 = vpack.c.b16 %v1606, %v1591
    %v2462 = vpack.c.b16 %v1622, %v1607
    %v2463 = vpack.c.b16 %v1623, %v1608
    %v2464 = vpack.c.b16 %v1624, %v1609
    %v2465 = vpack.c.b16 %v1625, %v1610
    %v2466 = vpack.c.b16 %v1626, %v1611
    %v2467 = vpack.c.b16 %v1627, %v1612
    %v2468 = vpack.c.b16 %v1628, %v1613
    %v2469 = vpack.c.b16 %v1629, %v1614
    %v2470 = vpack.c.b16 %v1630, %v1615
    %v2471 = vpack.c.b16 %v1631, %v1616
    %v2472 = vpack.c.b16 %v1632, %v1617
    %v2473 = vpack.c.b16 %v1633, %v1618
    %v2474 = vpack.c.b16 %v1634, %v1619
    %v2475 = vpack.c.b16 %v1635, %v1620
    %v2476 = vpack.c.b16 %v1636, %v1621
    %v2477 = vpack.c.b16 %v1652, %v1637
    %v2478 = vpack.c.b16 %v1653, %v1638
    %v2479 = vpack.c.b16 %v1654, %v1639
    %v2480 = vpack.c.b16 %v1655, %v1640
    %v2481 = vpack.c.b16 %v1656, %v1641
    %v2482 = vpack.c.b16 %v1657, %v1642
    %v2483 = vpack.c.b16 %v1658, %v1643
    %v2484 = vpack.c.b16 %v1659, %v1644
    %v2485 = vpack.c.b16 %v1660, %v1645
    %v2486 = vpack.c.b16 %v1661, %v1646
    %v2487 = vpack.c.b16 %v1662, %v1647
    %v2488 = vpack.c.b16 %v1663, %v1648
    %v2489 = vpack.c.b16 %v1664, %v1649
    %v2490 = vpack.c.b16 %v1665, %v1650
    %v2491 = vpack.c.b16 %v1666, %v1651
    %v2492 = vpack.c.b16 %v1682, %v1667
    %v2493 = vpack.c.b16 %v1683, %v1668
    %v2494 = vpack.c.b16 %v1684, %v1669
    %v2495 = vpack.c.b16 %v1685, %v1670
    %v2496 = vpack.c.b16 %v1686, %v1671
    %v2497 = vpack.c.b16 %v1687, %v1672
    %v2498 = vpack.c.b16 %v1688, %v1673
    %v2499 = vpack.c.b16 %v1689, %v1674
    %v2500 = vpack.c.b16 %v1690, %v1675
    %v2501 = vpack.c.b16 %v1691, %v1676
    %v2502 = vpack.c.b16 %v1692, %v1677
    %v2503 = vpack.c.b16 %v1693, %v1678
    %v2504 = vpack.c.b16 %v1694, %v1679
    %v2505 = vpack.c.b16 %v1695, %v1680
    %v2506 = vpack.c.b16 %v1696, %v1681
    %v2507 = vpack.c.b16 %v1712, %v1697
    %v2508 = vpack.c.b16 %v1713, %v1698
    %v2509 = vpack.c.b16 %v1714, %v1699
    %v2510 = vpack.c.b16 %v1715, %v1700
    %v2511 = vpack.c.b16 %v1716, %v1701
    %v2512 = vpack.c.b16 %v1717, %v1702
    %v2513 = vpack.c.b16 %v1718, %v1703
    %v2514 = vpack.c.b16 %v1719, %v1704
    %v2515 = vpack.c.b16 %v1720, %v1705
    %v2516 = vpack.c.b16 %v1721, %v1706
    %v2517 = vpack.c.b16 %v1722, %v1707
    %v2518 = vpack.c.b16 %v1723, %v1708
    %v2519 = vpack.c.b16 %v1724, %v1709
    %v2520 = vpack.c.b16 %v1725, %v1710
    %v2521 = vpack.c.b16 %v1726, %v1711
    %v2522 = vpack.c.b16 %v1742, %v1727
    %v2523 = vpack.c.b16 %v1743, %v1728
    %v2524 = vpack.c.b16 %v1744, %v1729
    %v2525 = vpack.c.b16 %v1745, %v1730
    %v2526 = vpack.c.b16 %v1746, %v1731
    %v2527 = vpack.c.b16 %v1747, %v1732
    %v2528 = vpack.c.b16 %v1748, %v1733
    %v2529 = vpack.c.b16 %v1749, %v1734
    %v2530 = vpack.c.b16 %v1750, %v1735
    %v2531 = vpack.c.b16 %v1751, %v1736
    %v2532 = vpack.c.b16 %v1752, %v1737
    %v2533 = vpack.c.b16 %v1753, %v1738
    %v2534 = vpack.c.b16 %v1754, %v1739
    %v2535 = vpack.c.b16 %v1755, %v1740
    %v2536 = vpack.c.b16 %v1756, %v1741
    %v2537 = vpack.c.b16 %v1772, %v1757
    %v2538 = vpack.c.b16 %v1773, %v1758
    %v2539 = vpack.c.b16 %v1774, %v1759
    %v2540 = vpack.c.b16 %v1775, %v1760
    %v2541 = vpack.c.b16 %v1776, %v1761
    %v2542 = vpack.c.b16 %v1777, %v1762
    %v2543 = vpack.c.b16 %v1778, %v1763
    %v2544 = vpack.c.b16 %v1779, %v1764
    %v2545 = vpack.c.b16 %v1780, %v1765
    %v2546 = vpack.c.b16 %v1781, %v1766
    %v2547 = vpack.c.b16 %v1782, %v1767
    %v2548 = vpack.c.b16 %v1783, %v1768
    %v2549 = vpack.c.b16 %v1784, %v1769
    %v2550 = vpack.c.b16 %v1785, %v1770
    %v2551 = vpack.c.b16 %v1786, %v1771
    %v2552 = vpack.c.b16 %v1802, %v1787
    %v2553 = vpack.c.b16 %v1803, %v1788
    %v2554 = vpack.c.b16 %v1804, %v1789
    %v2555 = vpack.c.b16 %v1805, %v1790
    %v2556 = vpack.c.b16 %v1806, %v1791
    %v2557 = vpack.c.b16 %v1807, %v1792
    %v2558 = vpack.c.b16 %v1808, %v1793
    %v2559 = vpack.c.b16 %v1809, %v1794
    %v2560 = vpack.c.b16 %v1810, %v1795
    %v2561 = vpack.c.b16 %v1811, %v1796
    %v2562 = vpack.c.b16 %v1812, %v1797
    %v2563 = vpack.c.b16 %v1813, %v1798
    %v2564 = vpack.c.b16 %v1814, %v1799
    %v2565 = vpack.c.b16 %v1815, %v1800
    %v2566 = vpack.c.b16 %v1816, %v1801
    %v2567 = vpack.c.b16 %v1832, %v1817
    %v2568 = vpack.c.b16 %v1833, %v1818
    %v2569 = vpack.c.b16 %v1834, %v1819
    %v2570 = vpack.c.b16 %v1835, %v1820
    %v2571 = vpack.c.b16 %v1836, %v1821
    %v2572 = vpack.c.b16 %v1837, %v1822
    %v2573 = vpack.c.b16 %v1838, %v1823
    %v2574 = vpack.c.b16 %v1839, %v1824
    %v2575 = vpack.c.b16 %v1840, %v1825
    %v2576 = vpack.c.b16 %v1841, %v1826
    %v2577 = vpack.c.b16 %v1842, %v1827
    %v2578 = vpack.c.b16 %v1843, %v1828
    %v2579 = vpack.c.b16 %v1844, %v1829
    %v2580 = vpack.c.b16 %v1845, %v1830
    %v2581 = vpack.c.b16 %v1846, %v1831
    %v2582 = vpack.c.b16 %v1862, %v1847
    %v2583 = vpack.c.b16 %v1863, %v1848
    %v2584 = vpack.c.b16 %v1864, %v1849
    %v2585 = vpack.c.b16 %v1865, %v1850
    %v2586 = vpack.c.b16 %v1866, %v1851
    %v2587 = vpack.c.b16 %v1867, %v1852
    %v2588 = vpack.c.b16 %v1868, %v1853
    %v2589 = vpack.c.b16 %v1869, %v1854
    %v2590 = vpack.c.b16 %v1870, %v1855
    %v2591 = vpack.c.b16 %v1871, %v1856
    %v2592 = vpack.c.b16 %v1872, %v1857
    %v2593 = vpack.c.b16 %v1873, %v1858
    %v2594 = vpack.c.b16 %v1874, %v1859
    %v2595 = vpack.c.b16 %v1875, %v1860
    %v2596 = vpack.c.b16 %v1876, %v1861
    %v2597 = vpack.c.b16 %v1892, %v1877
    %v2598 = vpack.c.b16 %v1893, %v1878
    %v2599 = vpack.c.b16 %v1894, %v1879
    %v2600 = vpack.c.b16 %v1895, %v1880
    %v2601 = vpack.c.b16 %v1896, %v1881
    %v2602 = vpack.c.b16 %v1897, %v1882
    %v2603 = vpack.c.b16 %v1898, %v1883
    %v2604 = vpack.c.b16 %v1899, %v1884
    %v2605 = vpack.c.b16 %v1900, %v1885
    %v2606 = vpack.c.b16 %v1901, %v1886
    %v2607 = vpack.c.b16 %v1902, %v1887
    %v2608 = vpack.c.b16 %v1903, %v1888
    %v2609 = vpack.c.b16 %v1904, %v1889
    %v2610 = vpack.c.b16 %v1905, %v1890
    %v2611 = vpack.c.b16 %v1906, %v1891
    %v2612 = vpack.c.b16 %v1922, %v1907
    %v2613 = vpack.c.b16 %v1923, %v1908
    %v2614 = vpack.c.b16 %v1924, %v1909
    %v2615 = vpack.c.b16 %v1925, %v1910
    %v2616 = vpack.c.b16 %v1926, %v1911
    %v2617 = vpack.c.b16 %v1927, %v1912
    %v2618 = vpack.c.b16 %v1928, %v1913
    %v2619 = vpack.c.b16 %v1929, %v1914
    %v2620 = vpack.c.b16 %v1930, %v1915
    %v2621 = vpack.c.b16 %v1931, %v1916
    %v2622 = vpack.c.b16 %v1932, %v1917
    %v2623 = vpack.c.b16 %v1933, %v1918
    %v2624 = vpack.c.b16 %v1934, %v1919
    %v2625 = vpack.c.b16 %v1935, %v1920
    %v2626 = vpack.c.b16 %v1936, %v1921
    %v2627 = vpack.c.b16 %v1952, %v1937
    %v2628 = vpack.c.b16 %v1953, %v1938
    %v2629 = vpack.c.b16 %v1954, %v1939
    %v2630 = vpack.c.b16 %v1955, %v1940
    %v2631 = vpack.c.b16 %v1956, %v1941
    %v2632 = vpack.c.b16 %v1957, %v1942
    %v2633 = vpack.c.b16 %v1958, %v1943
    %v2634 = vpack.c.b16 %v1959, %v1944
    %v2635 = vpack.c.b16 %v1960, %v1945
    %v2636 = vpack.c.b16 %v1961, %v1946
    %v2637 = vpack.c.b16 %v1962, %v1947
    %v2638 = vpack.c.b16 %v1963, %v1948
    %v2639 = vpack.c.b16 %v1964, %v1949
    %v2640 = vpack.c.b16 %v1965, %v1950
    %v2641 = vpack.c.b16 %v1966, %v1951
    %v2642 = vpack.c.b16 %v1982, %v1967
    %v2643 = vpack.c.b16 %v1983, %v1968
    %v2644 = vpack.c.b16 %v1984, %v1969
    %v2645 = vpack.c.b16 %v1985, %v1970
    %v2646 = vpack.c.b16 %v1986, %v1971
    %v2647 = vpack.c.b16 %v1987, %v1972
    %v2648 = vpack.c.b16 %v1988, %v1973
    %v2649 = vpack.c.b16 %v1989, %v1974
    %v2650 = vpack.c.b16 %v1990, %v1975
    %v2651 = vpack.c.b16 %v1991, %v1976
    %v2652 = vpack.c.b16 %v1992, %v1977
    %v2653 = vpack.c.b16 %v1993, %v1978
    %v2654 = vpack.c.b16 %v1994, %v1979
    %v2655 = vpack.c.b16 %v1995, %v1980
    %v2656 = vpack.c.b16 %v1996, %v1981
    %v2657 = vpack.c.b16 %v2012, %v1997
    %v2658 = vpack.c.b16 %v2013, %v1998
    %v2659 = vpack.c.b16 %v2014, %v1999
    %v2660 = vpack.c.b16 %v2015, %v2000
    %v2661 = vpack.c.b16 %v2016, %v2001
    %v2662 = vpack.c.b16 %v2017, %v2002
    %v2663 = vpack.c.b16 %v2018, %v2003
    %v2664 = vpack.c.b16 %v2019, %v2004
    %v2665 = vpack.c.b16 %v2020, %v2005
    %v2666 = vpack.c.b16 %v2021, %v2006
    %v2667 = vpack.c.b16 %v2022, %v2007
    %v2668 = vpack.c.b16 %v2023, %v2008
    %v2669 = vpack.c.b16 %v2024, %v2009
    %v2670 = vpack.c.b16 %v2025, %v2010
    %v2671 = vpack.c.b16 %v2026, %v2011
    %v2672 = vpack.c.b16 %v2042, %v2027
    %v2673 = vpack.c.b16 %v2043, %v2028
    %v2674 = vpack.c.b16 %v2044, %v2029
    %v2675 = vpack.c.b16 %v2045, %v2030
    %v2676 = vpack.c.b16 %v2046, %v2031
    %v2677 = vpack.c.b16 %v2047, %v2032
    %v2678 = vpack.c.b16 %v2048, %v2033
    %v2679 = vpack.c.b16 %v2049, %v2034
    %v2680 = vpack.c.b16 %v2050, %v2035
    %v2681 = vpack.c.b16 %v2051, %v2036
    %v2682 = vpack.c.b16 %v2052, %v2037
    %v2683 = vpack.c.b16 %v2053, %v2038
    %v2684 = vpack.c.b16 %v2054, %v2039
    %v2685 = vpack.c.b16 %v2055, %v2040
    %v2686 = vpack.c.b16 %v2056, %v2041
    %v2687 = vpack.c.b16 %v2072, %v2057
    %v2688 = vpack.c.b16 %v2073, %v2058
    %v2689 = vpack.c.b16 %v2074, %v2059
    %v2690 = vpack.c.b16 %v2075, %v2060
    %v2691 = vpack.c.b16 %v2076, %v2061
    %v2692 = vpack.c.b16 %v2077, %v2062
    %v2693 = vpack.c.b16 %v2078, %v2063
    %v2694 = vpack.c.b16 %v2079, %v2064
    %v2695 = vpack.c.b16 %v2080, %v2065
    %v2696 = vpack.c.b16 %v2081, %v2066
    %v2697 = vpack.c.b16 %v2082, %v2067
    %v2698 = vpack.c.b16 %v2083, %v2068
    %v2699 = vpack.c.b16 %v2084, %v2069
    %v2700 = vpack.c.b16 %v2085, %v2070
    %v2701 = vpack.c.b16 %v2086, %v2071
    %v2702 = vpack.c.b16 %v2102, %v2087
    %v2703 = vpack.c.b16 %v2103, %v2088
    %v2704 = vpack.c.b16 %v2104, %v2089
    %v2705 = vpack.c.b16 %v2105, %v2090
    %v2706 = vpack.c.b16 %v2106, %v2091
    %v2707 = vpack.c.b16 %v2107, %v2092
    %v2708 = vpack.c.b16 %v2108, %v2093
    %v2709 = vpack.c.b16 %v2109, %v2094
    %v2710 = vpack.c.b16 %v2110, %v2095
    %v2711 = vpack.c.b16 %v2111, %v2096
    %v2712 = vpack.c.b16 %v2112, %v2097
    %v2713 = vpack.c.b16 %v2113, %v2098
    %v2714 = vpack.c.b16 %v2114, %v2099
    %v2715 = vpack.c.b16 %v2115, %v2100
    %v2716 = vpack.c.b16 %v2116, %v2101
    %v2717 = vpack.c.b16 %v2132, %v2117
    %v2718 = vpack.c.b16 %v2133, %v2118
    %v2719 = vpack.c.b16 %v2134, %v2119
    %v2720 = vpack.c.b16 %v2135, %v2120
    %v2721 = vpack.c.b16 %v2136, %v2121
    %v2722 = vpack.c.b16 %v2137, %v2122
    %v2723 = vpack.c.b16 %v2138, %v2123
    %v2724 = vpack.c.b16 %v2139, %v2124
    %v2725 = vpack.c.b16 %v2140, %v2125
    %v2726 = vpack.c.b16 %v2141, %v2126
    %v2727 = vpack.c.b16 %v2142, %v2127
    %v2728 = vpack.c.b16 %v2143, %v2128
    %v2729 = vpack.c.b16 %v2144, %v2129
    %v2730 = vpack.c.b16 %v2145, %v2130
    %v2731 = vpack.c.b16 %v2146, %v2131
    %v2732 = vpack.c.b16 %v2162, %v2147
    %v2733 = vpack.c.b16 %v2163, %v2148
    %v2734 = vpack.c.b16 %v2164, %v2149
    %v2735 = vpack.c.b16 %v2165, %v2150
    %v2736 = vpack.c.b16 %v2166, %v2151
    %v2737 = vpack.c.b16 %v2167, %v2152
    %v2738 = vpack.c.b16 %v2168, %v2153
    %v2739 = vpack.c.b16 %v2169, %v2154
    %v2740 = vpack.c.b16 %v2170, %v2155
    %v2741 = vpack.c.b16 %v2171, %v2156
    %v2742 = vpack.c.b16 %v2172, %v2157
    %v2743 = vpack.c.b16 %v2173, %v2158
    %v2744 = vpack.c.b16 %v2174, %v2159
    %v2745 = vpack.c.b16 %v2175, %v2160
    %v2746 = vpack.c.b16 %v2176, %v2161
    %v2747 = vpack.c.b16 %v2192, %v2177
    %v2748 = vpack.c.b16 %v2193, %v2178
    %v2749 = vpack.c.b16 %v2194, %v2179
    %v2750 = vpack.c.b16 %v2195, %v2180
    %v2751 = vpack.c.b16 %v2196, %v2181
    %v2752 = vpack.c.b16 %v2197, %v2182
    %v2753 = vpack.c.b16 %v2198, %v2183
    %v2754 = vpack.c.b16 %v2199, %v2184
    %v2755 = vpack.c.b16 %v2200, %v2185
    %v2756 = vpack.c.b16 %v2201, %v2186
    %v2757 = vpack.c.b16 %v2202, %v2187
    %v2758 = vpack.c.b16 %v2203, %v2188
    %v2759 = vpack.c.b16 %v2204, %v2189
    %v2760 = vpack.c.b16 %v2205, %v2190
    %v2761 = vpack.c.b16 %v2206, %v2191
    %v2762 = vpack.c.b16 %v2222, %v2207
    %v2763 = vpack.c.b16 %v2223, %v2208
    %v2764 = vpack.c.b16 %v2224, %v2209
    %v2765 = vpack.c.b16 %v2225, %v2210
    %v2766 = vpack.c.b16 %v2226, %v2211
    %v2767 = vpack.c.b16 %v2227, %v2212
    %v2768 = vpack.c.b16 %v2228, %v2213
    %v2769 = vpack.c.b16 %v2229, %v2214
    %v2770 = vpack.c.b16 %v2230, %v2215
    %v2771 = vpack.c.b16 %v2231, %v2216
    %v2772 = vpack.c.b16 %v2232, %v2217
    %v2773 = vpack.c.b16 %v2233, %v2218
    %v2774 = vpack.c.b16 %v2234, %v2219
    %v2775 = vpack.c.b16 %v2235, %v2220
    %v2776 = vpack.c.b16 %v2236, %v2221
    %v2777 = vpack.c.b16 %v2252, %v2237
    %v2778 = vpack.c.b16 %v2253, %v2238
    %v2779 = vpack.c.b16 %v2254, %v2239
    %v2780 = vpack.c.b16 %v2255, %v2240
    %v2781 = vpack.c.b16 %v2256, %v2241
    %v2782 = vpack.c.b16 %v2257, %v2242
    %v2783 = vpack.c.b16 %v2258, %v2243
    %v2784 = vpack.c.b16 %v2259, %v2244
    %v2785 = vpack.c.b16 %v2260, %v2245
    %v2786 = vpack.c.b16 %v2261, %v2246
    %v2787 = vpack.c.b16 %v2262, %v2247
    %v2788 = vpack.c.b16 %v2263, %v2248
    %v2789 = vpack.c.b16 %v2264, %v2249
    %v2790 = vpack.c.b16 %v2265, %v2250
    %v2791 = vpack.c.b16 %v2266, %v2251
    %v2792 = vpack.c.b16 %v2282, %v2267
    %v2793 = vpack.c.b16 %v2283, %v2268
    %v2794 = vpack.c.b16 %v2284, %v2269
    %v2795 = vpack.c.b16 %v2285, %v2270
    %v2796 = vpack.c.b16 %v2286, %v2271
    %v2797 = vpack.c.b16 %v2287, %v2272
    %v2798 = vpack.c.b16 %v2288, %v2273
    %v2799 = vpack.c.b16 %v2289, %v2274
    %v2800 = vpack.c.b16 %v2290, %v2275
    %v2801 = vpack.c.b16 %v2291, %v2276
    %v2802 = vpack.c.b16 %v2292, %v2277
    %v2803 = vpack.c.b16 %v2293, %v2278
    %v2804 = vpack.c.b16 %v2294, %v2279
    %v2805 = vpack.c.b16 %v2295, %v2280
    %v2806 = vpack.c.b16 %v2296, %v2281
    %v2807 = vpack.c.b16 %v2312, %v2297
    %v2808 = vpack.c.b16 %v2313, %v2298
    %v2809 = vpack.c.b16 %v2314, %v2299
    %v2810 = vpack.c.b16 %v2315, %v2300
    %v2811 = vpack.c.b16 %v2316, %v2301
    %v2812 = vpack.c.b16 %v2317, %v2302
    %v2813 = vpack.c.b16 %v2318, %v2303
    %v2814 = vpack.c.b16 %v2319, %v2304
    %v2815 = vpack.c.b16 %v2320, %v2305
    %v2816 = vpack.c.b16 %v2321, %v2306
    %v2817 = vpack.c.b16 %v2322, %v2307
    %v2818 = vpack.c.b16 %v2323, %v2308
    %v2819 = vpack.c.b16 %v2324, %v2309
    %v2820 = vpack.c.b16 %v2325, %v2310
    %v2821 = vpack.c.b16 %v2326, %v2311
    %v2822 = vpack.c.b16 %v2342, %v2327
    %v2823 = vpack.c.b16 %v2343, %v2328
    %v2824 = vpack.c.b16 %v2344, %v2329
    %v2825 = vpack.c.b16 %v2345, %v2330
    %v2826 = vpack.c.b16 %v2346, %v2331
    %v2827 = vpack.c.b16 %v2347, %v2332
    %v2828 = vpack.c.b16 %v2348, %v2333
    %v2829 = vpack.c.b16 %v2349, %v2334
    %v2830 = vpack.c.b16 %v2350, %v2335
    %v2831 = vpack.c.b16 %v2351, %v2336
    %v2832 = vpack.c.b16 %v2352, %v2337
    %v2833 = vpack.c.b16 %v2353, %v2338
    %v2834 = vpack.c.b16 %v2354, %v2339
    %v2835 = vpack.c.b16 %v2355, %v2340
    %v2836 = vpack.c.b16 %v2356, %v2341
    %3317 = vmatpush.bf16.msra.mxu0 %v2462
    %3318 = vmatpush.bf16.msra.mxu0 %v2447
    %3319 = vmatpush.bf16.msra.mxu0 %v2432
    %3320 = vmatpush.bf16.msra.mxu0 %v2417
    %3321 = vmatpush.bf16.msra.mxu0 %v2402
    %3322 = vmatpush.bf16.msra.mxu0 %v2387
    %3323 = vmatpush.bf16.msra.mxu0 %v2372
    %3324 = vmatpush.bf16.msra.mxu0 %v2357
    %3325 = vmatmul.bf16.gmra.mxu0 %v335
    %v3326 = vpop.f32.mrf.mxu0
    %v3327 = vadd.f32 %v855, %v3326
    %v3328 = vpop.f32.mrf.mxu0
    %3329 = vdwg.mxu0
    %3330 = vmatpush.bf16.msra.mxu0 %v2582
    %3331 = vmatpush.bf16.msra.mxu0 %v2567
    %3332 = vmatpush.bf16.msra.mxu0 %v2552
    %3333 = vmatpush.bf16.msra.mxu0 %v2537
    %3334 = vmatpush.bf16.msra.mxu0 %v2522
    %3335 = vmatpush.bf16.msra.mxu0 %v2507
    %3336 = vmatpush.bf16.msra.mxu0 %v2492
    %3337 = vmatpush.bf16.msra.mxu0 %v2477
    %3338 = vmatmul.bf16.gmra.mxu0 %v336
    %v3339 = vpop.f32.mrf.mxu0
    %v3340 = vadd.f32 %v3327, %v3339
    %v3341 = vpop.f32.mrf.mxu0
    %3342 = vdwg.mxu0
    %3343 = vmatpush.bf16.msra.mxu0 %v2702
    %3344 = vmatpush.bf16.msra.mxu0 %v2687
    %3345 = vmatpush.bf16.msra.mxu0 %v2672
    %3346 = vmatpush.bf16.msra.mxu0 %v2657
    %3347 = vmatpush.bf16.msra.mxu0 %v2642
    %3348 = vmatpush.bf16.msra.mxu0 %v2627
    %3349 = vmatpush.bf16.msra.mxu0 %v2612
    %3350 = vmatpush.bf16.msra.mxu0 %v2597
    %3351 = vmatmul.bf16.gmra.mxu0 %v337
    %v3352 = vpop.f32.mrf.mxu0
    %v3353 = vadd.f32 %v3340, %v3352
    %v3354 = vpop.f32.mrf.mxu0
    %3355 = vdwg.mxu0
    %3356 = vmatpush.bf16.msra.mxu0 %v2822
    %3357 = vmatpush.bf16.msra.mxu0 %v2807
    %3358 = vmatpush.bf16.msra.mxu0 %v2792
    %3359 = vmatpush.bf16.msra.mxu0 %v2777
    %3360 = vmatpush.bf16.msra.mxu0 %v2762
    %3361 = vmatpush.bf16.msra.mxu0 %v2747
    %3362 = vmatpush.bf16.msra.mxu0 %v2732
    %3363 = vmatpush.bf16.msra.mxu0 %v2717
    %3364 = vmatmul.bf16.gmra.mxu0 %v338
    %v3365 = vpop.f32.mrf.mxu0
    %v3366 = vadd.f32 %v3353, %v3365
    %v3367 = vpop.f32.mrf.mxu0
    %3368 = vdwg.mxu0
    %3369 = vmatpush.bf16.msra.mxu0 %v2463
    %3370 = vmatpush.bf16.msra.mxu0 %v2448
    %3371 = vmatpush.bf16.msra.mxu0 %v2433
    %3372 = vmatpush.bf16.msra.mxu0 %v2418
    %3373 = vmatpush.bf16.msra.mxu0 %v2403
    %3374 = vmatpush.bf16.msra.mxu0 %v2388
    %3375 = vmatpush.bf16.msra.mxu0 %v2373
    %3376 = vmatpush.bf16.msra.mxu0 %v2358
    %3377 = vmatmul.bf16.gmra.mxu0 %v335
    %v3378 = vpop.f32.mrf.mxu0
    %v3379 = vadd.f32 %v856, %v3378
    %v3380 = vpop.f32.mrf.mxu0
    %3381 = vdwg.mxu0
    %3382 = vmatpush.bf16.msra.mxu0 %v2583
    %3383 = vmatpush.bf16.msra.mxu0 %v2568
    %3384 = vmatpush.bf16.msra.mxu0 %v2553
    %3385 = vmatpush.bf16.msra.mxu0 %v2538
    %3386 = vmatpush.bf16.msra.mxu0 %v2523
    %3387 = vmatpush.bf16.msra.mxu0 %v2508
    %3388 = vmatpush.bf16.msra.mxu0 %v2493
    %3389 = vmatpush.bf16.msra.mxu0 %v2478
    %3390 = vmatmul.bf16.gmra.mxu0 %v336
    %v3391 = vpop.f32.mrf.mxu0
    %v3392 = vadd.f32 %v3379, %v3391
    %v3393 = vpop.f32.mrf.mxu0
    %3394 = vdwg.mxu0
    %3395 = vmatpush.bf16.msra.mxu0 %v2703
    %3396 = vmatpush.bf16.msra.mxu0 %v2688
    %3397 = vmatpush.bf16.msra.mxu0 %v2673
    %3398 = vmatpush.bf16.msra.mxu0 %v2658
    %3399 = vmatpush.bf16.msra.mxu0 %v2643
    %3400 = vmatpush.bf16.msra.mxu0 %v2628
    %3401 = vmatpush.bf16.msra.mxu0 %v2613
    %3402 = vmatpush.bf16.msra.mxu0 %v2598
    %3403 = vmatmul.bf16.gmra.mxu0 %v337
    %v3404 = vpop.f32.mrf.mxu0
    %v3405 = vadd.f32 %v3392, %v3404
    %v3406 = vpop.f32.mrf.mxu0
    %3407 = vdwg.mxu0
    %3408 = vmatpush.bf16.msra.mxu0 %v2823
    %3409 = vmatpush.bf16.msra.mxu0 %v2808
    %3410 = vmatpush.bf16.msra.mxu0 %v2793
    %3411 = vmatpush.bf16.msra.mxu0 %v2778
    %3412 = vmatpush.bf16.msra.mxu0 %v2763
    %3413 = vmatpush.bf16.msra.mxu0 %v2748
    %3414 = vmatpush.bf16.msra.mxu0 %v2733
    %3415 = vmatpush.bf16.msra.mxu0 %v2718
    %3416 = vmatmul.bf16.gmra.mxu0 %v338
    %v3417 = vpop.f32.mrf.mxu0
    %v3418 = vadd.f32 %v3405, %v3417
    %v3419 = vpop.f32.mrf.mxu0
    %3420 = vdwg.mxu0
    %3421 = vmatpush.bf16.msra.mxu0 %v2464
    %3422 = vmatpush.bf16.msra.mxu0 %v2449
    %3423 = vmatpush.bf16.msra.mxu0 %v2434
    %3424 = vmatpush.bf16.msra.mxu0 %v2419
    %3425 = vmatpush.bf16.msra.mxu0 %v2404
    %3426 = vmatpush.bf16.msra.mxu0 %v2389
    %3427 = vmatpush.bf16.msra.mxu0 %v2374
    %3428 = vmatpush.bf16.msra.mxu0 %v2359
    %3429 = vmatmul.bf16.gmra.mxu0 %v335
    %v3430 = vpop.f32.mrf.mxu0
    %v3431 = vadd.f32 %v857, %v3430
    %v3432 = vpop.f32.mrf.mxu0
    %3433 = vdwg.mxu0
    %3434 = vmatpush.bf16.msra.mxu0 %v2584
    %3435 = vmatpush.bf16.msra.mxu0 %v2569
    %3436 = vmatpush.bf16.msra.mxu0 %v2554
    %3437 = vmatpush.bf16.msra.mxu0 %v2539
    %3438 = vmatpush.bf16.msra.mxu0 %v2524
    %3439 = vmatpush.bf16.msra.mxu0 %v2509
    %3440 = vmatpush.bf16.msra.mxu0 %v2494
    %3441 = vmatpush.bf16.msra.mxu0 %v2479
    %3442 = vmatmul.bf16.gmra.mxu0 %v336
    %v3443 = vpop.f32.mrf.mxu0
    %v3444 = vadd.f32 %v3431, %v3443
    %v3445 = vpop.f32.mrf.mxu0
    %3446 = vdwg.mxu0
    %3447 = vmatpush.bf16.msra.mxu0 %v2704
    %3448 = vmatpush.bf16.msra.mxu0 %v2689
    %3449 = vmatpush.bf16.msra.mxu0 %v2674
    %3450 = vmatpush.bf16.msra.mxu0 %v2659
    %3451 = vmatpush.bf16.msra.mxu0 %v2644
    %3452 = vmatpush.bf16.msra.mxu0 %v2629
    %3453 = vmatpush.bf16.msra.mxu0 %v2614
    %3454 = vmatpush.bf16.msra.mxu0 %v2599
    %3455 = vmatmul.bf16.gmra.mxu0 %v337
    %v3456 = vpop.f32.mrf.mxu0
    %v3457 = vadd.f32 %v3444, %v3456
    %v3458 = vpop.f32.mrf.mxu0
    %3459 = vdwg.mxu0
    %3460 = vmatpush.bf16.msra.mxu0 %v2824
    %3461 = vmatpush.bf16.msra.mxu0 %v2809
    %3462 = vmatpush.bf16.msra.mxu0 %v2794
    %3463 = vmatpush.bf16.msra.mxu0 %v2779
    %3464 = vmatpush.bf16.msra.mxu0 %v2764
    %3465 = vmatpush.bf16.msra.mxu0 %v2749
    %3466 = vmatpush.bf16.msra.mxu0 %v2734
    %3467 = vmatpush.bf16.msra.mxu0 %v2719
    %3468 = vmatmul.bf16.gmra.mxu0 %v338
    %v3469 = vpop.f32.mrf.mxu0
    %v3470 = vadd.f32 %v3457, %v3469
    %v3471 = vpop.f32.mrf.mxu0
    %3472 = vdwg.mxu0
    %3473 = vmatpush.bf16.msra.mxu0 %v2465
    %3474 = vmatpush.bf16.msra.mxu0 %v2450
    %3475 = vmatpush.bf16.msra.mxu0 %v2435
    %3476 = vmatpush.bf16.msra.mxu0 %v2420
    %3477 = vmatpush.bf16.msra.mxu0 %v2405
    %3478 = vmatpush.bf16.msra.mxu0 %v2390
    %3479 = vmatpush.bf16.msra.mxu0 %v2375
    %3480 = vmatpush.bf16.msra.mxu0 %v2360
    %3481 = vmatmul.bf16.gmra.mxu0 %v335
    %v3482 = vpop.f32.mrf.mxu0
    %v3483 = vadd.f32 %v858, %v3482
    %v3484 = vpop.f32.mrf.mxu0
    %3485 = vdwg.mxu0
    %3486 = vmatpush.bf16.msra.mxu0 %v2585
    %3487 = vmatpush.bf16.msra.mxu0 %v2570
    %3488 = vmatpush.bf16.msra.mxu0 %v2555
    %3489 = vmatpush.bf16.msra.mxu0 %v2540
    %3490 = vmatpush.bf16.msra.mxu0 %v2525
    %3491 = vmatpush.bf16.msra.mxu0 %v2510
    %3492 = vmatpush.bf16.msra.mxu0 %v2495
    %3493 = vmatpush.bf16.msra.mxu0 %v2480
    %3494 = vmatmul.bf16.gmra.mxu0 %v336
    %v3495 = vpop.f32.mrf.mxu0
    %v3496 = vadd.f32 %v3483, %v3495
    %v3497 = vpop.f32.mrf.mxu0
    %3498 = vdwg.mxu0
    %3499 = vmatpush.bf16.msra.mxu0 %v2705
    %3500 = vmatpush.bf16.msra.mxu0 %v2690
    %3501 = vmatpush.bf16.msra.mxu0 %v2675
    %3502 = vmatpush.bf16.msra.mxu0 %v2660
    %3503 = vmatpush.bf16.msra.mxu0 %v2645
    %3504 = vmatpush.bf16.msra.mxu0 %v2630
    %3505 = vmatpush.bf16.msra.mxu0 %v2615
    %3506 = vmatpush.bf16.msra.mxu0 %v2600
    %3507 = vmatmul.bf16.gmra.mxu0 %v337
    %v3508 = vpop.f32.mrf.mxu0
    %v3509 = vadd.f32 %v3496, %v3508
    %v3510 = vpop.f32.mrf.mxu0
    %3511 = vdwg.mxu0
    %3512 = vmatpush.bf16.msra.mxu0 %v2825
    %3513 = vmatpush.bf16.msra.mxu0 %v2810
    %3514 = vmatpush.bf16.msra.mxu0 %v2795
    %3515 = vmatpush.bf16.msra.mxu0 %v2780
    %3516 = vmatpush.bf16.msra.mxu0 %v2765
    %3517 = vmatpush.bf16.msra.mxu0 %v2750
    %3518 = vmatpush.bf16.msra.mxu0 %v2735
    %3519 = vmatpush.bf16.msra.mxu0 %v2720
    %3520 = vmatmul.bf16.gmra.mxu0 %v338
    %v3521 = vpop.f32.mrf.mxu0
    %v3522 = vadd.f32 %v3509, %v3521
    %v3523 = vpop.f32.mrf.mxu0
    %3524 = vdwg.mxu0
    %3525 = vmatpush.bf16.msra.mxu0 %v2466
    %3526 = vmatpush.bf16.msra.mxu0 %v2451
    %3527 = vmatpush.bf16.msra.mxu0 %v2436
    %3528 = vmatpush.bf16.msra.mxu0 %v2421
    %3529 = vmatpush.bf16.msra.mxu0 %v2406
    %3530 = vmatpush.bf16.msra.mxu0 %v2391
    %3531 = vmatpush.bf16.msra.mxu0 %v2376
    %3532 = vmatpush.bf16.msra.mxu0 %v2361
    %3533 = vmatmul.bf16.gmra.mxu0 %v335
    %v3534 = vpop.f32.mrf.mxu0
    %v3535 = vadd.f32 %v859, %v3534
    %v3536 = vpop.f32.mrf.mxu0
    %3537 = vdwg.mxu0
    %3538 = vmatpush.bf16.msra.mxu0 %v2586
    %3539 = vmatpush.bf16.msra.mxu0 %v2571
    %3540 = vmatpush.bf16.msra.mxu0 %v2556
    %3541 = vmatpush.bf16.msra.mxu0 %v2541
    %3542 = vmatpush.bf16.msra.mxu0 %v2526
    %3543 = vmatpush.bf16.msra.mxu0 %v2511
    %3544 = vmatpush.bf16.msra.mxu0 %v2496
    %3545 = vmatpush.bf16.msra.mxu0 %v2481
    %3546 = vmatmul.bf16.gmra.mxu0 %v336
    %v3547 = vpop.f32.mrf.mxu0
    %v3548 = vadd.f32 %v3535, %v3547
    %v3549 = vpop.f32.mrf.mxu0
    %3550 = vdwg.mxu0
    %3551 = vmatpush.bf16.msra.mxu0 %v2706
    %3552 = vmatpush.bf16.msra.mxu0 %v2691
    %3553 = vmatpush.bf16.msra.mxu0 %v2676
    %3554 = vmatpush.bf16.msra.mxu0 %v2661
    %3555 = vmatpush.bf16.msra.mxu0 %v2646
    %3556 = vmatpush.bf16.msra.mxu0 %v2631
    %3557 = vmatpush.bf16.msra.mxu0 %v2616
    %3558 = vmatpush.bf16.msra.mxu0 %v2601
    %3559 = vmatmul.bf16.gmra.mxu0 %v337
    %v3560 = vpop.f32.mrf.mxu0
    %v3561 = vadd.f32 %v3548, %v3560
    %v3562 = vpop.f32.mrf.mxu0
    %3563 = vdwg.mxu0
    %3564 = vmatpush.bf16.msra.mxu0 %v2826
    %3565 = vmatpush.bf16.msra.mxu0 %v2811
    %3566 = vmatpush.bf16.msra.mxu0 %v2796
    %3567 = vmatpush.bf16.msra.mxu0 %v2781
    %3568 = vmatpush.bf16.msra.mxu0 %v2766
    %3569 = vmatpush.bf16.msra.mxu0 %v2751
    %3570 = vmatpush.bf16.msra.mxu0 %v2736
    %3571 = vmatpush.bf16.msra.mxu0 %v2721
    %3572 = vmatmul.bf16.gmra.mxu0 %v338
    %v3573 = vpop.f32.mrf.mxu0
    %v3574 = vadd.f32 %v3561, %v3573
    %v3575 = vpop.f32.mrf.mxu0
    %3576 = vdwg.mxu0
    %3577 = vmatpush.bf16.msra.mxu0 %v2467
    %3578 = vmatpush.bf16.msra.mxu0 %v2452
    %3579 = vmatpush.bf16.msra.mxu0 %v2437
    %3580 = vmatpush.bf16.msra.mxu0 %v2422
    %3581 = vmatpush.bf16.msra.mxu0 %v2407
    %3582 = vmatpush.bf16.msra.mxu0 %v2392
    %3583 = vmatpush.bf16.msra.mxu0 %v2377
    %3584 = vmatpush.bf16.msra.mxu0 %v2362
    %3585 = vmatmul.bf16.gmra.mxu0 %v335
    %v3586 = vpop.f32.mrf.mxu0
    %v3587 = vadd.f32 %v860, %v3586
    %v3588 = vpop.f32.mrf.mxu0
    %3589 = vdwg.mxu0
    %3590 = vmatpush.bf16.msra.mxu0 %v2587
    %3591 = vmatpush.bf16.msra.mxu0 %v2572
    %3592 = vmatpush.bf16.msra.mxu0 %v2557
    %3593 = vmatpush.bf16.msra.mxu0 %v2542
    %3594 = vmatpush.bf16.msra.mxu0 %v2527
    %3595 = vmatpush.bf16.msra.mxu0 %v2512
    %3596 = vmatpush.bf16.msra.mxu0 %v2497
    %3597 = vmatpush.bf16.msra.mxu0 %v2482
    %3598 = vmatmul.bf16.gmra.mxu0 %v336
    %v3599 = vpop.f32.mrf.mxu0
    %v3600 = vadd.f32 %v3587, %v3599
    %v3601 = vpop.f32.mrf.mxu0
    %3602 = vdwg.mxu0
    %3603 = vmatpush.bf16.msra.mxu0 %v2707
    %3604 = vmatpush.bf16.msra.mxu0 %v2692
    %3605 = vmatpush.bf16.msra.mxu0 %v2677
    %3606 = vmatpush.bf16.msra.mxu0 %v2662
    %3607 = vmatpush.bf16.msra.mxu0 %v2647
    %3608 = vmatpush.bf16.msra.mxu0 %v2632
    %3609 = vmatpush.bf16.msra.mxu0 %v2617
    %3610 = vmatpush.bf16.msra.mxu0 %v2602
    %3611 = vmatmul.bf16.gmra.mxu0 %v337
    %v3612 = vpop.f32.mrf.mxu0
    %v3613 = vadd.f32 %v3600, %v3612
    %v3614 = vpop.f32.mrf.mxu0
    %3615 = vdwg.mxu0
    %3616 = vmatpush.bf16.msra.mxu0 %v2827
    %3617 = vmatpush.bf16.msra.mxu0 %v2812
    %3618 = vmatpush.bf16.msra.mxu0 %v2797
    %3619 = vmatpush.bf16.msra.mxu0 %v2782
    %3620 = vmatpush.bf16.msra.mxu0 %v2767
    %3621 = vmatpush.bf16.msra.mxu0 %v2752
    %3622 = vmatpush.bf16.msra.mxu0 %v2737
    %3623 = vmatpush.bf16.msra.mxu0 %v2722
    %3624 = vmatmul.bf16.gmra.mxu0 %v338
    %v3625 = vpop.f32.mrf.mxu0
    %v3626 = vadd.f32 %v3613, %v3625
    %v3627 = vpop.f32.mrf.mxu0
    %3628 = vdwg.mxu0
    %3629 = vmatpush.bf16.msra.mxu0 %v2468
    %3630 = vmatpush.bf16.msra.mxu0 %v2453
    %3631 = vmatpush.bf16.msra.mxu0 %v2438
    %3632 = vmatpush.bf16.msra.mxu0 %v2423
    %3633 = vmatpush.bf16.msra.mxu0 %v2408
    %3634 = vmatpush.bf16.msra.mxu0 %v2393
    %3635 = vmatpush.bf16.msra.mxu0 %v2378
    %3636 = vmatpush.bf16.msra.mxu0 %v2363
    %3637 = vmatmul.bf16.gmra.mxu0 %v335
    %v3638 = vpop.f32.mrf.mxu0
    %v3639 = vadd.f32 %v861, %v3638
    %v3640 = vpop.f32.mrf.mxu0
    %3641 = vdwg.mxu0
    %3642 = vmatpush.bf16.msra.mxu0 %v2588
    %3643 = vmatpush.bf16.msra.mxu0 %v2573
    %3644 = vmatpush.bf16.msra.mxu0 %v2558
    %3645 = vmatpush.bf16.msra.mxu0 %v2543
    %3646 = vmatpush.bf16.msra.mxu0 %v2528
    %3647 = vmatpush.bf16.msra.mxu0 %v2513
    %3648 = vmatpush.bf16.msra.mxu0 %v2498
    %3649 = vmatpush.bf16.msra.mxu0 %v2483
    %3650 = vmatmul.bf16.gmra.mxu0 %v336
    %v3651 = vpop.f32.mrf.mxu0
    %v3652 = vadd.f32 %v3639, %v3651
    %v3653 = vpop.f32.mrf.mxu0
    %3654 = vdwg.mxu0
    %3655 = vmatpush.bf16.msra.mxu0 %v2708
    %3656 = vmatpush.bf16.msra.mxu0 %v2693
    %3657 = vmatpush.bf16.msra.mxu0 %v2678
    %3658 = vmatpush.bf16.msra.mxu0 %v2663
    %3659 = vmatpush.bf16.msra.mxu0 %v2648
    %3660 = vmatpush.bf16.msra.mxu0 %v2633
    %3661 = vmatpush.bf16.msra.mxu0 %v2618
    %3662 = vmatpush.bf16.msra.mxu0 %v2603
    %3663 = vmatmul.bf16.gmra.mxu0 %v337
    %v3664 = vpop.f32.mrf.mxu0
    %v3665 = vadd.f32 %v3652, %v3664
    %v3666 = vpop.f32.mrf.mxu0
    %3667 = vdwg.mxu0
    %3668 = vmatpush.bf16.msra.mxu0 %v2828
    %3669 = vmatpush.bf16.msra.mxu0 %v2813
    %3670 = vmatpush.bf16.msra.mxu0 %v2798
    %3671 = vmatpush.bf16.msra.mxu0 %v2783
    %3672 = vmatpush.bf16.msra.mxu0 %v2768
    %3673 = vmatpush.bf16.msra.mxu0 %v2753
    %3674 = vmatpush.bf16.msra.mxu0 %v2738
    %3675 = vmatpush.bf16.msra.mxu0 %v2723
    %3676 = vmatmul.bf16.gmra.mxu0 %v338
    %v3677 = vpop.f32.mrf.mxu0
    %v3678 = vadd.f32 %v3665, %v3677
    %v3679 = vpop.f32.mrf.mxu0
    %3680 = vdwg.mxu0
    %3681 = vmatpush.bf16.msra.mxu0 %v2469
    %3682 = vmatpush.bf16.msra.mxu0 %v2454
    %3683 = vmatpush.bf16.msra.mxu0 %v2439
    %3684 = vmatpush.bf16.msra.mxu0 %v2424
    %3685 = vmatpush.bf16.msra.mxu0 %v2409
    %3686 = vmatpush.bf16.msra.mxu0 %v2394
    %3687 = vmatpush.bf16.msra.mxu0 %v2379
    %3688 = vmatpush.bf16.msra.mxu0 %v2364
    %3689 = vmatmul.bf16.gmra.mxu0 %v335
    %v3690 = vpop.f32.mrf.mxu0
    %v3691 = vadd.f32 %v862, %v3690
    %v3692 = vpop.f32.mrf.mxu0
    %3693 = vdwg.mxu0
    %3694 = vmatpush.bf16.msra.mxu0 %v2589
    %3695 = vmatpush.bf16.msra.mxu0 %v2574
    %3696 = vmatpush.bf16.msra.mxu0 %v2559
    %3697 = vmatpush.bf16.msra.mxu0 %v2544
    %3698 = vmatpush.bf16.msra.mxu0 %v2529
    %3699 = vmatpush.bf16.msra.mxu0 %v2514
    %3700 = vmatpush.bf16.msra.mxu0 %v2499
    %3701 = vmatpush.bf16.msra.mxu0 %v2484
    %3702 = vmatmul.bf16.gmra.mxu0 %v336
    %v3703 = vpop.f32.mrf.mxu0
    %v3704 = vadd.f32 %v3691, %v3703
    %v3705 = vpop.f32.mrf.mxu0
    %3706 = vdwg.mxu0
    %3707 = vmatpush.bf16.msra.mxu0 %v2709
    %3708 = vmatpush.bf16.msra.mxu0 %v2694
    %3709 = vmatpush.bf16.msra.mxu0 %v2679
    %3710 = vmatpush.bf16.msra.mxu0 %v2664
    %3711 = vmatpush.bf16.msra.mxu0 %v2649
    %3712 = vmatpush.bf16.msra.mxu0 %v2634
    %3713 = vmatpush.bf16.msra.mxu0 %v2619
    %3714 = vmatpush.bf16.msra.mxu0 %v2604
    %3715 = vmatmul.bf16.gmra.mxu0 %v337
    %v3716 = vpop.f32.mrf.mxu0
    %v3717 = vadd.f32 %v3704, %v3716
    %v3718 = vpop.f32.mrf.mxu0
    %3719 = vdwg.mxu0
    %3720 = vmatpush.bf16.msra.mxu0 %v2829
    %3721 = vmatpush.bf16.msra.mxu0 %v2814
    %3722 = vmatpush.bf16.msra.mxu0 %v2799
    %3723 = vmatpush.bf16.msra.mxu0 %v2784
    %3724 = vmatpush.bf16.msra.mxu0 %v2769
    %3725 = vmatpush.bf16.msra.mxu0 %v2754
    %3726 = vmatpush.bf16.msra.mxu0 %v2739
    %3727 = vmatpush.bf16.msra.mxu0 %v2724
    %3728 = vmatmul.bf16.gmra.mxu0 %v338
    %v3729 = vpop.f32.mrf.mxu0
    %v3730 = vadd.f32 %v3717, %v3729
    %v3731 = vpop.f32.mrf.mxu0
    %3732 = vdwg.mxu0
    %3733 = vmatpush.bf16.msra.mxu0 %v2470
    %3734 = vmatpush.bf16.msra.mxu0 %v2455
    %3735 = vmatpush.bf16.msra.mxu0 %v2440
    %3736 = vmatpush.bf16.msra.mxu0 %v2425
    %3737 = vmatpush.bf16.msra.mxu0 %v2410
    %3738 = vmatpush.bf16.msra.mxu0 %v2395
    %3739 = vmatpush.bf16.msra.mxu0 %v2380
    %3740 = vmatpush.bf16.msra.mxu0 %v2365
    %3741 = vmatmul.bf16.gmra.mxu0 %v335
    %v3742 = vpop.f32.mrf.mxu0
    %v3743 = vadd.f32 %v863, %v3742
    %v3744 = vpop.f32.mrf.mxu0
    %3745 = vdwg.mxu0
    %3746 = vmatpush.bf16.msra.mxu0 %v2590
    %3747 = vmatpush.bf16.msra.mxu0 %v2575
    %3748 = vmatpush.bf16.msra.mxu0 %v2560
    %3749 = vmatpush.bf16.msra.mxu0 %v2545
    %3750 = vmatpush.bf16.msra.mxu0 %v2530
    %3751 = vmatpush.bf16.msra.mxu0 %v2515
    %3752 = vmatpush.bf16.msra.mxu0 %v2500
    %3753 = vmatpush.bf16.msra.mxu0 %v2485
    %3754 = vmatmul.bf16.gmra.mxu0 %v336
    %v3755 = vpop.f32.mrf.mxu0
    %v3756 = vadd.f32 %v3743, %v3755
    %v3757 = vpop.f32.mrf.mxu0
    %3758 = vdwg.mxu0
    %3759 = vmatpush.bf16.msra.mxu0 %v2710
    %3760 = vmatpush.bf16.msra.mxu0 %v2695
    %3761 = vmatpush.bf16.msra.mxu0 %v2680
    %3762 = vmatpush.bf16.msra.mxu0 %v2665
    %3763 = vmatpush.bf16.msra.mxu0 %v2650
    %3764 = vmatpush.bf16.msra.mxu0 %v2635
    %3765 = vmatpush.bf16.msra.mxu0 %v2620
    %3766 = vmatpush.bf16.msra.mxu0 %v2605
    %3767 = vmatmul.bf16.gmra.mxu0 %v337
    %v3768 = vpop.f32.mrf.mxu0
    %v3769 = vadd.f32 %v3756, %v3768
    %v3770 = vpop.f32.mrf.mxu0
    %3771 = vdwg.mxu0
    %3772 = vmatpush.bf16.msra.mxu0 %v2830
    %3773 = vmatpush.bf16.msra.mxu0 %v2815
    %3774 = vmatpush.bf16.msra.mxu0 %v2800
    %3775 = vmatpush.bf16.msra.mxu0 %v2785
    %3776 = vmatpush.bf16.msra.mxu0 %v2770
    %3777 = vmatpush.bf16.msra.mxu0 %v2755
    %3778 = vmatpush.bf16.msra.mxu0 %v2740
    %3779 = vmatpush.bf16.msra.mxu0 %v2725
    %3780 = vmatmul.bf16.gmra.mxu0 %v338
    %v3781 = vpop.f32.mrf.mxu0
    %v3782 = vadd.f32 %v3769, %v3781
    %v3783 = vpop.f32.mrf.mxu0
    %3784 = vdwg.mxu0
    %3785 = vmatpush.bf16.msra.mxu0 %v2471
    %3786 = vmatpush.bf16.msra.mxu0 %v2456
    %3787 = vmatpush.bf16.msra.mxu0 %v2441
    %3788 = vmatpush.bf16.msra.mxu0 %v2426
    %3789 = vmatpush.bf16.msra.mxu0 %v2411
    %3790 = vmatpush.bf16.msra.mxu0 %v2396
    %3791 = vmatpush.bf16.msra.mxu0 %v2381
    %3792 = vmatpush.bf16.msra.mxu0 %v2366
    %3793 = vmatmul.bf16.gmra.mxu0 %v335
    %v3794 = vpop.f32.mrf.mxu0
    %v3795 = vadd.f32 %v864, %v3794
    %v3796 = vpop.f32.mrf.mxu0
    %3797 = vdwg.mxu0
    %3798 = vmatpush.bf16.msra.mxu0 %v2591
    %3799 = vmatpush.bf16.msra.mxu0 %v2576
    %3800 = vmatpush.bf16.msra.mxu0 %v2561
    %3801 = vmatpush.bf16.msra.mxu0 %v2546
    %3802 = vmatpush.bf16.msra.mxu0 %v2531
    %3803 = vmatpush.bf16.msra.mxu0 %v2516
    %3804 = vmatpush.bf16.msra.mxu0 %v2501
    %3805 = vmatpush.bf16.msra.mxu0 %v2486
    %3806 = vmatmul.bf16.gmra.mxu0 %v336
    %v3807 = vpop.f32.mrf.mxu0
    %v3808 = vadd.f32 %v3795, %v3807
    %v3809 = vpop.f32.mrf.mxu0
    %3810 = vdwg.mxu0
    %3811 = vmatpush.bf16.msra.mxu0 %v2711
    %3812 = vmatpush.bf16.msra.mxu0 %v2696
    %3813 = vmatpush.bf16.msra.mxu0 %v2681
    %3814 = vmatpush.bf16.msra.mxu0 %v2666
    %3815 = vmatpush.bf16.msra.mxu0 %v2651
    %3816 = vmatpush.bf16.msra.mxu0 %v2636
    %3817 = vmatpush.bf16.msra.mxu0 %v2621
    %3818 = vmatpush.bf16.msra.mxu0 %v2606
    %3819 = vmatmul.bf16.gmra.mxu0 %v337
    %v3820 = vpop.f32.mrf.mxu0
    %v3821 = vadd.f32 %v3808, %v3820
    %v3822 = vpop.f32.mrf.mxu0
    %3823 = vdwg.mxu0
    %3824 = vmatpush.bf16.msra.mxu0 %v2831
    %3825 = vmatpush.bf16.msra.mxu0 %v2816
    %3826 = vmatpush.bf16.msra.mxu0 %v2801
    %3827 = vmatpush.bf16.msra.mxu0 %v2786
    %3828 = vmatpush.bf16.msra.mxu0 %v2771
    %3829 = vmatpush.bf16.msra.mxu0 %v2756
    %3830 = vmatpush.bf16.msra.mxu0 %v2741
    %3831 = vmatpush.bf16.msra.mxu0 %v2726
    %3832 = vmatmul.bf16.gmra.mxu0 %v338
    %v3833 = vpop.f32.mrf.mxu0
    %v3834 = vadd.f32 %v3821, %v3833
    %v3835 = vpop.f32.mrf.mxu0
    %3836 = vdwg.mxu0
    %3837 = vmatpush.bf16.msra.mxu0 %v2472
    %3838 = vmatpush.bf16.msra.mxu0 %v2457
    %3839 = vmatpush.bf16.msra.mxu0 %v2442
    %3840 = vmatpush.bf16.msra.mxu0 %v2427
    %3841 = vmatpush.bf16.msra.mxu0 %v2412
    %3842 = vmatpush.bf16.msra.mxu0 %v2397
    %3843 = vmatpush.bf16.msra.mxu0 %v2382
    %3844 = vmatpush.bf16.msra.mxu0 %v2367
    %3845 = vmatmul.bf16.gmra.mxu0 %v335
    %v3846 = vpop.f32.mrf.mxu0
    %v3847 = vadd.f32 %v865, %v3846
    %v3848 = vpop.f32.mrf.mxu0
    %3849 = vdwg.mxu0
    %3850 = vmatpush.bf16.msra.mxu0 %v2592
    %3851 = vmatpush.bf16.msra.mxu0 %v2577
    %3852 = vmatpush.bf16.msra.mxu0 %v2562
    %3853 = vmatpush.bf16.msra.mxu0 %v2547
    %3854 = vmatpush.bf16.msra.mxu0 %v2532
    %3855 = vmatpush.bf16.msra.mxu0 %v2517
    %3856 = vmatpush.bf16.msra.mxu0 %v2502
    %3857 = vmatpush.bf16.msra.mxu0 %v2487
    %3858 = vmatmul.bf16.gmra.mxu0 %v336
    %v3859 = vpop.f32.mrf.mxu0
    %v3860 = vadd.f32 %v3847, %v3859
    %v3861 = vpop.f32.mrf.mxu0
    %3862 = vdwg.mxu0
    %3863 = vmatpush.bf16.msra.mxu0 %v2712
    %3864 = vmatpush.bf16.msra.mxu0 %v2697
    %3865 = vmatpush.bf16.msra.mxu0 %v2682
    %3866 = vmatpush.bf16.msra.mxu0 %v2667
    %3867 = vmatpush.bf16.msra.mxu0 %v2652
    %3868 = vmatpush.bf16.msra.mxu0 %v2637
    %3869 = vmatpush.bf16.msra.mxu0 %v2622
    %3870 = vmatpush.bf16.msra.mxu0 %v2607
    %3871 = vmatmul.bf16.gmra.mxu0 %v337
    %v3872 = vpop.f32.mrf.mxu0
    %v3873 = vadd.f32 %v3860, %v3872
    %v3874 = vpop.f32.mrf.mxu0
    %3875 = vdwg.mxu0
    %3876 = vmatpush.bf16.msra.mxu0 %v2832
    %3877 = vmatpush.bf16.msra.mxu0 %v2817
    %3878 = vmatpush.bf16.msra.mxu0 %v2802
    %3879 = vmatpush.bf16.msra.mxu0 %v2787
    %3880 = vmatpush.bf16.msra.mxu0 %v2772
    %3881 = vmatpush.bf16.msra.mxu0 %v2757
    %3882 = vmatpush.bf16.msra.mxu0 %v2742
    %3883 = vmatpush.bf16.msra.mxu0 %v2727
    %3884 = vmatmul.bf16.gmra.mxu0 %v338
    %v3885 = vpop.f32.mrf.mxu0
    %v3886 = vadd.f32 %v3873, %v3885
    %v3887 = vpop.f32.mrf.mxu0
    %3888 = vdwg.mxu0
    %3889 = vmatpush.bf16.msra.mxu0 %v2473
    %3890 = vmatpush.bf16.msra.mxu0 %v2458
    %3891 = vmatpush.bf16.msra.mxu0 %v2443
    %3892 = vmatpush.bf16.msra.mxu0 %v2428
    %3893 = vmatpush.bf16.msra.mxu0 %v2413
    %3894 = vmatpush.bf16.msra.mxu0 %v2398
    %3895 = vmatpush.bf16.msra.mxu0 %v2383
    %3896 = vmatpush.bf16.msra.mxu0 %v2368
    %3897 = vmatmul.bf16.gmra.mxu0 %v335
    %v3898 = vpop.f32.mrf.mxu0
    %v3899 = vadd.f32 %v866, %v3898
    %v3900 = vpop.f32.mrf.mxu0
    %3901 = vdwg.mxu0
    %3902 = vmatpush.bf16.msra.mxu0 %v2593
    %3903 = vmatpush.bf16.msra.mxu0 %v2578
    %3904 = vmatpush.bf16.msra.mxu0 %v2563
    %3905 = vmatpush.bf16.msra.mxu0 %v2548
    %3906 = vmatpush.bf16.msra.mxu0 %v2533
    %3907 = vmatpush.bf16.msra.mxu0 %v2518
    %3908 = vmatpush.bf16.msra.mxu0 %v2503
    %3909 = vmatpush.bf16.msra.mxu0 %v2488
    %3910 = vmatmul.bf16.gmra.mxu0 %v336
    %v3911 = vpop.f32.mrf.mxu0
    %v3912 = vadd.f32 %v3899, %v3911
    %v3913 = vpop.f32.mrf.mxu0
    %3914 = vdwg.mxu0
    %3915 = vmatpush.bf16.msra.mxu0 %v2713
    %3916 = vmatpush.bf16.msra.mxu0 %v2698
    %3917 = vmatpush.bf16.msra.mxu0 %v2683
    %3918 = vmatpush.bf16.msra.mxu0 %v2668
    %3919 = vmatpush.bf16.msra.mxu0 %v2653
    %3920 = vmatpush.bf16.msra.mxu0 %v2638
    %3921 = vmatpush.bf16.msra.mxu0 %v2623
    %3922 = vmatpush.bf16.msra.mxu0 %v2608
    %3923 = vmatmul.bf16.gmra.mxu0 %v337
    %v3924 = vpop.f32.mrf.mxu0
    %v3925 = vadd.f32 %v3912, %v3924
    %v3926 = vpop.f32.mrf.mxu0
    %3927 = vdwg.mxu0
    %3928 = vmatpush.bf16.msra.mxu0 %v2833
    %3929 = vmatpush.bf16.msra.mxu0 %v2818
    %3930 = vmatpush.bf16.msra.mxu0 %v2803
    %3931 = vmatpush.bf16.msra.mxu0 %v2788
    %3932 = vmatpush.bf16.msra.mxu0 %v2773
    %3933 = vmatpush.bf16.msra.mxu0 %v2758
    %3934 = vmatpush.bf16.msra.mxu0 %v2743
    %3935 = vmatpush.bf16.msra.mxu0 %v2728
    %3936 = vmatmul.bf16.gmra.mxu0 %v338
    %v3937 = vpop.f32.mrf.mxu0
    %v3938 = vadd.f32 %v3925, %v3937
    %v3939 = vpop.f32.mrf.mxu0
    %3940 = vdwg.mxu0
    %3941 = vmatpush.bf16.msra.mxu0 %v2474
    %3942 = vmatpush.bf16.msra.mxu0 %v2459
    %3943 = vmatpush.bf16.msra.mxu0 %v2444
    %3944 = vmatpush.bf16.msra.mxu0 %v2429
    %3945 = vmatpush.bf16.msra.mxu0 %v2414
    %3946 = vmatpush.bf16.msra.mxu0 %v2399
    %3947 = vmatpush.bf16.msra.mxu0 %v2384
    %3948 = vmatpush.bf16.msra.mxu0 %v2369
    %3949 = vmatmul.bf16.gmra.mxu0 %v335
    %v3950 = vpop.f32.mrf.mxu0
    %v3951 = vadd.f32 %v867, %v3950
    %v3952 = vpop.f32.mrf.mxu0
    %3953 = vdwg.mxu0
    %3954 = vmatpush.bf16.msra.mxu0 %v2594
    %3955 = vmatpush.bf16.msra.mxu0 %v2579
    %3956 = vmatpush.bf16.msra.mxu0 %v2564
    %3957 = vmatpush.bf16.msra.mxu0 %v2549
    %3958 = vmatpush.bf16.msra.mxu0 %v2534
    %3959 = vmatpush.bf16.msra.mxu0 %v2519
    %3960 = vmatpush.bf16.msra.mxu0 %v2504
    %3961 = vmatpush.bf16.msra.mxu0 %v2489
    %3962 = vmatmul.bf16.gmra.mxu0 %v336
    %v3963 = vpop.f32.mrf.mxu0
    %v3964 = vadd.f32 %v3951, %v3963
    %v3965 = vpop.f32.mrf.mxu0
    %3966 = vdwg.mxu0
    %3967 = vmatpush.bf16.msra.mxu0 %v2714
    %3968 = vmatpush.bf16.msra.mxu0 %v2699
    %3969 = vmatpush.bf16.msra.mxu0 %v2684
    %3970 = vmatpush.bf16.msra.mxu0 %v2669
    %3971 = vmatpush.bf16.msra.mxu0 %v2654
    %3972 = vmatpush.bf16.msra.mxu0 %v2639
    %3973 = vmatpush.bf16.msra.mxu0 %v2624
    %3974 = vmatpush.bf16.msra.mxu0 %v2609
    %3975 = vmatmul.bf16.gmra.mxu0 %v337
    %v3976 = vpop.f32.mrf.mxu0
    %v3977 = vadd.f32 %v3964, %v3976
    %v3978 = vpop.f32.mrf.mxu0
    %3979 = vdwg.mxu0
    %3980 = vmatpush.bf16.msra.mxu0 %v2834
    %3981 = vmatpush.bf16.msra.mxu0 %v2819
    %3982 = vmatpush.bf16.msra.mxu0 %v2804
    %3983 = vmatpush.bf16.msra.mxu0 %v2789
    %3984 = vmatpush.bf16.msra.mxu0 %v2774
    %3985 = vmatpush.bf16.msra.mxu0 %v2759
    %3986 = vmatpush.bf16.msra.mxu0 %v2744
    %3987 = vmatpush.bf16.msra.mxu0 %v2729
    %3988 = vmatmul.bf16.gmra.mxu0 %v338
    %v3989 = vpop.f32.mrf.mxu0
    %v3990 = vadd.f32 %v3977, %v3989
    %v3991 = vpop.f32.mrf.mxu0
    %3992 = vdwg.mxu0
    %3993 = vmatpush.bf16.msra.mxu0 %v2475
    %3994 = vmatpush.bf16.msra.mxu0 %v2460
    %3995 = vmatpush.bf16.msra.mxu0 %v2445
    %3996 = vmatpush.bf16.msra.mxu0 %v2430
    %3997 = vmatpush.bf16.msra.mxu0 %v2415
    %3998 = vmatpush.bf16.msra.mxu0 %v2400
    %3999 = vmatpush.bf16.msra.mxu0 %v2385
    %4000 = vmatpush.bf16.msra.mxu0 %v2370
    %4001 = vmatmul.bf16.gmra.mxu0 %v335
    %v4002 = vpop.f32.mrf.mxu0
    %v4003 = vadd.f32 %v868, %v4002
    %v4004 = vpop.f32.mrf.mxu0
    %4005 = vdwg.mxu0
    %4006 = vmatpush.bf16.msra.mxu0 %v2595
    %4007 = vmatpush.bf16.msra.mxu0 %v2580
    %4008 = vmatpush.bf16.msra.mxu0 %v2565
    %4009 = vmatpush.bf16.msra.mxu0 %v2550
    %4010 = vmatpush.bf16.msra.mxu0 %v2535
    %4011 = vmatpush.bf16.msra.mxu0 %v2520
    %4012 = vmatpush.bf16.msra.mxu0 %v2505
    %4013 = vmatpush.bf16.msra.mxu0 %v2490
    %4014 = vmatmul.bf16.gmra.mxu0 %v336
    %v4015 = vpop.f32.mrf.mxu0
    %v4016 = vadd.f32 %v4003, %v4015
    %v4017 = vpop.f32.mrf.mxu0
    %4018 = vdwg.mxu0
    %4019 = vmatpush.bf16.msra.mxu0 %v2715
    %4020 = vmatpush.bf16.msra.mxu0 %v2700
    %4021 = vmatpush.bf16.msra.mxu0 %v2685
    %4022 = vmatpush.bf16.msra.mxu0 %v2670
    %4023 = vmatpush.bf16.msra.mxu0 %v2655
    %4024 = vmatpush.bf16.msra.mxu0 %v2640
    %4025 = vmatpush.bf16.msra.mxu0 %v2625
    %4026 = vmatpush.bf16.msra.mxu0 %v2610
    %4027 = vmatmul.bf16.gmra.mxu0 %v337
    %v4028 = vpop.f32.mrf.mxu0
    %v4029 = vadd.f32 %v4016, %v4028
    %v4030 = vpop.f32.mrf.mxu0
    %4031 = vdwg.mxu0
    %4032 = vmatpush.bf16.msra.mxu0 %v2835
    %4033 = vmatpush.bf16.msra.mxu0 %v2820
    %4034 = vmatpush.bf16.msra.mxu0 %v2805
    %4035 = vmatpush.bf16.msra.mxu0 %v2790
    %4036 = vmatpush.bf16.msra.mxu0 %v2775
    %4037 = vmatpush.bf16.msra.mxu0 %v2760
    %4038 = vmatpush.bf16.msra.mxu0 %v2745
    %4039 = vmatpush.bf16.msra.mxu0 %v2730
    %4040 = vmatmul.bf16.gmra.mxu0 %v338
    %v4041 = vpop.f32.mrf.mxu0
    %v4042 = vadd.f32 %v4029, %v4041
    %v4043 = vpop.f32.mrf.mxu0
    %4044 = vdwg.mxu0
    %4045 = vmatpush.bf16.msra.mxu0 %v2476
    %4046 = vmatpush.bf16.msra.mxu0 %v2461
    %4047 = vmatpush.bf16.msra.mxu0 %v2446
    %4048 = vmatpush.bf16.msra.mxu0 %v2431
    %4049 = vmatpush.bf16.msra.mxu0 %v2416
    %4050 = vmatpush.bf16.msra.mxu0 %v2401
    %4051 = vmatpush.bf16.msra.mxu0 %v2386
    %4052 = vmatpush.bf16.msra.mxu0 %v2371
    %4053 = vmatmul.bf16.gmra.mxu0 %v335
    %v4054 = vpop.f32.mrf.mxu0
    %v4055 = vadd.f32 %v869, %v4054
    %v4056 = vpop.f32.mrf.mxu0
    %4057 = vdwg.mxu0
    %4058 = vmatpush.bf16.msra.mxu0 %v2596
    %4059 = vmatpush.bf16.msra.mxu0 %v2581
    %4060 = vmatpush.bf16.msra.mxu0 %v2566
    %4061 = vmatpush.bf16.msra.mxu0 %v2551
    %4062 = vmatpush.bf16.msra.mxu0 %v2536
    %4063 = vmatpush.bf16.msra.mxu0 %v2521
    %4064 = vmatpush.bf16.msra.mxu0 %v2506
    %4065 = vmatpush.bf16.msra.mxu0 %v2491
    %4066 = vmatmul.bf16.gmra.mxu0 %v336
    %v4067 = vpop.f32.mrf.mxu0
    %v4068 = vadd.f32 %v4055, %v4067
    %v4069 = vpop.f32.mrf.mxu0
    %4070 = vdwg.mxu0
    %4071 = vmatpush.bf16.msra.mxu0 %v2716
    %4072 = vmatpush.bf16.msra.mxu0 %v2701
    %4073 = vmatpush.bf16.msra.mxu0 %v2686
    %4074 = vmatpush.bf16.msra.mxu0 %v2671
    %4075 = vmatpush.bf16.msra.mxu0 %v2656
    %4076 = vmatpush.bf16.msra.mxu0 %v2641
    %4077 = vmatpush.bf16.msra.mxu0 %v2626
    %4078 = vmatpush.bf16.msra.mxu0 %v2611
    %4079 = vmatmul.bf16.gmra.mxu0 %v337
    %v4080 = vpop.f32.mrf.mxu0
    %v4081 = vadd.f32 %v4068, %v4080
    %v4082 = vpop.f32.mrf.mxu0
    %4083 = vdwg.mxu0
    %4084 = vmatpush.bf16.msra.mxu0 %v2836
    %4085 = vmatpush.bf16.msra.mxu0 %v2821
    %4086 = vmatpush.bf16.msra.mxu0 %v2806
    %4087 = vmatpush.bf16.msra.mxu0 %v2791
    %4088 = vmatpush.bf16.msra.mxu0 %v2776
    %4089 = vmatpush.bf16.msra.mxu0 %v2761
    %4090 = vmatpush.bf16.msra.mxu0 %v2746
    %4091 = vmatpush.bf16.msra.mxu0 %v2731
    %4092 = vmatmul.bf16.gmra.mxu0 %v338
    %v4093 = vpop.f32.mrf.mxu0
    %v4094 = vadd.f32 %v4081, %v4093
    %v4095 = vpop.f32.mrf.mxu0
    %4096 = vdwg.mxu0
    %vm4097 = vcmp.gt.f32.partialorder %v3366, 0.0
    %vm4098 = vcmp.gt.f32.partialorder %v3418, 0.0
    %vm4099 = vcmp.gt.f32.partialorder %v3470, 0.0
    %vm4100 = vcmp.gt.f32.partialorder %v3522, 0.0
    %vm4101 = vcmp.gt.f32.partialorder %v3574, 0.0
    %vm4102 = vcmp.gt.f32.partialorder %v3626, 0.0
    %vm4103 = vcmp.gt.f32.partialorder %v3678, 0.0
    %vm4104 = vcmp.gt.f32.partialorder %v3730, 0.0
    %vm4105 = vcmp.gt.f32.partialorder %v3782, 0.0
    %vm4106 = vcmp.gt.f32.partialorder %v3834, 0.0
    %vm4107 = vcmp.gt.f32.partialorder %v3886, 0.0
    %vm4108 = vcmp.gt.f32.partialorder %v3938, 0.0
    %vm4109 = vcmp.gt.f32.partialorder %v3990, 0.0
    %vm4110 = vcmp.gt.f32.partialorder %v4042, 0.0
    %vm4111 = vcmp.gt.f32.partialorder %v4094, 0.0
    %v4112 = vmin.f32 %v3366, 0.0
    %v4113 = vmin.f32 %v3418, 0.0
    %v4114 = vmin.f32 %v3470, 0.0
    %v4115 = vmin.f32 %v3522, 0.0
    %v4116 = vmin.f32 %v3574, 0.0
    %v4117 = vmin.f32 %v3626, 0.0
    %v4118 = vmin.f32 %v3678, 0.0
    %v4119 = vmin.f32 %v3730, 0.0
    %v4120 = vmin.f32 %v3782, 0.0
    %v4121 = vmin.f32 %v3834, 0.0
    %v4122 = vmin.f32 %v3886, 0.0
    %v4123 = vmin.f32 %v3938, 0.0
    %v4124 = vmin.f32 %v3990, 0.0
    %v4125 = vmin.f32 %v4042, 0.0
    %v4126 = vmin.f32 %v4094, 0.0
    %v4127 = vmul.f32 %v4112, 1.442695
    %v4128 = vpow.pop %v4127
    %v4129 = vmul.f32 %v4113, 1.442695
    %v4130 = vpow.pop %v4129
    %v4131 = vmul.f32 %v4114, 1.442695
    %v4132 = vpow.pop %v4131
    %v4133 = vmul.f32 %v4115, 1.442695
    %v4134 = vpow.pop %v4133
    %v4135 = vmul.f32 %v4116, 1.442695
    %v4136 = vpow.pop %v4135
    %v4137 = vmul.f32 %v4117, 1.442695
    %v4138 = vpow.pop %v4137
    %v4139 = vmul.f32 %v4118, 1.442695
    %v4140 = vpow.pop %v4139
    %v4141 = vmul.f32 %v4119, 1.442695
    %v4142 = vpow.pop %v4141
    %v4143 = vmul.f32 %v4120, 1.442695
    %v4144 = vpow.pop %v4143
    %v4145 = vmul.f32 %v4121, 1.442695
    %v4146 = vpow.pop %v4145
    %v4147 = vmul.f32 %v4122, 1.442695
    %v4148 = vpow.pop %v4147
    %v4149 = vmul.f32 %v4123, 1.442695
    %v4150 = vpow.pop %v4149
    %v4151 = vmul.f32 %v4124, 1.442695
    %v4152 = vpow.pop %v4151
    %v4153 = vmul.f32 %v4125, 1.442695
    %v4154 = vpow.pop %v4153
    %v4155 = vmul.f32 %v4126, 1.442695
    %v4156 = vpow.pop %v4155
    %v4157 = vsub.f32 %v4128, 1.0
    %v4158 = vsub.f32 %v4130, 1.0
    %v4159 = vsub.f32 %v4132, 1.0
    %v4160 = vsub.f32 %v4134, 1.0
    %v4161 = vsub.f32 %v4136, 1.0
    %v4162 = vsub.f32 %v4138, 1.0
    %v4163 = vsub.f32 %v4140, 1.0
    %v4164 = vsub.f32 %v4142, 1.0
    %v4165 = vsub.f32 %v4144, 1.0
    %v4166 = vsub.f32 %v4146, 1.0
    %v4167 = vsub.f32 %v4148, 1.0
    %v4168 = vsub.f32 %v4150, 1.0
    %v4169 = vsub.f32 %v4152, 1.0
    %v4170 = vsub.f32 %v4154, 1.0
    %v4171 = vsub.f32 %v4156, 1.0
    %v4172 = vsel %vm4097, %v3366, %v4157
    %v4173 = vsel %vm4098, %v3418, %v4158
    %v4174 = vsel %vm4099, %v3470, %v4159
    %v4175 = vsel %vm4100, %v3522, %v4160
    %v4176 = vsel %vm4101, %v3574, %v4161
    %v4177 = vsel %vm4102, %v3626, %v4162
    %v4178 = vsel %vm4103, %v3678, %v4163
    %v4179 = vsel %vm4104, %v3730, %v4164
    %v4180 = vsel %vm4105, %v3782, %v4165
    %v4181 = vsel %vm4106, %v3834, %v4166
    %v4182 = vsel %vm4107, %v3886, %v4167
    %v4183 = vsel %vm4108, %v3938, %v4168
    %v4184 = vsel %vm4109, %v3990, %v4169
    %v4185 = vsel %vm4110, %v4042, %v4170
    %v4186 = vsel %vm4111, %v4094, %v4171
    %v4187 = vpack.c.bf16 %v4172, %v4172
    %v4188 = vpack.c.bf16 %v4173, %v4173
    %v4189 = vpack.c.bf16 %v4174, %v4174
    %v4190 = vpack.c.bf16 %v4175, %v4175
    %v4191 = vpack.c.bf16 %v4176, %v4176
    %v4192 = vpack.c.bf16 %v4177, %v4177
    %v4193 = vpack.c.bf16 %v4178, %v4178
    %v4194 = vpack.c.bf16 %v4179, %v4179
    %v4195 = vpack.c.bf16 %v4180, %v4180
    %v4196 = vpack.c.bf16 %v4181, %v4181
    %v4197 = vpack.c.bf16 %v4182, %v4182
    %v4198 = vpack.c.bf16 %v4183, %v4183
    %v4199 = vpack.c.bf16 %v4184, %v4184
    %v4200 = vpack.c.bf16 %v4185, %v4185
    %v4201 = vpack.c.bf16 %v4186, %v4186
    %v4202 = vld [vmem:[#allocation13] sm:$0xff]
    %v4203 = vld [vmem:[#allocation13 + $0x8] sm:$0xff]
    %v4204 = vld [vmem:[#allocation13 + $0x10] sm:$0xff]
    %v4205 = vld [vmem:[#allocation13 + $0x18] sm:$0xf]
    %v4206 = vld [vmem:[#allocation13 + $0x1c] sm:$0xff]
    %v4207 = vld [vmem:[#allocation13 + $0x24] sm:$0xff]
    %v4208 = vld [vmem:[#allocation13 + $0x2c] sm:$0xff]
    %v4209 = vld [vmem:[#allocation13 + $0x34] sm:$0xf]
    %v4210 = vld [vmem:[#allocation13 + $0x38] sm:$0xff]
    %v4211 = vld [vmem:[#allocation13 + $0x40] sm:$0xff]
    %v4212 = vld [vmem:[#allocation13 + $0x48] sm:$0xff]
    %v4213 = vld [vmem:[#allocation13 + $0x50] sm:$0xf]
    %v4214 = vld [vmem:[#allocation13 + $0x54] sm:$0xff]
    %v4215 = vld [vmem:[#allocation13 + $0x5c] sm:$0xff]
    %v4216 = vld [vmem:[#allocation13 + $0x64] sm:$0xff]
    %v4217 = vld [vmem:[#allocation13 + $0x6c] sm:$0xf]
    %v4218 = vld [vmem:[#allocation13 + $0x70] sm:$0xff]
    %v4219 = vld [vmem:[#allocation13 + $0x78] sm:$0xff]
    %v4220 = vld [vmem:[#allocation13 + $0x80] sm:$0xff]
    %v4221 = vld [vmem:[#allocation13 + $0x88] sm:$0xf]
    %v4222 = vld [vmem:[#allocation13 + $0x8c] sm:$0xff]
    %v4223 = vld [vmem:[#allocation13 + $0x94] sm:$0xff]
    %v4224 = vld [vmem:[#allocation13 + $0x9c] sm:$0xff]
    %v4225 = vld [vmem:[#allocation13 + $0xa4] sm:$0xf]
    %v4226 = vld [vmem:[#allocation13 + $0xa8] sm:$0xff]
    %v4227 = vld [vmem:[#allocation13 + $0xb0] sm:$0xff]
    %v4228 = vld [vmem:[#allocation13 + $0xb8] sm:$0xff]
    %v4229 = vld [vmem:[#allocation13 + $0xc0] sm:$0xf]
    %v4230 = vld [vmem:[#allocation13 + $0xc4] sm:$0xff]
    %v4231 = vld [vmem:[#allocation13 + $0xcc] sm:$0xff]
    %v4232 = vld [vmem:[#allocation13 + $0xd4] sm:$0xff]
    %v4233 = vld [vmem:[#allocation13 + $0xdc] sm:$0xf]
    %v4234 = vld [vmem:[#allocation13 + $0xe0] sm:$0xff]
    %v4235 = vld [vmem:[#allocation13 + $0xe8] sm:$0xff]
    %v4236 = vld [vmem:[#allocation13 + $0xf0] sm:$0xff]
    %v4237 = vld [vmem:[#allocation13 + $0xf8] sm:$0xf]
    %v4238 = vld [vmem:[#allocation13 + $0xfc] sm:$0xff]
    %v4239 = vld [vmem:[#allocation13 + $0x104] sm:$0xff]
    %v4240 = vld [vmem:[#allocation13 + $0x10c] sm:$0xff]
    %v4241 = vld [vmem:[#allocation13 + $0x114] sm:$0xf]
    %v4242 = vld [vmem:[#allocation13 + $0x118] sm:$0xff]
    %v4243 = vld [vmem:[#allocation13 + $0x120] sm:$0xff]
    %v4244 = vld [vmem:[#allocation13 + $0x128] sm:$0xff]
    %v4245 = vld [vmem:[#allocation13 + $0x130] sm:$0xf]
    %v4246 = vld [vmem:[#allocation13 + $0x134] sm:$0xff]
    %v4247 = vld [vmem:[#allocation13 + $0x13c] sm:$0xff]
    %v4248 = vld [vmem:[#allocation13 + $0x144] sm:$0xff]
    %v4249 = vld [vmem:[#allocation13 + $0x14c] sm:$0xf]
    %v4250 = vld [vmem:[#allocation13 + $0x150] sm:$0xff]
    %v4251 = vld [vmem:[#allocation13 + $0x158] sm:$0xff]
    %v4252 = vld [vmem:[#allocation13 + $0x160] sm:$0xff]
    %v4253 = vld [vmem:[#allocation13 + $0x168] sm:$0xf]
    %v4254 = vld [vmem:[#allocation13 + $0x16c] sm:$0xff]
    %v4255 = vld [vmem:[#allocation13 + $0x174] sm:$0xff]
    %v4256 = vld [vmem:[#allocation13 + $0x17c] sm:$0xff]
    %v4257 = vld [vmem:[#allocation13 + $0x184] sm:$0xf]
    %v4258 = vld [vmem:[#allocation13 + $0x188] sm:$0xff]
    %v4259 = vld [vmem:[#allocation13 + $0x190] sm:$0xff]
    %v4260 = vld [vmem:[#allocation13 + $0x198] sm:$0xff]
    %v4261 = vld [vmem:[#allocation13 + $0x1a0] sm:$0xf]
    %v4262 = vld [vmem:[#allocation13 + $0x1a4] sm:$0xff]
    %v4263 = vld [vmem:[#allocation13 + $0x1ac] sm:$0xff]
    %v4264 = vld [vmem:[#allocation13 + $0x1b4] sm:$0xff]
    %v4265 = vld [vmem:[#allocation13 + $0x1bc] sm:$0xf]
    %v4266 = vld [vmem:[#allocation13 + $0x1c0] sm:$0xff]
    %v4267 = vld [vmem:[#allocation13 + $0x1c8] sm:$0xff]
    %v4268 = vld [vmem:[#allocation13 + $0x1d0] sm:$0xff]
    %v4269 = vld [vmem:[#allocation13 + $0x1d8] sm:$0xf]
    %v4270 = vld [vmem:[#allocation13 + $0x1dc] sm:$0xff]
    %v4271 = vld [vmem:[#allocation13 + $0x1e4] sm:$0xff]
    %v4272 = vld [vmem:[#allocation13 + $0x1ec] sm:$0xff]
    %v4273 = vld [vmem:[#allocation13 + $0x1f4] sm:$0xf]
    %v4274 = vld [vmem:[#allocation13 + $0x1f8] sm:$0xff]
    %v4275 = vld [vmem:[#allocation13 + $0x200] sm:$0xff]
    %v4276 = vld [vmem:[#allocation13 + $0x208] sm:$0xff]
    %v4277 = vld [vmem:[#allocation13 + $0x210] sm:$0xf]
    %v4278 = vld [vmem:[#allocation13 + $0x214] sm:$0xff]
    %v4279 = vld [vmem:[#allocation13 + $0x21c] sm:$0xff]
    %v4280 = vld [vmem:[#allocation13 + $0x224] sm:$0xff]
    %v4281 = vld [vmem:[#allocation13 + $0x22c] sm:$0xf]
    %v4282 = vld [vmem:[#allocation13 + $0x230] sm:$0xff]
    %v4283 = vld [vmem:[#allocation13 + $0x238] sm:$0xff]
    %v4284 = vld [vmem:[#allocation13 + $0x240] sm:$0xff]
    %v4285 = vld [vmem:[#allocation13 + $0x248] sm:$0xf]
    %v4286 = vld [vmem:[#allocation13 + $0x24c] sm:$0xff]
    %v4287 = vld [vmem:[#allocation13 + $0x254] sm:$0xff]
    %v4288 = vld [vmem:[#allocation13 + $0x25c] sm:$0xff]
    %v4289 = vld [vmem:[#allocation13 + $0x264] sm:$0xf]
    %v4290 = vld [vmem:[#allocation13 + $0x268] sm:$0xff]
    %v4291 = vld [vmem:[#allocation13 + $0x270] sm:$0xff]
    %v4292 = vld [vmem:[#allocation13 + $0x278] sm:$0xff]
    %v4293 = vld [vmem:[#allocation13 + $0x280] sm:$0xf]
    %v4294 = vld [vmem:[#allocation13 + $0x284] sm:$0xff]
    %v4295 = vld [vmem:[#allocation13 + $0x28c] sm:$0xff]
    %v4296 = vld [vmem:[#allocation13 + $0x294] sm:$0xff]
    %v4297 = vld [vmem:[#allocation13 + $0x29c] sm:$0xf]
    %v4298 = vld [vmem:[#allocation13 + $0x2a0] sm:$0xff]
    %v4299 = vld [vmem:[#allocation13 + $0x2a8] sm:$0xff]
    %v4300 = vld [vmem:[#allocation13 + $0x2b0] sm:$0xff]
    %v4301 = vld [vmem:[#allocation13 + $0x2b8] sm:$0xf]
    %v4302 = vld [vmem:[#allocation13 + $0x2bc] sm:$0xff]
    %v4303 = vld [vmem:[#allocation13 + $0x2c4] sm:$0xff]
    %v4304 = vld [vmem:[#allocation13 + $0x2cc] sm:$0xff]
    %v4305 = vld [vmem:[#allocation13 + $0x2d4] sm:$0xf]
    %v4306 = vld [vmem:[#allocation13 + $0x2d8] sm:$0xff]
    %v4307 = vld [vmem:[#allocation13 + $0x2e0] sm:$0xff]
    %v4308 = vld [vmem:[#allocation13 + $0x2e8] sm:$0xff]
    %v4309 = vld [vmem:[#allocation13 + $0x2f0] sm:$0xf]
    %v4310 = vld [vmem:[#allocation13 + $0x2f4] sm:$0xff]
    %v4311 = vld [vmem:[#allocation13 + $0x2fc] sm:$0xff]
    %v4312 = vld [vmem:[#allocation13 + $0x304] sm:$0xff]
    %v4313 = vld [vmem:[#allocation13 + $0x30c] sm:$0xf]
    %v4314 = vld [vmem:[#allocation13 + $0x310] sm:$0xff]
    %v4315 = vld [vmem:[#allocation13 + $0x318] sm:$0xff]
    %v4316 = vld [vmem:[#allocation13 + $0x320] sm:$0xff]
    %v4317 = vld [vmem:[#allocation13 + $0x328] sm:$0xf]
    %v4318 = vld [vmem:[#allocation13 + $0x32c] sm:$0xff]
    %v4319 = vld [vmem:[#allocation13 + $0x334] sm:$0xff]
    %v4320 = vld [vmem:[#allocation13 + $0x33c] sm:$0xff]
    %v4321 = vld [vmem:[#allocation13 + $0x344] sm:$0xf]
    %v4322 = vld [vmem:[#allocation13 + $0x348] sm:$0xff]
    %v4323 = vld [vmem:[#allocation13 + $0x350] sm:$0xff]
    %v4324 = vld [vmem:[#allocation13 + $0x358] sm:$0xff]
    %v4325 = vld [vmem:[#allocation13 + $0x360] sm:$0xf]
    %v4326 = vld [vmem:[#allocation13 + $0x364] sm:$0xff]
    %v4327 = vld [vmem:[#allocation13 + $0x36c] sm:$0xff]
    %v4328 = vld [vmem:[#allocation13 + $0x374] sm:$0xff]
    %v4329 = vld [vmem:[#allocation13 + $0x37c] sm:$0xf]
    %v4330 = vld [vmem:[#allocation13 + $0x380] sm:$0xff]
    %v4331 = vld [vmem:[#allocation13 + $0x388] sm:$0xff]
    %v4332 = vld [vmem:[#allocation13 + $0x390] sm:$0xff]
    %v4333 = vld [vmem:[#allocation13 + $0x398] sm:$0xf]
    %v4334 = vld [vmem:[#allocation13 + $0x39c] sm:$0xff]
    %v4335 = vld [vmem:[#allocation13 + $0x3a4] sm:$0xff]
    %v4336 = vld [vmem:[#allocation13 + $0x3ac] sm:$0xff]
    %v4337 = vld [vmem:[#allocation13 + $0x3b4] sm:$0xf]
    %v4338 = vld [vmem:[#allocation13 + $0x3b8] sm:$0xff]
    %v4339 = vld [vmem:[#allocation13 + $0x3c0] sm:$0xff]
    %v4340 = vld [vmem:[#allocation13 + $0x3c8] sm:$0xff]
    %v4341 = vld [vmem:[#allocation13 + $0x3d0] sm:$0xf]
    %v4342 = vld [vmem:[#allocation13 + $0x3d4] sm:$0xff]
    %v4343 = vld [vmem:[#allocation13 + $0x3dc] sm:$0xff]
    %v4344 = vld [vmem:[#allocation13 + $0x3e4] sm:$0xff]
    %v4345 = vld [vmem:[#allocation13 + $0x3ec] sm:$0xf]
    %v4346 = vld [vmem:[#allocation13 + $0x3f0] sm:$0xff]
    %v4347 = vld [vmem:[#allocation13 + $0x3f8] sm:$0xff]
    %v4348 = vld [vmem:[#allocation13 + $0x400] sm:$0xff]
    %v4349 = vld [vmem:[#allocation13 + $0x408] sm:$0xf]
    %v4350 = vld [vmem:[#allocation13 + $0x40c] sm:$0xff]
    %v4351 = vld [vmem:[#allocation13 + $0x414] sm:$0xff]
    %v4352 = vld [vmem:[#allocation13 + $0x41c] sm:$0xff]
    %v4353 = vld [vmem:[#allocation13 + $0x424] sm:$0xf]
    %v4354 = vld [vmem:[#allocation13 + $0x428] sm:$0xff]
    %v4355 = vld [vmem:[#allocation13 + $0x430] sm:$0xff]
    %v4356 = vld [vmem:[#allocation13 + $0x438] sm:$0xff]
    %v4357 = vld [vmem:[#allocation13 + $0x440] sm:$0xf]
    %v4358 = vld [vmem:[#allocation13 + $0x444] sm:$0xff]
    %v4359 = vld [vmem:[#allocation13 + $0x44c] sm:$0xff]
    %v4360 = vld [vmem:[#allocation13 + $0x454] sm:$0xff]
    %v4361 = vld [vmem:[#allocation13 + $0x45c] sm:$0xf]
    %v4362 = vld [vmem:[#allocation13 + $0x460] sm:$0xff]
    %v4363 = vld [vmem:[#allocation13 + $0x468] sm:$0xff]
    %v4364 = vld [vmem:[#allocation13 + $0x470] sm:$0xff]
    %v4365 = vld [vmem:[#allocation13 + $0x478] sm:$0xf]
    %v4366 = vld [vmem:[#allocation13 + $0x47c] sm:$0xff]
    %v4367 = vld [vmem:[#allocation13 + $0x484] sm:$0xff]
    %v4368 = vld [vmem:[#allocation13 + $0x48c] sm:$0xff]
    %v4369 = vld [vmem:[#allocation13 + $0x494] sm:$0xf]
    %v4370 = vld [vmem:[#allocation13 + $0x498] sm:$0xff]
    %v4371 = vld [vmem:[#allocation13 + $0x4a0] sm:$0xff]
    %v4372 = vld [vmem:[#allocation13 + $0x4a8] sm:$0xff]
    %v4373 = vld [vmem:[#allocation13 + $0x4b0] sm:$0xf]
    %v4374 = vld [vmem:[#allocation13 + $0x4b4] sm:$0xff]
    %v4375 = vld [vmem:[#allocation13 + $0x4bc] sm:$0xff]
    %v4376 = vld [vmem:[#allocation13 + $0x4c4] sm:$0xff]
    %v4377 = vld [vmem:[#allocation13 + $0x4cc] sm:$0xf]
    %v4378 = vld [vmem:[#allocation13 + $0x4d0] sm:$0xff]
    %v4379 = vld [vmem:[#allocation13 + $0x4d8] sm:$0xff]
    %v4380 = vld [vmem:[#allocation13 + $0x4e0] sm:$0xff]
    %v4381 = vld [vmem:[#allocation13 + $0x4e8] sm:$0xf]
    %v4382 = vld [vmem:[#allocation13 + $0x4ec] sm:$0xff]
    %v4383 = vld [vmem:[#allocation13 + $0x4f4] sm:$0xff]
    %v4384 = vld [vmem:[#allocation13 + $0x4fc] sm:$0xff]
    %v4385 = vld [vmem:[#allocation13 + $0x504] sm:$0xf]
    %v4386 = vld [vmem:[#allocation13 + $0x508] sm:$0xff]
    %v4387 = vld [vmem:[#allocation13 + $0x510] sm:$0xff]
    %v4388 = vld [vmem:[#allocation13 + $0x518] sm:$0xff]
    %v4389 = vld [vmem:[#allocation13 + $0x520] sm:$0xf]
    %v4390 = vld [vmem:[#allocation13 + $0x524] sm:$0xff]
    %v4391 = vld [vmem:[#allocation13 + $0x52c] sm:$0xff]
    %v4392 = vld [vmem:[#allocation13 + $0x534] sm:$0xff]
    %v4393 = vld [vmem:[#allocation13 + $0x53c] sm:$0xf]
    %v4394 = vld [vmem:[#allocation13 + $0x540] sm:$0xff]
    %v4395 = vld [vmem:[#allocation13 + $0x548] sm:$0xff]
    %v4396 = vld [vmem:[#allocation13 + $0x550] sm:$0xff]
    %v4397 = vld [vmem:[#allocation13 + $0x558] sm:$0xf]
    %v4398 = vld [vmem:[#allocation13 + $0x55c] sm:$0xff]
    %v4399 = vld [vmem:[#allocation13 + $0x564] sm:$0xff]
    %v4400 = vld [vmem:[#allocation13 + $0x56c] sm:$0xff]
    %v4401 = vld [vmem:[#allocation13 + $0x574] sm:$0xf]
    %v4402 = vld [vmem:[#allocation13 + $0x578] sm:$0xff]
    %v4403 = vld [vmem:[#allocation13 + $0x580] sm:$0xff]
    %v4404 = vld [vmem:[#allocation13 + $0x588] sm:$0xff]
    %v4405 = vld [vmem:[#allocation13 + $0x590] sm:$0xf]
    %v4406 = vld [vmem:[#allocation13 + $0x594] sm:$0xff]
    %v4407 = vld [vmem:[#allocation13 + $0x59c] sm:$0xff]
    %v4408 = vld [vmem:[#allocation13 + $0x5a4] sm:$0xff]
    %v4409 = vld [vmem:[#allocation13 + $0x5ac] sm:$0xf]
    %v4410 = vld [vmem:[#allocation13 + $0x5b0] sm:$0xff]
    %v4411 = vld [vmem:[#allocation13 + $0x5b8] sm:$0xff]
    %v4412 = vld [vmem:[#allocation13 + $0x5c0] sm:$0xff]
    %v4413 = vld [vmem:[#allocation13 + $0x5c8] sm:$0xf]
    %v4414 = vld [vmem:[#allocation13 + $0x5cc] sm:$0xff]
    %v4415 = vld [vmem:[#allocation13 + $0x5d4] sm:$0xff]
    %v4416 = vld [vmem:[#allocation13 + $0x5dc] sm:$0xff]
    %v4417 = vld [vmem:[#allocation13 + $0x5e4] sm:$0xf]
    %v4418 = vld [vmem:[#allocation13 + $0x5e8] sm:$0xff]
    %v4419 = vld [vmem:[#allocation13 + $0x5f0] sm:$0xff]
    %v4420 = vld [vmem:[#allocation13 + $0x5f8] sm:$0xff]
    %v4421 = vld [vmem:[#allocation13 + $0x600] sm:$0xf]
    %v4422 = vld [vmem:[#allocation13 + $0x604] sm:$0xff]
    %v4423 = vld [vmem:[#allocation13 + $0x60c] sm:$0xff]
    %v4424 = vld [vmem:[#allocation13 + $0x614] sm:$0xff]
    %v4425 = vld [vmem:[#allocation13 + $0x61c] sm:$0xf]
    %v4426 = vld [vmem:[#allocation13 + $0x620] sm:$0xff]
    %v4427 = vld [vmem:[#allocation13 + $0x628] sm:$0xff]
    %v4428 = vld [vmem:[#allocation13 + $0x630] sm:$0xff]
    %v4429 = vld [vmem:[#allocation13 + $0x638] sm:$0xf]
    %v4430 = vld [vmem:[#allocation13 + $0x63c] sm:$0xff]
    %v4431 = vld [vmem:[#allocation13 + $0x644] sm:$0xff]
    %v4432 = vld [vmem:[#allocation13 + $0x64c] sm:$0xff]
    %v4433 = vld [vmem:[#allocation13 + $0x654] sm:$0xf]
    %v4434 = vld [vmem:[#allocation13 + $0x658] sm:$0xff]
    %v4435 = vld [vmem:[#allocation13 + $0x660] sm:$0xff]
    %v4436 = vld [vmem:[#allocation13 + $0x668] sm:$0xff]
    %v4437 = vld [vmem:[#allocation13 + $0x670] sm:$0xf]
    %v4438 = vld [vmem:[#allocation13 + $0x674] sm:$0xff]
    %v4439 = vld [vmem:[#allocation13 + $0x67c] sm:$0xff]
    %v4440 = vld [vmem:[#allocation13 + $0x684] sm:$0xff]
    %v4441 = vld [vmem:[#allocation13 + $0x68c] sm:$0xf]
    %v4442 = vld [vmem:[#allocation13 + $0x690] sm:$0xff]
    %v4443 = vld [vmem:[#allocation13 + $0x698] sm:$0xff]
    %v4444 = vld [vmem:[#allocation13 + $0x6a0] sm:$0xff]
    %v4445 = vld [vmem:[#allocation13 + $0x6a8] sm:$0xf]
    %v4446 = vld [vmem:[#allocation13 + $0x6ac] sm:$0xff]
    %v4447 = vld [vmem:[#allocation13 + $0x6b4] sm:$0xff]
    %v4448 = vld [vmem:[#allocation13 + $0x6bc] sm:$0xff]
    %v4449 = vld [vmem:[#allocation13 + $0x6c4] sm:$0xf]
    %v4450 = vld [vmem:[#allocation13 + $0x6c8] sm:$0xff]
    %v4451 = vld [vmem:[#allocation13 + $0x6d0] sm:$0xff]
    %v4452 = vld [vmem:[#allocation13 + $0x6d8] sm:$0xff]
    %v4453 = vld [vmem:[#allocation13 + $0x6e0] sm:$0xf]
    %v4454 = vld [vmem:[#allocation13 + $0x6e4] sm:$0xff]
    %v4455 = vld [vmem:[#allocation13 + $0x6ec] sm:$0xff]
    %v4456 = vld [vmem:[#allocation13 + $0x6f4] sm:$0xff]
    %v4457 = vld [vmem:[#allocation13 + $0x6fc] sm:$0xf]
    %v4458 = vld [vmem:[#allocation13 + $0x700] sm:$0xff]
    %v4459 = vld [vmem:[#allocation13 + $0x708] sm:$0xff]
    %v4460 = vld [vmem:[#allocation13 + $0x710] sm:$0xff]
    %v4461 = vld [vmem:[#allocation13 + $0x718] sm:$0xf]
    %v4462 = vld [vmem:[#allocation13 + $0x71c] sm:$0xff]
    %v4463 = vld [vmem:[#allocation13 + $0x724] sm:$0xff]
    %v4464 = vld [vmem:[#allocation13 + $0x72c] sm:$0xff]
    %v4465 = vld [vmem:[#allocation13 + $0x734] sm:$0xf]
    %v4466 = vld [vmem:[#allocation13 + $0x738] sm:$0xff]
    %v4467 = vld [vmem:[#allocation13 + $0x740] sm:$0xff]
    %v4468 = vld [vmem:[#allocation13 + $0x748] sm:$0xff]
    %v4469 = vld [vmem:[#allocation13 + $0x750] sm:$0xf]
    %v4470 = vld [vmem:[#allocation13 + $0x754] sm:$0xff]
    %v4471 = vld [vmem:[#allocation13 + $0x75c] sm:$0xff]
    %v4472 = vld [vmem:[#allocation13 + $0x764] sm:$0xff]
    %v4473 = vld [vmem:[#allocation13 + $0x76c] sm:$0xf]
    %v4474 = vld [vmem:[#allocation13 + $0x770] sm:$0xff]
    %v4475 = vld [vmem:[#allocation13 + $0x778] sm:$0xff]
    %v4476 = vld [vmem:[#allocation13 + $0x780] sm:$0xff]
    %v4477 = vld [vmem:[#allocation13 + $0x788] sm:$0xf]
    %v4478 = vld [vmem:[#allocation13 + $0x78c] sm:$0xff]
    %v4479 = vld [vmem:[#allocation13 + $0x794] sm:$0xff]
    %v4480 = vld [vmem:[#allocation13 + $0x79c] sm:$0xff]
    %v4481 = vld [vmem:[#allocation13 + $0x7a4] sm:$0xf]
    %v4482 = vld [vmem:[#allocation13 + $0x7a8] sm:$0xff]
    %v4483 = vld [vmem:[#allocation13 + $0x7b0] sm:$0xff]
    %v4484 = vld [vmem:[#allocation13 + $0x7b8] sm:$0xff]
    %v4485 = vld [vmem:[#allocation13 + $0x7c0] sm:$0xf]
    %v4486 = vld [vmem:[#allocation13 + $0x7c4] sm:$0xff]
    %v4487 = vld [vmem:[#allocation13 + $0x7cc] sm:$0xff]
    %v4488 = vld [vmem:[#allocation13 + $0x7d4] sm:$0xff]
    %v4489 = vld [vmem:[#allocation13 + $0x7dc] sm:$0xf]
    %v4490 = vld [vmem:[#allocation13 + $0x7e0] sm:$0xff]
    %v4491 = vld [vmem:[#allocation13 + $0x7e8] sm:$0xff]
    %v4492 = vld [vmem:[#allocation13 + $0x7f0] sm:$0xff]
    %v4493 = vld [vmem:[#allocation13 + $0x7f8] sm:$0xf]
    %v4494 = vld [vmem:[#allocation13 + $0x7fc] sm:$0xff]
    %v4495 = vld [vmem:[#allocation13 + $0x804] sm:$0xff]
    %v4496 = vld [vmem:[#allocation13 + $0x80c] sm:$0xff]
    %v4497 = vld [vmem:[#allocation13 + $0x814] sm:$0xf]
    %v4498 = vld [vmem:[#allocation13 + $0x818] sm:$0xff]
    %v4499 = vld [vmem:[#allocation13 + $0x820] sm:$0xff]
    %v4500 = vld [vmem:[#allocation13 + $0x828] sm:$0xff]
    %v4501 = vld [vmem:[#allocation13 + $0x830] sm:$0xf]
    %v4502 = vld [vmem:[#allocation13 + $0x834] sm:$0xff]
    %v4503 = vld [vmem:[#allocation13 + $0x83c] sm:$0xff]
    %v4504 = vld [vmem:[#allocation13 + $0x844] sm:$0xff]
    %v4505 = vld [vmem:[#allocation13 + $0x84c] sm:$0xf]
    %v4506 = vld [vmem:[#allocation13 + $0x850] sm:$0xff]
    %v4507 = vld [vmem:[#allocation13 + $0x858] sm:$0xff]
    %v4508 = vld [vmem:[#allocation13 + $0x860] sm:$0xff]
    %v4509 = vld [vmem:[#allocation13 + $0x868] sm:$0xf]
    %v4510 = vld [vmem:[#allocation13 + $0x86c] sm:$0xff]
    %v4511 = vld [vmem:[#allocation13 + $0x874] sm:$0xff]
    %v4512 = vld [vmem:[#allocation13 + $0x87c] sm:$0xff]
    %v4513 = vld [vmem:[#allocation13 + $0x884] sm:$0xf]
    %v4514 = vld [vmem:[#allocation13 + $0x888] sm:$0xff]
    %v4515 = vld [vmem:[#allocation13 + $0x890] sm:$0xff]
    %v4516 = vld [vmem:[#allocation13 + $0x898] sm:$0xff]
    %v4517 = vld [vmem:[#allocation13 + $0x8a0] sm:$0xf]
    %v4518 = vld [vmem:[#allocation13 + $0x8a4] sm:$0xff]
    %v4519 = vld [vmem:[#allocation13 + $0x8ac] sm:$0xff]
    %v4520 = vld [vmem:[#allocation13 + $0x8b4] sm:$0xff]
    %v4521 = vld [vmem:[#allocation13 + $0x8bc] sm:$0xf]
    %v4522 = vld [vmem:[#allocation13 + $0x8c0] sm:$0xff]
    %v4523 = vld [vmem:[#allocation13 + $0x8c8] sm:$0xff]
    %v4524 = vld [vmem:[#allocation13 + $0x8d0] sm:$0xff]
    %v4525 = vld [vmem:[#allocation13 + $0x8d8] sm:$0xf]
    %v4526 = vld [vmem:[#allocation13 + $0x8dc] sm:$0xff]
    %v4527 = vld [vmem:[#allocation13 + $0x8e4] sm:$0xff]
    %v4528 = vld [vmem:[#allocation13 + $0x8ec] sm:$0xff]
    %v4529 = vld [vmem:[#allocation13 + $0x8f4] sm:$0xf]
    %v4530 = vld [vmem:[#allocation13 + $0x8f8] sm:$0xff]
    %v4531 = vld [vmem:[#allocation13 + $0x900] sm:$0xff]
    %v4532 = vld [vmem:[#allocation13 + $0x908] sm:$0xff]
    %v4533 = vld [vmem:[#allocation13 + $0x910] sm:$0xf]
    %v4534 = vld [vmem:[#allocation13 + $0x914] sm:$0xff]
    %v4535 = vld [vmem:[#allocation13 + $0x91c] sm:$0xff]
    %v4536 = vld [vmem:[#allocation13 + $0x924] sm:$0xff]
    %v4537 = vld [vmem:[#allocation13 + $0x92c] sm:$0xf]
    %v4538 = vld [vmem:[#allocation13 + $0x930] sm:$0xff]
    %v4539 = vld [vmem:[#allocation13 + $0x938] sm:$0xff]
    %v4540 = vld [vmem:[#allocation13 + $0x940] sm:$0xff]
    %v4541 = vld [vmem:[#allocation13 + $0x948] sm:$0xf]
    %v4542 = vld [vmem:[#allocation13 + $0x94c] sm:$0xff]
    %v4543 = vld [vmem:[#allocation13 + $0x954] sm:$0xff]
    %v4544 = vld [vmem:[#allocation13 + $0x95c] sm:$0xff]
    %v4545 = vld [vmem:[#allocation13 + $0x964] sm:$0xf]
    %v4546 = vld [vmem:[#allocation13 + $0x968] sm:$0xff]
    %v4547 = vld [vmem:[#allocation13 + $0x970] sm:$0xff]
    %v4548 = vld [vmem:[#allocation13 + $0x978] sm:$0xff]
    %v4549 = vld [vmem:[#allocation13 + $0x980] sm:$0xf]
    %v4550 = vld [vmem:[#allocation13 + $0x984] sm:$0xff]
    %v4551 = vld [vmem:[#allocation13 + $0x98c] sm:$0xff]
    %v4552 = vld [vmem:[#allocation13 + $0x994] sm:$0xff]
    %v4553 = vld [vmem:[#allocation13 + $0x99c] sm:$0xf]
    %v4554 = vld [vmem:[#allocation13 + $0x9a0] sm:$0xff]
    %v4555 = vld [vmem:[#allocation13 + $0x9a8] sm:$0xff]
    %v4556 = vld [vmem:[#allocation13 + $0x9b0] sm:$0xff]
    %v4557 = vld [vmem:[#allocation13 + $0x9b8] sm:$0xf]
    %v4558 = vld [vmem:[#allocation13 + $0x9bc] sm:$0xff]
    %v4559 = vld [vmem:[#allocation13 + $0x9c4] sm:$0xff]
    %v4560 = vld [vmem:[#allocation13 + $0x9cc] sm:$0xff]
    %v4561 = vld [vmem:[#allocation13 + $0x9d4] sm:$0xf]
    %v4562 = vld [vmem:[#allocation13 + $0x9d8] sm:$0xff]
    %v4563 = vld [vmem:[#allocation13 + $0x9e0] sm:$0xff]
    %v4564 = vld [vmem:[#allocation13 + $0x9e8] sm:$0xff]
    %v4565 = vld [vmem:[#allocation13 + $0x9f0] sm:$0xf]
    %v4566 = vld [vmem:[#allocation13 + $0x9f4] sm:$0xff]
    %v4567 = vld [vmem:[#allocation13 + $0x9fc] sm:$0xff]
    %v4568 = vld [vmem:[#allocation13 + $0xa04] sm:$0xff]
    %v4569 = vld [vmem:[#allocation13 + $0xa0c] sm:$0xf]
    %v4570 = vld [vmem:[#allocation13 + $0xa10] sm:$0xff]
    %v4571 = vld [vmem:[#allocation13 + $0xa18] sm:$0xff]
    %v4572 = vld [vmem:[#allocation13 + $0xa20] sm:$0xff]
    %v4573 = vld [vmem:[#allocation13 + $0xa28] sm:$0xf]
    %v4574 = vld [vmem:[#allocation13 + $0xa2c] sm:$0xff]
    %v4575 = vld [vmem:[#allocation13 + $0xa34] sm:$0xff]
    %v4576 = vld [vmem:[#allocation13 + $0xa3c] sm:$0xff]
    %v4577 = vld [vmem:[#allocation13 + $0xa44] sm:$0xf]
    %v4578 = vld [vmem:[#allocation13 + $0xa48] sm:$0xff]
    %v4579 = vld [vmem:[#allocation13 + $0xa50] sm:$0xff]
    %v4580 = vld [vmem:[#allocation13 + $0xa58] sm:$0xff]
    %v4581 = vld [vmem:[#allocation13 + $0xa60] sm:$0xf]
    %v4582 = vld [vmem:[#allocation13 + $0xa64] sm:$0xff]
    %v4583 = vld [vmem:[#allocation13 + $0xa6c] sm:$0xff]
    %v4584 = vld [vmem:[#allocation13 + $0xa74] sm:$0xff]
    %v4585 = vld [vmem:[#allocation13 + $0xa7c] sm:$0xf]
    %v4586 = vld [vmem:[#allocation13 + $0xa80] sm:$0xff]
    %v4587 = vld [vmem:[#allocation13 + $0xa88] sm:$0xff]
    %v4588 = vld [vmem:[#allocation13 + $0xa90] sm:$0xff]
    %v4589 = vld [vmem:[#allocation13 + $0xa98] sm:$0xf]
    %v4590 = vld [vmem:[#allocation13 + $0xa9c] sm:$0xff]
    %v4591 = vld [vmem:[#allocation13 + $0xaa4] sm:$0xff]
    %v4592 = vld [vmem:[#allocation13 + $0xaac] sm:$0xff]
    %v4593 = vld [vmem:[#allocation13 + $0xab4] sm:$0xf]
    %v4594 = vld [vmem:[#allocation13 + $0xab8] sm:$0xff]
    %v4595 = vld [vmem:[#allocation13 + $0xac0] sm:$0xff]
    %v4596 = vld [vmem:[#allocation13 + $0xac8] sm:$0xff]
    %v4597 = vld [vmem:[#allocation13 + $0xad0] sm:$0xf]
    %v4598 = vld [vmem:[#allocation13 + $0xad4] sm:$0xff]
    %v4599 = vld [vmem:[#allocation13 + $0xadc] sm:$0xff]
    %v4600 = vld [vmem:[#allocation13 + $0xae4] sm:$0xff]
    %v4601 = vld [vmem:[#allocation13 + $0xaec] sm:$0xf]
    %v4602 = vld [vmem:[#allocation13 + $0xaf0] sm:$0xff]
    %v4603 = vld [vmem:[#allocation13 + $0xaf8] sm:$0xff]
    %v4604 = vld [vmem:[#allocation13 + $0xb00] sm:$0xff]
    %v4605 = vld [vmem:[#allocation13 + $0xb08] sm:$0xf]
    %v4606 = vld [vmem:[#allocation13 + $0xb0c] sm:$0xff]
    %v4607 = vld [vmem:[#allocation13 + $0xb14] sm:$0xff]
    %v4608 = vld [vmem:[#allocation13 + $0xb1c] sm:$0xff]
    %v4609 = vld [vmem:[#allocation13 + $0xb24] sm:$0xf]
    %v4610 = vld [vmem:[#allocation13 + $0xb28] sm:$0xff]
    %v4611 = vld [vmem:[#allocation13 + $0xb30] sm:$0xff]
    %v4612 = vld [vmem:[#allocation13 + $0xb38] sm:$0xff]
    %v4613 = vld [vmem:[#allocation13 + $0xb40] sm:$0xf]
    %v4614 = vld [vmem:[#allocation13 + $0xb44] sm:$0xff]
    %v4615 = vld [vmem:[#allocation13 + $0xb4c] sm:$0xff]
    %v4616 = vld [vmem:[#allocation13 + $0xb54] sm:$0xff]
    %v4617 = vld [vmem:[#allocation13 + $0xb5c] sm:$0xf]
    %v4618 = vld [vmem:[#allocation13 + $0xb60] sm:$0xff]
    %v4619 = vld [vmem:[#allocation13 + $0xb68] sm:$0xff]
    %v4620 = vld [vmem:[#allocation13 + $0xb70] sm:$0xff]
    %v4621 = vld [vmem:[#allocation13 + $0xb78] sm:$0xf]
    %v4622 = vld [vmem:[#allocation13 + $0xb7c] sm:$0xff]
    %v4623 = vld [vmem:[#allocation13 + $0xb84] sm:$0xff]
    %v4624 = vld [vmem:[#allocation13 + $0xb8c] sm:$0xff]
    %v4625 = vld [vmem:[#allocation13 + $0xb94] sm:$0xf]
    %v4626 = vld [vmem:[#allocation13 + $0xb98] sm:$0xff]
    %v4627 = vld [vmem:[#allocation13 + $0xba0] sm:$0xff]
    %v4628 = vld [vmem:[#allocation13 + $0xba8] sm:$0xff]
    %v4629 = vld [vmem:[#allocation13 + $0xbb0] sm:$0xf]
    %v4630 = vld [vmem:[#allocation13 + $0xbb4] sm:$0xff]
    %v4631 = vld [vmem:[#allocation13 + $0xbbc] sm:$0xff]
    %v4632 = vld [vmem:[#allocation13 + $0xbc4] sm:$0xff]
    %v4633 = vld [vmem:[#allocation13 + $0xbcc] sm:$0xf]
    %v4634 = vld [vmem:[#allocation13 + $0xbd0] sm:$0xff]
    %v4635 = vld [vmem:[#allocation13 + $0xbd8] sm:$0xff]
    %v4636 = vld [vmem:[#allocation13 + $0xbe0] sm:$0xff]
    %v4637 = vld [vmem:[#allocation13 + $0xbe8] sm:$0xf]
    %v4638 = vld [vmem:[#allocation13 + $0xbec] sm:$0xff]
    %v4639 = vld [vmem:[#allocation13 + $0xbf4] sm:$0xff]
    %v4640 = vld [vmem:[#allocation13 + $0xbfc] sm:$0xff]
    %v4641 = vld [vmem:[#allocation13 + $0xc04] sm:$0xf]
    %v4642 = vld [vmem:[#allocation13 + $0xc08] sm:$0xff]
    %v4643 = vld [vmem:[#allocation13 + $0xc10] sm:$0xff]
    %v4644 = vld [vmem:[#allocation13 + $0xc18] sm:$0xff]
    %v4645 = vld [vmem:[#allocation13 + $0xc20] sm:$0xf]
    %v4646 = vld [vmem:[#allocation13 + $0xc24] sm:$0xff]
    %v4647 = vld [vmem:[#allocation13 + $0xc2c] sm:$0xff]
    %v4648 = vld [vmem:[#allocation13 + $0xc34] sm:$0xff]
    %v4649 = vld [vmem:[#allocation13 + $0xc3c] sm:$0xf]
    %v4650 = vld [vmem:[#allocation13 + $0xc40] sm:$0xff]
    %v4651 = vld [vmem:[#allocation13 + $0xc48] sm:$0xff]
    %v4652 = vld [vmem:[#allocation13 + $0xc50] sm:$0xff]
    %v4653 = vld [vmem:[#allocation13 + $0xc58] sm:$0xf]
    %v4654 = vld [vmem:[#allocation13 + $0xc5c] sm:$0xff]
    %v4655 = vld [vmem:[#allocation13 + $0xc64] sm:$0xff]
    %v4656 = vld [vmem:[#allocation13 + $0xc6c] sm:$0xff]
    %v4657 = vld [vmem:[#allocation13 + $0xc74] sm:$0xf]
    %v4658 = vld [vmem:[#allocation13 + $0xc78] sm:$0xff]
    %v4659 = vld [vmem:[#allocation13 + $0xc80] sm:$0xff]
    %v4660 = vld [vmem:[#allocation13 + $0xc88] sm:$0xff]
    %v4661 = vld [vmem:[#allocation13 + $0xc90] sm:$0xf]
    %v4662 = vld [vmem:[#allocation13 + $0xc94] sm:$0xff]
    %v4663 = vld [vmem:[#allocation13 + $0xc9c] sm:$0xff]
    %v4664 = vld [vmem:[#allocation13 + $0xca4] sm:$0xff]
    %v4665 = vld [vmem:[#allocation13 + $0xcac] sm:$0xf]
    %v4666 = vld [vmem:[#allocation13 + $0xcb0] sm:$0xff]
    %v4667 = vld [vmem:[#allocation13 + $0xcb8] sm:$0xff]
    %v4668 = vld [vmem:[#allocation13 + $0xcc0] sm:$0xff]
    %v4669 = vld [vmem:[#allocation13 + $0xcc8] sm:$0xf]
    %v4670 = vld [vmem:[#allocation13 + $0xccc] sm:$0xff]
    %v4671 = vld [vmem:[#allocation13 + $0xcd4] sm:$0xff]
    %v4672 = vld [vmem:[#allocation13 + $0xcdc] sm:$0xff]
    %v4673 = vld [vmem:[#allocation13 + $0xce4] sm:$0xf]
    %v4674 = vld [vmem:[#allocation13 + $0xce8] sm:$0xff]
    %v4675 = vld [vmem:[#allocation13 + $0xcf0] sm:$0xff]
    %v4676 = vld [vmem:[#allocation13 + $0xcf8] sm:$0xff]
    %v4677 = vld [vmem:[#allocation13 + $0xd00] sm:$0xf]
    %v4678 = vld [vmem:[#allocation13 + $0xd04] sm:$0xff]
    %v4679 = vld [vmem:[#allocation13 + $0xd0c] sm:$0xff]
    %v4680 = vld [vmem:[#allocation13 + $0xd14] sm:$0xff]
    %v4681 = vld [vmem:[#allocation13 + $0xd1c] sm:$0xf]
    %v4682 = vld [vmem:[#allocation13 + $0xd20] sm:$0xff]
    %v4683 = vld [vmem:[#allocation13 + $0xd28] sm:$0xff]
    %v4684 = vld [vmem:[#allocation13 + $0xd30] sm:$0xff]
    %v4685 = vld [vmem:[#allocation13 + $0xd38] sm:$0xf]
    %v4686 = vld [vmem:[#allocation13 + $0xd3c] sm:$0xff]
    %v4687 = vld [vmem:[#allocation13 + $0xd44] sm:$0xff]
    %v4688 = vld [vmem:[#allocation13 + $0xd4c] sm:$0xff]
    %v4689 = vld [vmem:[#allocation13 + $0xd54] sm:$0xf]
    %v4690 = vld [vmem:[#allocation13 + $0xd58] sm:$0xff]
    %v4691 = vld [vmem:[#allocation13 + $0xd60] sm:$0xff]
    %v4692 = vld [vmem:[#allocation13 + $0xd68] sm:$0xff]
    %v4693 = vld [vmem:[#allocation13 + $0xd70] sm:$0xf]
    %v4694 = vld [vmem:[#allocation13 + $0xd74] sm:$0xff]
    %v4695 = vld [vmem:[#allocation13 + $0xd7c] sm:$0xff]
    %v4696 = vld [vmem:[#allocation13 + $0xd84] sm:$0xff]
    %v4697 = vld [vmem:[#allocation13 + $0xd8c] sm:$0xf]
    %v4698 = vld [vmem:[#allocation13 + $0xd90] sm:$0xff]
    %v4699 = vld [vmem:[#allocation13 + $0xd98] sm:$0xff]
    %v4700 = vld [vmem:[#allocation13 + $0xda0] sm:$0xff]
    %v4701 = vld [vmem:[#allocation13 + $0xda8] sm:$0xf]
    %v4702 = vld [vmem:[#allocation13 + $0xdac] sm:$0xff]
    %v4703 = vld [vmem:[#allocation13 + $0xdb4] sm:$0xff]
    %v4704 = vld [vmem:[#allocation13 + $0xdbc] sm:$0xff]
    %v4705 = vld [vmem:[#allocation13 + $0xdc4] sm:$0xf]
    %v4706 = vld [vmem:[#allocation13 + $0xdc8] sm:$0xff]
    %v4707 = vld [vmem:[#allocation13 + $0xdd0] sm:$0xff]
    %v4708 = vld [vmem:[#allocation13 + $0xdd8] sm:$0xff]
    %v4709 = vld [vmem:[#allocation13 + $0xde0] sm:$0xf]
    %v4710 = vld [vmem:[#allocation13 + $0xde4] sm:$0xff]
    %v4711 = vld [vmem:[#allocation13 + $0xdec] sm:$0xff]
    %v4712 = vld [vmem:[#allocation13 + $0xdf4] sm:$0xff]
    %v4713 = vld [vmem:[#allocation13 + $0xdfc] sm:$0xf]
    %v4714 = vld [vmem:[#allocation13 + $0xe00] sm:$0xff]
    %v4715 = vld [vmem:[#allocation13 + $0xe08] sm:$0xff]
    %v4716 = vld [vmem:[#allocation13 + $0xe10] sm:$0xff]
    %v4717 = vld [vmem:[#allocation13 + $0xe18] sm:$0xf]
    %v4718 = vld [vmem:[#allocation13 + $0xe1c] sm:$0xff]
    %v4719 = vld [vmem:[#allocation13 + $0xe24] sm:$0xff]
    %v4720 = vld [vmem:[#allocation13 + $0xe2c] sm:$0xff]
    %v4721 = vld [vmem:[#allocation13 + $0xe34] sm:$0xf]
    %v4722 = vld [vmem:[#allocation13 + $0xe38] sm:$0xff]
    %v4723 = vld [vmem:[#allocation13 + $0xe40] sm:$0xff]
    %v4724 = vld [vmem:[#allocation13 + $0xe48] sm:$0xff]
    %v4725 = vld [vmem:[#allocation13 + $0xe50] sm:$0xf]
    %v4726 = vld [vmem:[#allocation13 + $0xe54] sm:$0xff]
    %v4727 = vld [vmem:[#allocation13 + $0xe5c] sm:$0xff]
    %v4728 = vld [vmem:[#allocation13 + $0xe64] sm:$0xff]
    %v4729 = vld [vmem:[#allocation13 + $0xe6c] sm:$0xf]
    %v4730 = vld [vmem:[#allocation13 + $0xe70] sm:$0xff]
    %v4731 = vld [vmem:[#allocation13 + $0xe78] sm:$0xff]
    %v4732 = vld [vmem:[#allocation13 + $0xe80] sm:$0xff]
    %v4733 = vld [vmem:[#allocation13 + $0xe88] sm:$0xf]
    %v4734 = vld [vmem:[#allocation13 + $0xe8c] sm:$0xff]
    %v4735 = vld [vmem:[#allocation13 + $0xe94] sm:$0xff]
    %v4736 = vld [vmem:[#allocation13 + $0xe9c] sm:$0xff]
    %v4737 = vld [vmem:[#allocation13 + $0xea4] sm:$0xf]
    %v4738 = vld [vmem:[#allocation13 + $0xea8] sm:$0xff]
    %v4739 = vld [vmem:[#allocation13 + $0xeb0] sm:$0xff]
    %v4740 = vld [vmem:[#allocation13 + $0xeb8] sm:$0xff]
    %v4741 = vld [vmem:[#allocation13 + $0xec0] sm:$0xf]
    %v4742 = vld [vmem:[#allocation13 + $0xec4] sm:$0xff]
    %v4743 = vld [vmem:[#allocation13 + $0xecc] sm:$0xff]
    %v4744 = vld [vmem:[#allocation13 + $0xed4] sm:$0xff]
    %v4745 = vld [vmem:[#allocation13 + $0xedc] sm:$0xf]
    %v4746 = vld [vmem:[#allocation13 + $0xee0] sm:$0xff]
    %v4747 = vld [vmem:[#allocation13 + $0xee8] sm:$0xff]
    %v4748 = vld [vmem:[#allocation13 + $0xef0] sm:$0xff]
    %v4749 = vld [vmem:[#allocation13 + $0xef8] sm:$0xf]
    %v4750 = vld [vmem:[#allocation13 + $0xefc] sm:$0xff]
    %v4751 = vld [vmem:[#allocation13 + $0xf04] sm:$0xff]
    %v4752 = vld [vmem:[#allocation13 + $0xf0c] sm:$0xff]
    %v4753 = vld [vmem:[#allocation13 + $0xf14] sm:$0xf]
    %v4754 = vld [vmem:[#allocation13 + $0xf18] sm:$0xff]
    %v4755 = vld [vmem:[#allocation13 + $0xf20] sm:$0xff]
    %v4756 = vld [vmem:[#allocation13 + $0xf28] sm:$0xff]
    %v4757 = vld [vmem:[#allocation13 + $0xf30] sm:$0xf]
    %v4758 = vld [vmem:[#allocation13 + $0xf34] sm:$0xff]
    %v4759 = vld [vmem:[#allocation13 + $0xf3c] sm:$0xff]
    %v4760 = vld [vmem:[#allocation13 + $0xf44] sm:$0xff]
    %v4761 = vld [vmem:[#allocation13 + $0xf4c] sm:$0xf]
    %v4762 = vld [vmem:[#allocation13 + $0xf50] sm:$0xff]
    %v4763 = vld [vmem:[#allocation13 + $0xf58] sm:$0xff]
    %v4764 = vld [vmem:[#allocation13 + $0xf60] sm:$0xff]
    %v4765 = vld [vmem:[#allocation13 + $0xf68] sm:$0xf]
    %v4766 = vld [vmem:[#allocation13 + $0xf6c] sm:$0xff]
    %v4767 = vld [vmem:[#allocation13 + $0xf74] sm:$0xff]
    %v4768 = vld [vmem:[#allocation13 + $0xf7c] sm:$0xff]
    %v4769 = vld [vmem:[#allocation13 + $0xf84] sm:$0xf]
    %v4770 = vld [vmem:[#allocation13 + $0xf88] sm:$0xff]
    %v4771 = vld [vmem:[#allocation13 + $0xf90] sm:$0xff]
    %v4772 = vld [vmem:[#allocation13 + $0xf98] sm:$0xff]
    %v4773 = vld [vmem:[#allocation13 + $0xfa0] sm:$0xf]
    %v4774 = vld [vmem:[#allocation13 + $0xfa4] sm:$0xff]
    %v4775 = vld [vmem:[#allocation13 + $0xfac] sm:$0xff]
    %v4776 = vld [vmem:[#allocation13 + $0xfb4] sm:$0xff]
    %v4777 = vld [vmem:[#allocation13 + $0xfbc] sm:$0xf]
    %v4778 = vld [vmem:[#allocation13 + $0xfc0] sm:$0xff]
    %v4779 = vld [vmem:[#allocation13 + $0xfc8] sm:$0xff]
    %v4780 = vld [vmem:[#allocation13 + $0xfd0] sm:$0xff]
    %v4781 = vld [vmem:[#allocation13 + $0xfd8] sm:$0xf]
    %v4782 = vld [vmem:[#allocation13 + $0xfdc] sm:$0xff]
    %v4783 = vld [vmem:[#allocation13 + $0xfe4] sm:$0xff]
    %v4784 = vld [vmem:[#allocation13 + $0xfec] sm:$0xff]
    %v4785 = vld [vmem:[#allocation13 + $0xff4] sm:$0xf]
    %v4786 = vld [vmem:[#allocation13 + $0xff8] sm:$0xff]
    %v4787 = vld [vmem:[#allocation13 + $0x1000] sm:$0xff]
    %v4788 = vld [vmem:[#allocation13 + $0x1008] sm:$0xff]
    %v4789 = vld [vmem:[#allocation13 + $0x1010] sm:$0xf]
    %v4790 = vld [vmem:[#allocation13 + $0x1014] sm:$0xff]
    %v4791 = vld [vmem:[#allocation13 + $0x101c] sm:$0xff]
    %v4792 = vld [vmem:[#allocation13 + $0x1024] sm:$0xff]
    %v4793 = vld [vmem:[#allocation13 + $0x102c] sm:$0xf]
    %v4794 = vld [vmem:[#allocation13 + $0x1030] sm:$0xff]
    %v4795 = vld [vmem:[#allocation13 + $0x1038] sm:$0xff]
    %v4796 = vld [vmem:[#allocation13 + $0x1040] sm:$0xff]
    %v4797 = vld [vmem:[#allocation13 + $0x1048] sm:$0xf]
    %v4798 = vld [vmem:[#allocation13 + $0x104c] sm:$0xff]
    %v4799 = vld [vmem:[#allocation13 + $0x1054] sm:$0xff]
    %v4800 = vld [vmem:[#allocation13 + $0x105c] sm:$0xff]
    %v4801 = vld [vmem:[#allocation13 + $0x1064] sm:$0xf]
    %v4802 = vld [vmem:[#allocation13 + $0x1068] sm:$0xff]
    %v4803 = vld [vmem:[#allocation13 + $0x1070] sm:$0xff]
    %v4804 = vld [vmem:[#allocation13 + $0x1078] sm:$0xff]
    %v4805 = vld [vmem:[#allocation13 + $0x1080] sm:$0xf]
    %v4806 = vld [vmem:[#allocation13 + $0x1084] sm:$0xff]
    %v4807 = vld [vmem:[#allocation13 + $0x108c] sm:$0xff]
    %v4808 = vld [vmem:[#allocation13 + $0x1094] sm:$0xff]
    %v4809 = vld [vmem:[#allocation13 + $0x109c] sm:$0xf]
    %v4810 = vld [vmem:[#allocation13 + $0x10a0] sm:$0xff]
    %v4811 = vld [vmem:[#allocation13 + $0x10a8] sm:$0xff]
    %v4812 = vld [vmem:[#allocation13 + $0x10b0] sm:$0xff]
    %v4813 = vld [vmem:[#allocation13 + $0x10b8] sm:$0xf]
    %v4814 = vld [vmem:[#allocation13 + $0x10bc] sm:$0xff]
    %v4815 = vld [vmem:[#allocation13 + $0x10c4] sm:$0xff]
    %v4816 = vld [vmem:[#allocation13 + $0x10cc] sm:$0xff]
    %v4817 = vld [vmem:[#allocation13 + $0x10d4] sm:$0xf]
    %v4818 = vld [vmem:[#allocation13 + $0x10d8] sm:$0xff]
    %v4819 = vld [vmem:[#allocation13 + $0x10e0] sm:$0xff]
    %v4820 = vld [vmem:[#allocation13 + $0x10e8] sm:$0xff]
    %v4821 = vld [vmem:[#allocation13 + $0x10f0] sm:$0xf]
    %v4822 = vld [vmem:[#allocation13 + $0x10f4] sm:$0xff]
    %v4823 = vld [vmem:[#allocation13 + $0x10fc] sm:$0xff]
    %v4824 = vld [vmem:[#allocation13 + $0x1104] sm:$0xff]
    %v4825 = vld [vmem:[#allocation13 + $0x110c] sm:$0xf]
    %v4826 = vld [vmem:[#allocation13 + $0x1110] sm:$0xff]
    %v4827 = vld [vmem:[#allocation13 + $0x1118] sm:$0xff]
    %v4828 = vld [vmem:[#allocation13 + $0x1120] sm:$0xff]
    %v4829 = vld [vmem:[#allocation13 + $0x1128] sm:$0xf]
    %v4830 = vld [vmem:[#allocation13 + $0x112c] sm:$0xff]
    %v4831 = vld [vmem:[#allocation13 + $0x1134] sm:$0xff]
    %v4832 = vld [vmem:[#allocation13 + $0x113c] sm:$0xff]
    %v4833 = vld [vmem:[#allocation13 + $0x1144] sm:$0xf]
    %v4834 = vld [vmem:[#allocation13 + $0x1148] sm:$0xff]
    %v4835 = vld [vmem:[#allocation13 + $0x1150] sm:$0xff]
    %v4836 = vld [vmem:[#allocation13 + $0x1158] sm:$0xff]
    %v4837 = vld [vmem:[#allocation13 + $0x1160] sm:$0xf]
    %v4838 = vld [vmem:[#allocation13 + $0x1164] sm:$0xff]
    %v4839 = vld [vmem:[#allocation13 + $0x116c] sm:$0xff]
    %v4840 = vld [vmem:[#allocation13 + $0x1174] sm:$0xff]
    %v4841 = vld [vmem:[#allocation13 + $0x117c] sm:$0xf]
    %v4842 = vld [vmem:[#allocation13 + $0x1180] sm:$0xff]
    %v4843 = vld [vmem:[#allocation13 + $0x1188] sm:$0xff]
    %v4844 = vld [vmem:[#allocation13 + $0x1190] sm:$0xff]
    %v4845 = vld [vmem:[#allocation13 + $0x1198] sm:$0xf]
    %v4846 = vld [vmem:[#allocation13 + $0x119c] sm:$0xff]
    %v4847 = vld [vmem:[#allocation13 + $0x11a4] sm:$0xff]
    %v4848 = vld [vmem:[#allocation13 + $0x11ac] sm:$0xff]
    %v4849 = vld [vmem:[#allocation13 + $0x11b4] sm:$0xf]
    %v4850 = vld [vmem:[#allocation13 + $0x11b8] sm:$0xff]
    %v4851 = vld [vmem:[#allocation13 + $0x11c0] sm:$0xff]
    %v4852 = vld [vmem:[#allocation13 + $0x11c8] sm:$0xff]
    %v4853 = vld [vmem:[#allocation13 + $0x11d0] sm:$0xf]
    %v4854 = vld [vmem:[#allocation13 + $0x11d4] sm:$0xff]
    %v4855 = vld [vmem:[#allocation13 + $0x11dc] sm:$0xff]
    %v4856 = vld [vmem:[#allocation13 + $0x11e4] sm:$0xff]
    %v4857 = vld [vmem:[#allocation13 + $0x11ec] sm:$0xf]
    %v4858 = vld [vmem:[#allocation13 + $0x11f0] sm:$0xff]
    %v4859 = vld [vmem:[#allocation13 + $0x11f8] sm:$0xff]
    %v4860 = vld [vmem:[#allocation13 + $0x1200] sm:$0xff]
    %v4861 = vld [vmem:[#allocation13 + $0x1208] sm:$0xf]
    %v4862 = vld [vmem:[#allocation13 + $0x120c] sm:$0xff]
    %v4863 = vld [vmem:[#allocation13 + $0x1214] sm:$0xff]
    %v4864 = vld [vmem:[#allocation13 + $0x121c] sm:$0xff]
    %v4865 = vld [vmem:[#allocation13 + $0x1224] sm:$0xf]
    %v4866 = vld [vmem:[#allocation13 + $0x1228] sm:$0xff]
    %v4867 = vld [vmem:[#allocation13 + $0x1230] sm:$0xff]
    %v4868 = vld [vmem:[#allocation13 + $0x1238] sm:$0xff]
    %v4869 = vld [vmem:[#allocation13 + $0x1240] sm:$0xf]
    %v4870 = vld [vmem:[#allocation13 + $0x1244] sm:$0xff]
    %v4871 = vld [vmem:[#allocation13 + $0x124c] sm:$0xff]
    %v4872 = vld [vmem:[#allocation13 + $0x1254] sm:$0xff]
    %v4873 = vld [vmem:[#allocation13 + $0x125c] sm:$0xf]
    %v4874 = vld [vmem:[#allocation13 + $0x1260] sm:$0xff]
    %v4875 = vld [vmem:[#allocation13 + $0x1268] sm:$0xff]
    %v4876 = vld [vmem:[#allocation13 + $0x1270] sm:$0xff]
    %v4877 = vld [vmem:[#allocation13 + $0x1278] sm:$0xf]
    %v4878 = vld [vmem:[#allocation13 + $0x127c] sm:$0xff]
    %v4879 = vld [vmem:[#allocation13 + $0x1284] sm:$0xff]
    %v4880 = vld [vmem:[#allocation13 + $0x128c] sm:$0xff]
    %v4881 = vld [vmem:[#allocation13 + $0x1294] sm:$0xf]
    %v4882 = vld [vmem:[#allocation13 + $0x1298] sm:$0xff]
    %v4883 = vld [vmem:[#allocation13 + $0x12a0] sm:$0xff]
    %v4884 = vld [vmem:[#allocation13 + $0x12a8] sm:$0xff]
    %v4885 = vld [vmem:[#allocation13 + $0x12b0] sm:$0xf]
    %v4886 = vld [vmem:[#allocation13 + $0x12b4] sm:$0xff]
    %v4887 = vld [vmem:[#allocation13 + $0x12bc] sm:$0xff]
    %v4888 = vld [vmem:[#allocation13 + $0x12c4] sm:$0xff]
    %v4889 = vld [vmem:[#allocation13 + $0x12cc] sm:$0xf]
    %v4890 = vld [vmem:[#allocation13 + $0x12d0] sm:$0xff]
    %v4891 = vld [vmem:[#allocation13 + $0x12d8] sm:$0xff]
    %v4892 = vld [vmem:[#allocation13 + $0x12e0] sm:$0xff]
    %v4893 = vld [vmem:[#allocation13 + $0x12e8] sm:$0xf]
    %v4894 = vld [vmem:[#allocation13 + $0x12ec] sm:$0xff]
    %v4895 = vld [vmem:[#allocation13 + $0x12f4] sm:$0xff]
    %v4896 = vld [vmem:[#allocation13 + $0x12fc] sm:$0xff]
    %v4897 = vld [vmem:[#allocation13 + $0x1304] sm:$0xf]
    %v4898 = vld [vmem:[#allocation13 + $0x1308] sm:$0xff]
    %v4899 = vld [vmem:[#allocation13 + $0x1310] sm:$0xff]
    %v4900 = vld [vmem:[#allocation13 + $0x1318] sm:$0xff]
    %v4901 = vld [vmem:[#allocation13 + $0x1320] sm:$0xf]
    %v4902 = vld [vmem:[#allocation13 + $0x1324] sm:$0xff]
    %v4903 = vld [vmem:[#allocation13 + $0x132c] sm:$0xff]
    %v4904 = vld [vmem:[#allocation13 + $0x1334] sm:$0xff]
    %v4905 = vld [vmem:[#allocation13 + $0x133c] sm:$0xf]
    %v4906 = vld [vmem:[#allocation13 + $0x1340] sm:$0xff]
    %v4907 = vld [vmem:[#allocation13 + $0x1348] sm:$0xff]
    %v4908 = vld [vmem:[#allocation13 + $0x1350] sm:$0xff]
    %v4909 = vld [vmem:[#allocation13 + $0x1358] sm:$0xf]
    %v4910 = vld [vmem:[#allocation13 + $0x135c] sm:$0xff]
    %v4911 = vld [vmem:[#allocation13 + $0x1364] sm:$0xff]
    %v4912 = vld [vmem:[#allocation13 + $0x136c] sm:$0xff]
    %v4913 = vld [vmem:[#allocation13 + $0x1374] sm:$0xf]
    %v4914 = vld [vmem:[#allocation13 + $0x1378] sm:$0xff]
    %v4915 = vld [vmem:[#allocation13 + $0x1380] sm:$0xff]
    %v4916 = vld [vmem:[#allocation13 + $0x1388] sm:$0xff]
    %v4917 = vld [vmem:[#allocation13 + $0x1390] sm:$0xf]
    %v4918 = vld [vmem:[#allocation13 + $0x1394] sm:$0xff]
    %v4919 = vld [vmem:[#allocation13 + $0x139c] sm:$0xff]
    %v4920 = vld [vmem:[#allocation13 + $0x13a4] sm:$0xff]
    %v4921 = vld [vmem:[#allocation13 + $0x13ac] sm:$0xf]
    %v4922 = vld [vmem:[#allocation13 + $0x13b0] sm:$0xff]
    %v4923 = vld [vmem:[#allocation13 + $0x13b8] sm:$0xff]
    %v4924 = vld [vmem:[#allocation13 + $0x13c0] sm:$0xff]
    %v4925 = vld [vmem:[#allocation13 + $0x13c8] sm:$0xf]
    %v4926 = vld [vmem:[#allocation13 + $0x13cc] sm:$0xff]
    %v4927 = vld [vmem:[#allocation13 + $0x13d4] sm:$0xff]
    %v4928 = vld [vmem:[#allocation13 + $0x13dc] sm:$0xff]
    %v4929 = vld [vmem:[#allocation13 + $0x13e4] sm:$0xf]
    %v4930 = vld [vmem:[#allocation13 + $0x13e8] sm:$0xff]
    %v4931 = vld [vmem:[#allocation13 + $0x13f0] sm:$0xff]
    %v4932 = vld [vmem:[#allocation13 + $0x13f8] sm:$0xff]
    %v4933 = vld [vmem:[#allocation13 + $0x1400] sm:$0xf]
    %v4934 = vld [vmem:[#allocation13 + $0x1404] sm:$0xff]
    %v4935 = vld [vmem:[#allocation13 + $0x140c] sm:$0xff]
    %v4936 = vld [vmem:[#allocation13 + $0x1414] sm:$0xff]
    %v4937 = vld [vmem:[#allocation13 + $0x141c] sm:$0xf]
    %v4938 = vld [vmem:[#allocation13 + $0x1420] sm:$0xff]
    %v4939 = vld [vmem:[#allocation13 + $0x1428] sm:$0xff]
    %v4940 = vld [vmem:[#allocation13 + $0x1430] sm:$0xff]
    %v4941 = vld [vmem:[#allocation13 + $0x1438] sm:$0xf]
    %v4942 = vld [vmem:[#allocation13 + $0x143c] sm:$0xff]
    %v4943 = vld [vmem:[#allocation13 + $0x1444] sm:$0xff]
    %v4944 = vld [vmem:[#allocation13 + $0x144c] sm:$0xff]
    %v4945 = vld [vmem:[#allocation13 + $0x1454] sm:$0xf]
    %v4946 = vld [vmem:[#allocation13 + $0x1458] sm:$0xff]
    %v4947 = vld [vmem:[#allocation13 + $0x1460] sm:$0xff]
    %v4948 = vld [vmem:[#allocation13 + $0x1468] sm:$0xff]
    %v4949 = vld [vmem:[#allocation13 + $0x1470] sm:$0xf]
    %v4950 = vld [vmem:[#allocation13 + $0x1474] sm:$0xff]
    %v4951 = vld [vmem:[#allocation13 + $0x147c] sm:$0xff]
    %v4952 = vld [vmem:[#allocation13 + $0x1484] sm:$0xff]
    %v4953 = vld [vmem:[#allocation13 + $0x148c] sm:$0xf]
    %v4954 = vld [vmem:[#allocation13 + $0x1490] sm:$0xff]
    %v4955 = vld [vmem:[#allocation13 + $0x1498] sm:$0xff]
    %v4956 = vld [vmem:[#allocation13 + $0x14a0] sm:$0xff]
    %v4957 = vld [vmem:[#allocation13 + $0x14a8] sm:$0xf]
    %v4958 = vld [vmem:[#allocation13 + $0x14ac] sm:$0xff]
    %v4959 = vld [vmem:[#allocation13 + $0x14b4] sm:$0xff]
    %v4960 = vld [vmem:[#allocation13 + $0x14bc] sm:$0xff]
    %v4961 = vld [vmem:[#allocation13 + $0x14c4] sm:$0xf]
    %v4962 = vld [vmem:[#allocation13 + $0x14c8] sm:$0xff]
    %v4963 = vld [vmem:[#allocation13 + $0x14d0] sm:$0xff]
    %v4964 = vld [vmem:[#allocation13 + $0x14d8] sm:$0xff]
    %v4965 = vld [vmem:[#allocation13 + $0x14e0] sm:$0xf]
    %v4966 = vld [vmem:[#allocation13 + $0x14e4] sm:$0xff]
    %v4967 = vld [vmem:[#allocation13 + $0x14ec] sm:$0xff]
    %v4968 = vld [vmem:[#allocation13 + $0x14f4] sm:$0xff]
    %v4969 = vld [vmem:[#allocation13 + $0x14fc] sm:$0xf]
    %v4970 = vld [vmem:[#allocation13 + $0x1500] sm:$0xff]
    %v4971 = vld [vmem:[#allocation13 + $0x1508] sm:$0xff]
    %v4972 = vld [vmem:[#allocation13 + $0x1510] sm:$0xff]
    %v4973 = vld [vmem:[#allocation13 + $0x1518] sm:$0xf]
    %v4974 = vld [vmem:[#allocation13 + $0x151c] sm:$0xff]
    %v4975 = vld [vmem:[#allocation13 + $0x1524] sm:$0xff]
    %v4976 = vld [vmem:[#allocation13 + $0x152c] sm:$0xff]
    %v4977 = vld [vmem:[#allocation13 + $0x1534] sm:$0xf]
    %v4978 = vld [vmem:[#allocation13 + $0x1538] sm:$0xff]
    %v4979 = vld [vmem:[#allocation13 + $0x1540] sm:$0xff]
    %v4980 = vld [vmem:[#allocation13 + $0x1548] sm:$0xff]
    %v4981 = vld [vmem:[#allocation13 + $0x1550] sm:$0xf]
    %v4982 = vld [vmem:[#allocation13 + $0x1554] sm:$0xff]
    %v4983 = vld [vmem:[#allocation13 + $0x155c] sm:$0xff]
    %v4984 = vld [vmem:[#allocation13 + $0x1564] sm:$0xff]
    %v4985 = vld [vmem:[#allocation13 + $0x156c] sm:$0xf]
    %v4986 = vld [vmem:[#allocation13 + $0x1570] sm:$0xff]
    %v4987 = vld [vmem:[#allocation13 + $0x1578] sm:$0xff]
    %v4988 = vld [vmem:[#allocation13 + $0x1580] sm:$0xff]
    %v4989 = vld [vmem:[#allocation13 + $0x1588] sm:$0xf]
    %v4990 = vld [vmem:[#allocation13 + $0x158c] sm:$0xff]
    %v4991 = vld [vmem:[#allocation13 + $0x1594] sm:$0xff]
    %v4992 = vld [vmem:[#allocation13 + $0x159c] sm:$0xff]
    %v4993 = vld [vmem:[#allocation13 + $0x15a4] sm:$0xf]
    %v4994 = vld [vmem:[#allocation13 + $0x15a8] sm:$0xff]
    %v4995 = vld [vmem:[#allocation13 + $0x15b0] sm:$0xff]
    %v4996 = vld [vmem:[#allocation13 + $0x15b8] sm:$0xff]
    %v4997 = vld [vmem:[#allocation13 + $0x15c0] sm:$0xf]
    %v4998 = vld [vmem:[#allocation13 + $0x15c4] sm:$0xff]
    %v4999 = vld [vmem:[#allocation13 + $0x15cc] sm:$0xff]
    %v5000 = vld [vmem:[#allocation13 + $0x15d4] sm:$0xff]
    %v5001 = vld [vmem:[#allocation13 + $0x15dc] sm:$0xf]
    %v5002 = vld [vmem:[#allocation13 + $0x15e0] sm:$0xff]
    %v5003 = vld [vmem:[#allocation13 + $0x15e8] sm:$0xff]
    %v5004 = vld [vmem:[#allocation13 + $0x15f0] sm:$0xff]
    %v5005 = vld [vmem:[#allocation13 + $0x15f8] sm:$0xf]
    %v5006 = vld [vmem:[#allocation13 + $0x15fc] sm:$0xff]
    %v5007 = vld [vmem:[#allocation13 + $0x1604] sm:$0xff]
    %v5008 = vld [vmem:[#allocation13 + $0x160c] sm:$0xff]
    %v5009 = vld [vmem:[#allocation13 + $0x1614] sm:$0xf]
    %v5010 = vld [vmem:[#allocation13 + $0x1618] sm:$0xff]
    %v5011 = vld [vmem:[#allocation13 + $0x1620] sm:$0xff]
    %v5012 = vld [vmem:[#allocation13 + $0x1628] sm:$0xff]
    %v5013 = vld [vmem:[#allocation13 + $0x1630] sm:$0xf]
    %v5014 = vld [vmem:[#allocation13 + $0x1634] sm:$0xff]
    %v5015 = vld [vmem:[#allocation13 + $0x163c] sm:$0xff]
    %v5016 = vld [vmem:[#allocation13 + $0x1644] sm:$0xff]
    %v5017 = vld [vmem:[#allocation13 + $0x164c] sm:$0xf]
    %v5018 = vld [vmem:[#allocation13 + $0x1650] sm:$0xff]
    %v5019 = vld [vmem:[#allocation13 + $0x1658] sm:$0xff]
    %v5020 = vld [vmem:[#allocation13 + $0x1660] sm:$0xff]
    %v5021 = vld [vmem:[#allocation13 + $0x1668] sm:$0xf]
    %v5022 = vld [vmem:[#allocation13 + $0x166c] sm:$0xff]
    %v5023 = vld [vmem:[#allocation13 + $0x1674] sm:$0xff]
    %v5024 = vld [vmem:[#allocation13 + $0x167c] sm:$0xff]
    %v5025 = vld [vmem:[#allocation13 + $0x1684] sm:$0xf]
    %v5026 = vld [vmem:[#allocation13 + $0x1688] sm:$0xff]
    %v5027 = vld [vmem:[#allocation13 + $0x1690] sm:$0xff]
    %v5028 = vld [vmem:[#allocation13 + $0x1698] sm:$0xff]
    %v5029 = vld [vmem:[#allocation13 + $0x16a0] sm:$0xf]
    %v5030 = vld [vmem:[#allocation13 + $0x16a4] sm:$0xff]
    %v5031 = vld [vmem:[#allocation13 + $0x16ac] sm:$0xff]
    %v5032 = vld [vmem:[#allocation13 + $0x16b4] sm:$0xff]
    %v5033 = vld [vmem:[#allocation13 + $0x16bc] sm:$0xf]
    %v5034 = vld [vmem:[#allocation13 + $0x16c0] sm:$0xff]
    %v5035 = vld [vmem:[#allocation13 + $0x16c8] sm:$0xff]
    %v5036 = vld [vmem:[#allocation13 + $0x16d0] sm:$0xff]
    %v5037 = vld [vmem:[#allocation13 + $0x16d8] sm:$0xf]
    %v5038 = vld [vmem:[#allocation13 + $0x16dc] sm:$0xff]
    %v5039 = vld [vmem:[#allocation13 + $0x16e4] sm:$0xff]
    %v5040 = vld [vmem:[#allocation13 + $0x16ec] sm:$0xff]
    %v5041 = vld [vmem:[#allocation13 + $0x16f4] sm:$0xf]
    %v5042 = vld [vmem:[#allocation13 + $0x16f8] sm:$0xff]
    %v5043 = vld [vmem:[#allocation13 + $0x1700] sm:$0xff]
    %v5044 = vld [vmem:[#allocation13 + $0x1708] sm:$0xff]
    %v5045 = vld [vmem:[#allocation13 + $0x1710] sm:$0xf]
    %v5046 = vld [vmem:[#allocation13 + $0x1714] sm:$0xff]
    %v5047 = vld [vmem:[#allocation13 + $0x171c] sm:$0xff]
    %v5048 = vld [vmem:[#allocation13 + $0x1724] sm:$0xff]
    %v5049 = vld [vmem:[#allocation13 + $0x172c] sm:$0xf]
    %v5050 = vld [vmem:[#allocation13 + $0x1730] sm:$0xff]
    %v5051 = vld [vmem:[#allocation13 + $0x1738] sm:$0xff]
    %v5052 = vld [vmem:[#allocation13 + $0x1740] sm:$0xff]
    %v5053 = vld [vmem:[#allocation13 + $0x1748] sm:$0xf]
    %v5054 = vld [vmem:[#allocation13 + $0x174c] sm:$0xff]
    %v5055 = vld [vmem:[#allocation13 + $0x1754] sm:$0xff]
    %v5056 = vld [vmem:[#allocation13 + $0x175c] sm:$0xff]
    %v5057 = vld [vmem:[#allocation13 + $0x1764] sm:$0xf]
    %v5058 = vld [vmem:[#allocation13 + $0x1768] sm:$0xff]
    %v5059 = vld [vmem:[#allocation13 + $0x1770] sm:$0xff]
    %v5060 = vld [vmem:[#allocation13 + $0x1778] sm:$0xff]
    %v5061 = vld [vmem:[#allocation13 + $0x1780] sm:$0xf]
    %v5062 = vld [vmem:[#allocation13 + $0x1784] sm:$0xff]
    %v5063 = vld [vmem:[#allocation13 + $0x178c] sm:$0xff]
    %v5064 = vld [vmem:[#allocation13 + $0x1794] sm:$0xff]
    %v5065 = vld [vmem:[#allocation13 + $0x179c] sm:$0xf]
    %v5066 = vld [vmem:[#allocation13 + $0x17a0] sm:$0xff]
    %v5067 = vld [vmem:[#allocation13 + $0x17a8] sm:$0xff]
    %v5068 = vld [vmem:[#allocation13 + $0x17b0] sm:$0xff]
    %v5069 = vld [vmem:[#allocation13 + $0x17b8] sm:$0xf]
    %v5070 = vld [vmem:[#allocation13 + $0x17bc] sm:$0xff]
    %v5071 = vld [vmem:[#allocation13 + $0x17c4] sm:$0xff]
    %v5072 = vld [vmem:[#allocation13 + $0x17cc] sm:$0xff]
    %v5073 = vld [vmem:[#allocation13 + $0x17d4] sm:$0xf]
    %v5074 = vld [vmem:[#allocation13 + $0x17d8] sm:$0xff]
    %v5075 = vld [vmem:[#allocation13 + $0x17e0] sm:$0xff]
    %v5076 = vld [vmem:[#allocation13 + $0x17e8] sm:$0xff]
    %v5077 = vld [vmem:[#allocation13 + $0x17f0] sm:$0xf]
    %v5078 = vld [vmem:[#allocation13 + $0x17f4] sm:$0xff]
    %v5079 = vld [vmem:[#allocation13 + $0x17fc] sm:$0xff]
    %v5080 = vld [vmem:[#allocation13 + $0x1804] sm:$0xff]
    %v5081 = vld [vmem:[#allocation13 + $0x180c] sm:$0xf]
    %v5082 = vld [vmem:[#allocation13 + $0x1810] sm:$0xff]
    %v5083 = vld [vmem:[#allocation13 + $0x1818] sm:$0xff]
    %v5084 = vld [vmem:[#allocation13 + $0x1820] sm:$0xff]
    %v5085 = vld [vmem:[#allocation13 + $0x1828] sm:$0xf]
    %v5086 = vld [vmem:[#allocation13 + $0x182c] sm:$0xff]
    %v5087 = vld [vmem:[#allocation13 + $0x1834] sm:$0xff]
    %v5088 = vld [vmem:[#allocation13 + $0x183c] sm:$0xff]
    %v5089 = vld [vmem:[#allocation13 + $0x1844] sm:$0xf]
    %v5090 = vld [vmem:[#allocation13 + $0x1848] sm:$0xff]
    %v5091 = vld [vmem:[#allocation13 + $0x1850] sm:$0xff]
    %v5092 = vld [vmem:[#allocation13 + $0x1858] sm:$0xff]
    %v5093 = vld [vmem:[#allocation13 + $0x1860] sm:$0xf]
    %v5094 = vld [vmem:[#allocation13 + $0x1864] sm:$0xff]
    %v5095 = vld [vmem:[#allocation13 + $0x186c] sm:$0xff]
    %v5096 = vld [vmem:[#allocation13 + $0x1874] sm:$0xff]
    %v5097 = vld [vmem:[#allocation13 + $0x187c] sm:$0xf]
    %v5098 = vld [vmem:[#allocation13 + $0x1880] sm:$0xff]
    %v5099 = vld [vmem:[#allocation13 + $0x1888] sm:$0xff]
    %v5100 = vld [vmem:[#allocation13 + $0x1890] sm:$0xff]
    %v5101 = vld [vmem:[#allocation13 + $0x1898] sm:$0xf]
    %v5102 = vld [vmem:[#allocation13 + $0x189c] sm:$0xff]
    %v5103 = vld [vmem:[#allocation13 + $0x18a4] sm:$0xff]
    %v5104 = vld [vmem:[#allocation13 + $0x18ac] sm:$0xff]
    %v5105 = vld [vmem:[#allocation13 + $0x18b4] sm:$0xf]
    %v5106 = vld [vmem:[#allocation13 + $0x18b8] sm:$0xff]
    %v5107 = vld [vmem:[#allocation13 + $0x18c0] sm:$0xff]
    %v5108 = vld [vmem:[#allocation13 + $0x18c8] sm:$0xff]
    %v5109 = vld [vmem:[#allocation13 + $0x18d0] sm:$0xf]
    %v5110 = vld [vmem:[#allocation13 + $0x18d4] sm:$0xff]
    %v5111 = vld [vmem:[#allocation13 + $0x18dc] sm:$0xff]
    %v5112 = vld [vmem:[#allocation13 + $0x18e4] sm:$0xff]
    %v5113 = vld [vmem:[#allocation13 + $0x18ec] sm:$0xf]
    %v5114 = vld [vmem:[#allocation13 + $0x18f0] sm:$0xff]
    %v5115 = vld [vmem:[#allocation13 + $0x18f8] sm:$0xff]
    %v5116 = vld [vmem:[#allocation13 + $0x1900] sm:$0xff]
    %v5117 = vld [vmem:[#allocation13 + $0x1908] sm:$0xf]
    %v5118 = vld [vmem:[#allocation13 + $0x190c] sm:$0xff]
    %v5119 = vld [vmem:[#allocation13 + $0x1914] sm:$0xff]
    %v5120 = vld [vmem:[#allocation13 + $0x191c] sm:$0xff]
    %v5121 = vld [vmem:[#allocation13 + $0x1924] sm:$0xf]
    %v5122 = vld [vmem:[#allocation13 + $0x1928] sm:$0xff]
    %v5123 = vld [vmem:[#allocation13 + $0x1930] sm:$0xff]
    %v5124 = vld [vmem:[#allocation13 + $0x1938] sm:$0xff]
    %v5125 = vld [vmem:[#allocation13 + $0x1940] sm:$0xf]
    %v5126 = vld [vmem:[#allocation13 + $0x1944] sm:$0xff]
    %v5127 = vld [vmem:[#allocation13 + $0x194c] sm:$0xff]
    %v5128 = vld [vmem:[#allocation13 + $0x1954] sm:$0xff]
    %v5129 = vld [vmem:[#allocation13 + $0x195c] sm:$0xf]
    %v5130 = vld [vmem:[#allocation13 + $0x1960] sm:$0xff]
    %v5131 = vld [vmem:[#allocation13 + $0x1968] sm:$0xff]
    %v5132 = vld [vmem:[#allocation13 + $0x1970] sm:$0xff]
    %v5133 = vld [vmem:[#allocation13 + $0x1978] sm:$0xf]
    %v5134 = vld [vmem:[#allocation13 + $0x197c] sm:$0xff]
    %v5135 = vld [vmem:[#allocation13 + $0x1984] sm:$0xff]
    %v5136 = vld [vmem:[#allocation13 + $0x198c] sm:$0xff]
    %v5137 = vld [vmem:[#allocation13 + $0x1994] sm:$0xf]
    %v5138 = vld [vmem:[#allocation13 + $0x1998] sm:$0xff]
    %v5139 = vld [vmem:[#allocation13 + $0x19a0] sm:$0xff]
    %v5140 = vld [vmem:[#allocation13 + $0x19a8] sm:$0xff]
    %v5141 = vld [vmem:[#allocation13 + $0x19b0] sm:$0xf]
    %v5142 = vld [vmem:[#allocation13 + $0x19b4] sm:$0xff]
    %v5143 = vld [vmem:[#allocation13 + $0x19bc] sm:$0xff]
    %v5144 = vld [vmem:[#allocation13 + $0x19c4] sm:$0xff]
    %v5145 = vld [vmem:[#allocation13 + $0x19cc] sm:$0xf]
    %v5146 = vld [vmem:[#allocation13 + $0x19d0] sm:$0xff]
    %v5147 = vld [vmem:[#allocation13 + $0x19d8] sm:$0xff]
    %v5148 = vld [vmem:[#allocation13 + $0x19e0] sm:$0xff]
    %v5149 = vld [vmem:[#allocation13 + $0x19e8] sm:$0xf]
    %v5150 = vld [vmem:[#allocation13 + $0x19ec] sm:$0xff]
    %v5151 = vld [vmem:[#allocation13 + $0x19f4] sm:$0xff]
    %v5152 = vld [vmem:[#allocation13 + $0x19fc] sm:$0xff]
    %v5153 = vld [vmem:[#allocation13 + $0x1a04] sm:$0xf]
    %v5154 = vld [vmem:[#allocation13 + $0x1a08] sm:$0xff]
    %v5155 = vld [vmem:[#allocation13 + $0x1a10] sm:$0xff]
    %v5156 = vld [vmem:[#allocation13 + $0x1a18] sm:$0xff]
    %v5157 = vld [vmem:[#allocation13 + $0x1a20] sm:$0xf]
    %v5158 = vld [vmem:[#allocation13 + $0x1a24] sm:$0xff]
    %v5159 = vld [vmem:[#allocation13 + $0x1a2c] sm:$0xff]
    %v5160 = vld [vmem:[#allocation13 + $0x1a34] sm:$0xff]
    %v5161 = vld [vmem:[#allocation13 + $0x1a3c] sm:$0xf]
    %v5162 = vld [vmem:[#allocation15] sm:$0xff]
    %v5164 = vperm.slane %v5162, 0
    %v5165 = vperm.slane %v5162, 1
    %v5166 = vperm.slane %v5162, 2
    %v5167 = vperm.slane %v5162, 3
    %v5168 = vperm.slane %v5162, 4
    %v5169 = vperm.slane %v5162, 5
    %v5170 = vperm.slane %v5162, 6
    %v6138 = vunpack.c.l.b16 %v4202
    %v6139 = vunpack.c.h.b16 %v4202
    %v6140 = vunpack.c.l.b16 %v4203
    %v6141 = vunpack.c.h.b16 %v4203
    %v6142 = vunpack.c.l.b16 %v4204
    %v6143 = vunpack.c.h.b16 %v4204
    %v6144 = vunpack.c.l.b16 %v4205
    %v6145 = vunpack.c.l.b16 %v4206
    %v6146 = vunpack.c.h.b16 %v4206
    %v6147 = vunpack.c.l.b16 %v4207
    %v6148 = vunpack.c.h.b16 %v4207
    %v6149 = vunpack.c.l.b16 %v4208
    %v6150 = vunpack.c.h.b16 %v4208
    %v6151 = vunpack.c.l.b16 %v4209
    %v6152 = vunpack.c.l.b16 %v4210
    %v6153 = vunpack.c.h.b16 %v4210
    %v6154 = vunpack.c.l.b16 %v4211
    %v6155 = vunpack.c.h.b16 %v4211
    %v6156 = vunpack.c.l.b16 %v4212
    %v6157 = vunpack.c.h.b16 %v4212
    %v6158 = vunpack.c.l.b16 %v4213
    %v6159 = vunpack.c.l.b16 %v4214
    %v6160 = vunpack.c.h.b16 %v4214
    %v6161 = vunpack.c.l.b16 %v4215
    %v6162 = vunpack.c.h.b16 %v4215
    %v6163 = vunpack.c.l.b16 %v4216
    %v6164 = vunpack.c.h.b16 %v4216
    %v6165 = vunpack.c.l.b16 %v4217
    %v6166 = vunpack.c.l.b16 %v4218
    %v6167 = vunpack.c.h.b16 %v4218
    %v6168 = vunpack.c.l.b16 %v4219
    %v6169 = vunpack.c.h.b16 %v4219
    %v6170 = vunpack.c.l.b16 %v4220
    %v6171 = vunpack.c.h.b16 %v4220
    %v6172 = vunpack.c.l.b16 %v4221
    %v6173 = vunpack.c.l.b16 %v4222
    %v6174 = vunpack.c.h.b16 %v4222
    %v6175 = vunpack.c.l.b16 %v4223
    %v6176 = vunpack.c.h.b16 %v4223
    %v6177 = vunpack.c.l.b16 %v4224
    %v6178 = vunpack.c.h.b16 %v4224
    %v6179 = vunpack.c.l.b16 %v4225
    %v6180 = vunpack.c.l.b16 %v4226
    %v6181 = vunpack.c.h.b16 %v4226
    %v6182 = vunpack.c.l.b16 %v4227
    %v6183 = vunpack.c.h.b16 %v4227
    %v6184 = vunpack.c.l.b16 %v4228
    %v6185 = vunpack.c.h.b16 %v4228
    %v6186 = vunpack.c.l.b16 %v4229
    %v6187 = vunpack.c.l.b16 %v4230
    %v6188 = vunpack.c.h.b16 %v4230
    %v6189 = vunpack.c.l.b16 %v4231
    %v6190 = vunpack.c.h.b16 %v4231
    %v6191 = vunpack.c.l.b16 %v4232
    %v6192 = vunpack.c.h.b16 %v4232
    %v6193 = vunpack.c.l.b16 %v4233
    %v6194 = vunpack.c.l.b16 %v4234
    %v6195 = vunpack.c.h.b16 %v4234
    %v6196 = vunpack.c.l.b16 %v4235
    %v6197 = vunpack.c.h.b16 %v4235
    %v6198 = vunpack.c.l.b16 %v4236
    %v6199 = vunpack.c.h.b16 %v4236
    %v6200 = vunpack.c.l.b16 %v4237
    %v6201 = vunpack.c.l.b16 %v4238
    %v6202 = vunpack.c.h.b16 %v4238
    %v6203 = vunpack.c.l.b16 %v4239
    %v6204 = vunpack.c.h.b16 %v4239
    %v6205 = vunpack.c.l.b16 %v4240
    %v6206 = vunpack.c.h.b16 %v4240
    %v6207 = vunpack.c.l.b16 %v4241
    %v6208 = vunpack.c.l.b16 %v4242
    %v6209 = vunpack.c.h.b16 %v4242
    %v6210 = vunpack.c.l.b16 %v4243
    %v6211 = vunpack.c.h.b16 %v4243
    %v6212 = vunpack.c.l.b16 %v4244
    %v6213 = vunpack.c.h.b16 %v4244
    %v6214 = vunpack.c.l.b16 %v4245
    %v6215 = vunpack.c.l.b16 %v4246
    %v6216 = vunpack.c.h.b16 %v4246
    %v6217 = vunpack.c.l.b16 %v4247
    %v6218 = vunpack.c.h.b16 %v4247
    %v6219 = vunpack.c.l.b16 %v4248
    %v6220 = vunpack.c.h.b16 %v4248
    %v6221 = vunpack.c.l.b16 %v4249
    %v6222 = vunpack.c.l.b16 %v4250
    %v6223 = vunpack.c.h.b16 %v4250
    %v6224 = vunpack.c.l.b16 %v4251
    %v6225 = vunpack.c.h.b16 %v4251
    %v6226 = vunpack.c.l.b16 %v4252
    %v6227 = vunpack.c.h.b16 %v4252
    %v6228 = vunpack.c.l.b16 %v4253
    %v6229 = vunpack.c.l.b16 %v4254
    %v6230 = vunpack.c.h.b16 %v4254
    %v6231 = vunpack.c.l.b16 %v4255
    %v6232 = vunpack.c.h.b16 %v4255
    %v6233 = vunpack.c.l.b16 %v4256
    %v6234 = vunpack.c.h.b16 %v4256
    %v6235 = vunpack.c.l.b16 %v4257
    %v6236 = vunpack.c.l.b16 %v4258
    %v6237 = vunpack.c.h.b16 %v4258
    %v6238 = vunpack.c.l.b16 %v4259
    %v6239 = vunpack.c.h.b16 %v4259
    %v6240 = vunpack.c.l.b16 %v4260
    %v6241 = vunpack.c.h.b16 %v4260
    %v6242 = vunpack.c.l.b16 %v4261
    %v6243 = vunpack.c.l.b16 %v4262
    %v6244 = vunpack.c.h.b16 %v4262
    %v6245 = vunpack.c.l.b16 %v4263
    %v6246 = vunpack.c.h.b16 %v4263
    %v6247 = vunpack.c.l.b16 %v4264
    %v6248 = vunpack.c.h.b16 %v4264
    %v6249 = vunpack.c.l.b16 %v4265
    %v6250 = vunpack.c.l.b16 %v4266
    %v6251 = vunpack.c.h.b16 %v4266
    %v6252 = vunpack.c.l.b16 %v4267
    %v6253 = vunpack.c.h.b16 %v4267
    %v6254 = vunpack.c.l.b16 %v4268
    %v6255 = vunpack.c.h.b16 %v4268
    %v6256 = vunpack.c.l.b16 %v4269
    %v6257 = vunpack.c.l.b16 %v4270
    %v6258 = vunpack.c.h.b16 %v4270
    %v6259 = vunpack.c.l.b16 %v4271
    %v6260 = vunpack.c.h.b16 %v4271
    %v6261 = vunpack.c.l.b16 %v4272
    %v6262 = vunpack.c.h.b16 %v4272
    %v6263 = vunpack.c.l.b16 %v4273
    %v6264 = vunpack.c.l.b16 %v4274
    %v6265 = vunpack.c.h.b16 %v4274
    %v6266 = vunpack.c.l.b16 %v4275
    %v6267 = vunpack.c.h.b16 %v4275
    %v6268 = vunpack.c.l.b16 %v4276
    %v6269 = vunpack.c.h.b16 %v4276
    %v6270 = vunpack.c.l.b16 %v4277
    %v6271 = vunpack.c.l.b16 %v4278
    %v6272 = vunpack.c.h.b16 %v4278
    %v6273 = vunpack.c.l.b16 %v4279
    %v6274 = vunpack.c.h.b16 %v4279
    %v6275 = vunpack.c.l.b16 %v4280
    %v6276 = vunpack.c.h.b16 %v4280
    %v6277 = vunpack.c.l.b16 %v4281
    %v6278 = vunpack.c.l.b16 %v4282
    %v6279 = vunpack.c.h.b16 %v4282
    %v6280 = vunpack.c.l.b16 %v4283
    %v6281 = vunpack.c.h.b16 %v4283
    %v6282 = vunpack.c.l.b16 %v4284
    %v6283 = vunpack.c.h.b16 %v4284
    %v6284 = vunpack.c.l.b16 %v4285
    %v6285 = vunpack.c.l.b16 %v4286
    %v6286 = vunpack.c.h.b16 %v4286
    %v6287 = vunpack.c.l.b16 %v4287
    %v6288 = vunpack.c.h.b16 %v4287
    %v6289 = vunpack.c.l.b16 %v4288
    %v6290 = vunpack.c.h.b16 %v4288
    %v6291 = vunpack.c.l.b16 %v4289
    %v6292 = vunpack.c.l.b16 %v4290
    %v6293 = vunpack.c.h.b16 %v4290
    %v6294 = vunpack.c.l.b16 %v4291
    %v6295 = vunpack.c.h.b16 %v4291
    %v6296 = vunpack.c.l.b16 %v4292
    %v6297 = vunpack.c.h.b16 %v4292
    %v6298 = vunpack.c.l.b16 %v4293
    %v6299 = vunpack.c.l.b16 %v4294
    %v6300 = vunpack.c.h.b16 %v4294
    %v6301 = vunpack.c.l.b16 %v4295
    %v6302 = vunpack.c.h.b16 %v4295
    %v6303 = vunpack.c.l.b16 %v4296
    %v6304 = vunpack.c.h.b16 %v4296
    %v6305 = vunpack.c.l.b16 %v4297
    %v6306 = vunpack.c.l.b16 %v4298
    %v6307 = vunpack.c.h.b16 %v4298
    %v6308 = vunpack.c.l.b16 %v4299
    %v6309 = vunpack.c.h.b16 %v4299
    %v6310 = vunpack.c.l.b16 %v4300
    %v6311 = vunpack.c.h.b16 %v4300
    %v6312 = vunpack.c.l.b16 %v4301
    %v6313 = vunpack.c.l.b16 %v4302
    %v6314 = vunpack.c.h.b16 %v4302
    %v6315 = vunpack.c.l.b16 %v4303
    %v6316 = vunpack.c.h.b16 %v4303
    %v6317 = vunpack.c.l.b16 %v4304
    %v6318 = vunpack.c.h.b16 %v4304
    %v6319 = vunpack.c.l.b16 %v4305
    %v6320 = vunpack.c.l.b16 %v4306
    %v6321 = vunpack.c.h.b16 %v4306
    %v6322 = vunpack.c.l.b16 %v4307
    %v6323 = vunpack.c.h.b16 %v4307
    %v6324 = vunpack.c.l.b16 %v4308
    %v6325 = vunpack.c.h.b16 %v4308
    %v6326 = vunpack.c.l.b16 %v4309
    %v6327 = vunpack.c.l.b16 %v4310
    %v6328 = vunpack.c.h.b16 %v4310
    %v6329 = vunpack.c.l.b16 %v4311
    %v6330 = vunpack.c.h.b16 %v4311
    %v6331 = vunpack.c.l.b16 %v4312
    %v6332 = vunpack.c.h.b16 %v4312
    %v6333 = vunpack.c.l.b16 %v4313
    %v6334 = vunpack.c.l.b16 %v4314
    %v6335 = vunpack.c.h.b16 %v4314
    %v6336 = vunpack.c.l.b16 %v4315
    %v6337 = vunpack.c.h.b16 %v4315
    %v6338 = vunpack.c.l.b16 %v4316
    %v6339 = vunpack.c.h.b16 %v4316
    %v6340 = vunpack.c.l.b16 %v4317
    %v6341 = vunpack.c.l.b16 %v4318
    %v6342 = vunpack.c.h.b16 %v4318
    %v6343 = vunpack.c.l.b16 %v4319
    %v6344 = vunpack.c.h.b16 %v4319
    %v6345 = vunpack.c.l.b16 %v4320
    %v6346 = vunpack.c.h.b16 %v4320
    %v6347 = vunpack.c.l.b16 %v4321
    %v6348 = vunpack.c.l.b16 %v4322
    %v6349 = vunpack.c.h.b16 %v4322
    %v6350 = vunpack.c.l.b16 %v4323
    %v6351 = vunpack.c.h.b16 %v4323
    %v6352 = vunpack.c.l.b16 %v4324
    %v6353 = vunpack.c.h.b16 %v4324
    %v6354 = vunpack.c.l.b16 %v4325
    %v6355 = vunpack.c.l.b16 %v4326
    %v6356 = vunpack.c.h.b16 %v4326
    %v6357 = vunpack.c.l.b16 %v4327
    %v6358 = vunpack.c.h.b16 %v4327
    %v6359 = vunpack.c.l.b16 %v4328
    %v6360 = vunpack.c.h.b16 %v4328
    %v6361 = vunpack.c.l.b16 %v4329
    %v6362 = vunpack.c.l.b16 %v4330
    %v6363 = vunpack.c.h.b16 %v4330
    %v6364 = vunpack.c.l.b16 %v4331
    %v6365 = vunpack.c.h.b16 %v4331
    %v6366 = vunpack.c.l.b16 %v4332
    %v6367 = vunpack.c.h.b16 %v4332
    %v6368 = vunpack.c.l.b16 %v4333
    %v6369 = vunpack.c.l.b16 %v4334
    %v6370 = vunpack.c.h.b16 %v4334
    %v6371 = vunpack.c.l.b16 %v4335
    %v6372 = vunpack.c.h.b16 %v4335
    %v6373 = vunpack.c.l.b16 %v4336
    %v6374 = vunpack.c.h.b16 %v4336
    %v6375 = vunpack.c.l.b16 %v4337
    %v6376 = vunpack.c.l.b16 %v4338
    %v6377 = vunpack.c.h.b16 %v4338
    %v6378 = vunpack.c.l.b16 %v4339
    %v6379 = vunpack.c.h.b16 %v4339
    %v6380 = vunpack.c.l.b16 %v4340
    %v6381 = vunpack.c.h.b16 %v4340
    %v6382 = vunpack.c.l.b16 %v4341
    %v6383 = vunpack.c.l.b16 %v4342
    %v6384 = vunpack.c.h.b16 %v4342
    %v6385 = vunpack.c.l.b16 %v4343
    %v6386 = vunpack.c.h.b16 %v4343
    %v6387 = vunpack.c.l.b16 %v4344
    %v6388 = vunpack.c.h.b16 %v4344
    %v6389 = vunpack.c.l.b16 %v4345
    %v6390 = vunpack.c.l.b16 %v4346
    %v6391 = vunpack.c.h.b16 %v4346
    %v6392 = vunpack.c.l.b16 %v4347
    %v6393 = vunpack.c.h.b16 %v4347
    %v6394 = vunpack.c.l.b16 %v4348
    %v6395 = vunpack.c.h.b16 %v4348
    %v6396 = vunpack.c.l.b16 %v4349
    %v6397 = vunpack.c.l.b16 %v4350
    %v6398 = vunpack.c.h.b16 %v4350
    %v6399 = vunpack.c.l.b16 %v4351
    %v6400 = vunpack.c.h.b16 %v4351
    %v6401 = vunpack.c.l.b16 %v4352
    %v6402 = vunpack.c.h.b16 %v4352
    %v6403 = vunpack.c.l.b16 %v4353
    %v6404 = vunpack.c.l.b16 %v4354
    %v6405 = vunpack.c.h.b16 %v4354
    %v6406 = vunpack.c.l.b16 %v4355
    %v6407 = vunpack.c.h.b16 %v4355
    %v6408 = vunpack.c.l.b16 %v4356
    %v6409 = vunpack.c.h.b16 %v4356
    %v6410 = vunpack.c.l.b16 %v4357
    %v6411 = vunpack.c.l.b16 %v4358
    %v6412 = vunpack.c.h.b16 %v4358
    %v6413 = vunpack.c.l.b16 %v4359
    %v6414 = vunpack.c.h.b16 %v4359
    %v6415 = vunpack.c.l.b16 %v4360
    %v6416 = vunpack.c.h.b16 %v4360
    %v6417 = vunpack.c.l.b16 %v4361
    %v6418 = vunpack.c.l.b16 %v4362
    %v6419 = vunpack.c.h.b16 %v4362
    %v6420 = vunpack.c.l.b16 %v4363
    %v6421 = vunpack.c.h.b16 %v4363
    %v6422 = vunpack.c.l.b16 %v4364
    %v6423 = vunpack.c.h.b16 %v4364
    %v6424 = vunpack.c.l.b16 %v4365
    %v6425 = vunpack.c.l.b16 %v4366
    %v6426 = vunpack.c.h.b16 %v4366
    %v6427 = vunpack.c.l.b16 %v4367
    %v6428 = vunpack.c.h.b16 %v4367
    %v6429 = vunpack.c.l.b16 %v4368
    %v6430 = vunpack.c.h.b16 %v4368
    %v6431 = vunpack.c.l.b16 %v4369
    %v6432 = vunpack.c.l.b16 %v4370
    %v6433 = vunpack.c.h.b16 %v4370
    %v6434 = vunpack.c.l.b16 %v4371
    %v6435 = vunpack.c.h.b16 %v4371
    %v6436 = vunpack.c.l.b16 %v4372
    %v6437 = vunpack.c.h.b16 %v4372
    %v6438 = vunpack.c.l.b16 %v4373
    %v6439 = vunpack.c.l.b16 %v4374
    %v6440 = vunpack.c.h.b16 %v4374
    %v6441 = vunpack.c.l.b16 %v4375
    %v6442 = vunpack.c.h.b16 %v4375
    %v6443 = vunpack.c.l.b16 %v4376
    %v6444 = vunpack.c.h.b16 %v4376
    %v6445 = vunpack.c.l.b16 %v4377
    %v6446 = vunpack.c.l.b16 %v4378
    %v6447 = vunpack.c.h.b16 %v4378
    %v6448 = vunpack.c.l.b16 %v4379
    %v6449 = vunpack.c.h.b16 %v4379
    %v6450 = vunpack.c.l.b16 %v4380
    %v6451 = vunpack.c.h.b16 %v4380
    %v6452 = vunpack.c.l.b16 %v4381
    %v6453 = vunpack.c.l.b16 %v4382
    %v6454 = vunpack.c.h.b16 %v4382
    %v6455 = vunpack.c.l.b16 %v4383
    %v6456 = vunpack.c.h.b16 %v4383
    %v6457 = vunpack.c.l.b16 %v4384
    %v6458 = vunpack.c.h.b16 %v4384
    %v6459 = vunpack.c.l.b16 %v4385
    %v6460 = vunpack.c.l.b16 %v4386
    %v6461 = vunpack.c.h.b16 %v4386
    %v6462 = vunpack.c.l.b16 %v4387
    %v6463 = vunpack.c.h.b16 %v4387
    %v6464 = vunpack.c.l.b16 %v4388
    %v6465 = vunpack.c.h.b16 %v4388
    %v6466 = vunpack.c.l.b16 %v4389
    %v6467 = vunpack.c.l.b16 %v4390
    %v6468 = vunpack.c.h.b16 %v4390
    %v6469 = vunpack.c.l.b16 %v4391
    %v6470 = vunpack.c.h.b16 %v4391
    %v6471 = vunpack.c.l.b16 %v4392
    %v6472 = vunpack.c.h.b16 %v4392
    %v6473 = vunpack.c.l.b16 %v4393
    %v6474 = vunpack.c.l.b16 %v4394
    %v6475 = vunpack.c.h.b16 %v4394
    %v6476 = vunpack.c.l.b16 %v4395
    %v6477 = vunpack.c.h.b16 %v4395
    %v6478 = vunpack.c.l.b16 %v4396
    %v6479 = vunpack.c.h.b16 %v4396
    %v6480 = vunpack.c.l.b16 %v4397
    %v6481 = vunpack.c.l.b16 %v4398
    %v6482 = vunpack.c.h.b16 %v4398
    %v6483 = vunpack.c.l.b16 %v4399
    %v6484 = vunpack.c.h.b16 %v4399
    %v6485 = vunpack.c.l.b16 %v4400
    %v6486 = vunpack.c.h.b16 %v4400
    %v6487 = vunpack.c.l.b16 %v4401
    %v6488 = vunpack.c.l.b16 %v4402
    %v6489 = vunpack.c.h.b16 %v4402
    %v6490 = vunpack.c.l.b16 %v4403
    %v6491 = vunpack.c.h.b16 %v4403
    %v6492 = vunpack.c.l.b16 %v4404
    %v6493 = vunpack.c.h.b16 %v4404
    %v6494 = vunpack.c.l.b16 %v4405
    %v6495 = vunpack.c.l.b16 %v4406
    %v6496 = vunpack.c.h.b16 %v4406
    %v6497 = vunpack.c.l.b16 %v4407
    %v6498 = vunpack.c.h.b16 %v4407
    %v6499 = vunpack.c.l.b16 %v4408
    %v6500 = vunpack.c.h.b16 %v4408
    %v6501 = vunpack.c.l.b16 %v4409
    %v6502 = vunpack.c.l.b16 %v4410
    %v6503 = vunpack.c.h.b16 %v4410
    %v6504 = vunpack.c.l.b16 %v4411
    %v6505 = vunpack.c.h.b16 %v4411
    %v6506 = vunpack.c.l.b16 %v4412
    %v6507 = vunpack.c.h.b16 %v4412
    %v6508 = vunpack.c.l.b16 %v4413
    %v6509 = vunpack.c.l.b16 %v4414
    %v6510 = vunpack.c.h.b16 %v4414
    %v6511 = vunpack.c.l.b16 %v4415
    %v6512 = vunpack.c.h.b16 %v4415
    %v6513 = vunpack.c.l.b16 %v4416
    %v6514 = vunpack.c.h.b16 %v4416
    %v6515 = vunpack.c.l.b16 %v4417
    %v6516 = vunpack.c.l.b16 %v4418
    %v6517 = vunpack.c.h.b16 %v4418
    %v6518 = vunpack.c.l.b16 %v4419
    %v6519 = vunpack.c.h.b16 %v4419
    %v6520 = vunpack.c.l.b16 %v4420
    %v6521 = vunpack.c.h.b16 %v4420
    %v6522 = vunpack.c.l.b16 %v4421
    %v6523 = vunpack.c.l.b16 %v4422
    %v6524 = vunpack.c.h.b16 %v4422
    %v6525 = vunpack.c.l.b16 %v4423
    %v6526 = vunpack.c.h.b16 %v4423
    %v6527 = vunpack.c.l.b16 %v4424
    %v6528 = vunpack.c.h.b16 %v4424
    %v6529 = vunpack.c.l.b16 %v4425
    %v6530 = vunpack.c.l.b16 %v4426
    %v6531 = vunpack.c.h.b16 %v4426
    %v6532 = vunpack.c.l.b16 %v4427
    %v6533 = vunpack.c.h.b16 %v4427
    %v6534 = vunpack.c.l.b16 %v4428
    %v6535 = vunpack.c.h.b16 %v4428
    %v6536 = vunpack.c.l.b16 %v4429
    %v6537 = vunpack.c.l.b16 %v4430
    %v6538 = vunpack.c.h.b16 %v4430
    %v6539 = vunpack.c.l.b16 %v4431
    %v6540 = vunpack.c.h.b16 %v4431
    %v6541 = vunpack.c.l.b16 %v4432
    %v6542 = vunpack.c.h.b16 %v4432
    %v6543 = vunpack.c.l.b16 %v4433
    %v6544 = vunpack.c.l.b16 %v4434
    %v6545 = vunpack.c.h.b16 %v4434
    %v6546 = vunpack.c.l.b16 %v4435
    %v6547 = vunpack.c.h.b16 %v4435
    %v6548 = vunpack.c.l.b16 %v4436
    %v6549 = vunpack.c.h.b16 %v4436
    %v6550 = vunpack.c.l.b16 %v4437
    %v6551 = vunpack.c.l.b16 %v4438
    %v6552 = vunpack.c.h.b16 %v4438
    %v6553 = vunpack.c.l.b16 %v4439
    %v6554 = vunpack.c.h.b16 %v4439
    %v6555 = vunpack.c.l.b16 %v4440
    %v6556 = vunpack.c.h.b16 %v4440
    %v6557 = vunpack.c.l.b16 %v4441
    %v6558 = vunpack.c.l.b16 %v4442
    %v6559 = vunpack.c.h.b16 %v4442
    %v6560 = vunpack.c.l.b16 %v4443
    %v6561 = vunpack.c.h.b16 %v4443
    %v6562 = vunpack.c.l.b16 %v4444
    %v6563 = vunpack.c.h.b16 %v4444
    %v6564 = vunpack.c.l.b16 %v4445
    %v6565 = vunpack.c.l.b16 %v4446
    %v6566 = vunpack.c.h.b16 %v4446
    %v6567 = vunpack.c.l.b16 %v4447
    %v6568 = vunpack.c.h.b16 %v4447
    %v6569 = vunpack.c.l.b16 %v4448
    %v6570 = vunpack.c.h.b16 %v4448
    %v6571 = vunpack.c.l.b16 %v4449
    %v6572 = vunpack.c.l.b16 %v4450
    %v6573 = vunpack.c.h.b16 %v4450
    %v6574 = vunpack.c.l.b16 %v4451
    %v6575 = vunpack.c.h.b16 %v4451
    %v6576 = vunpack.c.l.b16 %v4452
    %v6577 = vunpack.c.h.b16 %v4452
    %v6578 = vunpack.c.l.b16 %v4453
    %v6579 = vunpack.c.l.b16 %v4454
    %v6580 = vunpack.c.h.b16 %v4454
    %v6581 = vunpack.c.l.b16 %v4455
    %v6582 = vunpack.c.h.b16 %v4455
    %v6583 = vunpack.c.l.b16 %v4456
    %v6584 = vunpack.c.h.b16 %v4456
    %v6585 = vunpack.c.l.b16 %v4457
    %v6586 = vunpack.c.l.b16 %v4458
    %v6587 = vunpack.c.h.b16 %v4458
    %v6588 = vunpack.c.l.b16 %v4459
    %v6589 = vunpack.c.h.b16 %v4459
    %v6590 = vunpack.c.l.b16 %v4460
    %v6591 = vunpack.c.h.b16 %v4460
    %v6592 = vunpack.c.l.b16 %v4461
    %v6593 = vunpack.c.l.b16 %v4462
    %v6594 = vunpack.c.h.b16 %v4462
    %v6595 = vunpack.c.l.b16 %v4463
    %v6596 = vunpack.c.h.b16 %v4463
    %v6597 = vunpack.c.l.b16 %v4464
    %v6598 = vunpack.c.h.b16 %v4464
    %v6599 = vunpack.c.l.b16 %v4465
    %v6600 = vunpack.c.l.b16 %v4466
    %v6601 = vunpack.c.h.b16 %v4466
    %v6602 = vunpack.c.l.b16 %v4467
    %v6603 = vunpack.c.h.b16 %v4467
    %v6604 = vunpack.c.l.b16 %v4468
    %v6605 = vunpack.c.h.b16 %v4468
    %v6606 = vunpack.c.l.b16 %v4469
    %v6607 = vunpack.c.l.b16 %v4470
    %v6608 = vunpack.c.h.b16 %v4470
    %v6609 = vunpack.c.l.b16 %v4471
    %v6610 = vunpack.c.h.b16 %v4471
    %v6611 = vunpack.c.l.b16 %v4472
    %v6612 = vunpack.c.h.b16 %v4472
    %v6613 = vunpack.c.l.b16 %v4473
    %v6614 = vunpack.c.l.b16 %v4474
    %v6615 = vunpack.c.h.b16 %v4474
    %v6616 = vunpack.c.l.b16 %v4475
    %v6617 = vunpack.c.h.b16 %v4475
    %v6618 = vunpack.c.l.b16 %v4476
    %v6619 = vunpack.c.h.b16 %v4476
    %v6620 = vunpack.c.l.b16 %v4477
    %v6621 = vunpack.c.l.b16 %v4478
    %v6622 = vunpack.c.h.b16 %v4478
    %v6623 = vunpack.c.l.b16 %v4479
    %v6624 = vunpack.c.h.b16 %v4479
    %v6625 = vunpack.c.l.b16 %v4480
    %v6626 = vunpack.c.h.b16 %v4480
    %v6627 = vunpack.c.l.b16 %v4481
    %v6628 = vunpack.c.l.b16 %v4482
    %v6629 = vunpack.c.h.b16 %v4482
    %v6630 = vunpack.c.l.b16 %v4483
    %v6631 = vunpack.c.h.b16 %v4483
    %v6632 = vunpack.c.l.b16 %v4484
    %v6633 = vunpack.c.h.b16 %v4484
    %v6634 = vunpack.c.l.b16 %v4485
    %v6635 = vunpack.c.l.b16 %v4486
    %v6636 = vunpack.c.h.b16 %v4486
    %v6637 = vunpack.c.l.b16 %v4487
    %v6638 = vunpack.c.h.b16 %v4487
    %v6639 = vunpack.c.l.b16 %v4488
    %v6640 = vunpack.c.h.b16 %v4488
    %v6641 = vunpack.c.l.b16 %v4489
    %v6642 = vunpack.c.l.b16 %v4490
    %v6643 = vunpack.c.h.b16 %v4490
    %v6644 = vunpack.c.l.b16 %v4491
    %v6645 = vunpack.c.h.b16 %v4491
    %v6646 = vunpack.c.l.b16 %v4492
    %v6647 = vunpack.c.h.b16 %v4492
    %v6648 = vunpack.c.l.b16 %v4493
    %v6649 = vunpack.c.l.b16 %v4494
    %v6650 = vunpack.c.h.b16 %v4494
    %v6651 = vunpack.c.l.b16 %v4495
    %v6652 = vunpack.c.h.b16 %v4495
    %v6653 = vunpack.c.l.b16 %v4496
    %v6654 = vunpack.c.h.b16 %v4496
    %v6655 = vunpack.c.l.b16 %v4497
    %v6656 = vunpack.c.l.b16 %v4498
    %v6657 = vunpack.c.h.b16 %v4498
    %v6658 = vunpack.c.l.b16 %v4499
    %v6659 = vunpack.c.h.b16 %v4499
    %v6660 = vunpack.c.l.b16 %v4500
    %v6661 = vunpack.c.h.b16 %v4500
    %v6662 = vunpack.c.l.b16 %v4501
    %v6663 = vunpack.c.l.b16 %v4502
    %v6664 = vunpack.c.h.b16 %v4502
    %v6665 = vunpack.c.l.b16 %v4503
    %v6666 = vunpack.c.h.b16 %v4503
    %v6667 = vunpack.c.l.b16 %v4504
    %v6668 = vunpack.c.h.b16 %v4504
    %v6669 = vunpack.c.l.b16 %v4505
    %v6670 = vunpack.c.l.b16 %v4506
    %v6671 = vunpack.c.h.b16 %v4506
    %v6672 = vunpack.c.l.b16 %v4507
    %v6673 = vunpack.c.h.b16 %v4507
    %v6674 = vunpack.c.l.b16 %v4508
    %v6675 = vunpack.c.h.b16 %v4508
    %v6676 = vunpack.c.l.b16 %v4509
    %v6677 = vunpack.c.l.b16 %v4510
    %v6678 = vunpack.c.h.b16 %v4510
    %v6679 = vunpack.c.l.b16 %v4511
    %v6680 = vunpack.c.h.b16 %v4511
    %v6681 = vunpack.c.l.b16 %v4512
    %v6682 = vunpack.c.h.b16 %v4512
    %v6683 = vunpack.c.l.b16 %v4513
    %v6684 = vunpack.c.l.b16 %v4514
    %v6685 = vunpack.c.h.b16 %v4514
    %v6686 = vunpack.c.l.b16 %v4515
    %v6687 = vunpack.c.h.b16 %v4515
    %v6688 = vunpack.c.l.b16 %v4516
    %v6689 = vunpack.c.h.b16 %v4516
    %v6690 = vunpack.c.l.b16 %v4517
    %v6691 = vunpack.c.l.b16 %v4518
    %v6692 = vunpack.c.h.b16 %v4518
    %v6693 = vunpack.c.l.b16 %v4519
    %v6694 = vunpack.c.h.b16 %v4519
    %v6695 = vunpack.c.l.b16 %v4520
    %v6696 = vunpack.c.h.b16 %v4520
    %v6697 = vunpack.c.l.b16 %v4521
    %v6698 = vunpack.c.l.b16 %v4522
    %v6699 = vunpack.c.h.b16 %v4522
    %v6700 = vunpack.c.l.b16 %v4523
    %v6701 = vunpack.c.h.b16 %v4523
    %v6702 = vunpack.c.l.b16 %v4524
    %v6703 = vunpack.c.h.b16 %v4524
    %v6704 = vunpack.c.l.b16 %v4525
    %v6705 = vunpack.c.l.b16 %v4526
    %v6706 = vunpack.c.h.b16 %v4526
    %v6707 = vunpack.c.l.b16 %v4527
    %v6708 = vunpack.c.h.b16 %v4527
    %v6709 = vunpack.c.l.b16 %v4528
    %v6710 = vunpack.c.h.b16 %v4528
    %v6711 = vunpack.c.l.b16 %v4529
    %v6712 = vunpack.c.l.b16 %v4530
    %v6713 = vunpack.c.h.b16 %v4530
    %v6714 = vunpack.c.l.b16 %v4531
    %v6715 = vunpack.c.h.b16 %v4531
    %v6716 = vunpack.c.l.b16 %v4532
    %v6717 = vunpack.c.h.b16 %v4532
    %v6718 = vunpack.c.l.b16 %v4533
    %v6719 = vunpack.c.l.b16 %v4534
    %v6720 = vunpack.c.h.b16 %v4534
    %v6721 = vunpack.c.l.b16 %v4535
    %v6722 = vunpack.c.h.b16 %v4535
    %v6723 = vunpack.c.l.b16 %v4536
    %v6724 = vunpack.c.h.b16 %v4536
    %v6725 = vunpack.c.l.b16 %v4537
    %v6726 = vunpack.c.l.b16 %v4538
    %v6727 = vunpack.c.h.b16 %v4538
    %v6728 = vunpack.c.l.b16 %v4539
    %v6729 = vunpack.c.h.b16 %v4539
    %v6730 = vunpack.c.l.b16 %v4540
    %v6731 = vunpack.c.h.b16 %v4540
    %v6732 = vunpack.c.l.b16 %v4541
    %v6733 = vunpack.c.l.b16 %v4542
    %v6734 = vunpack.c.h.b16 %v4542
    %v6735 = vunpack.c.l.b16 %v4543
    %v6736 = vunpack.c.h.b16 %v4543
    %v6737 = vunpack.c.l.b16 %v4544
    %v6738 = vunpack.c.h.b16 %v4544
    %v6739 = vunpack.c.l.b16 %v4545
    %v6740 = vunpack.c.l.b16 %v4546
    %v6741 = vunpack.c.h.b16 %v4546
    %v6742 = vunpack.c.l.b16 %v4547
    %v6743 = vunpack.c.h.b16 %v4547
    %v6744 = vunpack.c.l.b16 %v4548
    %v6745 = vunpack.c.h.b16 %v4548
    %v6746 = vunpack.c.l.b16 %v4549
    %v6747 = vunpack.c.l.b16 %v4550
    %v6748 = vunpack.c.h.b16 %v4550
    %v6749 = vunpack.c.l.b16 %v4551
    %v6750 = vunpack.c.h.b16 %v4551
    %v6751 = vunpack.c.l.b16 %v4552
    %v6752 = vunpack.c.h.b16 %v4552
    %v6753 = vunpack.c.l.b16 %v4553
    %v6754 = vunpack.c.l.b16 %v4554
    %v6755 = vunpack.c.h.b16 %v4554
    %v6756 = vunpack.c.l.b16 %v4555
    %v6757 = vunpack.c.h.b16 %v4555
    %v6758 = vunpack.c.l.b16 %v4556
    %v6759 = vunpack.c.h.b16 %v4556
    %v6760 = vunpack.c.l.b16 %v4557
    %v6761 = vunpack.c.l.b16 %v4558
    %v6762 = vunpack.c.h.b16 %v4558
    %v6763 = vunpack.c.l.b16 %v4559
    %v6764 = vunpack.c.h.b16 %v4559
    %v6765 = vunpack.c.l.b16 %v4560
    %v6766 = vunpack.c.h.b16 %v4560
    %v6767 = vunpack.c.l.b16 %v4561
    %v6768 = vunpack.c.l.b16 %v4562
    %v6769 = vunpack.c.h.b16 %v4562
    %v6770 = vunpack.c.l.b16 %v4563
    %v6771 = vunpack.c.h.b16 %v4563
    %v6772 = vunpack.c.l.b16 %v4564
    %v6773 = vunpack.c.h.b16 %v4564
    %v6774 = vunpack.c.l.b16 %v4565
    %v6775 = vunpack.c.l.b16 %v4566
    %v6776 = vunpack.c.h.b16 %v4566
    %v6777 = vunpack.c.l.b16 %v4567
    %v6778 = vunpack.c.h.b16 %v4567
    %v6779 = vunpack.c.l.b16 %v4568
    %v6780 = vunpack.c.h.b16 %v4568
    %v6781 = vunpack.c.l.b16 %v4569
    %v6782 = vunpack.c.l.b16 %v4570
    %v6783 = vunpack.c.h.b16 %v4570
    %v6784 = vunpack.c.l.b16 %v4571
    %v6785 = vunpack.c.h.b16 %v4571
    %v6786 = vunpack.c.l.b16 %v4572
    %v6787 = vunpack.c.h.b16 %v4572
    %v6788 = vunpack.c.l.b16 %v4573
    %v6789 = vunpack.c.l.b16 %v4574
    %v6790 = vunpack.c.h.b16 %v4574
    %v6791 = vunpack.c.l.b16 %v4575
    %v6792 = vunpack.c.h.b16 %v4575
    %v6793 = vunpack.c.l.b16 %v4576
    %v6794 = vunpack.c.h.b16 %v4576
    %v6795 = vunpack.c.l.b16 %v4577
    %v6796 = vunpack.c.l.b16 %v4578
    %v6797 = vunpack.c.h.b16 %v4578
    %v6798 = vunpack.c.l.b16 %v4579
    %v6799 = vunpack.c.h.b16 %v4579
    %v6800 = vunpack.c.l.b16 %v4580
    %v6801 = vunpack.c.h.b16 %v4580
    %v6802 = vunpack.c.l.b16 %v4581
    %v6803 = vunpack.c.l.b16 %v4582
    %v6804 = vunpack.c.h.b16 %v4582
    %v6805 = vunpack.c.l.b16 %v4583
    %v6806 = vunpack.c.h.b16 %v4583
    %v6807 = vunpack.c.l.b16 %v4584
    %v6808 = vunpack.c.h.b16 %v4584
    %v6809 = vunpack.c.l.b16 %v4585
    %v6810 = vunpack.c.l.b16 %v4586
    %v6811 = vunpack.c.h.b16 %v4586
    %v6812 = vunpack.c.l.b16 %v4587
    %v6813 = vunpack.c.h.b16 %v4587
    %v6814 = vunpack.c.l.b16 %v4588
    %v6815 = vunpack.c.h.b16 %v4588
    %v6816 = vunpack.c.l.b16 %v4589
    %v6817 = vunpack.c.l.b16 %v4590
    %v6818 = vunpack.c.h.b16 %v4590
    %v6819 = vunpack.c.l.b16 %v4591
    %v6820 = vunpack.c.h.b16 %v4591
    %v6821 = vunpack.c.l.b16 %v4592
    %v6822 = vunpack.c.h.b16 %v4592
    %v6823 = vunpack.c.l.b16 %v4593
    %v6824 = vunpack.c.l.b16 %v4594
    %v6825 = vunpack.c.h.b16 %v4594
    %v6826 = vunpack.c.l.b16 %v4595
    %v6827 = vunpack.c.h.b16 %v4595
    %v6828 = vunpack.c.l.b16 %v4596
    %v6829 = vunpack.c.h.b16 %v4596
    %v6830 = vunpack.c.l.b16 %v4597
    %v6831 = vunpack.c.l.b16 %v4598
    %v6832 = vunpack.c.h.b16 %v4598
    %v6833 = vunpack.c.l.b16 %v4599
    %v6834 = vunpack.c.h.b16 %v4599
    %v6835 = vunpack.c.l.b16 %v4600
    %v6836 = vunpack.c.h.b16 %v4600
    %v6837 = vunpack.c.l.b16 %v4601
    %v6838 = vunpack.c.l.b16 %v4602
    %v6839 = vunpack.c.h.b16 %v4602
    %v6840 = vunpack.c.l.b16 %v4603
    %v6841 = vunpack.c.h.b16 %v4603
    %v6842 = vunpack.c.l.b16 %v4604
    %v6843 = vunpack.c.h.b16 %v4604
    %v6844 = vunpack.c.l.b16 %v4605
    %v6845 = vunpack.c.l.b16 %v4606
    %v6846 = vunpack.c.h.b16 %v4606
    %v6847 = vunpack.c.l.b16 %v4607
    %v6848 = vunpack.c.h.b16 %v4607
    %v6849 = vunpack.c.l.b16 %v4608
    %v6850 = vunpack.c.h.b16 %v4608
    %v6851 = vunpack.c.l.b16 %v4609
    %v6852 = vunpack.c.l.b16 %v4610
    %v6853 = vunpack.c.h.b16 %v4610
    %v6854 = vunpack.c.l.b16 %v4611
    %v6855 = vunpack.c.h.b16 %v4611
    %v6856 = vunpack.c.l.b16 %v4612
    %v6857 = vunpack.c.h.b16 %v4612
    %v6858 = vunpack.c.l.b16 %v4613
    %v6859 = vunpack.c.l.b16 %v4614
    %v6860 = vunpack.c.h.b16 %v4614
    %v6861 = vunpack.c.l.b16 %v4615
    %v6862 = vunpack.c.h.b16 %v4615
    %v6863 = vunpack.c.l.b16 %v4616
    %v6864 = vunpack.c.h.b16 %v4616
    %v6865 = vunpack.c.l.b16 %v4617
    %v6866 = vunpack.c.l.b16 %v4618
    %v6867 = vunpack.c.h.b16 %v4618
    %v6868 = vunpack.c.l.b16 %v4619
    %v6869 = vunpack.c.h.b16 %v4619
    %v6870 = vunpack.c.l.b16 %v4620
    %v6871 = vunpack.c.h.b16 %v4620
    %v6872 = vunpack.c.l.b16 %v4621
    %v6873 = vunpack.c.l.b16 %v4622
    %v6874 = vunpack.c.h.b16 %v4622
    %v6875 = vunpack.c.l.b16 %v4623
    %v6876 = vunpack.c.h.b16 %v4623
    %v6877 = vunpack.c.l.b16 %v4624
    %v6878 = vunpack.c.h.b16 %v4624
    %v6879 = vunpack.c.l.b16 %v4625
    %v6880 = vunpack.c.l.b16 %v4626
    %v6881 = vunpack.c.h.b16 %v4626
    %v6882 = vunpack.c.l.b16 %v4627
    %v6883 = vunpack.c.h.b16 %v4627
    %v6884 = vunpack.c.l.b16 %v4628
    %v6885 = vunpack.c.h.b16 %v4628
    %v6886 = vunpack.c.l.b16 %v4629
    %v6887 = vunpack.c.l.b16 %v4630
    %v6888 = vunpack.c.h.b16 %v4630
    %v6889 = vunpack.c.l.b16 %v4631
    %v6890 = vunpack.c.h.b16 %v4631
    %v6891 = vunpack.c.l.b16 %v4632
    %v6892 = vunpack.c.h.b16 %v4632
    %v6893 = vunpack.c.l.b16 %v4633
    %v6894 = vunpack.c.l.b16 %v4634
    %v6895 = vunpack.c.h.b16 %v4634
    %v6896 = vunpack.c.l.b16 %v4635
    %v6897 = vunpack.c.h.b16 %v4635
    %v6898 = vunpack.c.l.b16 %v4636
    %v6899 = vunpack.c.h.b16 %v4636
    %v6900 = vunpack.c.l.b16 %v4637
    %v6901 = vunpack.c.l.b16 %v4638
    %v6902 = vunpack.c.h.b16 %v4638
    %v6903 = vunpack.c.l.b16 %v4639
    %v6904 = vunpack.c.h.b16 %v4639
    %v6905 = vunpack.c.l.b16 %v4640
    %v6906 = vunpack.c.h.b16 %v4640
    %v6907 = vunpack.c.l.b16 %v4641
    %v6908 = vunpack.c.l.b16 %v4642
    %v6909 = vunpack.c.h.b16 %v4642
    %v6910 = vunpack.c.l.b16 %v4643
    %v6911 = vunpack.c.h.b16 %v4643
    %v6912 = vunpack.c.l.b16 %v4644
    %v6913 = vunpack.c.h.b16 %v4644
    %v6914 = vunpack.c.l.b16 %v4645
    %v6915 = vunpack.c.l.b16 %v4646
    %v6916 = vunpack.c.h.b16 %v4646
    %v6917 = vunpack.c.l.b16 %v4647
    %v6918 = vunpack.c.h.b16 %v4647
    %v6919 = vunpack.c.l.b16 %v4648
    %v6920 = vunpack.c.h.b16 %v4648
    %v6921 = vunpack.c.l.b16 %v4649
    %v6922 = vunpack.c.l.b16 %v4650
    %v6923 = vunpack.c.h.b16 %v4650
    %v6924 = vunpack.c.l.b16 %v4651
    %v6925 = vunpack.c.h.b16 %v4651
    %v6926 = vunpack.c.l.b16 %v4652
    %v6927 = vunpack.c.h.b16 %v4652
    %v6928 = vunpack.c.l.b16 %v4653
    %v6929 = vunpack.c.l.b16 %v4654
    %v6930 = vunpack.c.h.b16 %v4654
    %v6931 = vunpack.c.l.b16 %v4655
    %v6932 = vunpack.c.h.b16 %v4655
    %v6933 = vunpack.c.l.b16 %v4656
    %v6934 = vunpack.c.h.b16 %v4656
    %v6935 = vunpack.c.l.b16 %v4657
    %v6936 = vunpack.c.l.b16 %v4658
    %v6937 = vunpack.c.h.b16 %v4658
    %v6938 = vunpack.c.l.b16 %v4659
    %v6939 = vunpack.c.h.b16 %v4659
    %v6940 = vunpack.c.l.b16 %v4660
    %v6941 = vunpack.c.h.b16 %v4660
    %v6942 = vunpack.c.l.b16 %v4661
    %v6943 = vunpack.c.l.b16 %v4662
    %v6944 = vunpack.c.h.b16 %v4662
    %v6945 = vunpack.c.l.b16 %v4663
    %v6946 = vunpack.c.h.b16 %v4663
    %v6947 = vunpack.c.l.b16 %v4664
    %v6948 = vunpack.c.h.b16 %v4664
    %v6949 = vunpack.c.l.b16 %v4665
    %v6950 = vunpack.c.l.b16 %v4666
    %v6951 = vunpack.c.h.b16 %v4666
    %v6952 = vunpack.c.l.b16 %v4667
    %v6953 = vunpack.c.h.b16 %v4667
    %v6954 = vunpack.c.l.b16 %v4668
    %v6955 = vunpack.c.h.b16 %v4668
    %v6956 = vunpack.c.l.b16 %v4669
    %v6957 = vunpack.c.l.b16 %v4670
    %v6958 = vunpack.c.h.b16 %v4670
    %v6959 = vunpack.c.l.b16 %v4671
    %v6960 = vunpack.c.h.b16 %v4671
    %v6961 = vunpack.c.l.b16 %v4672
    %v6962 = vunpack.c.h.b16 %v4672
    %v6963 = vunpack.c.l.b16 %v4673
    %v6964 = vunpack.c.l.b16 %v4674
    %v6965 = vunpack.c.h.b16 %v4674
    %v6966 = vunpack.c.l.b16 %v4675
    %v6967 = vunpack.c.h.b16 %v4675
    %v6968 = vunpack.c.l.b16 %v4676
    %v6969 = vunpack.c.h.b16 %v4676
    %v6970 = vunpack.c.l.b16 %v4677
    %v6971 = vunpack.c.l.b16 %v4678
    %v6972 = vunpack.c.h.b16 %v4678
    %v6973 = vunpack.c.l.b16 %v4679
    %v6974 = vunpack.c.h.b16 %v4679
    %v6975 = vunpack.c.l.b16 %v4680
    %v6976 = vunpack.c.h.b16 %v4680
    %v6977 = vunpack.c.l.b16 %v4681
    %v6978 = vunpack.c.l.b16 %v4682
    %v6979 = vunpack.c.h.b16 %v4682
    %v6980 = vunpack.c.l.b16 %v4683
    %v6981 = vunpack.c.h.b16 %v4683
    %v6982 = vunpack.c.l.b16 %v4684
    %v6983 = vunpack.c.h.b16 %v4684
    %v6984 = vunpack.c.l.b16 %v4685
    %v6985 = vunpack.c.l.b16 %v4686
    %v6986 = vunpack.c.h.b16 %v4686
    %v6987 = vunpack.c.l.b16 %v4687
    %v6988 = vunpack.c.h.b16 %v4687
    %v6989 = vunpack.c.l.b16 %v4688
    %v6990 = vunpack.c.h.b16 %v4688
    %v6991 = vunpack.c.l.b16 %v4689
    %v6992 = vunpack.c.l.b16 %v4690
    %v6993 = vunpack.c.h.b16 %v4690
    %v6994 = vunpack.c.l.b16 %v4691
    %v6995 = vunpack.c.h.b16 %v4691
    %v6996 = vunpack.c.l.b16 %v4692
    %v6997 = vunpack.c.h.b16 %v4692
    %v6998 = vunpack.c.l.b16 %v4693
    %v6999 = vunpack.c.l.b16 %v4694
    %v7000 = vunpack.c.h.b16 %v4694
    %v7001 = vunpack.c.l.b16 %v4695
    %v7002 = vunpack.c.h.b16 %v4695
    %v7003 = vunpack.c.l.b16 %v4696
    %v7004 = vunpack.c.h.b16 %v4696
    %v7005 = vunpack.c.l.b16 %v4697
    %v7006 = vunpack.c.l.b16 %v4698
    %v7007 = vunpack.c.h.b16 %v4698
    %v7008 = vunpack.c.l.b16 %v4699
    %v7009 = vunpack.c.h.b16 %v4699
    %v7010 = vunpack.c.l.b16 %v4700
    %v7011 = vunpack.c.h.b16 %v4700
    %v7012 = vunpack.c.l.b16 %v4701
    %v7013 = vunpack.c.l.b16 %v4702
    %v7014 = vunpack.c.h.b16 %v4702
    %v7015 = vunpack.c.l.b16 %v4703
    %v7016 = vunpack.c.h.b16 %v4703
    %v7017 = vunpack.c.l.b16 %v4704
    %v7018 = vunpack.c.h.b16 %v4704
    %v7019 = vunpack.c.l.b16 %v4705
    %v7020 = vunpack.c.l.b16 %v4706
    %v7021 = vunpack.c.h.b16 %v4706
    %v7022 = vunpack.c.l.b16 %v4707
    %v7023 = vunpack.c.h.b16 %v4707
    %v7024 = vunpack.c.l.b16 %v4708
    %v7025 = vunpack.c.h.b16 %v4708
    %v7026 = vunpack.c.l.b16 %v4709
    %v7027 = vunpack.c.l.b16 %v4710
    %v7028 = vunpack.c.h.b16 %v4710
    %v7029 = vunpack.c.l.b16 %v4711
    %v7030 = vunpack.c.h.b16 %v4711
    %v7031 = vunpack.c.l.b16 %v4712
    %v7032 = vunpack.c.h.b16 %v4712
    %v7033 = vunpack.c.l.b16 %v4713
    %v7034 = vunpack.c.l.b16 %v4714
    %v7035 = vunpack.c.h.b16 %v4714
    %v7036 = vunpack.c.l.b16 %v4715
    %v7037 = vunpack.c.h.b16 %v4715
    %v7038 = vunpack.c.l.b16 %v4716
    %v7039 = vunpack.c.h.b16 %v4716
    %v7040 = vunpack.c.l.b16 %v4717
    %v7041 = vunpack.c.l.b16 %v4718
    %v7042 = vunpack.c.h.b16 %v4718
    %v7043 = vunpack.c.l.b16 %v4719
    %v7044 = vunpack.c.h.b16 %v4719
    %v7045 = vunpack.c.l.b16 %v4720
    %v7046 = vunpack.c.h.b16 %v4720
    %v7047 = vunpack.c.l.b16 %v4721
    %v7048 = vunpack.c.l.b16 %v4722
    %v7049 = vunpack.c.h.b16 %v4722
    %v7050 = vunpack.c.l.b16 %v4723
    %v7051 = vunpack.c.h.b16 %v4723
    %v7052 = vunpack.c.l.b16 %v4724
    %v7053 = vunpack.c.h.b16 %v4724
    %v7054 = vunpack.c.l.b16 %v4725
    %v7055 = vunpack.c.l.b16 %v4726
    %v7056 = vunpack.c.h.b16 %v4726
    %v7057 = vunpack.c.l.b16 %v4727
    %v7058 = vunpack.c.h.b16 %v4727
    %v7059 = vunpack.c.l.b16 %v4728
    %v7060 = vunpack.c.h.b16 %v4728
    %v7061 = vunpack.c.l.b16 %v4729
    %v7062 = vunpack.c.l.b16 %v4730
    %v7063 = vunpack.c.h.b16 %v4730
    %v7064 = vunpack.c.l.b16 %v4731
    %v7065 = vunpack.c.h.b16 %v4731
    %v7066 = vunpack.c.l.b16 %v4732
    %v7067 = vunpack.c.h.b16 %v4732
    %v7068 = vunpack.c.l.b16 %v4733
    %v7069 = vunpack.c.l.b16 %v4734
    %v7070 = vunpack.c.h.b16 %v4734
    %v7071 = vunpack.c.l.b16 %v4735
    %v7072 = vunpack.c.h.b16 %v4735
    %v7073 = vunpack.c.l.b16 %v4736
    %v7074 = vunpack.c.h.b16 %v4736
    %v7075 = vunpack.c.l.b16 %v4737
    %v7076 = vunpack.c.l.b16 %v4738
    %v7077 = vunpack.c.h.b16 %v4738
    %v7078 = vunpack.c.l.b16 %v4739
    %v7079 = vunpack.c.h.b16 %v4739
    %v7080 = vunpack.c.l.b16 %v4740
    %v7081 = vunpack.c.h.b16 %v4740
    %v7082 = vunpack.c.l.b16 %v4741
    %v7083 = vunpack.c.l.b16 %v4742
    %v7084 = vunpack.c.h.b16 %v4742
    %v7085 = vunpack.c.l.b16 %v4743
    %v7086 = vunpack.c.h.b16 %v4743
    %v7087 = vunpack.c.l.b16 %v4744
    %v7088 = vunpack.c.h.b16 %v4744
    %v7089 = vunpack.c.l.b16 %v4745
    %v7090 = vunpack.c.l.b16 %v4746
    %v7091 = vunpack.c.h.b16 %v4746
    %v7092 = vunpack.c.l.b16 %v4747
    %v7093 = vunpack.c.h.b16 %v4747
    %v7094 = vunpack.c.l.b16 %v4748
    %v7095 = vunpack.c.h.b16 %v4748
    %v7096 = vunpack.c.l.b16 %v4749
    %v7097 = vunpack.c.l.b16 %v4750
    %v7098 = vunpack.c.h.b16 %v4750
    %v7099 = vunpack.c.l.b16 %v4751
    %v7100 = vunpack.c.h.b16 %v4751
    %v7101 = vunpack.c.l.b16 %v4752
    %v7102 = vunpack.c.h.b16 %v4752
    %v7103 = vunpack.c.l.b16 %v4753
    %v7104 = vunpack.c.l.b16 %v4754
    %v7105 = vunpack.c.h.b16 %v4754
    %v7106 = vunpack.c.l.b16 %v4755
    %v7107 = vunpack.c.h.b16 %v4755
    %v7108 = vunpack.c.l.b16 %v4756
    %v7109 = vunpack.c.h.b16 %v4756
    %v7110 = vunpack.c.l.b16 %v4757
    %v7111 = vunpack.c.l.b16 %v4758
    %v7112 = vunpack.c.h.b16 %v4758
    %v7113 = vunpack.c.l.b16 %v4759
    %v7114 = vunpack.c.h.b16 %v4759
    %v7115 = vunpack.c.l.b16 %v4760
    %v7116 = vunpack.c.h.b16 %v4760
    %v7117 = vunpack.c.l.b16 %v4761
    %v7118 = vunpack.c.l.b16 %v4762
    %v7119 = vunpack.c.h.b16 %v4762
    %v7120 = vunpack.c.l.b16 %v4763
    %v7121 = vunpack.c.h.b16 %v4763
    %v7122 = vunpack.c.l.b16 %v4764
    %v7123 = vunpack.c.h.b16 %v4764
    %v7124 = vunpack.c.l.b16 %v4765
    %v7125 = vunpack.c.l.b16 %v4766
    %v7126 = vunpack.c.h.b16 %v4766
    %v7127 = vunpack.c.l.b16 %v4767
    %v7128 = vunpack.c.h.b16 %v4767
    %v7129 = vunpack.c.l.b16 %v4768
    %v7130 = vunpack.c.h.b16 %v4768
    %v7131 = vunpack.c.l.b16 %v4769
    %v7132 = vunpack.c.l.b16 %v4770
    %v7133 = vunpack.c.h.b16 %v4770
    %v7134 = vunpack.c.l.b16 %v4771
    %v7135 = vunpack.c.h.b16 %v4771
    %v7136 = vunpack.c.l.b16 %v4772
    %v7137 = vunpack.c.h.b16 %v4772
    %v7138 = vunpack.c.l.b16 %v4773
    %v7139 = vunpack.c.l.b16 %v4774
    %v7140 = vunpack.c.h.b16 %v4774
    %v7141 = vunpack.c.l.b16 %v4775
    %v7142 = vunpack.c.h.b16 %v4775
    %v7143 = vunpack.c.l.b16 %v4776
    %v7144 = vunpack.c.h.b16 %v4776
    %v7145 = vunpack.c.l.b16 %v4777
    %v7146 = vunpack.c.l.b16 %v4778
    %v7147 = vunpack.c.h.b16 %v4778
    %v7148 = vunpack.c.l.b16 %v4779
    %v7149 = vunpack.c.h.b16 %v4779
    %v7150 = vunpack.c.l.b16 %v4780
    %v7151 = vunpack.c.h.b16 %v4780
    %v7152 = vunpack.c.l.b16 %v4781
    %v7153 = vunpack.c.l.b16 %v4782
    %v7154 = vunpack.c.h.b16 %v4782
    %v7155 = vunpack.c.l.b16 %v4783
    %v7156 = vunpack.c.h.b16 %v4783
    %v7157 = vunpack.c.l.b16 %v4784
    %v7158 = vunpack.c.h.b16 %v4784
    %v7159 = vunpack.c.l.b16 %v4785
    %v7160 = vunpack.c.l.b16 %v4786
    %v7161 = vunpack.c.h.b16 %v4786
    %v7162 = vunpack.c.l.b16 %v4787
    %v7163 = vunpack.c.h.b16 %v4787
    %v7164 = vunpack.c.l.b16 %v4788
    %v7165 = vunpack.c.h.b16 %v4788
    %v7166 = vunpack.c.l.b16 %v4789
    %v7167 = vunpack.c.l.b16 %v4790
    %v7168 = vunpack.c.h.b16 %v4790
    %v7169 = vunpack.c.l.b16 %v4791
    %v7170 = vunpack.c.h.b16 %v4791
    %v7171 = vunpack.c.l.b16 %v4792
    %v7172 = vunpack.c.h.b16 %v4792
    %v7173 = vunpack.c.l.b16 %v4793
    %v7174 = vunpack.c.l.b16 %v4794
    %v7175 = vunpack.c.h.b16 %v4794
    %v7176 = vunpack.c.l.b16 %v4795
    %v7177 = vunpack.c.h.b16 %v4795
    %v7178 = vunpack.c.l.b16 %v4796
    %v7179 = vunpack.c.h.b16 %v4796
    %v7180 = vunpack.c.l.b16 %v4797
    %v7181 = vunpack.c.l.b16 %v4798
    %v7182 = vunpack.c.h.b16 %v4798
    %v7183 = vunpack.c.l.b16 %v4799
    %v7184 = vunpack.c.h.b16 %v4799
    %v7185 = vunpack.c.l.b16 %v4800
    %v7186 = vunpack.c.h.b16 %v4800
    %v7187 = vunpack.c.l.b16 %v4801
    %v7188 = vunpack.c.l.b16 %v4802
    %v7189 = vunpack.c.h.b16 %v4802
    %v7190 = vunpack.c.l.b16 %v4803
    %v7191 = vunpack.c.h.b16 %v4803
    %v7192 = vunpack.c.l.b16 %v4804
    %v7193 = vunpack.c.h.b16 %v4804
    %v7194 = vunpack.c.l.b16 %v4805
    %v7195 = vunpack.c.l.b16 %v4806
    %v7196 = vunpack.c.h.b16 %v4806
    %v7197 = vunpack.c.l.b16 %v4807
    %v7198 = vunpack.c.h.b16 %v4807
    %v7199 = vunpack.c.l.b16 %v4808
    %v7200 = vunpack.c.h.b16 %v4808
    %v7201 = vunpack.c.l.b16 %v4809
    %v7202 = vunpack.c.l.b16 %v4810
    %v7203 = vunpack.c.h.b16 %v4810
    %v7204 = vunpack.c.l.b16 %v4811
    %v7205 = vunpack.c.h.b16 %v4811
    %v7206 = vunpack.c.l.b16 %v4812
    %v7207 = vunpack.c.h.b16 %v4812
    %v7208 = vunpack.c.l.b16 %v4813
    %v7209 = vunpack.c.l.b16 %v4814
    %v7210 = vunpack.c.h.b16 %v4814
    %v7211 = vunpack.c.l.b16 %v4815
    %v7212 = vunpack.c.h.b16 %v4815
    %v7213 = vunpack.c.l.b16 %v4816
    %v7214 = vunpack.c.h.b16 %v4816
    %v7215 = vunpack.c.l.b16 %v4817
    %v7216 = vunpack.c.l.b16 %v4818
    %v7217 = vunpack.c.h.b16 %v4818
    %v7218 = vunpack.c.l.b16 %v4819
    %v7219 = vunpack.c.h.b16 %v4819
    %v7220 = vunpack.c.l.b16 %v4820
    %v7221 = vunpack.c.h.b16 %v4820
    %v7222 = vunpack.c.l.b16 %v4821
    %v7223 = vunpack.c.l.b16 %v4822
    %v7224 = vunpack.c.h.b16 %v4822
    %v7225 = vunpack.c.l.b16 %v4823
    %v7226 = vunpack.c.h.b16 %v4823
    %v7227 = vunpack.c.l.b16 %v4824
    %v7228 = vunpack.c.h.b16 %v4824
    %v7229 = vunpack.c.l.b16 %v4825
    %v7230 = vunpack.c.l.b16 %v4826
    %v7231 = vunpack.c.h.b16 %v4826
    %v7232 = vunpack.c.l.b16 %v4827
    %v7233 = vunpack.c.h.b16 %v4827
    %v7234 = vunpack.c.l.b16 %v4828
    %v7235 = vunpack.c.h.b16 %v4828
    %v7236 = vunpack.c.l.b16 %v4829
    %v7237 = vunpack.c.l.b16 %v4830
    %v7238 = vunpack.c.h.b16 %v4830
    %v7239 = vunpack.c.l.b16 %v4831
    %v7240 = vunpack.c.h.b16 %v4831
    %v7241 = vunpack.c.l.b16 %v4832
    %v7242 = vunpack.c.h.b16 %v4832
    %v7243 = vunpack.c.l.b16 %v4833
    %v7244 = vunpack.c.l.b16 %v4834
    %v7245 = vunpack.c.h.b16 %v4834
    %v7246 = vunpack.c.l.b16 %v4835
    %v7247 = vunpack.c.h.b16 %v4835
    %v7248 = vunpack.c.l.b16 %v4836
    %v7249 = vunpack.c.h.b16 %v4836
    %v7250 = vunpack.c.l.b16 %v4837
    %v7251 = vunpack.c.l.b16 %v4838
    %v7252 = vunpack.c.h.b16 %v4838
    %v7253 = vunpack.c.l.b16 %v4839
    %v7254 = vunpack.c.h.b16 %v4839
    %v7255 = vunpack.c.l.b16 %v4840
    %v7256 = vunpack.c.h.b16 %v4840
    %v7257 = vunpack.c.l.b16 %v4841
    %v7258 = vunpack.c.l.b16 %v4842
    %v7259 = vunpack.c.h.b16 %v4842
    %v7260 = vunpack.c.l.b16 %v4843
    %v7261 = vunpack.c.h.b16 %v4843
    %v7262 = vunpack.c.l.b16 %v4844
    %v7263 = vunpack.c.h.b16 %v4844
    %v7264 = vunpack.c.l.b16 %v4845
    %v7265 = vunpack.c.l.b16 %v4846
    %v7266 = vunpack.c.h.b16 %v4846
    %v7267 = vunpack.c.l.b16 %v4847
    %v7268 = vunpack.c.h.b16 %v4847
    %v7269 = vunpack.c.l.b16 %v4848
    %v7270 = vunpack.c.h.b16 %v4848
    %v7271 = vunpack.c.l.b16 %v4849
    %v7272 = vunpack.c.l.b16 %v4850
    %v7273 = vunpack.c.h.b16 %v4850
    %v7274 = vunpack.c.l.b16 %v4851
    %v7275 = vunpack.c.h.b16 %v4851
    %v7276 = vunpack.c.l.b16 %v4852
    %v7277 = vunpack.c.h.b16 %v4852
    %v7278 = vunpack.c.l.b16 %v4853
    %v7279 = vunpack.c.l.b16 %v4854
    %v7280 = vunpack.c.h.b16 %v4854
    %v7281 = vunpack.c.l.b16 %v4855
    %v7282 = vunpack.c.h.b16 %v4855
    %v7283 = vunpack.c.l.b16 %v4856
    %v7284 = vunpack.c.h.b16 %v4856
    %v7285 = vunpack.c.l.b16 %v4857
    %v7286 = vunpack.c.l.b16 %v4858
    %v7287 = vunpack.c.h.b16 %v4858
    %v7288 = vunpack.c.l.b16 %v4859
    %v7289 = vunpack.c.h.b16 %v4859
    %v7290 = vunpack.c.l.b16 %v4860
    %v7291 = vunpack.c.h.b16 %v4860
    %v7292 = vunpack.c.l.b16 %v4861
    %v7293 = vunpack.c.l.b16 %v4862
    %v7294 = vunpack.c.h.b16 %v4862
    %v7295 = vunpack.c.l.b16 %v4863
    %v7296 = vunpack.c.h.b16 %v4863
    %v7297 = vunpack.c.l.b16 %v4864
    %v7298 = vunpack.c.h.b16 %v4864
    %v7299 = vunpack.c.l.b16 %v4865
    %v7300 = vunpack.c.l.b16 %v4866
    %v7301 = vunpack.c.h.b16 %v4866
    %v7302 = vunpack.c.l.b16 %v4867
    %v7303 = vunpack.c.h.b16 %v4867
    %v7304 = vunpack.c.l.b16 %v4868
    %v7305 = vunpack.c.h.b16 %v4868
    %v7306 = vunpack.c.l.b16 %v4869
    %v7307 = vunpack.c.l.b16 %v4870
    %v7308 = vunpack.c.h.b16 %v4870
    %v7309 = vunpack.c.l.b16 %v4871
    %v7310 = vunpack.c.h.b16 %v4871
    %v7311 = vunpack.c.l.b16 %v4872
    %v7312 = vunpack.c.h.b16 %v4872
    %v7313 = vunpack.c.l.b16 %v4873
    %v7314 = vunpack.c.l.b16 %v4874
    %v7315 = vunpack.c.h.b16 %v4874
    %v7316 = vunpack.c.l.b16 %v4875
    %v7317 = vunpack.c.h.b16 %v4875
    %v7318 = vunpack.c.l.b16 %v4876
    %v7319 = vunpack.c.h.b16 %v4876
    %v7320 = vunpack.c.l.b16 %v4877
    %v7321 = vunpack.c.l.b16 %v4878
    %v7322 = vunpack.c.h.b16 %v4878
    %v7323 = vunpack.c.l.b16 %v4879
    %v7324 = vunpack.c.h.b16 %v4879
    %v7325 = vunpack.c.l.b16 %v4880
    %v7326 = vunpack.c.h.b16 %v4880
    %v7327 = vunpack.c.l.b16 %v4881
    %v7328 = vunpack.c.l.b16 %v4882
    %v7329 = vunpack.c.h.b16 %v4882
    %v7330 = vunpack.c.l.b16 %v4883
    %v7331 = vunpack.c.h.b16 %v4883
    %v7332 = vunpack.c.l.b16 %v4884
    %v7333 = vunpack.c.h.b16 %v4884
    %v7334 = vunpack.c.l.b16 %v4885
    %v7335 = vunpack.c.l.b16 %v4886
    %v7336 = vunpack.c.h.b16 %v4886
    %v7337 = vunpack.c.l.b16 %v4887
    %v7338 = vunpack.c.h.b16 %v4887
    %v7339 = vunpack.c.l.b16 %v4888
    %v7340 = vunpack.c.h.b16 %v4888
    %v7341 = vunpack.c.l.b16 %v4889
    %v7342 = vunpack.c.l.b16 %v4890
    %v7343 = vunpack.c.h.b16 %v4890
    %v7344 = vunpack.c.l.b16 %v4891
    %v7345 = vunpack.c.h.b16 %v4891
    %v7346 = vunpack.c.l.b16 %v4892
    %v7347 = vunpack.c.h.b16 %v4892
    %v7348 = vunpack.c.l.b16 %v4893
    %v7349 = vunpack.c.l.b16 %v4894
    %v7350 = vunpack.c.h.b16 %v4894
    %v7351 = vunpack.c.l.b16 %v4895
    %v7352 = vunpack.c.h.b16 %v4895
    %v7353 = vunpack.c.l.b16 %v4896
    %v7354 = vunpack.c.h.b16 %v4896
    %v7355 = vunpack.c.l.b16 %v4897
    %v7356 = vunpack.c.l.b16 %v4898
    %v7357 = vunpack.c.h.b16 %v4898
    %v7358 = vunpack.c.l.b16 %v4899
    %v7359 = vunpack.c.h.b16 %v4899
    %v7360 = vunpack.c.l.b16 %v4900
    %v7361 = vunpack.c.h.b16 %v4900
    %v7362 = vunpack.c.l.b16 %v4901
    %v7363 = vunpack.c.l.b16 %v4902
    %v7364 = vunpack.c.h.b16 %v4902
    %v7365 = vunpack.c.l.b16 %v4903
    %v7366 = vunpack.c.h.b16 %v4903
    %v7367 = vunpack.c.l.b16 %v4904
    %v7368 = vunpack.c.h.b16 %v4904
    %v7369 = vunpack.c.l.b16 %v4905
    %v7370 = vunpack.c.l.b16 %v4906
    %v7371 = vunpack.c.h.b16 %v4906
    %v7372 = vunpack.c.l.b16 %v4907
    %v7373 = vunpack.c.h.b16 %v4907
    %v7374 = vunpack.c.l.b16 %v4908
    %v7375 = vunpack.c.h.b16 %v4908
    %v7376 = vunpack.c.l.b16 %v4909
    %v7377 = vunpack.c.l.b16 %v4910
    %v7378 = vunpack.c.h.b16 %v4910
    %v7379 = vunpack.c.l.b16 %v4911
    %v7380 = vunpack.c.h.b16 %v4911
    %v7381 = vunpack.c.l.b16 %v4912
    %v7382 = vunpack.c.h.b16 %v4912
    %v7383 = vunpack.c.l.b16 %v4913
    %v7384 = vunpack.c.l.b16 %v4914
    %v7385 = vunpack.c.h.b16 %v4914
    %v7386 = vunpack.c.l.b16 %v4915
    %v7387 = vunpack.c.h.b16 %v4915
    %v7388 = vunpack.c.l.b16 %v4916
    %v7389 = vunpack.c.h.b16 %v4916
    %v7390 = vunpack.c.l.b16 %v4917
    %v7391 = vunpack.c.l.b16 %v4918
    %v7392 = vunpack.c.h.b16 %v4918
    %v7393 = vunpack.c.l.b16 %v4919
    %v7394 = vunpack.c.h.b16 %v4919
    %v7395 = vunpack.c.l.b16 %v4920
    %v7396 = vunpack.c.h.b16 %v4920
    %v7397 = vunpack.c.l.b16 %v4921
    %v7398 = vunpack.c.l.b16 %v4922
    %v7399 = vunpack.c.h.b16 %v4922
    %v7400 = vunpack.c.l.b16 %v4923
    %v7401 = vunpack.c.h.b16 %v4923
    %v7402 = vunpack.c.l.b16 %v4924
    %v7403 = vunpack.c.h.b16 %v4924
    %v7404 = vunpack.c.l.b16 %v4925
    %v7405 = vunpack.c.l.b16 %v4926
    %v7406 = vunpack.c.h.b16 %v4926
    %v7407 = vunpack.c.l.b16 %v4927
    %v7408 = vunpack.c.h.b16 %v4927
    %v7409 = vunpack.c.l.b16 %v4928
    %v7410 = vunpack.c.h.b16 %v4928
    %v7411 = vunpack.c.l.b16 %v4929
    %v7412 = vunpack.c.l.b16 %v4930
    %v7413 = vunpack.c.h.b16 %v4930
    %v7414 = vunpack.c.l.b16 %v4931
    %v7415 = vunpack.c.h.b16 %v4931
    %v7416 = vunpack.c.l.b16 %v4932
    %v7417 = vunpack.c.h.b16 %v4932
    %v7418 = vunpack.c.l.b16 %v4933
    %v7419 = vunpack.c.l.b16 %v4934
    %v7420 = vunpack.c.h.b16 %v4934
    %v7421 = vunpack.c.l.b16 %v4935
    %v7422 = vunpack.c.h.b16 %v4935
    %v7423 = vunpack.c.l.b16 %v4936
    %v7424 = vunpack.c.h.b16 %v4936
    %v7425 = vunpack.c.l.b16 %v4937
    %v7426 = vunpack.c.l.b16 %v4938
    %v7427 = vunpack.c.h.b16 %v4938
    %v7428 = vunpack.c.l.b16 %v4939
    %v7429 = vunpack.c.h.b16 %v4939
    %v7430 = vunpack.c.l.b16 %v4940
    %v7431 = vunpack.c.h.b16 %v4940
    %v7432 = vunpack.c.l.b16 %v4941
    %v7433 = vunpack.c.l.b16 %v4942
    %v7434 = vunpack.c.h.b16 %v4942
    %v7435 = vunpack.c.l.b16 %v4943
    %v7436 = vunpack.c.h.b16 %v4943
    %v7437 = vunpack.c.l.b16 %v4944
    %v7438 = vunpack.c.h.b16 %v4944
    %v7439 = vunpack.c.l.b16 %v4945
    %v7440 = vunpack.c.l.b16 %v4946
    %v7441 = vunpack.c.h.b16 %v4946
    %v7442 = vunpack.c.l.b16 %v4947
    %v7443 = vunpack.c.h.b16 %v4947
    %v7444 = vunpack.c.l.b16 %v4948
    %v7445 = vunpack.c.h.b16 %v4948
    %v7446 = vunpack.c.l.b16 %v4949
    %v7447 = vunpack.c.l.b16 %v4950
    %v7448 = vunpack.c.h.b16 %v4950
    %v7449 = vunpack.c.l.b16 %v4951
    %v7450 = vunpack.c.h.b16 %v4951
    %v7451 = vunpack.c.l.b16 %v4952
    %v7452 = vunpack.c.h.b16 %v4952
    %v7453 = vunpack.c.l.b16 %v4953
    %v7454 = vunpack.c.l.b16 %v4954
    %v7455 = vunpack.c.h.b16 %v4954
    %v7456 = vunpack.c.l.b16 %v4955
    %v7457 = vunpack.c.h.b16 %v4955
    %v7458 = vunpack.c.l.b16 %v4956
    %v7459 = vunpack.c.h.b16 %v4956
    %v7460 = vunpack.c.l.b16 %v4957
    %v7461 = vunpack.c.l.b16 %v4958
    %v7462 = vunpack.c.h.b16 %v4958
    %v7463 = vunpack.c.l.b16 %v4959
    %v7464 = vunpack.c.h.b16 %v4959
    %v7465 = vunpack.c.l.b16 %v4960
    %v7466 = vunpack.c.h.b16 %v4960
    %v7467 = vunpack.c.l.b16 %v4961
    %v7468 = vunpack.c.l.b16 %v4962
    %v7469 = vunpack.c.h.b16 %v4962
    %v7470 = vunpack.c.l.b16 %v4963
    %v7471 = vunpack.c.h.b16 %v4963
    %v7472 = vunpack.c.l.b16 %v4964
    %v7473 = vunpack.c.h.b16 %v4964
    %v7474 = vunpack.c.l.b16 %v4965
    %v7475 = vunpack.c.l.b16 %v4966
    %v7476 = vunpack.c.h.b16 %v4966
    %v7477 = vunpack.c.l.b16 %v4967
    %v7478 = vunpack.c.h.b16 %v4967
    %v7479 = vunpack.c.l.b16 %v4968
    %v7480 = vunpack.c.h.b16 %v4968
    %v7481 = vunpack.c.l.b16 %v4969
    %v7482 = vunpack.c.l.b16 %v4970
    %v7483 = vunpack.c.h.b16 %v4970
    %v7484 = vunpack.c.l.b16 %v4971
    %v7485 = vunpack.c.h.b16 %v4971
    %v7486 = vunpack.c.l.b16 %v4972
    %v7487 = vunpack.c.h.b16 %v4972
    %v7488 = vunpack.c.l.b16 %v4973
    %v7489 = vunpack.c.l.b16 %v4974
    %v7490 = vunpack.c.h.b16 %v4974
    %v7491 = vunpack.c.l.b16 %v4975
    %v7492 = vunpack.c.h.b16 %v4975
    %v7493 = vunpack.c.l.b16 %v4976
    %v7494 = vunpack.c.h.b16 %v4976
    %v7495 = vunpack.c.l.b16 %v4977
    %v7496 = vunpack.c.l.b16 %v4978
    %v7497 = vunpack.c.h.b16 %v4978
    %v7498 = vunpack.c.l.b16 %v4979
    %v7499 = vunpack.c.h.b16 %v4979
    %v7500 = vunpack.c.l.b16 %v4980
    %v7501 = vunpack.c.h.b16 %v4980
    %v7502 = vunpack.c.l.b16 %v4981
    %v7503 = vunpack.c.l.b16 %v4982
    %v7504 = vunpack.c.h.b16 %v4982
    %v7505 = vunpack.c.l.b16 %v4983
    %v7506 = vunpack.c.h.b16 %v4983
    %v7507 = vunpack.c.l.b16 %v4984
    %v7508 = vunpack.c.h.b16 %v4984
    %v7509 = vunpack.c.l.b16 %v4985
    %v7510 = vunpack.c.l.b16 %v4986
    %v7511 = vunpack.c.h.b16 %v4986
    %v7512 = vunpack.c.l.b16 %v4987
    %v7513 = vunpack.c.h.b16 %v4987
    %v7514 = vunpack.c.l.b16 %v4988
    %v7515 = vunpack.c.h.b16 %v4988
    %v7516 = vunpack.c.l.b16 %v4989
    %v7517 = vunpack.c.l.b16 %v4990
    %v7518 = vunpack.c.h.b16 %v4990
    %v7519 = vunpack.c.l.b16 %v4991
    %v7520 = vunpack.c.h.b16 %v4991
    %v7521 = vunpack.c.l.b16 %v4992
    %v7522 = vunpack.c.h.b16 %v4992
    %v7523 = vunpack.c.l.b16 %v4993
    %v7524 = vunpack.c.l.b16 %v4994
    %v7525 = vunpack.c.h.b16 %v4994
    %v7526 = vunpack.c.l.b16 %v4995
    %v7527 = vunpack.c.h.b16 %v4995
    %v7528 = vunpack.c.l.b16 %v4996
    %v7529 = vunpack.c.h.b16 %v4996
    %v7530 = vunpack.c.l.b16 %v4997
    %v7531 = vunpack.c.l.b16 %v4998
    %v7532 = vunpack.c.h.b16 %v4998
    %v7533 = vunpack.c.l.b16 %v4999
    %v7534 = vunpack.c.h.b16 %v4999
    %v7535 = vunpack.c.l.b16 %v5000
    %v7536 = vunpack.c.h.b16 %v5000
    %v7537 = vunpack.c.l.b16 %v5001
    %v7538 = vunpack.c.l.b16 %v5002
    %v7539 = vunpack.c.h.b16 %v5002
    %v7540 = vunpack.c.l.b16 %v5003
    %v7541 = vunpack.c.h.b16 %v5003
    %v7542 = vunpack.c.l.b16 %v5004
    %v7543 = vunpack.c.h.b16 %v5004
    %v7544 = vunpack.c.l.b16 %v5005
    %v7545 = vunpack.c.l.b16 %v5006
    %v7546 = vunpack.c.h.b16 %v5006
    %v7547 = vunpack.c.l.b16 %v5007
    %v7548 = vunpack.c.h.b16 %v5007
    %v7549 = vunpack.c.l.b16 %v5008
    %v7550 = vunpack.c.h.b16 %v5008
    %v7551 = vunpack.c.l.b16 %v5009
    %v7552 = vunpack.c.l.b16 %v5010
    %v7553 = vunpack.c.h.b16 %v5010
    %v7554 = vunpack.c.l.b16 %v5011
    %v7555 = vunpack.c.h.b16 %v5011
    %v7556 = vunpack.c.l.b16 %v5012
    %v7557 = vunpack.c.h.b16 %v5012
    %v7558 = vunpack.c.l.b16 %v5013
    %v7559 = vunpack.c.l.b16 %v5014
    %v7560 = vunpack.c.h.b16 %v5014
    %v7561 = vunpack.c.l.b16 %v5015
    %v7562 = vunpack.c.h.b16 %v5015
    %v7563 = vunpack.c.l.b16 %v5016
    %v7564 = vunpack.c.h.b16 %v5016
    %v7565 = vunpack.c.l.b16 %v5017
    %v7566 = vunpack.c.l.b16 %v5018
    %v7567 = vunpack.c.h.b16 %v5018
    %v7568 = vunpack.c.l.b16 %v5019
    %v7569 = vunpack.c.h.b16 %v5019
    %v7570 = vunpack.c.l.b16 %v5020
    %v7571 = vunpack.c.h.b16 %v5020
    %v7572 = vunpack.c.l.b16 %v5021
    %v7573 = vunpack.c.l.b16 %v5022
    %v7574 = vunpack.c.h.b16 %v5022
    %v7575 = vunpack.c.l.b16 %v5023
    %v7576 = vunpack.c.h.b16 %v5023
    %v7577 = vunpack.c.l.b16 %v5024
    %v7578 = vunpack.c.h.b16 %v5024
    %v7579 = vunpack.c.l.b16 %v5025
    %v7580 = vunpack.c.l.b16 %v5026
    %v7581 = vunpack.c.h.b16 %v5026
    %v7582 = vunpack.c.l.b16 %v5027
    %v7583 = vunpack.c.h.b16 %v5027
    %v7584 = vunpack.c.l.b16 %v5028
    %v7585 = vunpack.c.h.b16 %v5028
    %v7586 = vunpack.c.l.b16 %v5029
    %v7587 = vunpack.c.l.b16 %v5030
    %v7588 = vunpack.c.h.b16 %v5030
    %v7589 = vunpack.c.l.b16 %v5031
    %v7590 = vunpack.c.h.b16 %v5031
    %v7591 = vunpack.c.l.b16 %v5032
    %v7592 = vunpack.c.h.b16 %v5032
    %v7593 = vunpack.c.l.b16 %v5033
    %v7594 = vunpack.c.l.b16 %v5034
    %v7595 = vunpack.c.h.b16 %v5034
    %v7596 = vunpack.c.l.b16 %v5035
    %v7597 = vunpack.c.h.b16 %v5035
    %v7598 = vunpack.c.l.b16 %v5036
    %v7599 = vunpack.c.h.b16 %v5036
    %v7600 = vunpack.c.l.b16 %v5037
    %v7601 = vunpack.c.l.b16 %v5038
    %v7602 = vunpack.c.h.b16 %v5038
    %v7603 = vunpack.c.l.b16 %v5039
    %v7604 = vunpack.c.h.b16 %v5039
    %v7605 = vunpack.c.l.b16 %v5040
    %v7606 = vunpack.c.h.b16 %v5040
    %v7607 = vunpack.c.l.b16 %v5041
    %v7608 = vunpack.c.l.b16 %v5042
    %v7609 = vunpack.c.h.b16 %v5042
    %v7610 = vunpack.c.l.b16 %v5043
    %v7611 = vunpack.c.h.b16 %v5043
    %v7612 = vunpack.c.l.b16 %v5044
    %v7613 = vunpack.c.h.b16 %v5044
    %v7614 = vunpack.c.l.b16 %v5045
    %v7615 = vunpack.c.l.b16 %v5046
    %v7616 = vunpack.c.h.b16 %v5046
    %v7617 = vunpack.c.l.b16 %v5047
    %v7618 = vunpack.c.h.b16 %v5047
    %v7619 = vunpack.c.l.b16 %v5048
    %v7620 = vunpack.c.h.b16 %v5048
    %v7621 = vunpack.c.l.b16 %v5049
    %v7622 = vunpack.c.l.b16 %v5050
    %v7623 = vunpack.c.h.b16 %v5050
    %v7624 = vunpack.c.l.b16 %v5051
    %v7625 = vunpack.c.h.b16 %v5051
    %v7626 = vunpack.c.l.b16 %v5052
    %v7627 = vunpack.c.h.b16 %v5052
    %v7628 = vunpack.c.l.b16 %v5053
    %v7629 = vunpack.c.l.b16 %v5054
    %v7630 = vunpack.c.h.b16 %v5054
    %v7631 = vunpack.c.l.b16 %v5055
    %v7632 = vunpack.c.h.b16 %v5055
    %v7633 = vunpack.c.l.b16 %v5056
    %v7634 = vunpack.c.h.b16 %v5056
    %v7635 = vunpack.c.l.b16 %v5057
    %v7636 = vunpack.c.l.b16 %v5058
    %v7637 = vunpack.c.h.b16 %v5058
    %v7638 = vunpack.c.l.b16 %v5059
    %v7639 = vunpack.c.h.b16 %v5059
    %v7640 = vunpack.c.l.b16 %v5060
    %v7641 = vunpack.c.h.b16 %v5060
    %v7642 = vunpack.c.l.b16 %v5061
    %v7643 = vunpack.c.l.b16 %v5062
    %v7644 = vunpack.c.h.b16 %v5062
    %v7645 = vunpack.c.l.b16 %v5063
    %v7646 = vunpack.c.h.b16 %v5063
    %v7647 = vunpack.c.l.b16 %v5064
    %v7648 = vunpack.c.h.b16 %v5064
    %v7649 = vunpack.c.l.b16 %v5065
    %v7650 = vunpack.c.l.b16 %v5066
    %v7651 = vunpack.c.h.b16 %v5066
    %v7652 = vunpack.c.l.b16 %v5067
    %v7653 = vunpack.c.h.b16 %v5067
    %v7654 = vunpack.c.l.b16 %v5068
    %v7655 = vunpack.c.h.b16 %v5068
    %v7656 = vunpack.c.l.b16 %v5069
    %v7657 = vunpack.c.l.b16 %v5070
    %v7658 = vunpack.c.h.b16 %v5070
    %v7659 = vunpack.c.l.b16 %v5071
    %v7660 = vunpack.c.h.b16 %v5071
    %v7661 = vunpack.c.l.b16 %v5072
    %v7662 = vunpack.c.h.b16 %v5072
    %v7663 = vunpack.c.l.b16 %v5073
    %v7664 = vunpack.c.l.b16 %v5074
    %v7665 = vunpack.c.h.b16 %v5074
    %v7666 = vunpack.c.l.b16 %v5075
    %v7667 = vunpack.c.h.b16 %v5075
    %v7668 = vunpack.c.l.b16 %v5076
    %v7669 = vunpack.c.h.b16 %v5076
    %v7670 = vunpack.c.l.b16 %v5077
    %v7671 = vunpack.c.l.b16 %v5078
    %v7672 = vunpack.c.h.b16 %v5078
    %v7673 = vunpack.c.l.b16 %v5079
    %v7674 = vunpack.c.h.b16 %v5079
    %v7675 = vunpack.c.l.b16 %v5080
    %v7676 = vunpack.c.h.b16 %v5080
    %v7677 = vunpack.c.l.b16 %v5081
    %v7678 = vunpack.c.l.b16 %v5082
    %v7679 = vunpack.c.h.b16 %v5082
    %v7680 = vunpack.c.l.b16 %v5083
    %v7681 = vunpack.c.h.b16 %v5083
    %v7682 = vunpack.c.l.b16 %v5084
    %v7683 = vunpack.c.h.b16 %v5084
    %v7684 = vunpack.c.l.b16 %v5085
    %v7685 = vunpack.c.l.b16 %v5086
    %v7686 = vunpack.c.h.b16 %v5086
    %v7687 = vunpack.c.l.b16 %v5087
    %v7688 = vunpack.c.h.b16 %v5087
    %v7689 = vunpack.c.l.b16 %v5088
    %v7690 = vunpack.c.h.b16 %v5088
    %v7691 = vunpack.c.l.b16 %v5089
    %v7692 = vunpack.c.l.b16 %v5090
    %v7693 = vunpack.c.h.b16 %v5090
    %v7694 = vunpack.c.l.b16 %v5091
    %v7695 = vunpack.c.h.b16 %v5091
    %v7696 = vunpack.c.l.b16 %v5092
    %v7697 = vunpack.c.h.b16 %v5092
    %v7698 = vunpack.c.l.b16 %v5093
    %v7699 = vunpack.c.l.b16 %v5094
    %v7700 = vunpack.c.h.b16 %v5094
    %v7701 = vunpack.c.l.b16 %v5095
    %v7702 = vunpack.c.h.b16 %v5095
    %v7703 = vunpack.c.l.b16 %v5096
    %v7704 = vunpack.c.h.b16 %v5096
    %v7705 = vunpack.c.l.b16 %v5097
    %v7706 = vunpack.c.l.b16 %v5098
    %v7707 = vunpack.c.h.b16 %v5098
    %v7708 = vunpack.c.l.b16 %v5099
    %v7709 = vunpack.c.h.b16 %v5099
    %v7710 = vunpack.c.l.b16 %v5100
    %v7711 = vunpack.c.h.b16 %v5100
    %v7712 = vunpack.c.l.b16 %v5101
    %v7713 = vunpack.c.l.b16 %v5102
    %v7714 = vunpack.c.h.b16 %v5102
    %v7715 = vunpack.c.l.b16 %v5103
    %v7716 = vunpack.c.h.b16 %v5103
    %v7717 = vunpack.c.l.b16 %v5104
    %v7718 = vunpack.c.h.b16 %v5104
    %v7719 = vunpack.c.l.b16 %v5105
    %v7720 = vunpack.c.l.b16 %v5106
    %v7721 = vunpack.c.h.b16 %v5106
    %v7722 = vunpack.c.l.b16 %v5107
    %v7723 = vunpack.c.h.b16 %v5107
    %v7724 = vunpack.c.l.b16 %v5108
    %v7725 = vunpack.c.h.b16 %v5108
    %v7726 = vunpack.c.l.b16 %v5109
    %v7727 = vunpack.c.l.b16 %v5110
    %v7728 = vunpack.c.h.b16 %v5110
    %v7729 = vunpack.c.l.b16 %v5111
    %v7730 = vunpack.c.h.b16 %v5111
    %v7731 = vunpack.c.l.b16 %v5112
    %v7732 = vunpack.c.h.b16 %v5112
    %v7733 = vunpack.c.l.b16 %v5113
    %v7734 = vunpack.c.l.b16 %v5114
    %v7735 = vunpack.c.h.b16 %v5114
    %v7736 = vunpack.c.l.b16 %v5115
    %v7737 = vunpack.c.h.b16 %v5115
    %v7738 = vunpack.c.l.b16 %v5116
    %v7739 = vunpack.c.h.b16 %v5116
    %v7740 = vunpack.c.l.b16 %v5117
    %v7741 = vunpack.c.l.b16 %v5118
    %v7742 = vunpack.c.h.b16 %v5118
    %v7743 = vunpack.c.l.b16 %v5119
    %v7744 = vunpack.c.h.b16 %v5119
    %v7745 = vunpack.c.l.b16 %v5120
    %v7746 = vunpack.c.h.b16 %v5120
    %v7747 = vunpack.c.l.b16 %v5121
    %v7748 = vunpack.c.l.b16 %v5122
    %v7749 = vunpack.c.h.b16 %v5122
    %v7750 = vunpack.c.l.b16 %v5123
    %v7751 = vunpack.c.h.b16 %v5123
    %v7752 = vunpack.c.l.b16 %v5124
    %v7753 = vunpack.c.h.b16 %v5124
    %v7754 = vunpack.c.l.b16 %v5125
    %v7755 = vunpack.c.l.b16 %v5126
    %v7756 = vunpack.c.h.b16 %v5126
    %v7757 = vunpack.c.l.b16 %v5127
    %v7758 = vunpack.c.h.b16 %v5127
    %v7759 = vunpack.c.l.b16 %v5128
    %v7760 = vunpack.c.h.b16 %v5128
    %v7761 = vunpack.c.l.b16 %v5129
    %v7762 = vunpack.c.l.b16 %v5130
    %v7763 = vunpack.c.h.b16 %v5130
    %v7764 = vunpack.c.l.b16 %v5131
    %v7765 = vunpack.c.h.b16 %v5131
    %v7766 = vunpack.c.l.b16 %v5132
    %v7767 = vunpack.c.h.b16 %v5132
    %v7768 = vunpack.c.l.b16 %v5133
    %v7769 = vunpack.c.l.b16 %v5134
    %v7770 = vunpack.c.h.b16 %v5134
    %v7771 = vunpack.c.l.b16 %v5135
    %v7772 = vunpack.c.h.b16 %v5135
    %v7773 = vunpack.c.l.b16 %v5136
    %v7774 = vunpack.c.h.b16 %v5136
    %v7775 = vunpack.c.l.b16 %v5137
    %v7776 = vunpack.c.l.b16 %v5138
    %v7777 = vunpack.c.h.b16 %v5138
    %v7778 = vunpack.c.l.b16 %v5139
    %v7779 = vunpack.c.h.b16 %v5139
    %v7780 = vunpack.c.l.b16 %v5140
    %v7781 = vunpack.c.h.b16 %v5140
    %v7782 = vunpack.c.l.b16 %v5141
    %v7783 = vunpack.c.l.b16 %v5142
    %v7784 = vunpack.c.h.b16 %v5142
    %v7785 = vunpack.c.l.b16 %v5143
    %v7786 = vunpack.c.h.b16 %v5143
    %v7787 = vunpack.c.l.b16 %v5144
    %v7788 = vunpack.c.h.b16 %v5144
    %v7789 = vunpack.c.l.b16 %v5145
    %v7790 = vunpack.c.l.b16 %v5146
    %v7791 = vunpack.c.h.b16 %v5146
    %v7792 = vunpack.c.l.b16 %v5147
    %v7793 = vunpack.c.h.b16 %v5147
    %v7794 = vunpack.c.l.b16 %v5148
    %v7795 = vunpack.c.h.b16 %v5148
    %v7796 = vunpack.c.l.b16 %v5149
    %v7797 = vunpack.c.l.b16 %v5150
    %v7798 = vunpack.c.h.b16 %v5150
    %v7799 = vunpack.c.l.b16 %v5151
    %v7800 = vunpack.c.h.b16 %v5151
    %v7801 = vunpack.c.l.b16 %v5152
    %v7802 = vunpack.c.h.b16 %v5152
    %v7803 = vunpack.c.l.b16 %v5153
    %v7804 = vunpack.c.l.b16 %v5154
    %v7805 = vunpack.c.h.b16 %v5154
    %v7806 = vunpack.c.l.b16 %v5155
    %v7807 = vunpack.c.h.b16 %v5155
    %v7808 = vunpack.c.l.b16 %v5156
    %v7809 = vunpack.c.h.b16 %v5156
    %v7810 = vunpack.c.l.b16 %v5157
    %v7811 = vunpack.c.l.b16 %v5158
    %v7812 = vunpack.c.h.b16 %v5158
    %v7813 = vunpack.c.l.b16 %v5159
    %v7814 = vunpack.c.h.b16 %v5159
    %v7815 = vunpack.c.l.b16 %v5160
    %v7816 = vunpack.c.h.b16 %v5160
    %v7817 = vunpack.c.l.b16 %v5161
    %v7818 = vpack.c.b16 %v6145, %v6138
    %v7819 = vpack.c.b16 %v6146, %v6139
    %v7820 = vpack.c.b16 %v6147, %v6140
    %v7821 = vpack.c.b16 %v6148, %v6141
    %v7822 = vpack.c.b16 %v6149, %v6142
    %v7823 = vpack.c.b16 %v6150, %v6143
    %v7824 = vpack.c.b16 %v6151, %v6144
    %v7825 = vpack.c.b16 %v6159, %v6152
    %v7826 = vpack.c.b16 %v6160, %v6153
    %v7827 = vpack.c.b16 %v6161, %v6154
    %v7828 = vpack.c.b16 %v6162, %v6155
    %v7829 = vpack.c.b16 %v6163, %v6156
    %v7830 = vpack.c.b16 %v6164, %v6157
    %v7831 = vpack.c.b16 %v6165, %v6158
    %v7832 = vpack.c.b16 %v6173, %v6166
    %v7833 = vpack.c.b16 %v6174, %v6167
    %v7834 = vpack.c.b16 %v6175, %v6168
    %v7835 = vpack.c.b16 %v6176, %v6169
    %v7836 = vpack.c.b16 %v6177, %v6170
    %v7837 = vpack.c.b16 %v6178, %v6171
    %v7838 = vpack.c.b16 %v6179, %v6172
    %v7839 = vpack.c.b16 %v6187, %v6180
    %v7840 = vpack.c.b16 %v6188, %v6181
    %v7841 = vpack.c.b16 %v6189, %v6182
    %v7842 = vpack.c.b16 %v6190, %v6183
    %v7843 = vpack.c.b16 %v6191, %v6184
    %v7844 = vpack.c.b16 %v6192, %v6185
    %v7845 = vpack.c.b16 %v6193, %v6186
    %v7846 = vpack.c.b16 %v6201, %v6194
    %v7847 = vpack.c.b16 %v6202, %v6195
    %v7848 = vpack.c.b16 %v6203, %v6196
    %v7849 = vpack.c.b16 %v6204, %v6197
    %v7850 = vpack.c.b16 %v6205, %v6198
    %v7851 = vpack.c.b16 %v6206, %v6199
    %v7852 = vpack.c.b16 %v6207, %v6200
    %v7853 = vpack.c.b16 %v6215, %v6208
    %v7854 = vpack.c.b16 %v6216, %v6209
    %v7855 = vpack.c.b16 %v6217, %v6210
    %v7856 = vpack.c.b16 %v6218, %v6211
    %v7857 = vpack.c.b16 %v6219, %v6212
    %v7858 = vpack.c.b16 %v6220, %v6213
    %v7859 = vpack.c.b16 %v6221, %v6214
    %v7860 = vpack.c.b16 %v6229, %v6222
    %v7861 = vpack.c.b16 %v6230, %v6223
    %v7862 = vpack.c.b16 %v6231, %v6224
    %v7863 = vpack.c.b16 %v6232, %v6225
    %v7864 = vpack.c.b16 %v6233, %v6226
    %v7865 = vpack.c.b16 %v6234, %v6227
    %v7866 = vpack.c.b16 %v6235, %v6228
    %v7867 = vpack.c.b16 %v6243, %v6236
    %v7868 = vpack.c.b16 %v6244, %v6237
    %v7869 = vpack.c.b16 %v6245, %v6238
    %v7870 = vpack.c.b16 %v6246, %v6239
    %v7871 = vpack.c.b16 %v6247, %v6240
    %v7872 = vpack.c.b16 %v6248, %v6241
    %v7873 = vpack.c.b16 %v6249, %v6242
    %v7874 = vpack.c.b16 %v6257, %v6250
    %v7875 = vpack.c.b16 %v6258, %v6251
    %v7876 = vpack.c.b16 %v6259, %v6252
    %v7877 = vpack.c.b16 %v6260, %v6253
    %v7878 = vpack.c.b16 %v6261, %v6254
    %v7879 = vpack.c.b16 %v6262, %v6255
    %v7880 = vpack.c.b16 %v6263, %v6256
    %v7881 = vpack.c.b16 %v6271, %v6264
    %v7882 = vpack.c.b16 %v6272, %v6265
    %v7883 = vpack.c.b16 %v6273, %v6266
    %v7884 = vpack.c.b16 %v6274, %v6267
    %v7885 = vpack.c.b16 %v6275, %v6268
    %v7886 = vpack.c.b16 %v6276, %v6269
    %v7887 = vpack.c.b16 %v6277, %v6270
    %v7888 = vpack.c.b16 %v6285, %v6278
    %v7889 = vpack.c.b16 %v6286, %v6279
    %v7890 = vpack.c.b16 %v6287, %v6280
    %v7891 = vpack.c.b16 %v6288, %v6281
    %v7892 = vpack.c.b16 %v6289, %v6282
    %v7893 = vpack.c.b16 %v6290, %v6283
    %v7894 = vpack.c.b16 %v6291, %v6284
    %v7895 = vpack.c.b16 %v6299, %v6292
    %v7896 = vpack.c.b16 %v6300, %v6293
    %v7897 = vpack.c.b16 %v6301, %v6294
    %v7898 = vpack.c.b16 %v6302, %v6295
    %v7899 = vpack.c.b16 %v6303, %v6296
    %v7900 = vpack.c.b16 %v6304, %v6297
    %v7901 = vpack.c.b16 %v6305, %v6298
    %v7902 = vpack.c.b16 %v6313, %v6306
    %v7903 = vpack.c.b16 %v6314, %v6307
    %v7904 = vpack.c.b16 %v6315, %v6308
    %v7905 = vpack.c.b16 %v6316, %v6309
    %v7906 = vpack.c.b16 %v6317, %v6310
    %v7907 = vpack.c.b16 %v6318, %v6311
    %v7908 = vpack.c.b16 %v6319, %v6312
    %v7909 = vpack.c.b16 %v6327, %v6320
    %v7910 = vpack.c.b16 %v6328, %v6321
    %v7911 = vpack.c.b16 %v6329, %v6322
    %v7912 = vpack.c.b16 %v6330, %v6323
    %v7913 = vpack.c.b16 %v6331, %v6324
    %v7914 = vpack.c.b16 %v6332, %v6325
    %v7915 = vpack.c.b16 %v6333, %v6326
    %v7916 = vpack.c.b16 %v6341, %v6334
    %v7917 = vpack.c.b16 %v6342, %v6335
    %v7918 = vpack.c.b16 %v6343, %v6336
    %v7919 = vpack.c.b16 %v6344, %v6337
    %v7920 = vpack.c.b16 %v6345, %v6338
    %v7921 = vpack.c.b16 %v6346, %v6339
    %v7922 = vpack.c.b16 %v6347, %v6340
    %v7923 = vpack.c.b16 %v6355, %v6348
    %v7924 = vpack.c.b16 %v6356, %v6349
    %v7925 = vpack.c.b16 %v6357, %v6350
    %v7926 = vpack.c.b16 %v6358, %v6351
    %v7927 = vpack.c.b16 %v6359, %v6352
    %v7928 = vpack.c.b16 %v6360, %v6353
    %v7929 = vpack.c.b16 %v6361, %v6354
    %v7930 = vpack.c.b16 %v6369, %v6362
    %v7931 = vpack.c.b16 %v6370, %v6363
    %v7932 = vpack.c.b16 %v6371, %v6364
    %v7933 = vpack.c.b16 %v6372, %v6365
    %v7934 = vpack.c.b16 %v6373, %v6366
    %v7935 = vpack.c.b16 %v6374, %v6367
    %v7936 = vpack.c.b16 %v6375, %v6368
    %v7937 = vpack.c.b16 %v6383, %v6376
    %v7938 = vpack.c.b16 %v6384, %v6377
    %v7939 = vpack.c.b16 %v6385, %v6378
    %v7940 = vpack.c.b16 %v6386, %v6379
    %v7941 = vpack.c.b16 %v6387, %v6380
    %v7942 = vpack.c.b16 %v6388, %v6381
    %v7943 = vpack.c.b16 %v6389, %v6382
    %v7944 = vpack.c.b16 %v6397, %v6390
    %v7945 = vpack.c.b16 %v6398, %v6391
    %v7946 = vpack.c.b16 %v6399, %v6392
    %v7947 = vpack.c.b16 %v6400, %v6393
    %v7948 = vpack.c.b16 %v6401, %v6394
    %v7949 = vpack.c.b16 %v6402, %v6395
    %v7950 = vpack.c.b16 %v6403, %v6396
    %v7951 = vpack.c.b16 %v6411, %v6404
    %v7952 = vpack.c.b16 %v6412, %v6405
    %v7953 = vpack.c.b16 %v6413, %v6406
    %v7954 = vpack.c.b16 %v6414, %v6407
    %v7955 = vpack.c.b16 %v6415, %v6408
    %v7956 = vpack.c.b16 %v6416, %v6409
    %v7957 = vpack.c.b16 %v6417, %v6410
    %v7958 = vpack.c.b16 %v6425, %v6418
    %v7959 = vpack.c.b16 %v6426, %v6419
    %v7960 = vpack.c.b16 %v6427, %v6420
    %v7961 = vpack.c.b16 %v6428, %v6421
    %v7962 = vpack.c.b16 %v6429, %v6422
    %v7963 = vpack.c.b16 %v6430, %v6423
    %v7964 = vpack.c.b16 %v6431, %v6424
    %v7965 = vpack.c.b16 %v6439, %v6432
    %v7966 = vpack.c.b16 %v6440, %v6433
    %v7967 = vpack.c.b16 %v6441, %v6434
    %v7968 = vpack.c.b16 %v6442, %v6435
    %v7969 = vpack.c.b16 %v6443, %v6436
    %v7970 = vpack.c.b16 %v6444, %v6437
    %v7971 = vpack.c.b16 %v6445, %v6438
    %v7972 = vpack.c.b16 %v6453, %v6446
    %v7973 = vpack.c.b16 %v6454, %v6447
    %v7974 = vpack.c.b16 %v6455, %v6448
    %v7975 = vpack.c.b16 %v6456, %v6449
    %v7976 = vpack.c.b16 %v6457, %v6450
    %v7977 = vpack.c.b16 %v6458, %v6451
    %v7978 = vpack.c.b16 %v6459, %v6452
    %v7979 = vpack.c.b16 %v6467, %v6460
    %v7980 = vpack.c.b16 %v6468, %v6461
    %v7981 = vpack.c.b16 %v6469, %v6462
    %v7982 = vpack.c.b16 %v6470, %v6463
    %v7983 = vpack.c.b16 %v6471, %v6464
    %v7984 = vpack.c.b16 %v6472, %v6465
    %v7985 = vpack.c.b16 %v6473, %v6466
    %v7986 = vpack.c.b16 %v6481, %v6474
    %v7987 = vpack.c.b16 %v6482, %v6475
    %v7988 = vpack.c.b16 %v6483, %v6476
    %v7989 = vpack.c.b16 %v6484, %v6477
    %v7990 = vpack.c.b16 %v6485, %v6478
    %v7991 = vpack.c.b16 %v6486, %v6479
    %v7992 = vpack.c.b16 %v6487, %v6480
    %v7993 = vpack.c.b16 %v6495, %v6488
    %v7994 = vpack.c.b16 %v6496, %v6489
    %v7995 = vpack.c.b16 %v6497, %v6490
    %v7996 = vpack.c.b16 %v6498, %v6491
    %v7997 = vpack.c.b16 %v6499, %v6492
    %v7998 = vpack.c.b16 %v6500, %v6493
    %v7999 = vpack.c.b16 %v6501, %v6494
    %v8000 = vpack.c.b16 %v6509, %v6502
    %v8001 = vpack.c.b16 %v6510, %v6503
    %v8002 = vpack.c.b16 %v6511, %v6504
    %v8003 = vpack.c.b16 %v6512, %v6505
    %v8004 = vpack.c.b16 %v6513, %v6506
    %v8005 = vpack.c.b16 %v6514, %v6507
    %v8006 = vpack.c.b16 %v6515, %v6508
    %v8007 = vpack.c.b16 %v6523, %v6516
    %v8008 = vpack.c.b16 %v6524, %v6517
    %v8009 = vpack.c.b16 %v6525, %v6518
    %v8010 = vpack.c.b16 %v6526, %v6519
    %v8011 = vpack.c.b16 %v6527, %v6520
    %v8012 = vpack.c.b16 %v6528, %v6521
    %v8013 = vpack.c.b16 %v6529, %v6522
    %v8014 = vpack.c.b16 %v6537, %v6530
    %v8015 = vpack.c.b16 %v6538, %v6531
    %v8016 = vpack.c.b16 %v6539, %v6532
    %v8017 = vpack.c.b16 %v6540, %v6533
    %v8018 = vpack.c.b16 %v6541, %v6534
    %v8019 = vpack.c.b16 %v6542, %v6535
    %v8020 = vpack.c.b16 %v6543, %v6536
    %v8021 = vpack.c.b16 %v6551, %v6544
    %v8022 = vpack.c.b16 %v6552, %v6545
    %v8023 = vpack.c.b16 %v6553, %v6546
    %v8024 = vpack.c.b16 %v6554, %v6547
    %v8025 = vpack.c.b16 %v6555, %v6548
    %v8026 = vpack.c.b16 %v6556, %v6549
    %v8027 = vpack.c.b16 %v6557, %v6550
    %v8028 = vpack.c.b16 %v6565, %v6558
    %v8029 = vpack.c.b16 %v6566, %v6559
    %v8030 = vpack.c.b16 %v6567, %v6560
    %v8031 = vpack.c.b16 %v6568, %v6561
    %v8032 = vpack.c.b16 %v6569, %v6562
    %v8033 = vpack.c.b16 %v6570, %v6563
    %v8034 = vpack.c.b16 %v6571, %v6564
    %v8035 = vpack.c.b16 %v6579, %v6572
    %v8036 = vpack.c.b16 %v6580, %v6573
    %v8037 = vpack.c.b16 %v6581, %v6574
    %v8038 = vpack.c.b16 %v6582, %v6575
    %v8039 = vpack.c.b16 %v6583, %v6576
    %v8040 = vpack.c.b16 %v6584, %v6577
    %v8041 = vpack.c.b16 %v6585, %v6578
    %v8042 = vpack.c.b16 %v6593, %v6586
    %v8043 = vpack.c.b16 %v6594, %v6587
    %v8044 = vpack.c.b16 %v6595, %v6588
    %v8045 = vpack.c.b16 %v6596, %v6589
    %v8046 = vpack.c.b16 %v6597, %v6590
    %v8047 = vpack.c.b16 %v6598, %v6591
    %v8048 = vpack.c.b16 %v6599, %v6592
    %v8049 = vpack.c.b16 %v6607, %v6600
    %v8050 = vpack.c.b16 %v6608, %v6601
    %v8051 = vpack.c.b16 %v6609, %v6602
    %v8052 = vpack.c.b16 %v6610, %v6603
    %v8053 = vpack.c.b16 %v6611, %v6604
    %v8054 = vpack.c.b16 %v6612, %v6605
    %v8055 = vpack.c.b16 %v6613, %v6606
    %v8056 = vpack.c.b16 %v6621, %v6614
    %v8057 = vpack.c.b16 %v6622, %v6615
    %v8058 = vpack.c.b16 %v6623, %v6616
    %v8059 = vpack.c.b16 %v6624, %v6617
    %v8060 = vpack.c.b16 %v6625, %v6618
    %v8061 = vpack.c.b16 %v6626, %v6619
    %v8062 = vpack.c.b16 %v6627, %v6620
    %v8063 = vpack.c.b16 %v6635, %v6628
    %v8064 = vpack.c.b16 %v6636, %v6629
    %v8065 = vpack.c.b16 %v6637, %v6630
    %v8066 = vpack.c.b16 %v6638, %v6631
    %v8067 = vpack.c.b16 %v6639, %v6632
    %v8068 = vpack.c.b16 %v6640, %v6633
    %v8069 = vpack.c.b16 %v6641, %v6634
    %v8070 = vpack.c.b16 %v6649, %v6642
    %v8071 = vpack.c.b16 %v6650, %v6643
    %v8072 = vpack.c.b16 %v6651, %v6644
    %v8073 = vpack.c.b16 %v6652, %v6645
    %v8074 = vpack.c.b16 %v6653, %v6646
    %v8075 = vpack.c.b16 %v6654, %v6647
    %v8076 = vpack.c.b16 %v6655, %v6648
    %v8077 = vpack.c.b16 %v6663, %v6656
    %v8078 = vpack.c.b16 %v6664, %v6657
    %v8079 = vpack.c.b16 %v6665, %v6658
    %v8080 = vpack.c.b16 %v6666, %v6659
    %v8081 = vpack.c.b16 %v6667, %v6660
    %v8082 = vpack.c.b16 %v6668, %v6661
    %v8083 = vpack.c.b16 %v6669, %v6662
    %v8084 = vpack.c.b16 %v6677, %v6670
    %v8085 = vpack.c.b16 %v6678, %v6671
    %v8086 = vpack.c.b16 %v6679, %v6672
    %v8087 = vpack.c.b16 %v6680, %v6673
    %v8088 = vpack.c.b16 %v6681, %v6674
    %v8089 = vpack.c.b16 %v6682, %v6675
    %v8090 = vpack.c.b16 %v6683, %v6676
    %v8091 = vpack.c.b16 %v6691, %v6684
    %v8092 = vpack.c.b16 %v6692, %v6685
    %v8093 = vpack.c.b16 %v6693, %v6686
    %v8094 = vpack.c.b16 %v6694, %v6687
    %v8095 = vpack.c.b16 %v6695, %v6688
    %v8096 = vpack.c.b16 %v6696, %v6689
    %v8097 = vpack.c.b16 %v6697, %v6690
    %v8098 = vpack.c.b16 %v6705, %v6698
    %v8099 = vpack.c.b16 %v6706, %v6699
    %v8100 = vpack.c.b16 %v6707, %v6700
    %v8101 = vpack.c.b16 %v6708, %v6701
    %v8102 = vpack.c.b16 %v6709, %v6702
    %v8103 = vpack.c.b16 %v6710, %v6703
    %v8104 = vpack.c.b16 %v6711, %v6704
    %v8105 = vpack.c.b16 %v6719, %v6712
    %v8106 = vpack.c.b16 %v6720, %v6713
    %v8107 = vpack.c.b16 %v6721, %v6714
    %v8108 = vpack.c.b16 %v6722, %v6715
    %v8109 = vpack.c.b16 %v6723, %v6716
    %v8110 = vpack.c.b16 %v6724, %v6717
    %v8111 = vpack.c.b16 %v6725, %v6718
    %v8112 = vpack.c.b16 %v6733, %v6726
    %v8113 = vpack.c.b16 %v6734, %v6727
    %v8114 = vpack.c.b16 %v6735, %v6728
    %v8115 = vpack.c.b16 %v6736, %v6729
    %v8116 = vpack.c.b16 %v6737, %v6730
    %v8117 = vpack.c.b16 %v6738, %v6731
    %v8118 = vpack.c.b16 %v6739, %v6732
    %v8119 = vpack.c.b16 %v6747, %v6740
    %v8120 = vpack.c.b16 %v6748, %v6741
    %v8121 = vpack.c.b16 %v6749, %v6742
    %v8122 = vpack.c.b16 %v6750, %v6743
    %v8123 = vpack.c.b16 %v6751, %v6744
    %v8124 = vpack.c.b16 %v6752, %v6745
    %v8125 = vpack.c.b16 %v6753, %v6746
    %v8126 = vpack.c.b16 %v6761, %v6754
    %v8127 = vpack.c.b16 %v6762, %v6755
    %v8128 = vpack.c.b16 %v6763, %v6756
    %v8129 = vpack.c.b16 %v6764, %v6757
    %v8130 = vpack.c.b16 %v6765, %v6758
    %v8131 = vpack.c.b16 %v6766, %v6759
    %v8132 = vpack.c.b16 %v6767, %v6760
    %v8133 = vpack.c.b16 %v6775, %v6768
    %v8134 = vpack.c.b16 %v6776, %v6769
    %v8135 = vpack.c.b16 %v6777, %v6770
    %v8136 = vpack.c.b16 %v6778, %v6771
    %v8137 = vpack.c.b16 %v6779, %v6772
    %v8138 = vpack.c.b16 %v6780, %v6773
    %v8139 = vpack.c.b16 %v6781, %v6774
    %v8140 = vpack.c.b16 %v6789, %v6782
    %v8141 = vpack.c.b16 %v6790, %v6783
    %v8142 = vpack.c.b16 %v6791, %v6784
    %v8143 = vpack.c.b16 %v6792, %v6785
    %v8144 = vpack.c.b16 %v6793, %v6786
    %v8145 = vpack.c.b16 %v6794, %v6787
    %v8146 = vpack.c.b16 %v6795, %v6788
    %v8147 = vpack.c.b16 %v6803, %v6796
    %v8148 = vpack.c.b16 %v6804, %v6797
    %v8149 = vpack.c.b16 %v6805, %v6798
    %v8150 = vpack.c.b16 %v6806, %v6799
    %v8151 = vpack.c.b16 %v6807, %v6800
    %v8152 = vpack.c.b16 %v6808, %v6801
    %v8153 = vpack.c.b16 %v6809, %v6802
    %v8154 = vpack.c.b16 %v6817, %v6810
    %v8155 = vpack.c.b16 %v6818, %v6811
    %v8156 = vpack.c.b16 %v6819, %v6812
    %v8157 = vpack.c.b16 %v6820, %v6813
    %v8158 = vpack.c.b16 %v6821, %v6814
    %v8159 = vpack.c.b16 %v6822, %v6815
    %v8160 = vpack.c.b16 %v6823, %v6816
    %v8161 = vpack.c.b16 %v6831, %v6824
    %v8162 = vpack.c.b16 %v6832, %v6825
    %v8163 = vpack.c.b16 %v6833, %v6826
    %v8164 = vpack.c.b16 %v6834, %v6827
    %v8165 = vpack.c.b16 %v6835, %v6828
    %v8166 = vpack.c.b16 %v6836, %v6829
    %v8167 = vpack.c.b16 %v6837, %v6830
    %v8168 = vpack.c.b16 %v6845, %v6838
    %v8169 = vpack.c.b16 %v6846, %v6839
    %v8170 = vpack.c.b16 %v6847, %v6840
    %v8171 = vpack.c.b16 %v6848, %v6841
    %v8172 = vpack.c.b16 %v6849, %v6842
    %v8173 = vpack.c.b16 %v6850, %v6843
    %v8174 = vpack.c.b16 %v6851, %v6844
    %v8175 = vpack.c.b16 %v6859, %v6852
    %v8176 = vpack.c.b16 %v6860, %v6853
    %v8177 = vpack.c.b16 %v6861, %v6854
    %v8178 = vpack.c.b16 %v6862, %v6855
    %v8179 = vpack.c.b16 %v6863, %v6856
    %v8180 = vpack.c.b16 %v6864, %v6857
    %v8181 = vpack.c.b16 %v6865, %v6858
    %v8182 = vpack.c.b16 %v6873, %v6866
    %v8183 = vpack.c.b16 %v6874, %v6867
    %v8184 = vpack.c.b16 %v6875, %v6868
    %v8185 = vpack.c.b16 %v6876, %v6869
    %v8186 = vpack.c.b16 %v6877, %v6870
    %v8187 = vpack.c.b16 %v6878, %v6871
    %v8188 = vpack.c.b16 %v6879, %v6872
    %v8189 = vpack.c.b16 %v6887, %v6880
    %v8190 = vpack.c.b16 %v6888, %v6881
    %v8191 = vpack.c.b16 %v6889, %v6882
    %v8192 = vpack.c.b16 %v6890, %v6883
    %v8193 = vpack.c.b16 %v6891, %v6884
    %v8194 = vpack.c.b16 %v6892, %v6885
    %v8195 = vpack.c.b16 %v6893, %v6886
    %v8196 = vpack.c.b16 %v6901, %v6894
    %v8197 = vpack.c.b16 %v6902, %v6895
    %v8198 = vpack.c.b16 %v6903, %v6896
    %v8199 = vpack.c.b16 %v6904, %v6897
    %v8200 = vpack.c.b16 %v6905, %v6898
    %v8201 = vpack.c.b16 %v6906, %v6899
    %v8202 = vpack.c.b16 %v6907, %v6900
    %v8203 = vpack.c.b16 %v6915, %v6908
    %v8204 = vpack.c.b16 %v6916, %v6909
    %v8205 = vpack.c.b16 %v6917, %v6910
    %v8206 = vpack.c.b16 %v6918, %v6911
    %v8207 = vpack.c.b16 %v6919, %v6912
    %v8208 = vpack.c.b16 %v6920, %v6913
    %v8209 = vpack.c.b16 %v6921, %v6914
    %v8210 = vpack.c.b16 %v6929, %v6922
    %v8211 = vpack.c.b16 %v6930, %v6923
    %v8212 = vpack.c.b16 %v6931, %v6924
    %v8213 = vpack.c.b16 %v6932, %v6925
    %v8214 = vpack.c.b16 %v6933, %v6926
    %v8215 = vpack.c.b16 %v6934, %v6927
    %v8216 = vpack.c.b16 %v6935, %v6928
    %v8217 = vpack.c.b16 %v6943, %v6936
    %v8218 = vpack.c.b16 %v6944, %v6937
    %v8219 = vpack.c.b16 %v6945, %v6938
    %v8220 = vpack.c.b16 %v6946, %v6939
    %v8221 = vpack.c.b16 %v6947, %v6940
    %v8222 = vpack.c.b16 %v6948, %v6941
    %v8223 = vpack.c.b16 %v6949, %v6942
    %v8224 = vpack.c.b16 %v6957, %v6950
    %v8225 = vpack.c.b16 %v6958, %v6951
    %v8226 = vpack.c.b16 %v6959, %v6952
    %v8227 = vpack.c.b16 %v6960, %v6953
    %v8228 = vpack.c.b16 %v6961, %v6954
    %v8229 = vpack.c.b16 %v6962, %v6955
    %v8230 = vpack.c.b16 %v6963, %v6956
    %v8231 = vpack.c.b16 %v6971, %v6964
    %v8232 = vpack.c.b16 %v6972, %v6965
    %v8233 = vpack.c.b16 %v6973, %v6966
    %v8234 = vpack.c.b16 %v6974, %v6967
    %v8235 = vpack.c.b16 %v6975, %v6968
    %v8236 = vpack.c.b16 %v6976, %v6969
    %v8237 = vpack.c.b16 %v6977, %v6970
    %v8238 = vpack.c.b16 %v6985, %v6978
    %v8239 = vpack.c.b16 %v6986, %v6979
    %v8240 = vpack.c.b16 %v6987, %v6980
    %v8241 = vpack.c.b16 %v6988, %v6981
    %v8242 = vpack.c.b16 %v6989, %v6982
    %v8243 = vpack.c.b16 %v6990, %v6983
    %v8244 = vpack.c.b16 %v6991, %v6984
    %v8245 = vpack.c.b16 %v6999, %v6992
    %v8246 = vpack.c.b16 %v7000, %v6993
    %v8247 = vpack.c.b16 %v7001, %v6994
    %v8248 = vpack.c.b16 %v7002, %v6995
    %v8249 = vpack.c.b16 %v7003, %v6996
    %v8250 = vpack.c.b16 %v7004, %v6997
    %v8251 = vpack.c.b16 %v7005, %v6998
    %v8252 = vpack.c.b16 %v7013, %v7006
    %v8253 = vpack.c.b16 %v7014, %v7007
    %v8254 = vpack.c.b16 %v7015, %v7008
    %v8255 = vpack.c.b16 %v7016, %v7009
    %v8256 = vpack.c.b16 %v7017, %v7010
    %v8257 = vpack.c.b16 %v7018, %v7011
    %v8258 = vpack.c.b16 %v7019, %v7012
    %v8259 = vpack.c.b16 %v7027, %v7020
    %v8260 = vpack.c.b16 %v7028, %v7021
    %v8261 = vpack.c.b16 %v7029, %v7022
    %v8262 = vpack.c.b16 %v7030, %v7023
    %v8263 = vpack.c.b16 %v7031, %v7024
    %v8264 = vpack.c.b16 %v7032, %v7025
    %v8265 = vpack.c.b16 %v7033, %v7026
    %v8266 = vpack.c.b16 %v7041, %v7034
    %v8267 = vpack.c.b16 %v7042, %v7035
    %v8268 = vpack.c.b16 %v7043, %v7036
    %v8269 = vpack.c.b16 %v7044, %v7037
    %v8270 = vpack.c.b16 %v7045, %v7038
    %v8271 = vpack.c.b16 %v7046, %v7039
    %v8272 = vpack.c.b16 %v7047, %v7040
    %v8273 = vpack.c.b16 %v7055, %v7048
    %v8274 = vpack.c.b16 %v7056, %v7049
    %v8275 = vpack.c.b16 %v7057, %v7050
    %v8276 = vpack.c.b16 %v7058, %v7051
    %v8277 = vpack.c.b16 %v7059, %v7052
    %v8278 = vpack.c.b16 %v7060, %v7053
    %v8279 = vpack.c.b16 %v7061, %v7054
    %v8280 = vpack.c.b16 %v7069, %v7062
    %v8281 = vpack.c.b16 %v7070, %v7063
    %v8282 = vpack.c.b16 %v7071, %v7064
    %v8283 = vpack.c.b16 %v7072, %v7065
    %v8284 = vpack.c.b16 %v7073, %v7066
    %v8285 = vpack.c.b16 %v7074, %v7067
    %v8286 = vpack.c.b16 %v7075, %v7068
    %v8287 = vpack.c.b16 %v7083, %v7076
    %v8288 = vpack.c.b16 %v7084, %v7077
    %v8289 = vpack.c.b16 %v7085, %v7078
    %v8290 = vpack.c.b16 %v7086, %v7079
    %v8291 = vpack.c.b16 %v7087, %v7080
    %v8292 = vpack.c.b16 %v7088, %v7081
    %v8293 = vpack.c.b16 %v7089, %v7082
    %v8294 = vpack.c.b16 %v7097, %v7090
    %v8295 = vpack.c.b16 %v7098, %v7091
    %v8296 = vpack.c.b16 %v7099, %v7092
    %v8297 = vpack.c.b16 %v7100, %v7093
    %v8298 = vpack.c.b16 %v7101, %v7094
    %v8299 = vpack.c.b16 %v7102, %v7095
    %v8300 = vpack.c.b16 %v7103, %v7096
    %v8301 = vpack.c.b16 %v7111, %v7104
    %v8302 = vpack.c.b16 %v7112, %v7105
    %v8303 = vpack.c.b16 %v7113, %v7106
    %v8304 = vpack.c.b16 %v7114, %v7107
    %v8305 = vpack.c.b16 %v7115, %v7108
    %v8306 = vpack.c.b16 %v7116, %v7109
    %v8307 = vpack.c.b16 %v7117, %v7110
    %v8308 = vpack.c.b16 %v7125, %v7118
    %v8309 = vpack.c.b16 %v7126, %v7119
    %v8310 = vpack.c.b16 %v7127, %v7120
    %v8311 = vpack.c.b16 %v7128, %v7121
    %v8312 = vpack.c.b16 %v7129, %v7122
    %v8313 = vpack.c.b16 %v7130, %v7123
    %v8314 = vpack.c.b16 %v7131, %v7124
    %v8315 = vpack.c.b16 %v7139, %v7132
    %v8316 = vpack.c.b16 %v7140, %v7133
    %v8317 = vpack.c.b16 %v7141, %v7134
    %v8318 = vpack.c.b16 %v7142, %v7135
    %v8319 = vpack.c.b16 %v7143, %v7136
    %v8320 = vpack.c.b16 %v7144, %v7137
    %v8321 = vpack.c.b16 %v7145, %v7138
    %v8322 = vpack.c.b16 %v7153, %v7146
    %v8323 = vpack.c.b16 %v7154, %v7147
    %v8324 = vpack.c.b16 %v7155, %v7148
    %v8325 = vpack.c.b16 %v7156, %v7149
    %v8326 = vpack.c.b16 %v7157, %v7150
    %v8327 = vpack.c.b16 %v7158, %v7151
    %v8328 = vpack.c.b16 %v7159, %v7152
    %v8329 = vpack.c.b16 %v7167, %v7160
    %v8330 = vpack.c.b16 %v7168, %v7161
    %v8331 = vpack.c.b16 %v7169, %v7162
    %v8332 = vpack.c.b16 %v7170, %v7163
    %v8333 = vpack.c.b16 %v7171, %v7164
    %v8334 = vpack.c.b16 %v7172, %v7165
    %v8335 = vpack.c.b16 %v7173, %v7166
    %v8336 = vpack.c.b16 %v7181, %v7174
    %v8337 = vpack.c.b16 %v7182, %v7175
    %v8338 = vpack.c.b16 %v7183, %v7176
    %v8339 = vpack.c.b16 %v7184, %v7177
    %v8340 = vpack.c.b16 %v7185, %v7178
    %v8341 = vpack.c.b16 %v7186, %v7179
    %v8342 = vpack.c.b16 %v7187, %v7180
    %v8343 = vpack.c.b16 %v7195, %v7188
    %v8344 = vpack.c.b16 %v7196, %v7189
    %v8345 = vpack.c.b16 %v7197, %v7190
    %v8346 = vpack.c.b16 %v7198, %v7191
    %v8347 = vpack.c.b16 %v7199, %v7192
    %v8348 = vpack.c.b16 %v7200, %v7193
    %v8349 = vpack.c.b16 %v7201, %v7194
    %v8350 = vpack.c.b16 %v7209, %v7202
    %v8351 = vpack.c.b16 %v7210, %v7203
    %v8352 = vpack.c.b16 %v7211, %v7204
    %v8353 = vpack.c.b16 %v7212, %v7205
    %v8354 = vpack.c.b16 %v7213, %v7206
    %v8355 = vpack.c.b16 %v7214, %v7207
    %v8356 = vpack.c.b16 %v7215, %v7208
    %v8357 = vpack.c.b16 %v7223, %v7216
    %v8358 = vpack.c.b16 %v7224, %v7217
    %v8359 = vpack.c.b16 %v7225, %v7218
    %v8360 = vpack.c.b16 %v7226, %v7219
    %v8361 = vpack.c.b16 %v7227, %v7220
    %v8362 = vpack.c.b16 %v7228, %v7221
    %v8363 = vpack.c.b16 %v7229, %v7222
    %v8364 = vpack.c.b16 %v7237, %v7230
    %v8365 = vpack.c.b16 %v7238, %v7231
    %v8366 = vpack.c.b16 %v7239, %v7232
    %v8367 = vpack.c.b16 %v7240, %v7233
    %v8368 = vpack.c.b16 %v7241, %v7234
    %v8369 = vpack.c.b16 %v7242, %v7235
    %v8370 = vpack.c.b16 %v7243, %v7236
    %v8371 = vpack.c.b16 %v7251, %v7244
    %v8372 = vpack.c.b16 %v7252, %v7245
    %v8373 = vpack.c.b16 %v7253, %v7246
    %v8374 = vpack.c.b16 %v7254, %v7247
    %v8375 = vpack.c.b16 %v7255, %v7248
    %v8376 = vpack.c.b16 %v7256, %v7249
    %v8377 = vpack.c.b16 %v7257, %v7250
    %v8378 = vpack.c.b16 %v7265, %v7258
    %v8379 = vpack.c.b16 %v7266, %v7259
    %v8380 = vpack.c.b16 %v7267, %v7260
    %v8381 = vpack.c.b16 %v7268, %v7261
    %v8382 = vpack.c.b16 %v7269, %v7262
    %v8383 = vpack.c.b16 %v7270, %v7263
    %v8384 = vpack.c.b16 %v7271, %v7264
    %v8385 = vpack.c.b16 %v7279, %v7272
    %v8386 = vpack.c.b16 %v7280, %v7273
    %v8387 = vpack.c.b16 %v7281, %v7274
    %v8388 = vpack.c.b16 %v7282, %v7275
    %v8389 = vpack.c.b16 %v7283, %v7276
    %v8390 = vpack.c.b16 %v7284, %v7277
    %v8391 = vpack.c.b16 %v7285, %v7278
    %v8392 = vpack.c.b16 %v7293, %v7286
    %v8393 = vpack.c.b16 %v7294, %v7287
    %v8394 = vpack.c.b16 %v7295, %v7288
    %v8395 = vpack.c.b16 %v7296, %v7289
    %v8396 = vpack.c.b16 %v7297, %v7290
    %v8397 = vpack.c.b16 %v7298, %v7291
    %v8398 = vpack.c.b16 %v7299, %v7292
    %v8399 = vpack.c.b16 %v7307, %v7300
    %v8400 = vpack.c.b16 %v7308, %v7301
    %v8401 = vpack.c.b16 %v7309, %v7302
    %v8402 = vpack.c.b16 %v7310, %v7303
    %v8403 = vpack.c.b16 %v7311, %v7304
    %v8404 = vpack.c.b16 %v7312, %v7305
    %v8405 = vpack.c.b16 %v7313, %v7306
    %v8406 = vpack.c.b16 %v7321, %v7314
    %v8407 = vpack.c.b16 %v7322, %v7315
    %v8408 = vpack.c.b16 %v7323, %v7316
    %v8409 = vpack.c.b16 %v7324, %v7317
    %v8410 = vpack.c.b16 %v7325, %v7318
    %v8411 = vpack.c.b16 %v7326, %v7319
    %v8412 = vpack.c.b16 %v7327, %v7320
    %v8413 = vpack.c.b16 %v7335, %v7328
    %v8414 = vpack.c.b16 %v7336, %v7329
    %v8415 = vpack.c.b16 %v7337, %v7330
    %v8416 = vpack.c.b16 %v7338, %v7331
    %v8417 = vpack.c.b16 %v7339, %v7332
    %v8418 = vpack.c.b16 %v7340, %v7333
    %v8419 = vpack.c.b16 %v7341, %v7334
    %v8420 = vpack.c.b16 %v7349, %v7342
    %v8421 = vpack.c.b16 %v7350, %v7343
    %v8422 = vpack.c.b16 %v7351, %v7344
    %v8423 = vpack.c.b16 %v7352, %v7345
    %v8424 = vpack.c.b16 %v7353, %v7346
    %v8425 = vpack.c.b16 %v7354, %v7347
    %v8426 = vpack.c.b16 %v7355, %v7348
    %v8427 = vpack.c.b16 %v7363, %v7356
    %v8428 = vpack.c.b16 %v7364, %v7357
    %v8429 = vpack.c.b16 %v7365, %v7358
    %v8430 = vpack.c.b16 %v7366, %v7359
    %v8431 = vpack.c.b16 %v7367, %v7360
    %v8432 = vpack.c.b16 %v7368, %v7361
    %v8433 = vpack.c.b16 %v7369, %v7362
    %v8434 = vpack.c.b16 %v7377, %v7370
    %v8435 = vpack.c.b16 %v7378, %v7371
    %v8436 = vpack.c.b16 %v7379, %v7372
    %v8437 = vpack.c.b16 %v7380, %v7373
    %v8438 = vpack.c.b16 %v7381, %v7374
    %v8439 = vpack.c.b16 %v7382, %v7375
    %v8440 = vpack.c.b16 %v7383, %v7376
    %v8441 = vpack.c.b16 %v7391, %v7384
    %v8442 = vpack.c.b16 %v7392, %v7385
    %v8443 = vpack.c.b16 %v7393, %v7386
    %v8444 = vpack.c.b16 %v7394, %v7387
    %v8445 = vpack.c.b16 %v7395, %v7388
    %v8446 = vpack.c.b16 %v7396, %v7389
    %v8447 = vpack.c.b16 %v7397, %v7390
    %v8448 = vpack.c.b16 %v7405, %v7398
    %v8449 = vpack.c.b16 %v7406, %v7399
    %v8450 = vpack.c.b16 %v7407, %v7400
    %v8451 = vpack.c.b16 %v7408, %v7401
    %v8452 = vpack.c.b16 %v7409, %v7402
    %v8453 = vpack.c.b16 %v7410, %v7403
    %v8454 = vpack.c.b16 %v7411, %v7404
    %v8455 = vpack.c.b16 %v7419, %v7412
    %v8456 = vpack.c.b16 %v7420, %v7413
    %v8457 = vpack.c.b16 %v7421, %v7414
    %v8458 = vpack.c.b16 %v7422, %v7415
    %v8459 = vpack.c.b16 %v7423, %v7416
    %v8460 = vpack.c.b16 %v7424, %v7417
    %v8461 = vpack.c.b16 %v7425, %v7418
    %v8462 = vpack.c.b16 %v7433, %v7426
    %v8463 = vpack.c.b16 %v7434, %v7427
    %v8464 = vpack.c.b16 %v7435, %v7428
    %v8465 = vpack.c.b16 %v7436, %v7429
    %v8466 = vpack.c.b16 %v7437, %v7430
    %v8467 = vpack.c.b16 %v7438, %v7431
    %v8468 = vpack.c.b16 %v7439, %v7432
    %v8469 = vpack.c.b16 %v7447, %v7440
    %v8470 = vpack.c.b16 %v7448, %v7441
    %v8471 = vpack.c.b16 %v7449, %v7442
    %v8472 = vpack.c.b16 %v7450, %v7443
    %v8473 = vpack.c.b16 %v7451, %v7444
    %v8474 = vpack.c.b16 %v7452, %v7445
    %v8475 = vpack.c.b16 %v7453, %v7446
    %v8476 = vpack.c.b16 %v7461, %v7454
    %v8477 = vpack.c.b16 %v7462, %v7455
    %v8478 = vpack.c.b16 %v7463, %v7456
    %v8479 = vpack.c.b16 %v7464, %v7457
    %v8480 = vpack.c.b16 %v7465, %v7458
    %v8481 = vpack.c.b16 %v7466, %v7459
    %v8482 = vpack.c.b16 %v7467, %v7460
    %v8483 = vpack.c.b16 %v7475, %v7468
    %v8484 = vpack.c.b16 %v7476, %v7469
    %v8485 = vpack.c.b16 %v7477, %v7470
    %v8486 = vpack.c.b16 %v7478, %v7471
    %v8487 = vpack.c.b16 %v7479, %v7472
    %v8488 = vpack.c.b16 %v7480, %v7473
    %v8489 = vpack.c.b16 %v7481, %v7474
    %v8490 = vpack.c.b16 %v7489, %v7482
    %v8491 = vpack.c.b16 %v7490, %v7483
    %v8492 = vpack.c.b16 %v7491, %v7484
    %v8493 = vpack.c.b16 %v7492, %v7485
    %v8494 = vpack.c.b16 %v7493, %v7486
    %v8495 = vpack.c.b16 %v7494, %v7487
    %v8496 = vpack.c.b16 %v7495, %v7488
    %v8497 = vpack.c.b16 %v7503, %v7496
    %v8498 = vpack.c.b16 %v7504, %v7497
    %v8499 = vpack.c.b16 %v7505, %v7498
    %v8500 = vpack.c.b16 %v7506, %v7499
    %v8501 = vpack.c.b16 %v7507, %v7500
    %v8502 = vpack.c.b16 %v7508, %v7501
    %v8503 = vpack.c.b16 %v7509, %v7502
    %v8504 = vpack.c.b16 %v7517, %v7510
    %v8505 = vpack.c.b16 %v7518, %v7511
    %v8506 = vpack.c.b16 %v7519, %v7512
    %v8507 = vpack.c.b16 %v7520, %v7513
    %v8508 = vpack.c.b16 %v7521, %v7514
    %v8509 = vpack.c.b16 %v7522, %v7515
    %v8510 = vpack.c.b16 %v7523, %v7516
    %v8511 = vpack.c.b16 %v7531, %v7524
    %v8512 = vpack.c.b16 %v7532, %v7525
    %v8513 = vpack.c.b16 %v7533, %v7526
    %v8514 = vpack.c.b16 %v7534, %v7527
    %v8515 = vpack.c.b16 %v7535, %v7528
    %v8516 = vpack.c.b16 %v7536, %v7529
    %v8517 = vpack.c.b16 %v7537, %v7530
    %v8518 = vpack.c.b16 %v7545, %v7538
    %v8519 = vpack.c.b16 %v7546, %v7539
    %v8520 = vpack.c.b16 %v7547, %v7540
    %v8521 = vpack.c.b16 %v7548, %v7541
    %v8522 = vpack.c.b16 %v7549, %v7542
    %v8523 = vpack.c.b16 %v7550, %v7543
    %v8524 = vpack.c.b16 %v7551, %v7544
    %v8525 = vpack.c.b16 %v7559, %v7552
    %v8526 = vpack.c.b16 %v7560, %v7553
    %v8527 = vpack.c.b16 %v7561, %v7554
    %v8528 = vpack.c.b16 %v7562, %v7555
    %v8529 = vpack.c.b16 %v7563, %v7556
    %v8530 = vpack.c.b16 %v7564, %v7557
    %v8531 = vpack.c.b16 %v7565, %v7558
    %v8532 = vpack.c.b16 %v7573, %v7566
    %v8533 = vpack.c.b16 %v7574, %v7567
    %v8534 = vpack.c.b16 %v7575, %v7568
    %v8535 = vpack.c.b16 %v7576, %v7569
    %v8536 = vpack.c.b16 %v7577, %v7570
    %v8537 = vpack.c.b16 %v7578, %v7571
    %v8538 = vpack.c.b16 %v7579, %v7572
    %v8539 = vpack.c.b16 %v7587, %v7580
    %v8540 = vpack.c.b16 %v7588, %v7581
    %v8541 = vpack.c.b16 %v7589, %v7582
    %v8542 = vpack.c.b16 %v7590, %v7583
    %v8543 = vpack.c.b16 %v7591, %v7584
    %v8544 = vpack.c.b16 %v7592, %v7585
    %v8545 = vpack.c.b16 %v7593, %v7586
    %v8546 = vpack.c.b16 %v7601, %v7594
    %v8547 = vpack.c.b16 %v7602, %v7595
    %v8548 = vpack.c.b16 %v7603, %v7596
    %v8549 = vpack.c.b16 %v7604, %v7597
    %v8550 = vpack.c.b16 %v7605, %v7598
    %v8551 = vpack.c.b16 %v7606, %v7599
    %v8552 = vpack.c.b16 %v7607, %v7600
    %v8553 = vpack.c.b16 %v7615, %v7608
    %v8554 = vpack.c.b16 %v7616, %v7609
    %v8555 = vpack.c.b16 %v7617, %v7610
    %v8556 = vpack.c.b16 %v7618, %v7611
    %v8557 = vpack.c.b16 %v7619, %v7612
    %v8558 = vpack.c.b16 %v7620, %v7613
    %v8559 = vpack.c.b16 %v7621, %v7614
    %v8560 = vpack.c.b16 %v7629, %v7622
    %v8561 = vpack.c.b16 %v7630, %v7623
    %v8562 = vpack.c.b16 %v7631, %v7624
    %v8563 = vpack.c.b16 %v7632, %v7625
    %v8564 = vpack.c.b16 %v7633, %v7626
    %v8565 = vpack.c.b16 %v7634, %v7627
    %v8566 = vpack.c.b16 %v7635, %v7628
    %v8567 = vpack.c.b16 %v7643, %v7636
    %v8568 = vpack.c.b16 %v7644, %v7637
    %v8569 = vpack.c.b16 %v7645, %v7638
    %v8570 = vpack.c.b16 %v7646, %v7639
    %v8571 = vpack.c.b16 %v7647, %v7640
    %v8572 = vpack.c.b16 %v7648, %v7641
    %v8573 = vpack.c.b16 %v7649, %v7642
    %v8574 = vpack.c.b16 %v7657, %v7650
    %v8575 = vpack.c.b16 %v7658, %v7651
    %v8576 = vpack.c.b16 %v7659, %v7652
    %v8577 = vpack.c.b16 %v7660, %v7653
    %v8578 = vpack.c.b16 %v7661, %v7654
    %v8579 = vpack.c.b16 %v7662, %v7655
    %v8580 = vpack.c.b16 %v7663, %v7656
    %v8581 = vpack.c.b16 %v7671, %v7664
    %v8582 = vpack.c.b16 %v7672, %v7665
    %v8583 = vpack.c.b16 %v7673, %v7666
    %v8584 = vpack.c.b16 %v7674, %v7667
    %v8585 = vpack.c.b16 %v7675, %v7668
    %v8586 = vpack.c.b16 %v7676, %v7669
    %v8587 = vpack.c.b16 %v7677, %v7670
    %v8588 = vpack.c.b16 %v7685, %v7678
    %v8589 = vpack.c.b16 %v7686, %v7679
    %v8590 = vpack.c.b16 %v7687, %v7680
    %v8591 = vpack.c.b16 %v7688, %v7681
    %v8592 = vpack.c.b16 %v7689, %v7682
    %v8593 = vpack.c.b16 %v7690, %v7683
    %v8594 = vpack.c.b16 %v7691, %v7684
    %v8595 = vpack.c.b16 %v7699, %v7692
    %v8596 = vpack.c.b16 %v7700, %v7693
    %v8597 = vpack.c.b16 %v7701, %v7694
    %v8598 = vpack.c.b16 %v7702, %v7695
    %v8599 = vpack.c.b16 %v7703, %v7696
    %v8600 = vpack.c.b16 %v7704, %v7697
    %v8601 = vpack.c.b16 %v7705, %v7698
    %v8602 = vpack.c.b16 %v7713, %v7706
    %v8603 = vpack.c.b16 %v7714, %v7707
    %v8604 = vpack.c.b16 %v7715, %v7708
    %v8605 = vpack.c.b16 %v7716, %v7709
    %v8606 = vpack.c.b16 %v7717, %v7710
    %v8607 = vpack.c.b16 %v7718, %v7711
    %v8608 = vpack.c.b16 %v7719, %v7712
    %v8609 = vpack.c.b16 %v7727, %v7720
    %v8610 = vpack.c.b16 %v7728, %v7721
    %v8611 = vpack.c.b16 %v7729, %v7722
    %v8612 = vpack.c.b16 %v7730, %v7723
    %v8613 = vpack.c.b16 %v7731, %v7724
    %v8614 = vpack.c.b16 %v7732, %v7725
    %v8615 = vpack.c.b16 %v7733, %v7726
    %v8616 = vpack.c.b16 %v7741, %v7734
    %v8617 = vpack.c.b16 %v7742, %v7735
    %v8618 = vpack.c.b16 %v7743, %v7736
    %v8619 = vpack.c.b16 %v7744, %v7737
    %v8620 = vpack.c.b16 %v7745, %v7738
    %v8621 = vpack.c.b16 %v7746, %v7739
    %v8622 = vpack.c.b16 %v7747, %v7740
    %v8623 = vpack.c.b16 %v7755, %v7748
    %v8624 = vpack.c.b16 %v7756, %v7749
    %v8625 = vpack.c.b16 %v7757, %v7750
    %v8626 = vpack.c.b16 %v7758, %v7751
    %v8627 = vpack.c.b16 %v7759, %v7752
    %v8628 = vpack.c.b16 %v7760, %v7753
    %v8629 = vpack.c.b16 %v7761, %v7754
    %v8630 = vpack.c.b16 %v7769, %v7762
    %v8631 = vpack.c.b16 %v7770, %v7763
    %v8632 = vpack.c.b16 %v7771, %v7764
    %v8633 = vpack.c.b16 %v7772, %v7765
    %v8634 = vpack.c.b16 %v7773, %v7766
    %v8635 = vpack.c.b16 %v7774, %v7767
    %v8636 = vpack.c.b16 %v7775, %v7768
    %v8637 = vpack.c.b16 %v7783, %v7776
    %v8638 = vpack.c.b16 %v7784, %v7777
    %v8639 = vpack.c.b16 %v7785, %v7778
    %v8640 = vpack.c.b16 %v7786, %v7779
    %v8641 = vpack.c.b16 %v7787, %v7780
    %v8642 = vpack.c.b16 %v7788, %v7781
    %v8643 = vpack.c.b16 %v7789, %v7782
    %v8644 = vpack.c.b16 %v7797, %v7790
    %v8645 = vpack.c.b16 %v7798, %v7791
    %v8646 = vpack.c.b16 %v7799, %v7792
    %v8647 = vpack.c.b16 %v7800, %v7793
    %v8648 = vpack.c.b16 %v7801, %v7794
    %v8649 = vpack.c.b16 %v7802, %v7795
    %v8650 = vpack.c.b16 %v7803, %v7796
    %v8651 = vpack.c.b16 %v7811, %v7804
    %v8652 = vpack.c.b16 %v7812, %v7805
    %v8653 = vpack.c.b16 %v7813, %v7806
    %v8654 = vpack.c.b16 %v7814, %v7807
    %v8655 = vpack.c.b16 %v7815, %v7808
    %v8656 = vpack.c.b16 %v7816, %v7809
    %v8657 = vpack.c.b16 %v7817, %v7810
    %9498 = vmatpush.bf16.msra.mxu0 %v7867
    %9499 = vmatpush.bf16.msra.mxu0 %v7860
    %9500 = vmatpush.bf16.msra.mxu0 %v7853
    %9501 = vmatpush.bf16.msra.mxu0 %v7846
    %9502 = vmatpush.bf16.msra.mxu0 %v7839
    %9503 = vmatpush.bf16.msra.mxu0 %v7832
    %9504 = vmatpush.bf16.msra.mxu0 %v7825
    %9505 = vmatpush.bf16.msra.mxu0 %v7818
    %9506 = vmatmul.bf16.gmra.mxu0 %v4187
    %v9507 = vpop.f32.mrf.mxu0
    %v9508 = vadd.f32 %v5164, %v9507
    %v9509 = vpop.f32.mrf.mxu0
    %9510 = vdwg.mxu0
    %9511 = vmatpush.bf16.msra.mxu0 %v7923
    %9512 = vmatpush.bf16.msra.mxu0 %v7916
    %9513 = vmatpush.bf16.msra.mxu0 %v7909
    %9514 = vmatpush.bf16.msra.mxu0 %v7902
    %9515 = vmatpush.bf16.msra.mxu0 %v7895
    %9516 = vmatpush.bf16.msra.mxu0 %v7888
    %9517 = vmatpush.bf16.msra.mxu0 %v7881
    %9518 = vmatpush.bf16.msra.mxu0 %v7874
    %9519 = vmatmul.bf16.gmra.mxu0 %v4188
    %v9520 = vpop.f32.mrf.mxu0
    %v9521 = vadd.f32 %v9508, %v9520
    %v9522 = vpop.f32.mrf.mxu0
    %9523 = vdwg.mxu0
    %9524 = vmatpush.bf16.msra.mxu0 %v7979
    %9525 = vmatpush.bf16.msra.mxu0 %v7972
    %9526 = vmatpush.bf16.msra.mxu0 %v7965
    %9527 = vmatpush.bf16.msra.mxu0 %v7958
    %9528 = vmatpush.bf16.msra.mxu0 %v7951
    %9529 = vmatpush.bf16.msra.mxu0 %v7944
    %9530 = vmatpush.bf16.msra.mxu0 %v7937
    %9531 = vmatpush.bf16.msra.mxu0 %v7930
    %9532 = vmatmul.bf16.gmra.mxu0 %v4189
    %v9533 = vpop.f32.mrf.mxu0
    %v9534 = vadd.f32 %v9521, %v9533
    %v9535 = vpop.f32.mrf.mxu0
    %9536 = vdwg.mxu0
    %9537 = vmatpush.bf16.msra.mxu0 %v8035
    %9538 = vmatpush.bf16.msra.mxu0 %v8028
    %9539 = vmatpush.bf16.msra.mxu0 %v8021
    %9540 = vmatpush.bf16.msra.mxu0 %v8014
    %9541 = vmatpush.bf16.msra.mxu0 %v8007
    %9542 = vmatpush.bf16.msra.mxu0 %v8000
    %9543 = vmatpush.bf16.msra.mxu0 %v7993
    %9544 = vmatpush.bf16.msra.mxu0 %v7986
    %9545 = vmatmul.bf16.gmra.mxu0 %v4190
    %v9546 = vpop.f32.mrf.mxu0
    %v9547 = vadd.f32 %v9534, %v9546
    %v9548 = vpop.f32.mrf.mxu0
    %9549 = vdwg.mxu0
    %9550 = vmatpush.bf16.msra.mxu0 %v8091
    %9551 = vmatpush.bf16.msra.mxu0 %v8084
    %9552 = vmatpush.bf16.msra.mxu0 %v8077
    %9553 = vmatpush.bf16.msra.mxu0 %v8070
    %9554 = vmatpush.bf16.msra.mxu0 %v8063
    %9555 = vmatpush.bf16.msra.mxu0 %v8056
    %9556 = vmatpush.bf16.msra.mxu0 %v8049
    %9557 = vmatpush.bf16.msra.mxu0 %v8042
    %9558 = vmatmul.bf16.gmra.mxu0 %v4191
    %v9559 = vpop.f32.mrf.mxu0
    %v9560 = vadd.f32 %v9547, %v9559
    %v9561 = vpop.f32.mrf.mxu0
    %9562 = vdwg.mxu0
    %9563 = vmatpush.bf16.msra.mxu0 %v8147
    %9564 = vmatpush.bf16.msra.mxu0 %v8140
    %9565 = vmatpush.bf16.msra.mxu0 %v8133
    %9566 = vmatpush.bf16.msra.mxu0 %v8126
    %9567 = vmatpush.bf16.msra.mxu0 %v8119
    %9568 = vmatpush.bf16.msra.mxu0 %v8112
    %9569 = vmatpush.bf16.msra.mxu0 %v8105
    %9570 = vmatpush.bf16.msra.mxu0 %v8098
    %9571 = vmatmul.bf16.gmra.mxu0 %v4192
    %v9572 = vpop.f32.mrf.mxu0
    %v9573 = vadd.f32 %v9560, %v9572
    %v9574 = vpop.f32.mrf.mxu0
    %9575 = vdwg.mxu0
    %9576 = vmatpush.bf16.msra.mxu0 %v8203
    %9577 = vmatpush.bf16.msra.mxu0 %v8196
    %9578 = vmatpush.bf16.msra.mxu0 %v8189
    %9579 = vmatpush.bf16.msra.mxu0 %v8182
    %9580 = vmatpush.bf16.msra.mxu0 %v8175
    %9581 = vmatpush.bf16.msra.mxu0 %v8168
    %9582 = vmatpush.bf16.msra.mxu0 %v8161
    %9583 = vmatpush.bf16.msra.mxu0 %v8154
    %9584 = vmatmul.bf16.gmra.mxu0 %v4193
    %v9585 = vpop.f32.mrf.mxu0
    %v9586 = vadd.f32 %v9573, %v9585
    %v9587 = vpop.f32.mrf.mxu0
    %9588 = vdwg.mxu0
    %9589 = vmatpush.bf16.msra.mxu0 %v8259
    %9590 = vmatpush.bf16.msra.mxu0 %v8252
    %9591 = vmatpush.bf16.msra.mxu0 %v8245
    %9592 = vmatpush.bf16.msra.mxu0 %v8238
    %9593 = vmatpush.bf16.msra.mxu0 %v8231
    %9594 = vmatpush.bf16.msra.mxu0 %v8224
    %9595 = vmatpush.bf16.msra.mxu0 %v8217
    %9596 = vmatpush.bf16.msra.mxu0 %v8210
    %9597 = vmatmul.bf16.gmra.mxu0 %v4194
    %v9598 = vpop.f32.mrf.mxu0
    %v9599 = vadd.f32 %v9586, %v9598
    %v9600 = vpop.f32.mrf.mxu0
    %9601 = vdwg.mxu0
    %9602 = vmatpush.bf16.msra.mxu0 %v8315
    %9603 = vmatpush.bf16.msra.mxu0 %v8308
    %9604 = vmatpush.bf16.msra.mxu0 %v8301
    %9605 = vmatpush.bf16.msra.mxu0 %v8294
    %9606 = vmatpush.bf16.msra.mxu0 %v8287
    %9607 = vmatpush.bf16.msra.mxu0 %v8280
    %9608 = vmatpush.bf16.msra.mxu0 %v8273
    %9609 = vmatpush.bf16.msra.mxu0 %v8266
    %9610 = vmatmul.bf16.gmra.mxu0 %v4195
    %v9611 = vpop.f32.mrf.mxu0
    %v9612 = vadd.f32 %v9599, %v9611
    %v9613 = vpop.f32.mrf.mxu0
    %9614 = vdwg.mxu0
    %9615 = vmatpush.bf16.msra.mxu0 %v8371
    %9616 = vmatpush.bf16.msra.mxu0 %v8364
    %9617 = vmatpush.bf16.msra.mxu0 %v8357
    %9618 = vmatpush.bf16.msra.mxu0 %v8350
    %9619 = vmatpush.bf16.msra.mxu0 %v8343
    %9620 = vmatpush.bf16.msra.mxu0 %v8336
    %9621 = vmatpush.bf16.msra.mxu0 %v8329
    %9622 = vmatpush.bf16.msra.mxu0 %v8322
    %9623 = vmatmul.bf16.gmra.mxu0 %v4196
    %v9624 = vpop.f32.mrf.mxu0
    %v9625 = vadd.f32 %v9612, %v9624
    %v9626 = vpop.f32.mrf.mxu0
    %9627 = vdwg.mxu0
    %9628 = vmatpush.bf16.msra.mxu0 %v8427
    %9629 = vmatpush.bf16.msra.mxu0 %v8420
    %9630 = vmatpush.bf16.msra.mxu0 %v8413
    %9631 = vmatpush.bf16.msra.mxu0 %v8406
    %9632 = vmatpush.bf16.msra.mxu0 %v8399
    %9633 = vmatpush.bf16.msra.mxu0 %v8392
    %9634 = vmatpush.bf16.msra.mxu0 %v8385
    %9635 = vmatpush.bf16.msra.mxu0 %v8378
    %9636 = vmatmul.bf16.gmra.mxu0 %v4197
    %v9637 = vpop.f32.mrf.mxu0
    %v9638 = vadd.f32 %v9625, %v9637
    %v9639 = vpop.f32.mrf.mxu0
    %9640 = vdwg.mxu0
    %9641 = vmatpush.bf16.msra.mxu0 %v8483
    %9642 = vmatpush.bf16.msra.mxu0 %v8476
    %9643 = vmatpush.bf16.msra.mxu0 %v8469
    %9644 = vmatpush.bf16.msra.mxu0 %v8462
    %9645 = vmatpush.bf16.msra.mxu0 %v8455
    %9646 = vmatpush.bf16.msra.mxu0 %v8448
    %9647 = vmatpush.bf16.msra.mxu0 %v8441
    %9648 = vmatpush.bf16.msra.mxu0 %v8434
    %9649 = vmatmul.bf16.gmra.mxu0 %v4198
    %v9650 = vpop.f32.mrf.mxu0
    %v9651 = vadd.f32 %v9638, %v9650
    %v9652 = vpop.f32.mrf.mxu0
    %9653 = vdwg.mxu0
    %9654 = vmatpush.bf16.msra.mxu0 %v8539
    %9655 = vmatpush.bf16.msra.mxu0 %v8532
    %9656 = vmatpush.bf16.msra.mxu0 %v8525
    %9657 = vmatpush.bf16.msra.mxu0 %v8518
    %9658 = vmatpush.bf16.msra.mxu0 %v8511
    %9659 = vmatpush.bf16.msra.mxu0 %v8504
    %9660 = vmatpush.bf16.msra.mxu0 %v8497
    %9661 = vmatpush.bf16.msra.mxu0 %v8490
    %9662 = vmatmul.bf16.gmra.mxu0 %v4199
    %v9663 = vpop.f32.mrf.mxu0
    %v9664 = vadd.f32 %v9651, %v9663
    %v9665 = vpop.f32.mrf.mxu0
    %9666 = vdwg.mxu0
    %9667 = vmatpush.bf16.msra.mxu0 %v8595
    %9668 = vmatpush.bf16.msra.mxu0 %v8588
    %9669 = vmatpush.bf16.msra.mxu0 %v8581
    %9670 = vmatpush.bf16.msra.mxu0 %v8574
    %9671 = vmatpush.bf16.msra.mxu0 %v8567
    %9672 = vmatpush.bf16.msra.mxu0 %v8560
    %9673 = vmatpush.bf16.msra.mxu0 %v8553
    %9674 = vmatpush.bf16.msra.mxu0 %v8546
    %9675 = vmatmul.bf16.gmra.mxu0 %v4200
    %v9676 = vpop.f32.mrf.mxu0
    %v9677 = vadd.f32 %v9664, %v9676
    %v9678 = vpop.f32.mrf.mxu0
    %9679 = vdwg.mxu0
    %9680 = vmatpush.bf16.msra.mxu0 %v8651
    %9681 = vmatpush.bf16.msra.mxu0 %v8644
    %9682 = vmatpush.bf16.msra.mxu0 %v8637
    %9683 = vmatpush.bf16.msra.mxu0 %v8630
    %9684 = vmatpush.bf16.msra.mxu0 %v8623
    %9685 = vmatpush.bf16.msra.mxu0 %v8616
    %9686 = vmatpush.bf16.msra.mxu0 %v8609
    %9687 = vmatpush.bf16.msra.mxu0 %v8602
    %9688 = vmatmul.bf16.gmra.mxu0 %v4201
    %v9689 = vpop.f32.mrf.mxu0
    %v9690 = vadd.f32 %v9677, %v9689
    %v9691 = vpop.f32.mrf.mxu0
    %9692 = vdwg.mxu0
    %9693 = vmatpush.bf16.msra.mxu0 %v7868
    %9694 = vmatpush.bf16.msra.mxu0 %v7861
    %9695 = vmatpush.bf16.msra.mxu0 %v7854
    %9696 = vmatpush.bf16.msra.mxu0 %v7847
    %9697 = vmatpush.bf16.msra.mxu0 %v7840
    %9698 = vmatpush.bf16.msra.mxu0 %v7833
    %9699 = vmatpush.bf16.msra.mxu0 %v7826
    %9700 = vmatpush.bf16.msra.mxu0 %v7819
    %9701 = vmatmul.bf16.gmra.mxu0 %v4187
    %v9702 = vpop.f32.mrf.mxu0
    %v9703 = vadd.f32 %v5165, %v9702
    %v9704 = vpop.f32.mrf.mxu0
    %9705 = vdwg.mxu0
    %9706 = vmatpush.bf16.msra.mxu0 %v7924
    %9707 = vmatpush.bf16.msra.mxu0 %v7917
    %9708 = vmatpush.bf16.msra.mxu0 %v7910
    %9709 = vmatpush.bf16.msra.mxu0 %v7903
    %9710 = vmatpush.bf16.msra.mxu0 %v7896
    %9711 = vmatpush.bf16.msra.mxu0 %v7889
    %9712 = vmatpush.bf16.msra.mxu0 %v7882
    %9713 = vmatpush.bf16.msra.mxu0 %v7875
    %9714 = vmatmul.bf16.gmra.mxu0 %v4188
    %v9715 = vpop.f32.mrf.mxu0
    %v9716 = vadd.f32 %v9703, %v9715
    %v9717 = vpop.f32.mrf.mxu0
    %9718 = vdwg.mxu0
    %9719 = vmatpush.bf16.msra.mxu0 %v7980
    %9720 = vmatpush.bf16.msra.mxu0 %v7973
    %9721 = vmatpush.bf16.msra.mxu0 %v7966
    %9722 = vmatpush.bf16.msra.mxu0 %v7959
    %9723 = vmatpush.bf16.msra.mxu0 %v7952
    %9724 = vmatpush.bf16.msra.mxu0 %v7945
    %9725 = vmatpush.bf16.msra.mxu0 %v7938
    %9726 = vmatpush.bf16.msra.mxu0 %v7931
    %9727 = vmatmul.bf16.gmra.mxu0 %v4189
    %v9728 = vpop.f32.mrf.mxu0
    %v9729 = vadd.f32 %v9716, %v9728
    %v9730 = vpop.f32.mrf.mxu0
    %9731 = vdwg.mxu0
    %9732 = vmatpush.bf16.msra.mxu0 %v8036
    %9733 = vmatpush.bf16.msra.mxu0 %v8029
    %9734 = vmatpush.bf16.msra.mxu0 %v8022
    %9735 = vmatpush.bf16.msra.mxu0 %v8015
    %9736 = vmatpush.bf16.msra.mxu0 %v8008
    %9737 = vmatpush.bf16.msra.mxu0 %v8001
    %9738 = vmatpush.bf16.msra.mxu0 %v7994
    %9739 = vmatpush.bf16.msra.mxu0 %v7987
    %9740 = vmatmul.bf16.gmra.mxu0 %v4190
    %v9741 = vpop.f32.mrf.mxu0
    %v9742 = vadd.f32 %v9729, %v9741
    %v9743 = vpop.f32.mrf.mxu0
    %9744 = vdwg.mxu0
    %9745 = vmatpush.bf16.msra.mxu0 %v8092
    %9746 = vmatpush.bf16.msra.mxu0 %v8085
    %9747 = vmatpush.bf16.msra.mxu0 %v8078
    %9748 = vmatpush.bf16.msra.mxu0 %v8071
    %9749 = vmatpush.bf16.msra.mxu0 %v8064
    %9750 = vmatpush.bf16.msra.mxu0 %v8057
    %9751 = vmatpush.bf16.msra.mxu0 %v8050
    %9752 = vmatpush.bf16.msra.mxu0 %v8043
    %9753 = vmatmul.bf16.gmra.mxu0 %v4191
    %v9754 = vpop.f32.mrf.mxu0
    %v9755 = vadd.f32 %v9742, %v9754
    %v9756 = vpop.f32.mrf.mxu0
    %9757 = vdwg.mxu0
    %9758 = vmatpush.bf16.msra.mxu0 %v8148
    %9759 = vmatpush.bf16.msra.mxu0 %v8141
    %9760 = vmatpush.bf16.msra.mxu0 %v8134
    %9761 = vmatpush.bf16.msra.mxu0 %v8127
    %9762 = vmatpush.bf16.msra.mxu0 %v8120
    %9763 = vmatpush.bf16.msra.mxu0 %v8113
    %9764 = vmatpush.bf16.msra.mxu0 %v8106
    %9765 = vmatpush.bf16.msra.mxu0 %v8099
    %9766 = vmatmul.bf16.gmra.mxu0 %v4192
    %v9767 = vpop.f32.mrf.mxu0
    %v9768 = vadd.f32 %v9755, %v9767
    %v9769 = vpop.f32.mrf.mxu0
    %9770 = vdwg.mxu0
    %9771 = vmatpush.bf16.msra.mxu0 %v8204
    %9772 = vmatpush.bf16.msra.mxu0 %v8197
    %9773 = vmatpush.bf16.msra.mxu0 %v8190
    %9774 = vmatpush.bf16.msra.mxu0 %v8183
    %9775 = vmatpush.bf16.msra.mxu0 %v8176
    %9776 = vmatpush.bf16.msra.mxu0 %v8169
    %9777 = vmatpush.bf16.msra.mxu0 %v8162
    %9778 = vmatpush.bf16.msra.mxu0 %v8155
    %9779 = vmatmul.bf16.gmra.mxu0 %v4193
    %v9780 = vpop.f32.mrf.mxu0
    %v9781 = vadd.f32 %v9768, %v9780
    %v9782 = vpop.f32.mrf.mxu0
    %9783 = vdwg.mxu0
    %9784 = vmatpush.bf16.msra.mxu0 %v8260
    %9785 = vmatpush.bf16.msra.mxu0 %v8253
    %9786 = vmatpush.bf16.msra.mxu0 %v8246
    %9787 = vmatpush.bf16.msra.mxu0 %v8239
    %9788 = vmatpush.bf16.msra.mxu0 %v8232
    %9789 = vmatpush.bf16.msra.mxu0 %v8225
    %9790 = vmatpush.bf16.msra.mxu0 %v8218
    %9791 = vmatpush.bf16.msra.mxu0 %v8211
    %9792 = vmatmul.bf16.gmra.mxu0 %v4194
    %v9793 = vpop.f32.mrf.mxu0
    %v9794 = vadd.f32 %v9781, %v9793
    %v9795 = vpop.f32.mrf.mxu0
    %9796 = vdwg.mxu0
    %9797 = vmatpush.bf16.msra.mxu0 %v8316
    %9798 = vmatpush.bf16.msra.mxu0 %v8309
    %9799 = vmatpush.bf16.msra.mxu0 %v8302
    %9800 = vmatpush.bf16.msra.mxu0 %v8295
    %9801 = vmatpush.bf16.msra.mxu0 %v8288
    %9802 = vmatpush.bf16.msra.mxu0 %v8281
    %9803 = vmatpush.bf16.msra.mxu0 %v8274
    %9804 = vmatpush.bf16.msra.mxu0 %v8267
    %9805 = vmatmul.bf16.gmra.mxu0 %v4195
    %v9806 = vpop.f32.mrf.mxu0
    %v9807 = vadd.f32 %v9794, %v9806
    %v9808 = vpop.f32.mrf.mxu0
    %9809 = vdwg.mxu0
    %9810 = vmatpush.bf16.msra.mxu0 %v8372
    %9811 = vmatpush.bf16.msra.mxu0 %v8365
    %9812 = vmatpush.bf16.msra.mxu0 %v8358
    %9813 = vmatpush.bf16.msra.mxu0 %v8351
    %9814 = vmatpush.bf16.msra.mxu0 %v8344
    %9815 = vmatpush.bf16.msra.mxu0 %v8337
    %9816 = vmatpush.bf16.msra.mxu0 %v8330
    %9817 = vmatpush.bf16.msra.mxu0 %v8323
    %9818 = vmatmul.bf16.gmra.mxu0 %v4196
    %v9819 = vpop.f32.mrf.mxu0
    %v9820 = vadd.f32 %v9807, %v9819
    %v9821 = vpop.f32.mrf.mxu0
    %9822 = vdwg.mxu0
    %9823 = vmatpush.bf16.msra.mxu0 %v8428
    %9824 = vmatpush.bf16.msra.mxu0 %v8421
    %9825 = vmatpush.bf16.msra.mxu0 %v8414
    %9826 = vmatpush.bf16.msra.mxu0 %v8407
    %9827 = vmatpush.bf16.msra.mxu0 %v8400
    %9828 = vmatpush.bf16.msra.mxu0 %v8393
    %9829 = vmatpush.bf16.msra.mxu0 %v8386
    %9830 = vmatpush.bf16.msra.mxu0 %v8379
    %9831 = vmatmul.bf16.gmra.mxu0 %v4197
    %v9832 = vpop.f32.mrf.mxu0
    %v9833 = vadd.f32 %v9820, %v9832
    %v9834 = vpop.f32.mrf.mxu0
    %9835 = vdwg.mxu0
    %9836 = vmatpush.bf16.msra.mxu0 %v8484
    %9837 = vmatpush.bf16.msra.mxu0 %v8477
    %9838 = vmatpush.bf16.msra.mxu0 %v8470
    %9839 = vmatpush.bf16.msra.mxu0 %v8463
    %9840 = vmatpush.bf16.msra.mxu0 %v8456
    %9841 = vmatpush.bf16.msra.mxu0 %v8449
    %9842 = vmatpush.bf16.msra.mxu0 %v8442
    %9843 = vmatpush.bf16.msra.mxu0 %v8435
    %9844 = vmatmul.bf16.gmra.mxu0 %v4198
    %v9845 = vpop.f32.mrf.mxu0
    %v9846 = vadd.f32 %v9833, %v9845
    %v9847 = vpop.f32.mrf.mxu0
    %9848 = vdwg.mxu0
    %9849 = vmatpush.bf16.msra.mxu0 %v8540
    %9850 = vmatpush.bf16.msra.mxu0 %v8533
    %9851 = vmatpush.bf16.msra.mxu0 %v8526
    %9852 = vmatpush.bf16.msra.mxu0 %v8519
    %9853 = vmatpush.bf16.msra.mxu0 %v8512
    %9854 = vmatpush.bf16.msra.mxu0 %v8505
    %9855 = vmatpush.bf16.msra.mxu0 %v8498
    %9856 = vmatpush.bf16.msra.mxu0 %v8491
    %9857 = vmatmul.bf16.gmra.mxu0 %v4199
    %v9858 = vpop.f32.mrf.mxu0
    %v9859 = vadd.f32 %v9846, %v9858
    %v9860 = vpop.f32.mrf.mxu0
    %9861 = vdwg.mxu0
    %9862 = vmatpush.bf16.msra.mxu0 %v8596
    %9863 = vmatpush.bf16.msra.mxu0 %v8589
    %9864 = vmatpush.bf16.msra.mxu0 %v8582
    %9865 = vmatpush.bf16.msra.mxu0 %v8575
    %9866 = vmatpush.bf16.msra.mxu0 %v8568
    %9867 = vmatpush.bf16.msra.mxu0 %v8561
    %9868 = vmatpush.bf16.msra.mxu0 %v8554
    %9869 = vmatpush.bf16.msra.mxu0 %v8547
    %9870 = vmatmul.bf16.gmra.mxu0 %v4200
    %v9871 = vpop.f32.mrf.mxu0
    %v9872 = vadd.f32 %v9859, %v9871
    %v9873 = vpop.f32.mrf.mxu0
    %9874 = vdwg.mxu0
    %9875 = vmatpush.bf16.msra.mxu0 %v8652
    %9876 = vmatpush.bf16.msra.mxu0 %v8645
    %9877 = vmatpush.bf16.msra.mxu0 %v8638
    %9878 = vmatpush.bf16.msra.mxu0 %v8631
    %9879 = vmatpush.bf16.msra.mxu0 %v8624
    %9880 = vmatpush.bf16.msra.mxu0 %v8617
    %9881 = vmatpush.bf16.msra.mxu0 %v8610
    %9882 = vmatpush.bf16.msra.mxu0 %v8603
    %9883 = vmatmul.bf16.gmra.mxu0 %v4201
    %v9884 = vpop.f32.mrf.mxu0
    %v9885 = vadd.f32 %v9872, %v9884
    %v9886 = vpop.f32.mrf.mxu0
    %9887 = vdwg.mxu0
    %9888 = vmatpush.bf16.msra.mxu0 %v7869
    %9889 = vmatpush.bf16.msra.mxu0 %v7862
    %9890 = vmatpush.bf16.msra.mxu0 %v7855
    %9891 = vmatpush.bf16.msra.mxu0 %v7848
    %9892 = vmatpush.bf16.msra.mxu0 %v7841
    %9893 = vmatpush.bf16.msra.mxu0 %v7834
    %9894 = vmatpush.bf16.msra.mxu0 %v7827
    %9895 = vmatpush.bf16.msra.mxu0 %v7820
    %9896 = vmatmul.bf16.gmra.mxu0 %v4187
    %v9897 = vpop.f32.mrf.mxu0
    %v9898 = vadd.f32 %v5166, %v9897
    %v9899 = vpop.f32.mrf.mxu0
    %9900 = vdwg.mxu0
    %9901 = vmatpush.bf16.msra.mxu0 %v7925
    %9902 = vmatpush.bf16.msra.mxu0 %v7918
    %9903 = vmatpush.bf16.msra.mxu0 %v7911
    %9904 = vmatpush.bf16.msra.mxu0 %v7904
    %9905 = vmatpush.bf16.msra.mxu0 %v7897
    %9906 = vmatpush.bf16.msra.mxu0 %v7890
    %9907 = vmatpush.bf16.msra.mxu0 %v7883
    %9908 = vmatpush.bf16.msra.mxu0 %v7876
    %9909 = vmatmul.bf16.gmra.mxu0 %v4188
    %v9910 = vpop.f32.mrf.mxu0
    %v9911 = vadd.f32 %v9898, %v9910
    %v9912 = vpop.f32.mrf.mxu0
    %9913 = vdwg.mxu0
    %9914 = vmatpush.bf16.msra.mxu0 %v7981
    %9915 = vmatpush.bf16.msra.mxu0 %v7974
    %9916 = vmatpush.bf16.msra.mxu0 %v7967
    %9917 = vmatpush.bf16.msra.mxu0 %v7960
    %9918 = vmatpush.bf16.msra.mxu0 %v7953
    %9919 = vmatpush.bf16.msra.mxu0 %v7946
    %9920 = vmatpush.bf16.msra.mxu0 %v7939
    %9921 = vmatpush.bf16.msra.mxu0 %v7932
    %9922 = vmatmul.bf16.gmra.mxu0 %v4189
    %v9923 = vpop.f32.mrf.mxu0
    %v9924 = vadd.f32 %v9911, %v9923
    %v9925 = vpop.f32.mrf.mxu0
    %9926 = vdwg.mxu0
    %9927 = vmatpush.bf16.msra.mxu0 %v8037
    %9928 = vmatpush.bf16.msra.mxu0 %v8030
    %9929 = vmatpush.bf16.msra.mxu0 %v8023
    %9930 = vmatpush.bf16.msra.mxu0 %v8016
    %9931 = vmatpush.bf16.msra.mxu0 %v8009
    %9932 = vmatpush.bf16.msra.mxu0 %v8002
    %9933 = vmatpush.bf16.msra.mxu0 %v7995
    %9934 = vmatpush.bf16.msra.mxu0 %v7988
    %9935 = vmatmul.bf16.gmra.mxu0 %v4190
    %v9936 = vpop.f32.mrf.mxu0
    %v9937 = vadd.f32 %v9924, %v9936
    %v9938 = vpop.f32.mrf.mxu0
    %9939 = vdwg.mxu0
    %9940 = vmatpush.bf16.msra.mxu0 %v8093
    %9941 = vmatpush.bf16.msra.mxu0 %v8086
    %9942 = vmatpush.bf16.msra.mxu0 %v8079
    %9943 = vmatpush.bf16.msra.mxu0 %v8072
    %9944 = vmatpush.bf16.msra.mxu0 %v8065
    %9945 = vmatpush.bf16.msra.mxu0 %v8058
    %9946 = vmatpush.bf16.msra.mxu0 %v8051
    %9947 = vmatpush.bf16.msra.mxu0 %v8044
    %9948 = vmatmul.bf16.gmra.mxu0 %v4191
    %v9949 = vpop.f32.mrf.mxu0
    %v9950 = vadd.f32 %v9937, %v9949
    %v9951 = vpop.f32.mrf.mxu0
    %9952 = vdwg.mxu0
    %9953 = vmatpush.bf16.msra.mxu0 %v8149
    %9954 = vmatpush.bf16.msra.mxu0 %v8142
    %9955 = vmatpush.bf16.msra.mxu0 %v8135
    %9956 = vmatpush.bf16.msra.mxu0 %v8128
    %9957 = vmatpush.bf16.msra.mxu0 %v8121
    %9958 = vmatpush.bf16.msra.mxu0 %v8114
    %9959 = vmatpush.bf16.msra.mxu0 %v8107
    %9960 = vmatpush.bf16.msra.mxu0 %v8100
    %9961 = vmatmul.bf16.gmra.mxu0 %v4192
    %v9962 = vpop.f32.mrf.mxu0
    %v9963 = vadd.f32 %v9950, %v9962
    %v9964 = vpop.f32.mrf.mxu0
    %9965 = vdwg.mxu0
    %9966 = vmatpush.bf16.msra.mxu0 %v8205
    %9967 = vmatpush.bf16.msra.mxu0 %v8198
    %9968 = vmatpush.bf16.msra.mxu0 %v8191
    %9969 = vmatpush.bf16.msra.mxu0 %v8184
    %9970 = vmatpush.bf16.msra.mxu0 %v8177
    %9971 = vmatpush.bf16.msra.mxu0 %v8170
    %9972 = vmatpush.bf16.msra.mxu0 %v8163
    %9973 = vmatpush.bf16.msra.mxu0 %v8156
    %9974 = vmatmul.bf16.gmra.mxu0 %v4193
    %v9975 = vpop.f32.mrf.mxu0
    %v9976 = vadd.f32 %v9963, %v9975
    %v9977 = vpop.f32.mrf.mxu0
    %9978 = vdwg.mxu0
    %9979 = vmatpush.bf16.msra.mxu0 %v8261
    %9980 = vmatpush.bf16.msra.mxu0 %v8254
    %9981 = vmatpush.bf16.msra.mxu0 %v8247
    %9982 = vmatpush.bf16.msra.mxu0 %v8240
    %9983 = vmatpush.bf16.msra.mxu0 %v8233
    %9984 = vmatpush.bf16.msra.mxu0 %v8226
    %9985 = vmatpush.bf16.msra.mxu0 %v8219
    %9986 = vmatpush.bf16.msra.mxu0 %v8212
    %9987 = vmatmul.bf16.gmra.mxu0 %v4194
    %v9988 = vpop.f32.mrf.mxu0
    %v9989 = vadd.f32 %v9976, %v9988
    %v9990 = vpop.f32.mrf.mxu0
    %9991 = vdwg.mxu0
    %9992 = vmatpush.bf16.msra.mxu0 %v8317
    %9993 = vmatpush.bf16.msra.mxu0 %v8310
    %9994 = vmatpush.bf16.msra.mxu0 %v8303
    %9995 = vmatpush.bf16.msra.mxu0 %v8296
    %9996 = vmatpush.bf16.msra.mxu0 %v8289
    %9997 = vmatpush.bf16.msra.mxu0 %v8282
    %9998 = vmatpush.bf16.msra.mxu0 %v8275
    %9999 = vmatpush.bf16.msra.mxu0 %v8268
    %10000 = vmatmul.bf16.gmra.mxu0 %v4195
    %v10001 = vpop.f32.mrf.mxu0
    %v10002 = vadd.f32 %v9989, %v10001
    %v10003 = vpop.f32.mrf.mxu0
    %10004 = vdwg.mxu0
    %10005 = vmatpush.bf16.msra.mxu0 %v8373
    %10006 = vmatpush.bf16.msra.mxu0 %v8366
    %10007 = vmatpush.bf16.msra.mxu0 %v8359
    %10008 = vmatpush.bf16.msra.mxu0 %v8352
    %10009 = vmatpush.bf16.msra.mxu0 %v8345
    %10010 = vmatpush.bf16.msra.mxu0 %v8338
    %10011 = vmatpush.bf16.msra.mxu0 %v8331
    %10012 = vmatpush.bf16.msra.mxu0 %v8324
    %10013 = vmatmul.bf16.gmra.mxu0 %v4196
    %v10014 = vpop.f32.mrf.mxu0
    %v10015 = vadd.f32 %v10002, %v10014
    %v10016 = vpop.f32.mrf.mxu0
    %10017 = vdwg.mxu0
    %10018 = vmatpush.bf16.msra.mxu0 %v8429
    %10019 = vmatpush.bf16.msra.mxu0 %v8422
    %10020 = vmatpush.bf16.msra.mxu0 %v8415
    %10021 = vmatpush.bf16.msra.mxu0 %v8408
    %10022 = vmatpush.bf16.msra.mxu0 %v8401
    %10023 = vmatpush.bf16.msra.mxu0 %v8394
    %10024 = vmatpush.bf16.msra.mxu0 %v8387
    %10025 = vmatpush.bf16.msra.mxu0 %v8380
    %10026 = vmatmul.bf16.gmra.mxu0 %v4197
    %v10027 = vpop.f32.mrf.mxu0
    %v10028 = vadd.f32 %v10015, %v10027
    %v10029 = vpop.f32.mrf.mxu0
    %10030 = vdwg.mxu0
    %10031 = vmatpush.bf16.msra.mxu0 %v8485
    %10032 = vmatpush.bf16.msra.mxu0 %v8478
    %10033 = vmatpush.bf16.msra.mxu0 %v8471
    %10034 = vmatpush.bf16.msra.mxu0 %v8464
    %10035 = vmatpush.bf16.msra.mxu0 %v8457
    %10036 = vmatpush.bf16.msra.mxu0 %v8450
    %10037 = vmatpush.bf16.msra.mxu0 %v8443
    %10038 = vmatpush.bf16.msra.mxu0 %v8436
    %10039 = vmatmul.bf16.gmra.mxu0 %v4198
    %v10040 = vpop.f32.mrf.mxu0
    %v10041 = vadd.f32 %v10028, %v10040
    %v10042 = vpop.f32.mrf.mxu0
    %10043 = vdwg.mxu0
    %10044 = vmatpush.bf16.msra.mxu0 %v8541
    %10045 = vmatpush.bf16.msra.mxu0 %v8534
    %10046 = vmatpush.bf16.msra.mxu0 %v8527
    %10047 = vmatpush.bf16.msra.mxu0 %v8520
    %10048 = vmatpush.bf16.msra.mxu0 %v8513
    %10049 = vmatpush.bf16.msra.mxu0 %v8506
    %10050 = vmatpush.bf16.msra.mxu0 %v8499
    %10051 = vmatpush.bf16.msra.mxu0 %v8492
    %10052 = vmatmul.bf16.gmra.mxu0 %v4199
    %v10053 = vpop.f32.mrf.mxu0
    %v10054 = vadd.f32 %v10041, %v10053
    %v10055 = vpop.f32.mrf.mxu0
    %10056 = vdwg.mxu0
    %10057 = vmatpush.bf16.msra.mxu0 %v8597
    %10058 = vmatpush.bf16.msra.mxu0 %v8590
    %10059 = vmatpush.bf16.msra.mxu0 %v8583
    %10060 = vmatpush.bf16.msra.mxu0 %v8576
    %10061 = vmatpush.bf16.msra.mxu0 %v8569
    %10062 = vmatpush.bf16.msra.mxu0 %v8562
    %10063 = vmatpush.bf16.msra.mxu0 %v8555
    %10064 = vmatpush.bf16.msra.mxu0 %v8548
    %10065 = vmatmul.bf16.gmra.mxu0 %v4200
    %v10066 = vpop.f32.mrf.mxu0
    %v10067 = vadd.f32 %v10054, %v10066
    %v10068 = vpop.f32.mrf.mxu0
    %10069 = vdwg.mxu0
    %10070 = vmatpush.bf16.msra.mxu0 %v8653
    %10071 = vmatpush.bf16.msra.mxu0 %v8646
    %10072 = vmatpush.bf16.msra.mxu0 %v8639
    %10073 = vmatpush.bf16.msra.mxu0 %v8632
    %10074 = vmatpush.bf16.msra.mxu0 %v8625
    %10075 = vmatpush.bf16.msra.mxu0 %v8618
    %10076 = vmatpush.bf16.msra.mxu0 %v8611
    %10077 = vmatpush.bf16.msra.mxu0 %v8604
    %10078 = vmatmul.bf16.gmra.mxu0 %v4201
    %v10079 = vpop.f32.mrf.mxu0
    %v10080 = vadd.f32 %v10067, %v10079
    %v10081 = vpop.f32.mrf.mxu0
    %10082 = vdwg.mxu0
    %10083 = vmatpush.bf16.msra.mxu0 %v7870
    %10084 = vmatpush.bf16.msra.mxu0 %v7863
    %10085 = vmatpush.bf16.msra.mxu0 %v7856
    %10086 = vmatpush.bf16.msra.mxu0 %v7849
    %10087 = vmatpush.bf16.msra.mxu0 %v7842
    %10088 = vmatpush.bf16.msra.mxu0 %v7835
    %10089 = vmatpush.bf16.msra.mxu0 %v7828
    %10090 = vmatpush.bf16.msra.mxu0 %v7821
    %10091 = vmatmul.bf16.gmra.mxu0 %v4187
    %v10092 = vpop.f32.mrf.mxu0
    %v10093 = vadd.f32 %v5167, %v10092
    %v10094 = vpop.f32.mrf.mxu0
    %10095 = vdwg.mxu0
    %10096 = vmatpush.bf16.msra.mxu0 %v7926
    %10097 = vmatpush.bf16.msra.mxu0 %v7919
    %10098 = vmatpush.bf16.msra.mxu0 %v7912
    %10099 = vmatpush.bf16.msra.mxu0 %v7905
    %10100 = vmatpush.bf16.msra.mxu0 %v7898
    %10101 = vmatpush.bf16.msra.mxu0 %v7891
    %10102 = vmatpush.bf16.msra.mxu0 %v7884
    %10103 = vmatpush.bf16.msra.mxu0 %v7877
    %10104 = vmatmul.bf16.gmra.mxu0 %v4188
    %v10105 = vpop.f32.mrf.mxu0
    %v10106 = vadd.f32 %v10093, %v10105
    %v10107 = vpop.f32.mrf.mxu0
    %10108 = vdwg.mxu0
    %10109 = vmatpush.bf16.msra.mxu0 %v7982
    %10110 = vmatpush.bf16.msra.mxu0 %v7975
    %10111 = vmatpush.bf16.msra.mxu0 %v7968
    %10112 = vmatpush.bf16.msra.mxu0 %v7961
    %10113 = vmatpush.bf16.msra.mxu0 %v7954
    %10114 = vmatpush.bf16.msra.mxu0 %v7947
    %10115 = vmatpush.bf16.msra.mxu0 %v7940
    %10116 = vmatpush.bf16.msra.mxu0 %v7933
    %10117 = vmatmul.bf16.gmra.mxu0 %v4189
    %v10118 = vpop.f32.mrf.mxu0
    %v10119 = vadd.f32 %v10106, %v10118
    %v10120 = vpop.f32.mrf.mxu0
    %10121 = vdwg.mxu0
    %10122 = vmatpush.bf16.msra.mxu0 %v8038
    %10123 = vmatpush.bf16.msra.mxu0 %v8031
    %10124 = vmatpush.bf16.msra.mxu0 %v8024
    %10125 = vmatpush.bf16.msra.mxu0 %v8017
    %10126 = vmatpush.bf16.msra.mxu0 %v8010
    %10127 = vmatpush.bf16.msra.mxu0 %v8003
    %10128 = vmatpush.bf16.msra.mxu0 %v7996
    %10129 = vmatpush.bf16.msra.mxu0 %v7989
    %10130 = vmatmul.bf16.gmra.mxu0 %v4190
    %v10131 = vpop.f32.mrf.mxu0
    %v10132 = vadd.f32 %v10119, %v10131
    %v10133 = vpop.f32.mrf.mxu0
    %10134 = vdwg.mxu0
    %10135 = vmatpush.bf16.msra.mxu0 %v8094
    %10136 = vmatpush.bf16.msra.mxu0 %v8087
    %10137 = vmatpush.bf16.msra.mxu0 %v8080
    %10138 = vmatpush.bf16.msra.mxu0 %v8073
    %10139 = vmatpush.bf16.msra.mxu0 %v8066
    %10140 = vmatpush.bf16.msra.mxu0 %v8059
    %10141 = vmatpush.bf16.msra.mxu0 %v8052
    %10142 = vmatpush.bf16.msra.mxu0 %v8045
    %10143 = vmatmul.bf16.gmra.mxu0 %v4191
    %v10144 = vpop.f32.mrf.mxu0
    %v10145 = vadd.f32 %v10132, %v10144
    %v10146 = vpop.f32.mrf.mxu0
    %10147 = vdwg.mxu0
    %10148 = vmatpush.bf16.msra.mxu0 %v8150
    %10149 = vmatpush.bf16.msra.mxu0 %v8143
    %10150 = vmatpush.bf16.msra.mxu0 %v8136
    %10151 = vmatpush.bf16.msra.mxu0 %v8129
    %10152 = vmatpush.bf16.msra.mxu0 %v8122
    %10153 = vmatpush.bf16.msra.mxu0 %v8115
    %10154 = vmatpush.bf16.msra.mxu0 %v8108
    %10155 = vmatpush.bf16.msra.mxu0 %v8101
    %10156 = vmatmul.bf16.gmra.mxu0 %v4192
    %v10157 = vpop.f32.mrf.mxu0
    %v10158 = vadd.f32 %v10145, %v10157
    %v10159 = vpop.f32.mrf.mxu0
    %10160 = vdwg.mxu0
    %10161 = vmatpush.bf16.msra.mxu0 %v8206
    %10162 = vmatpush.bf16.msra.mxu0 %v8199
    %10163 = vmatpush.bf16.msra.mxu0 %v8192
    %10164 = vmatpush.bf16.msra.mxu0 %v8185
    %10165 = vmatpush.bf16.msra.mxu0 %v8178
    %10166 = vmatpush.bf16.msra.mxu0 %v8171
    %10167 = vmatpush.bf16.msra.mxu0 %v8164
    %10168 = vmatpush.bf16.msra.mxu0 %v8157
    %10169 = vmatmul.bf16.gmra.mxu0 %v4193
    %v10170 = vpop.f32.mrf.mxu0
    %v10171 = vadd.f32 %v10158, %v10170
    %v10172 = vpop.f32.mrf.mxu0
    %10173 = vdwg.mxu0
    %10174 = vmatpush.bf16.msra.mxu0 %v8262
    %10175 = vmatpush.bf16.msra.mxu0 %v8255
    %10176 = vmatpush.bf16.msra.mxu0 %v8248
    %10177 = vmatpush.bf16.msra.mxu0 %v8241
    %10178 = vmatpush.bf16.msra.mxu0 %v8234
    %10179 = vmatpush.bf16.msra.mxu0 %v8227
    %10180 = vmatpush.bf16.msra.mxu0 %v8220
    %10181 = vmatpush.bf16.msra.mxu0 %v8213
    %10182 = vmatmul.bf16.gmra.mxu0 %v4194
    %v10183 = vpop.f32.mrf.mxu0
    %v10184 = vadd.f32 %v10171, %v10183
    %v10185 = vpop.f32.mrf.mxu0
    %10186 = vdwg.mxu0
    %10187 = vmatpush.bf16.msra.mxu0 %v8318
    %10188 = vmatpush.bf16.msra.mxu0 %v8311
    %10189 = vmatpush.bf16.msra.mxu0 %v8304
    %10190 = vmatpush.bf16.msra.mxu0 %v8297
    %10191 = vmatpush.bf16.msra.mxu0 %v8290
    %10192 = vmatpush.bf16.msra.mxu0 %v8283
    %10193 = vmatpush.bf16.msra.mxu0 %v8276
    %10194 = vmatpush.bf16.msra.mxu0 %v8269
    %10195 = vmatmul.bf16.gmra.mxu0 %v4195
    %v10196 = vpop.f32.mrf.mxu0
    %v10197 = vadd.f32 %v10184, %v10196
    %v10198 = vpop.f32.mrf.mxu0
    %10199 = vdwg.mxu0
    %10200 = vmatpush.bf16.msra.mxu0 %v8374
    %10201 = vmatpush.bf16.msra.mxu0 %v8367
    %10202 = vmatpush.bf16.msra.mxu0 %v8360
    %10203 = vmatpush.bf16.msra.mxu0 %v8353
    %10204 = vmatpush.bf16.msra.mxu0 %v8346
    %10205 = vmatpush.bf16.msra.mxu0 %v8339
    %10206 = vmatpush.bf16.msra.mxu0 %v8332
    %10207 = vmatpush.bf16.msra.mxu0 %v8325
    %10208 = vmatmul.bf16.gmra.mxu0 %v4196
    %v10209 = vpop.f32.mrf.mxu0
    %v10210 = vadd.f32 %v10197, %v10209
    %v10211 = vpop.f32.mrf.mxu0
    %10212 = vdwg.mxu0
    %10213 = vmatpush.bf16.msra.mxu0 %v8430
    %10214 = vmatpush.bf16.msra.mxu0 %v8423
    %10215 = vmatpush.bf16.msra.mxu0 %v8416
    %10216 = vmatpush.bf16.msra.mxu0 %v8409
    %10217 = vmatpush.bf16.msra.mxu0 %v8402
    %10218 = vmatpush.bf16.msra.mxu0 %v8395
    %10219 = vmatpush.bf16.msra.mxu0 %v8388
    %10220 = vmatpush.bf16.msra.mxu0 %v8381
    %10221 = vmatmul.bf16.gmra.mxu0 %v4197
    %v10222 = vpop.f32.mrf.mxu0
    %v10223 = vadd.f32 %v10210, %v10222
    %v10224 = vpop.f32.mrf.mxu0
    %10225 = vdwg.mxu0
    %10226 = vmatpush.bf16.msra.mxu0 %v8486
    %10227 = vmatpush.bf16.msra.mxu0 %v8479
    %10228 = vmatpush.bf16.msra.mxu0 %v8472
    %10229 = vmatpush.bf16.msra.mxu0 %v8465
    %10230 = vmatpush.bf16.msra.mxu0 %v8458
    %10231 = vmatpush.bf16.msra.mxu0 %v8451
    %10232 = vmatpush.bf16.msra.mxu0 %v8444
    %10233 = vmatpush.bf16.msra.mxu0 %v8437
    %10234 = vmatmul.bf16.gmra.mxu0 %v4198
    %v10235 = vpop.f32.mrf.mxu0
    %v10236 = vadd.f32 %v10223, %v10235
    %v10237 = vpop.f32.mrf.mxu0
    %10238 = vdwg.mxu0
    %10239 = vmatpush.bf16.msra.mxu0 %v8542
    %10240 = vmatpush.bf16.msra.mxu0 %v8535
    %10241 = vmatpush.bf16.msra.mxu0 %v8528
    %10242 = vmatpush.bf16.msra.mxu0 %v8521
    %10243 = vmatpush.bf16.msra.mxu0 %v8514
    %10244 = vmatpush.bf16.msra.mxu0 %v8507
    %10245 = vmatpush.bf16.msra.mxu0 %v8500
    %10246 = vmatpush.bf16.msra.mxu0 %v8493
    %10247 = vmatmul.bf16.gmra.mxu0 %v4199
    %v10248 = vpop.f32.mrf.mxu0
    %v10249 = vadd.f32 %v10236, %v10248
    %v10250 = vpop.f32.mrf.mxu0
    %10251 = vdwg.mxu0
    %10252 = vmatpush.bf16.msra.mxu0 %v8598
    %10253 = vmatpush.bf16.msra.mxu0 %v8591
    %10254 = vmatpush.bf16.msra.mxu0 %v8584
    %10255 = vmatpush.bf16.msra.mxu0 %v8577
    %10256 = vmatpush.bf16.msra.mxu0 %v8570
    %10257 = vmatpush.bf16.msra.mxu0 %v8563
    %10258 = vmatpush.bf16.msra.mxu0 %v8556
    %10259 = vmatpush.bf16.msra.mxu0 %v8549
    %10260 = vmatmul.bf16.gmra.mxu0 %v4200
    %v10261 = vpop.f32.mrf.mxu0
    %v10262 = vadd.f32 %v10249, %v10261
    %v10263 = vpop.f32.mrf.mxu0
    %10264 = vdwg.mxu0
    %10265 = vmatpush.bf16.msra.mxu0 %v8654
    %10266 = vmatpush.bf16.msra.mxu0 %v8647
    %10267 = vmatpush.bf16.msra.mxu0 %v8640
    %10268 = vmatpush.bf16.msra.mxu0 %v8633
    %10269 = vmatpush.bf16.msra.mxu0 %v8626
    %10270 = vmatpush.bf16.msra.mxu0 %v8619
    %10271 = vmatpush.bf16.msra.mxu0 %v8612
    %10272 = vmatpush.bf16.msra.mxu0 %v8605
    %10273 = vmatmul.bf16.gmra.mxu0 %v4201
    %v10274 = vpop.f32.mrf.mxu0
    %v10275 = vadd.f32 %v10262, %v10274
    %v10276 = vpop.f32.mrf.mxu0
    %10277 = vdwg.mxu0
    %10278 = vmatpush.bf16.msra.mxu0 %v7871
    %10279 = vmatpush.bf16.msra.mxu0 %v7864
    %10280 = vmatpush.bf16.msra.mxu0 %v7857
    %10281 = vmatpush.bf16.msra.mxu0 %v7850
    %10282 = vmatpush.bf16.msra.mxu0 %v7843
    %10283 = vmatpush.bf16.msra.mxu0 %v7836
    %10284 = vmatpush.bf16.msra.mxu0 %v7829
    %10285 = vmatpush.bf16.msra.mxu0 %v7822
    %10286 = vmatmul.bf16.gmra.mxu0 %v4187
    %v10287 = vpop.f32.mrf.mxu0
    %v10288 = vadd.f32 %v5168, %v10287
    %v10289 = vpop.f32.mrf.mxu0
    %10290 = vdwg.mxu0
    %10291 = vmatpush.bf16.msra.mxu0 %v7927
    %10292 = vmatpush.bf16.msra.mxu0 %v7920
    %10293 = vmatpush.bf16.msra.mxu0 %v7913
    %10294 = vmatpush.bf16.msra.mxu0 %v7906
    %10295 = vmatpush.bf16.msra.mxu0 %v7899
    %10296 = vmatpush.bf16.msra.mxu0 %v7892
    %10297 = vmatpush.bf16.msra.mxu0 %v7885
    %10298 = vmatpush.bf16.msra.mxu0 %v7878
    %10299 = vmatmul.bf16.gmra.mxu0 %v4188
    %v10300 = vpop.f32.mrf.mxu0
    %v10301 = vadd.f32 %v10288, %v10300
    %v10302 = vpop.f32.mrf.mxu0
    %10303 = vdwg.mxu0
    %10304 = vmatpush.bf16.msra.mxu0 %v7983
    %10305 = vmatpush.bf16.msra.mxu0 %v7976
    %10306 = vmatpush.bf16.msra.mxu0 %v7969
    %10307 = vmatpush.bf16.msra.mxu0 %v7962
    %10308 = vmatpush.bf16.msra.mxu0 %v7955
    %10309 = vmatpush.bf16.msra.mxu0 %v7948
    %10310 = vmatpush.bf16.msra.mxu0 %v7941
    %10311 = vmatpush.bf16.msra.mxu0 %v7934
    %10312 = vmatmul.bf16.gmra.mxu0 %v4189
    %v10313 = vpop.f32.mrf.mxu0
    %v10314 = vadd.f32 %v10301, %v10313
    %v10315 = vpop.f32.mrf.mxu0
    %10316 = vdwg.mxu0
    %10317 = vmatpush.bf16.msra.mxu0 %v8039
    %10318 = vmatpush.bf16.msra.mxu0 %v8032
    %10319 = vmatpush.bf16.msra.mxu0 %v8025
    %10320 = vmatpush.bf16.msra.mxu0 %v8018
    %10321 = vmatpush.bf16.msra.mxu0 %v8011
    %10322 = vmatpush.bf16.msra.mxu0 %v8004
    %10323 = vmatpush.bf16.msra.mxu0 %v7997
    %10324 = vmatpush.bf16.msra.mxu0 %v7990
    %10325 = vmatmul.bf16.gmra.mxu0 %v4190
    %v10326 = vpop.f32.mrf.mxu0
    %v10327 = vadd.f32 %v10314, %v10326
    %v10328 = vpop.f32.mrf.mxu0
    %10329 = vdwg.mxu0
    %10330 = vmatpush.bf16.msra.mxu0 %v8095
    %10331 = vmatpush.bf16.msra.mxu0 %v8088
    %10332 = vmatpush.bf16.msra.mxu0 %v8081
    %10333 = vmatpush.bf16.msra.mxu0 %v8074
    %10334 = vmatpush.bf16.msra.mxu0 %v8067
    %10335 = vmatpush.bf16.msra.mxu0 %v8060
    %10336 = vmatpush.bf16.msra.mxu0 %v8053
    %10337 = vmatpush.bf16.msra.mxu0 %v8046
    %10338 = vmatmul.bf16.gmra.mxu0 %v4191
    %v10339 = vpop.f32.mrf.mxu0
    %v10340 = vadd.f32 %v10327, %v10339
    %v10341 = vpop.f32.mrf.mxu0
    %10342 = vdwg.mxu0
    %10343 = vmatpush.bf16.msra.mxu0 %v8151
    %10344 = vmatpush.bf16.msra.mxu0 %v8144
    %10345 = vmatpush.bf16.msra.mxu0 %v8137
    %10346 = vmatpush.bf16.msra.mxu0 %v8130
    %10347 = vmatpush.bf16.msra.mxu0 %v8123
    %10348 = vmatpush.bf16.msra.mxu0 %v8116
    %10349 = vmatpush.bf16.msra.mxu0 %v8109
    %10350 = vmatpush.bf16.msra.mxu0 %v8102
    %10351 = vmatmul.bf16.gmra.mxu0 %v4192
    %v10352 = vpop.f32.mrf.mxu0
    %v10353 = vadd.f32 %v10340, %v10352
    %v10354 = vpop.f32.mrf.mxu0
    %10355 = vdwg.mxu0
    %10356 = vmatpush.bf16.msra.mxu0 %v8207
    %10357 = vmatpush.bf16.msra.mxu0 %v8200
    %10358 = vmatpush.bf16.msra.mxu0 %v8193
    %10359 = vmatpush.bf16.msra.mxu0 %v8186
    %10360 = vmatpush.bf16.msra.mxu0 %v8179
    %10361 = vmatpush.bf16.msra.mxu0 %v8172
    %10362 = vmatpush.bf16.msra.mxu0 %v8165
    %10363 = vmatpush.bf16.msra.mxu0 %v8158
    %10364 = vmatmul.bf16.gmra.mxu0 %v4193
    %v10365 = vpop.f32.mrf.mxu0
    %v10366 = vadd.f32 %v10353, %v10365
    %v10367 = vpop.f32.mrf.mxu0
    %10368 = vdwg.mxu0
    %10369 = vmatpush.bf16.msra.mxu0 %v8263
    %10370 = vmatpush.bf16.msra.mxu0 %v8256
    %10371 = vmatpush.bf16.msra.mxu0 %v8249
    %10372 = vmatpush.bf16.msra.mxu0 %v8242
    %10373 = vmatpush.bf16.msra.mxu0 %v8235
    %10374 = vmatpush.bf16.msra.mxu0 %v8228
    %10375 = vmatpush.bf16.msra.mxu0 %v8221
    %10376 = vmatpush.bf16.msra.mxu0 %v8214
    %10377 = vmatmul.bf16.gmra.mxu0 %v4194
    %v10378 = vpop.f32.mrf.mxu0
    %v10379 = vadd.f32 %v10366, %v10378
    %v10380 = vpop.f32.mrf.mxu0
    %10381 = vdwg.mxu0
    %10382 = vmatpush.bf16.msra.mxu0 %v8319
    %10383 = vmatpush.bf16.msra.mxu0 %v8312
    %10384 = vmatpush.bf16.msra.mxu0 %v8305
    %10385 = vmatpush.bf16.msra.mxu0 %v8298
    %10386 = vmatpush.bf16.msra.mxu0 %v8291
    %10387 = vmatpush.bf16.msra.mxu0 %v8284
    %10388 = vmatpush.bf16.msra.mxu0 %v8277
    %10389 = vmatpush.bf16.msra.mxu0 %v8270
    %10390 = vmatmul.bf16.gmra.mxu0 %v4195
    %v10391 = vpop.f32.mrf.mxu0
    %v10392 = vadd.f32 %v10379, %v10391
    %v10393 = vpop.f32.mrf.mxu0
    %10394 = vdwg.mxu0
    %10395 = vmatpush.bf16.msra.mxu0 %v8375
    %10396 = vmatpush.bf16.msra.mxu0 %v8368
    %10397 = vmatpush.bf16.msra.mxu0 %v8361
    %10398 = vmatpush.bf16.msra.mxu0 %v8354
    %10399 = vmatpush.bf16.msra.mxu0 %v8347
    %10400 = vmatpush.bf16.msra.mxu0 %v8340
    %10401 = vmatpush.bf16.msra.mxu0 %v8333
    %10402 = vmatpush.bf16.msra.mxu0 %v8326
    %10403 = vmatmul.bf16.gmra.mxu0 %v4196
    %v10404 = vpop.f32.mrf.mxu0
    %v10405 = vadd.f32 %v10392, %v10404
    %v10406 = vpop.f32.mrf.mxu0
    %10407 = vdwg.mxu0
    %10408 = vmatpush.bf16.msra.mxu0 %v8431
    %10409 = vmatpush.bf16.msra.mxu0 %v8424
    %10410 = vmatpush.bf16.msra.mxu0 %v8417
    %10411 = vmatpush.bf16.msra.mxu0 %v8410
    %10412 = vmatpush.bf16.msra.mxu0 %v8403
    %10413 = vmatpush.bf16.msra.mxu0 %v8396
    %10414 = vmatpush.bf16.msra.mxu0 %v8389
    %10415 = vmatpush.bf16.msra.mxu0 %v8382
    %10416 = vmatmul.bf16.gmra.mxu0 %v4197
    %v10417 = vpop.f32.mrf.mxu0
    %v10418 = vadd.f32 %v10405, %v10417
    %v10419 = vpop.f32.mrf.mxu0
    %10420 = vdwg.mxu0
    %10421 = vmatpush.bf16.msra.mxu0 %v8487
    %10422 = vmatpush.bf16.msra.mxu0 %v8480
    %10423 = vmatpush.bf16.msra.mxu0 %v8473
    %10424 = vmatpush.bf16.msra.mxu0 %v8466
    %10425 = vmatpush.bf16.msra.mxu0 %v8459
    %10426 = vmatpush.bf16.msra.mxu0 %v8452
    %10427 = vmatpush.bf16.msra.mxu0 %v8445
    %10428 = vmatpush.bf16.msra.mxu0 %v8438
    %10429 = vmatmul.bf16.gmra.mxu0 %v4198
    %v10430 = vpop.f32.mrf.mxu0
    %v10431 = vadd.f32 %v10418, %v10430
    %v10432 = vpop.f32.mrf.mxu0
    %10433 = vdwg.mxu0
    %10434 = vmatpush.bf16.msra.mxu0 %v8543
    %10435 = vmatpush.bf16.msra.mxu0 %v8536
    %10436 = vmatpush.bf16.msra.mxu0 %v8529
    %10437 = vmatpush.bf16.msra.mxu0 %v8522
    %10438 = vmatpush.bf16.msra.mxu0 %v8515
    %10439 = vmatpush.bf16.msra.mxu0 %v8508
    %10440 = vmatpush.bf16.msra.mxu0 %v8501
    %10441 = vmatpush.bf16.msra.mxu0 %v8494
    %10442 = vmatmul.bf16.gmra.mxu0 %v4199
    %v10443 = vpop.f32.mrf.mxu0
    %v10444 = vadd.f32 %v10431, %v10443
    %v10445 = vpop.f32.mrf.mxu0
    %10446 = vdwg.mxu0
    %10447 = vmatpush.bf16.msra.mxu0 %v8599
    %10448 = vmatpush.bf16.msra.mxu0 %v8592
    %10449 = vmatpush.bf16.msra.mxu0 %v8585
    %10450 = vmatpush.bf16.msra.mxu0 %v8578
    %10451 = vmatpush.bf16.msra.mxu0 %v8571
    %10452 = vmatpush.bf16.msra.mxu0 %v8564
    %10453 = vmatpush.bf16.msra.mxu0 %v8557
    %10454 = vmatpush.bf16.msra.mxu0 %v8550
    %10455 = vmatmul.bf16.gmra.mxu0 %v4200
    %v10456 = vpop.f32.mrf.mxu0
    %v10457 = vadd.f32 %v10444, %v10456
    %v10458 = vpop.f32.mrf.mxu0
    %10459 = vdwg.mxu0
    %10460 = vmatpush.bf16.msra.mxu0 %v8655
    %10461 = vmatpush.bf16.msra.mxu0 %v8648
    %10462 = vmatpush.bf16.msra.mxu0 %v8641
    %10463 = vmatpush.bf16.msra.mxu0 %v8634
    %10464 = vmatpush.bf16.msra.mxu0 %v8627
    %10465 = vmatpush.bf16.msra.mxu0 %v8620
    %10466 = vmatpush.bf16.msra.mxu0 %v8613
    %10467 = vmatpush.bf16.msra.mxu0 %v8606
    %10468 = vmatmul.bf16.gmra.mxu0 %v4201
    %v10469 = vpop.f32.mrf.mxu0
    %v10470 = vadd.f32 %v10457, %v10469
    %v10471 = vpop.f32.mrf.mxu0
    %10472 = vdwg.mxu0
    %10473 = vmatpush.bf16.msra.mxu0 %v7872
    %10474 = vmatpush.bf16.msra.mxu0 %v7865
    %10475 = vmatpush.bf16.msra.mxu0 %v7858
    %10476 = vmatpush.bf16.msra.mxu0 %v7851
    %10477 = vmatpush.bf16.msra.mxu0 %v7844
    %10478 = vmatpush.bf16.msra.mxu0 %v7837
    %10479 = vmatpush.bf16.msra.mxu0 %v7830
    %10480 = vmatpush.bf16.msra.mxu0 %v7823
    %10481 = vmatmul.bf16.gmra.mxu0 %v4187
    %v10482 = vpop.f32.mrf.mxu0
    %v10483 = vadd.f32 %v5169, %v10482
    %v10484 = vpop.f32.mrf.mxu0
    %10485 = vdwg.mxu0
    %10486 = vmatpush.bf16.msra.mxu0 %v7928
    %10487 = vmatpush.bf16.msra.mxu0 %v7921
    %10488 = vmatpush.bf16.msra.mxu0 %v7914
    %10489 = vmatpush.bf16.msra.mxu0 %v7907
    %10490 = vmatpush.bf16.msra.mxu0 %v7900
    %10491 = vmatpush.bf16.msra.mxu0 %v7893
    %10492 = vmatpush.bf16.msra.mxu0 %v7886
    %10493 = vmatpush.bf16.msra.mxu0 %v7879
    %10494 = vmatmul.bf16.gmra.mxu0 %v4188
    %v10495 = vpop.f32.mrf.mxu0
    %v10496 = vadd.f32 %v10483, %v10495
    %v10497 = vpop.f32.mrf.mxu0
    %10498 = vdwg.mxu0
    %10499 = vmatpush.bf16.msra.mxu0 %v7984
    %10500 = vmatpush.bf16.msra.mxu0 %v7977
    %10501 = vmatpush.bf16.msra.mxu0 %v7970
    %10502 = vmatpush.bf16.msra.mxu0 %v7963
    %10503 = vmatpush.bf16.msra.mxu0 %v7956
    %10504 = vmatpush.bf16.msra.mxu0 %v7949
    %10505 = vmatpush.bf16.msra.mxu0 %v7942
    %10506 = vmatpush.bf16.msra.mxu0 %v7935
    %10507 = vmatmul.bf16.gmra.mxu0 %v4189
    %v10508 = vpop.f32.mrf.mxu0
    %v10509 = vadd.f32 %v10496, %v10508
    %v10510 = vpop.f32.mrf.mxu0
    %10511 = vdwg.mxu0
    %10512 = vmatpush.bf16.msra.mxu0 %v8040
    %10513 = vmatpush.bf16.msra.mxu0 %v8033
    %10514 = vmatpush.bf16.msra.mxu0 %v8026
    %10515 = vmatpush.bf16.msra.mxu0 %v8019
    %10516 = vmatpush.bf16.msra.mxu0 %v8012
    %10517 = vmatpush.bf16.msra.mxu0 %v8005
    %10518 = vmatpush.bf16.msra.mxu0 %v7998
    %10519 = vmatpush.bf16.msra.mxu0 %v7991
    %10520 = vmatmul.bf16.gmra.mxu0 %v4190
    %v10521 = vpop.f32.mrf.mxu0
    %v10522 = vadd.f32 %v10509, %v10521
    %v10523 = vpop.f32.mrf.mxu0
    %10524 = vdwg.mxu0
    %10525 = vmatpush.bf16.msra.mxu0 %v8096
    %10526 = vmatpush.bf16.msra.mxu0 %v8089
    %10527 = vmatpush.bf16.msra.mxu0 %v8082
    %10528 = vmatpush.bf16.msra.mxu0 %v8075
    %10529 = vmatpush.bf16.msra.mxu0 %v8068
    %10530 = vmatpush.bf16.msra.mxu0 %v8061
    %10531 = vmatpush.bf16.msra.mxu0 %v8054
    %10532 = vmatpush.bf16.msra.mxu0 %v8047
    %10533 = vmatmul.bf16.gmra.mxu0 %v4191
    %v10534 = vpop.f32.mrf.mxu0
    %v10535 = vadd.f32 %v10522, %v10534
    %v10536 = vpop.f32.mrf.mxu0
    %10537 = vdwg.mxu0
    %10538 = vmatpush.bf16.msra.mxu0 %v8152
    %10539 = vmatpush.bf16.msra.mxu0 %v8145
    %10540 = vmatpush.bf16.msra.mxu0 %v8138
    %10541 = vmatpush.bf16.msra.mxu0 %v8131
    %10542 = vmatpush.bf16.msra.mxu0 %v8124
    %10543 = vmatpush.bf16.msra.mxu0 %v8117
    %10544 = vmatpush.bf16.msra.mxu0 %v8110
    %10545 = vmatpush.bf16.msra.mxu0 %v8103
    %10546 = vmatmul.bf16.gmra.mxu0 %v4192
    %v10547 = vpop.f32.mrf.mxu0
    %v10548 = vadd.f32 %v10535, %v10547
    %v10549 = vpop.f32.mrf.mxu0
    %10550 = vdwg.mxu0
    %10551 = vmatpush.bf16.msra.mxu0 %v8208
    %10552 = vmatpush.bf16.msra.mxu0 %v8201
    %10553 = vmatpush.bf16.msra.mxu0 %v8194
    %10554 = vmatpush.bf16.msra.mxu0 %v8187
    %10555 = vmatpush.bf16.msra.mxu0 %v8180
    %10556 = vmatpush.bf16.msra.mxu0 %v8173
    %10557 = vmatpush.bf16.msra.mxu0 %v8166
    %10558 = vmatpush.bf16.msra.mxu0 %v8159
    %10559 = vmatmul.bf16.gmra.mxu0 %v4193
    %v10560 = vpop.f32.mrf.mxu0
    %v10561 = vadd.f32 %v10548, %v10560
    %v10562 = vpop.f32.mrf.mxu0
    %10563 = vdwg.mxu0
    %10564 = vmatpush.bf16.msra.mxu0 %v8264
    %10565 = vmatpush.bf16.msra.mxu0 %v8257
    %10566 = vmatpush.bf16.msra.mxu0 %v8250
    %10567 = vmatpush.bf16.msra.mxu0 %v8243
    %10568 = vmatpush.bf16.msra.mxu0 %v8236
    %10569 = vmatpush.bf16.msra.mxu0 %v8229
    %10570 = vmatpush.bf16.msra.mxu0 %v8222
    %10571 = vmatpush.bf16.msra.mxu0 %v8215
    %10572 = vmatmul.bf16.gmra.mxu0 %v4194
    %v10573 = vpop.f32.mrf.mxu0
    %v10574 = vadd.f32 %v10561, %v10573
    %v10575 = vpop.f32.mrf.mxu0
    %10576 = vdwg.mxu0
    %10577 = vmatpush.bf16.msra.mxu0 %v8320
    %10578 = vmatpush.bf16.msra.mxu0 %v8313
    %10579 = vmatpush.bf16.msra.mxu0 %v8306
    %10580 = vmatpush.bf16.msra.mxu0 %v8299
    %10581 = vmatpush.bf16.msra.mxu0 %v8292
    %10582 = vmatpush.bf16.msra.mxu0 %v8285
    %10583 = vmatpush.bf16.msra.mxu0 %v8278
    %10584 = vmatpush.bf16.msra.mxu0 %v8271
    %10585 = vmatmul.bf16.gmra.mxu0 %v4195
    %v10586 = vpop.f32.mrf.mxu0
    %v10587 = vadd.f32 %v10574, %v10586
    %v10588 = vpop.f32.mrf.mxu0
    %10589 = vdwg.mxu0
    %10590 = vmatpush.bf16.msra.mxu0 %v8376
    %10591 = vmatpush.bf16.msra.mxu0 %v8369
    %10592 = vmatpush.bf16.msra.mxu0 %v8362
    %10593 = vmatpush.bf16.msra.mxu0 %v8355
    %10594 = vmatpush.bf16.msra.mxu0 %v8348
    %10595 = vmatpush.bf16.msra.mxu0 %v8341
    %10596 = vmatpush.bf16.msra.mxu0 %v8334
    %10597 = vmatpush.bf16.msra.mxu0 %v8327
    %10598 = vmatmul.bf16.gmra.mxu0 %v4196
    %v10599 = vpop.f32.mrf.mxu0
    %v10600 = vadd.f32 %v10587, %v10599
    %v10601 = vpop.f32.mrf.mxu0
    %10602 = vdwg.mxu0
    %10603 = vmatpush.bf16.msra.mxu0 %v8432
    %10604 = vmatpush.bf16.msra.mxu0 %v8425
    %10605 = vmatpush.bf16.msra.mxu0 %v8418
    %10606 = vmatpush.bf16.msra.mxu0 %v8411
    %10607 = vmatpush.bf16.msra.mxu0 %v8404
    %10608 = vmatpush.bf16.msra.mxu0 %v8397
    %10609 = vmatpush.bf16.msra.mxu0 %v8390
    %10610 = vmatpush.bf16.msra.mxu0 %v8383
    %10611 = vmatmul.bf16.gmra.mxu0 %v4197
    %v10612 = vpop.f32.mrf.mxu0
    %v10613 = vadd.f32 %v10600, %v10612
    %v10614 = vpop.f32.mrf.mxu0
    %10615 = vdwg.mxu0
    %10616 = vmatpush.bf16.msra.mxu0 %v8488
    %10617 = vmatpush.bf16.msra.mxu0 %v8481
    %10618 = vmatpush.bf16.msra.mxu0 %v8474
    %10619 = vmatpush.bf16.msra.mxu0 %v8467
    %10620 = vmatpush.bf16.msra.mxu0 %v8460
    %10621 = vmatpush.bf16.msra.mxu0 %v8453
    %10622 = vmatpush.bf16.msra.mxu0 %v8446
    %10623 = vmatpush.bf16.msra.mxu0 %v8439
    %10624 = vmatmul.bf16.gmra.mxu0 %v4198
    %v10625 = vpop.f32.mrf.mxu0
    %v10626 = vadd.f32 %v10613, %v10625
    %v10627 = vpop.f32.mrf.mxu0
    %10628 = vdwg.mxu0
    %10629 = vmatpush.bf16.msra.mxu0 %v8544
    %10630 = vmatpush.bf16.msra.mxu0 %v8537
    %10631 = vmatpush.bf16.msra.mxu0 %v8530
    %10632 = vmatpush.bf16.msra.mxu0 %v8523
    %10633 = vmatpush.bf16.msra.mxu0 %v8516
    %10634 = vmatpush.bf16.msra.mxu0 %v8509
    %10635 = vmatpush.bf16.msra.mxu0 %v8502
    %10636 = vmatpush.bf16.msra.mxu0 %v8495
    %10637 = vmatmul.bf16.gmra.mxu0 %v4199
    %v10638 = vpop.f32.mrf.mxu0
    %v10639 = vadd.f32 %v10626, %v10638
    %v10640 = vpop.f32.mrf.mxu0
    %10641 = vdwg.mxu0
    %10642 = vmatpush.bf16.msra.mxu0 %v8600
    %10643 = vmatpush.bf16.msra.mxu0 %v8593
    %10644 = vmatpush.bf16.msra.mxu0 %v8586
    %10645 = vmatpush.bf16.msra.mxu0 %v8579
    %10646 = vmatpush.bf16.msra.mxu0 %v8572
    %10647 = vmatpush.bf16.msra.mxu0 %v8565
    %10648 = vmatpush.bf16.msra.mxu0 %v8558
    %10649 = vmatpush.bf16.msra.mxu0 %v8551
    %10650 = vmatmul.bf16.gmra.mxu0 %v4200
    %v10651 = vpop.f32.mrf.mxu0
    %v10652 = vadd.f32 %v10639, %v10651
    %v10653 = vpop.f32.mrf.mxu0
    %10654 = vdwg.mxu0
    %10655 = vmatpush.bf16.msra.mxu0 %v8656
    %10656 = vmatpush.bf16.msra.mxu0 %v8649
    %10657 = vmatpush.bf16.msra.mxu0 %v8642
    %10658 = vmatpush.bf16.msra.mxu0 %v8635
    %10659 = vmatpush.bf16.msra.mxu0 %v8628
    %10660 = vmatpush.bf16.msra.mxu0 %v8621
    %10661 = vmatpush.bf16.msra.mxu0 %v8614
    %10662 = vmatpush.bf16.msra.mxu0 %v8607
    %10663 = vmatmul.bf16.gmra.mxu0 %v4201
    %v10664 = vpop.f32.mrf.mxu0
    %v10665 = vadd.f32 %v10652, %v10664
    %v10666 = vpop.f32.mrf.mxu0
    %10667 = vdwg.mxu0
    %10668 = vmatpush.bf16.msra.mxu0 %v7873
    %10669 = vmatpush.bf16.msra.mxu0 %v7866
    %10670 = vmatpush.bf16.msra.mxu0 %v7859
    %10671 = vmatpush.bf16.msra.mxu0 %v7852
    %10672 = vmatpush.bf16.msra.mxu0 %v7845
    %10673 = vmatpush.bf16.msra.mxu0 %v7838
    %10674 = vmatpush.bf16.msra.mxu0 %v7831
    %10675 = vmatpush.bf16.msra.mxu0 %v7824
    %10676 = vmatmul.bf16.gmra.mxu0 %v4187
    %v10677 = vpop.f32.mrf.mxu0
    %v10678 = vadd.f32 %v5170, %v10677
    %v10679 = vpop.f32.mrf.mxu0
    %10680 = vdwg.mxu0
    %10681 = vmatpush.bf16.msra.mxu0 %v7929
    %10682 = vmatpush.bf16.msra.mxu0 %v7922
    %10683 = vmatpush.bf16.msra.mxu0 %v7915
    %10684 = vmatpush.bf16.msra.mxu0 %v7908
    %10685 = vmatpush.bf16.msra.mxu0 %v7901
    %10686 = vmatpush.bf16.msra.mxu0 %v7894
    %10687 = vmatpush.bf16.msra.mxu0 %v7887
    %10688 = vmatpush.bf16.msra.mxu0 %v7880
    %10689 = vmatmul.bf16.gmra.mxu0 %v4188
    %v10690 = vpop.f32.mrf.mxu0
    %v10691 = vadd.f32 %v10678, %v10690
    %v10692 = vpop.f32.mrf.mxu0
    %10693 = vdwg.mxu0
    %10694 = vmatpush.bf16.msra.mxu0 %v7985
    %10695 = vmatpush.bf16.msra.mxu0 %v7978
    %10696 = vmatpush.bf16.msra.mxu0 %v7971
    %10697 = vmatpush.bf16.msra.mxu0 %v7964
    %10698 = vmatpush.bf16.msra.mxu0 %v7957
    %10699 = vmatpush.bf16.msra.mxu0 %v7950
    %10700 = vmatpush.bf16.msra.mxu0 %v7943
    %10701 = vmatpush.bf16.msra.mxu0 %v7936
    %10702 = vmatmul.bf16.gmra.mxu0 %v4189
    %v10703 = vpop.f32.mrf.mxu0
    %v10704 = vadd.f32 %v10691, %v10703
    %v10705 = vpop.f32.mrf.mxu0
    %10706 = vdwg.mxu0
    %10707 = vmatpush.bf16.msra.mxu0 %v8041
    %10708 = vmatpush.bf16.msra.mxu0 %v8034
    %10709 = vmatpush.bf16.msra.mxu0 %v8027
    %10710 = vmatpush.bf16.msra.mxu0 %v8020
    %10711 = vmatpush.bf16.msra.mxu0 %v8013
    %10712 = vmatpush.bf16.msra.mxu0 %v8006
    %10713 = vmatpush.bf16.msra.mxu0 %v7999
    %10714 = vmatpush.bf16.msra.mxu0 %v7992
    %10715 = vmatmul.bf16.gmra.mxu0 %v4190
    %v10716 = vpop.f32.mrf.mxu0
    %v10717 = vadd.f32 %v10704, %v10716
    %v10718 = vpop.f32.mrf.mxu0
    %10719 = vdwg.mxu0
    %10720 = vmatpush.bf16.msra.mxu0 %v8097
    %10721 = vmatpush.bf16.msra.mxu0 %v8090
    %10722 = vmatpush.bf16.msra.mxu0 %v8083
    %10723 = vmatpush.bf16.msra.mxu0 %v8076
    %10724 = vmatpush.bf16.msra.mxu0 %v8069
    %10725 = vmatpush.bf16.msra.mxu0 %v8062
    %10726 = vmatpush.bf16.msra.mxu0 %v8055
    %10727 = vmatpush.bf16.msra.mxu0 %v8048
    %10728 = vmatmul.bf16.gmra.mxu0 %v4191
    %v10729 = vpop.f32.mrf.mxu0
    %v10730 = vadd.f32 %v10717, %v10729
    %v10731 = vpop.f32.mrf.mxu0
    %10732 = vdwg.mxu0
    %10733 = vmatpush.bf16.msra.mxu0 %v8153
    %10734 = vmatpush.bf16.msra.mxu0 %v8146
    %10735 = vmatpush.bf16.msra.mxu0 %v8139
    %10736 = vmatpush.bf16.msra.mxu0 %v8132
    %10737 = vmatpush.bf16.msra.mxu0 %v8125
    %10738 = vmatpush.bf16.msra.mxu0 %v8118
    %10739 = vmatpush.bf16.msra.mxu0 %v8111
    %10740 = vmatpush.bf16.msra.mxu0 %v8104
    %10741 = vmatmul.bf16.gmra.mxu0 %v4192
    %v10742 = vpop.f32.mrf.mxu0
    %v10743 = vadd.f32 %v10730, %v10742
    %v10744 = vpop.f32.mrf.mxu0
    %10745 = vdwg.mxu0
    %10746 = vmatpush.bf16.msra.mxu0 %v8209
    %10747 = vmatpush.bf16.msra.mxu0 %v8202
    %10748 = vmatpush.bf16.msra.mxu0 %v8195
    %10749 = vmatpush.bf16.msra.mxu0 %v8188
    %10750 = vmatpush.bf16.msra.mxu0 %v8181
    %10751 = vmatpush.bf16.msra.mxu0 %v8174
    %10752 = vmatpush.bf16.msra.mxu0 %v8167
    %10753 = vmatpush.bf16.msra.mxu0 %v8160
    %10754 = vmatmul.bf16.gmra.mxu0 %v4193
    %v10755 = vpop.f32.mrf.mxu0
    %v10756 = vadd.f32 %v10743, %v10755
    %v10757 = vpop.f32.mrf.mxu0
    %10758 = vdwg.mxu0
    %10759 = vmatpush.bf16.msra.mxu0 %v8265
    %10760 = vmatpush.bf16.msra.mxu0 %v8258
    %10761 = vmatpush.bf16.msra.mxu0 %v8251
    %10762 = vmatpush.bf16.msra.mxu0 %v8244
    %10763 = vmatpush.bf16.msra.mxu0 %v8237
    %10764 = vmatpush.bf16.msra.mxu0 %v8230
    %10765 = vmatpush.bf16.msra.mxu0 %v8223
    %10766 = vmatpush.bf16.msra.mxu0 %v8216
    %10767 = vmatmul.bf16.gmra.mxu0 %v4194
    %v10768 = vpop.f32.mrf.mxu0
    %v10769 = vadd.f32 %v10756, %v10768
    %v10770 = vpop.f32.mrf.mxu0
    %10771 = vdwg.mxu0
    %10772 = vmatpush.bf16.msra.mxu0 %v8321
    %10773 = vmatpush.bf16.msra.mxu0 %v8314
    %10774 = vmatpush.bf16.msra.mxu0 %v8307
    %10775 = vmatpush.bf16.msra.mxu0 %v8300
    %10776 = vmatpush.bf16.msra.mxu0 %v8293
    %10777 = vmatpush.bf16.msra.mxu0 %v8286
    %10778 = vmatpush.bf16.msra.mxu0 %v8279
    %10779 = vmatpush.bf16.msra.mxu0 %v8272
    %10780 = vmatmul.bf16.gmra.mxu0 %v4195
    %v10781 = vpop.f32.mrf.mxu0
    %v10782 = vadd.f32 %v10769, %v10781
    %v10783 = vpop.f32.mrf.mxu0
    %10784 = vdwg.mxu0
    %10785 = vmatpush.bf16.msra.mxu0 %v8377
    %10786 = vmatpush.bf16.msra.mxu0 %v8370
    %10787 = vmatpush.bf16.msra.mxu0 %v8363
    %10788 = vmatpush.bf16.msra.mxu0 %v8356
    %10789 = vmatpush.bf16.msra.mxu0 %v8349
    %10790 = vmatpush.bf16.msra.mxu0 %v8342
    %10791 = vmatpush.bf16.msra.mxu0 %v8335
    %10792 = vmatpush.bf16.msra.mxu0 %v8328
    %10793 = vmatmul.bf16.gmra.mxu0 %v4196
    %v10794 = vpop.f32.mrf.mxu0
    %v10795 = vadd.f32 %v10782, %v10794
    %v10796 = vpop.f32.mrf.mxu0
    %10797 = vdwg.mxu0
    %10798 = vmatpush.bf16.msra.mxu0 %v8433
    %10799 = vmatpush.bf16.msra.mxu0 %v8426
    %10800 = vmatpush.bf16.msra.mxu0 %v8419
    %10801 = vmatpush.bf16.msra.mxu0 %v8412
    %10802 = vmatpush.bf16.msra.mxu0 %v8405
    %10803 = vmatpush.bf16.msra.mxu0 %v8398
    %10804 = vmatpush.bf16.msra.mxu0 %v8391
    %10805 = vmatpush.bf16.msra.mxu0 %v8384
    %10806 = vmatmul.bf16.gmra.mxu0 %v4197
    %v10807 = vpop.f32.mrf.mxu0
    %v10808 = vadd.f32 %v10795, %v10807
    %v10809 = vpop.f32.mrf.mxu0
    %10810 = vdwg.mxu0
    %10811 = vmatpush.bf16.msra.mxu0 %v8489
    %10812 = vmatpush.bf16.msra.mxu0 %v8482
    %10813 = vmatpush.bf16.msra.mxu0 %v8475
    %10814 = vmatpush.bf16.msra.mxu0 %v8468
    %10815 = vmatpush.bf16.msra.mxu0 %v8461
    %10816 = vmatpush.bf16.msra.mxu0 %v8454
    %10817 = vmatpush.bf16.msra.mxu0 %v8447
    %10818 = vmatpush.bf16.msra.mxu0 %v8440
    %10819 = vmatmul.bf16.gmra.mxu0 %v4198
    %v10820 = vpop.f32.mrf.mxu0
    %v10821 = vadd.f32 %v10808, %v10820
    %v10822 = vpop.f32.mrf.mxu0
    %10823 = vdwg.mxu0
    %10824 = vmatpush.bf16.msra.mxu0 %v8545
    %10825 = vmatpush.bf16.msra.mxu0 %v8538
    %10826 = vmatpush.bf16.msra.mxu0 %v8531
    %10827 = vmatpush.bf16.msra.mxu0 %v8524
    %10828 = vmatpush.bf16.msra.mxu0 %v8517
    %10829 = vmatpush.bf16.msra.mxu0 %v8510
    %10830 = vmatpush.bf16.msra.mxu0 %v8503
    %10831 = vmatpush.bf16.msra.mxu0 %v8496
    %10832 = vmatmul.bf16.gmra.mxu0 %v4199
    %v10833 = vpop.f32.mrf.mxu0
    %v10834 = vadd.f32 %v10821, %v10833
    %v10835 = vpop.f32.mrf.mxu0
    %10836 = vdwg.mxu0
    %10837 = vmatpush.bf16.msra.mxu0 %v8601
    %10838 = vmatpush.bf16.msra.mxu0 %v8594
    %10839 = vmatpush.bf16.msra.mxu0 %v8587
    %10840 = vmatpush.bf16.msra.mxu0 %v8580
    %10841 = vmatpush.bf16.msra.mxu0 %v8573
    %10842 = vmatpush.bf16.msra.mxu0 %v8566
    %10843 = vmatpush.bf16.msra.mxu0 %v8559
    %10844 = vmatpush.bf16.msra.mxu0 %v8552
    %10845 = vmatmul.bf16.gmra.mxu0 %v4200
    %v10846 = vpop.f32.mrf.mxu0
    %v10847 = vadd.f32 %v10834, %v10846
    %v10848 = vpop.f32.mrf.mxu0
    %10849 = vdwg.mxu0
    %10850 = vmatpush.bf16.msra.mxu0 %v8657
    %10851 = vmatpush.bf16.msra.mxu0 %v8650
    %10852 = vmatpush.bf16.msra.mxu0 %v8643
    %10853 = vmatpush.bf16.msra.mxu0 %v8636
    %10854 = vmatpush.bf16.msra.mxu0 %v8629
    %10855 = vmatpush.bf16.msra.mxu0 %v8622
    %10856 = vmatpush.bf16.msra.mxu0 %v8615
    %10857 = vmatpush.bf16.msra.mxu0 %v8608
    %10858 = vmatmul.bf16.gmra.mxu0 %v4201
    %v10859 = vpop.f32.mrf.mxu0
    %v10860 = vadd.f32 %v10847, %v10859
    %v10861 = vpop.f32.mrf.mxu0
    %10862 = vdwg.mxu0
    %vm10863 = vcmp.gt.f32.partialorder %v9690, 0.0
    %vm10864 = vcmp.gt.f32.partialorder %v9885, 0.0
    %vm10865 = vcmp.gt.f32.partialorder %v10080, 0.0
    %vm10866 = vcmp.gt.f32.partialorder %v10275, 0.0
    %vm10867 = vcmp.gt.f32.partialorder %v10470, 0.0
    %vm10868 = vcmp.gt.f32.partialorder %v10665, 0.0
    %vm10869 = vcmp.gt.f32.partialorder %v10860, 0.0
    %v10870 = vmin.f32 %v9690, 0.0
    %v10871 = vmin.f32 %v9885, 0.0
    %v10872 = vmin.f32 %v10080, 0.0
    %v10873 = vmin.f32 %v10275, 0.0
    %v10874 = vmin.f32 %v10470, 0.0
    %v10875 = vmin.f32 %v10665, 0.0
    %v10876 = vmin.f32 %v10860, 0.0
    %v10877 = vmul.f32 %v10870, 1.442695
    %v10878 = vpow.pop %v10877
    %v10879 = vmul.f32 %v10871, 1.442695
    %v10880 = vpow.pop %v10879
    %v10881 = vmul.f32 %v10872, 1.442695
    %v10882 = vpow.pop %v10881
    %v10883 = vmul.f32 %v10873, 1.442695
    %v10884 = vpow.pop %v10883
    %v10885 = vmul.f32 %v10874, 1.442695
    %v10886 = vpow.pop %v10885
    %v10887 = vmul.f32 %v10875, 1.442695
    %v10888 = vpow.pop %v10887
    %v10889 = vmul.f32 %v10876, 1.442695
    %v10890 = vpow.pop %v10889
    %v10891 = vsub.f32 %v10878, 1.0
    %v10892 = vsub.f32 %v10880, 1.0
    %v10893 = vsub.f32 %v10882, 1.0
    %v10894 = vsub.f32 %v10884, 1.0
    %v10895 = vsub.f32 %v10886, 1.0
    %v10896 = vsub.f32 %v10888, 1.0
    %v10897 = vsub.f32 %v10890, 1.0
    %v10898 = vsel %vm10863, %v9690, %v10891
    %v10899 = vsel %vm10864, %v9885, %v10892
    %v10900 = vsel %vm10865, %v10080, %v10893
    %v10901 = vsel %vm10866, %v10275, %v10894
    %v10902 = vsel %vm10867, %v10470, %v10895
    %v10903 = vsel %vm10868, %v10665, %v10896
    %v10904 = vsel %vm10869, %v10860, %v10897
    %v10912 = vrot.slane %v10899, 6
    %v10913 = vrot.slane %v10900, 4
    %v10914 = vrot.slane %v10901, 2
    %v10915 = vrot.slane %v10903, 6
    %v10916 = vrot.slane %v10904, 4
    %v10917 = vsel %vm171, %v10898, %v10912
    %vm10918 = vcmask 1045508
    %v10919 = vsel %vm10918, %v10913, %v10914
    %vm10920 = vcmask 1043456
    %v10921 = vsel %vm10920, %v10917, %v10919
    %v10922 = vsel %vm171, %v10902, %v10915
    %v10923 = vsel %vm10920, %v10922, %v10916
    %10926 = vst [vmem:[%s9] sm:$0xff] %v10921
    %10927 = vst [vmem:[%s9 + $0x8] sm:$0x3f] %v10923
    // Predicated region
    $region74: #{mnist_net_forward.1} parent=1 // pred_check
      _
    $region75: #{mnist_net_forward.1} parent=1 // pred_check_branch
      %10929 = sbr.rel (0) target = $region77
    $region76: #{mnist_net_forward.1} parent=1 // pred_region
      _
    $region77: #{mnist_net_forward.1} parent=1 // pred_fallthru
      _
    // Predicated region
    $region78: #{mnist_net_forward.1} parent=1 // pred_check
      _
    $region79: #{mnist_net_forward.1} parent=1 // pred_check_branch
      %10931 = sbr.rel (0) target = $region81
    $region80: #{mnist_net_forward.1} parent=1 // pred_region
      _
    $region81: #{mnist_net_forward.1} parent=1 // pred_fallthru
      _
    %10932 = vsyncpa [#allocation3], 1
    %10933 = vsyncpa [#allocation5], 1
    %10934 = vsyncpa [#allocation8], 1
    %10935 = vsyncpa [#allocation11], 1
    %10936 = vsyncpa [#allocation14], 1

</llo_original>
